<compile_context>
chip_gen: v7x
topology: tpu7x:2x2x1
jax: 0.10.0
libtpu: 0.0.40
codegen_flags: <defaults>
</compile_context>

<pallas_src>
import functools

import jax
import jax.numpy as jnp
import numpy as np
from jax import lax
from jax.experimental import pallas as pl
from jax.experimental.pallas import tpu as pltpu

C_BASE = 16                       # `c` in the reference module
ACT_DTYPE = jnp.bfloat16          # activation / MXU operand dtype (f32 accumulation)
_CONV_STEP_BYTES = 5 * 2 ** 20    # target block bytes per conv grid step (x2 buffered)
_WARP_TP = 2048                   # max pixels per warp grid step
_WARP_PALLAS_MAX_IMG_BYTES = 8 * 2 ** 20


def _round_up(x, m):
    return ((x + m - 1) // m) * m


# ----------------------------------------------------------------------------
# Pallas kernel 1: 3x3 conv (pad=1) + bias + PReLU, in-kernel im2col taps.
# ----------------------------------------------------------------------------
def _make_conv_kernel(taps, cin, cout, wo, tr):
    """taps: 9 x (view_idx, col_start, chan_start), tap-major (ky*3+kx) order."""

    def kernel(v0_ref, v1_ref, v2_ref, w_ref, b_ref, a_ref, o_ref):
        views = (v0_ref, v1_ref, v2_ref)

        def row_body(i, carry):
            acc = jnp.zeros((wo, cout), jnp.float32)
            for t, (vi, cs, ch) in enumerate(taps):
                slab = views[vi][i, cs:cs + wo, ch:ch + cin]       # (wo, cin) bf16
                wblk = w_ref[t * cin:(t + 1) * cin, :]             # (cin, cout) bf16
                acc = acc + jnp.dot(slab, wblk,
                                    preferred_element_type=jnp.float32)
            acc = acc + b_ref[...]
            # PReLU: x if x >= 0 else alpha * x (per output channel alpha)
            o_ref[i] = jnp.where(acc >= 0.0, acc, a_ref[...] * acc).astype(o_ref.dtype)
            return carry

        lax.fori_loop(0, tr, row_body, 0)

    return kernel


def _rows_per_step(m, row_bytes):
    """Rows of output per grid step, sized to ~_CONV_STEP_BYTES of block data."""
    tr = max(1, min(m, 256, _CONV_STEP_BYTES // max(row_bytes, 1)))
    if m % tr:
        # prefer an exact divisor close to tr so the views need no pad copy
        for d in range(tr, 0, -1):
            if m % d == 0:
                if 2 * d >= tr:
                    return d
                break
    return tr


def conv3x3_prelu(x, cp, stride):
    """3x3 conv (padding=1, given stride) + bias + PReLU.  x: NHWC, cp: prepared."""
    B, H, W, Cin = x.shape
    w_mat = cp["w"]
    cin = w_mat.shape[0] // 9          # channel count the (padded) weights expect
    cout = w_mat.shape[1]
    if Cin < cin:                      # e.g. RGB 3 -> 8 (lane/DMA friendliness)
        x = jnp.pad(x, ((0, 0), (0, 0), (0, 0), (0, cin - Cin)))
    x = x.astype(ACT_DTYPE)

    Ho = (H - 1) // stride + 1
    Wo = (W - 1) // stride + 1

    xp = jnp.pad(x, ((0, 0), (1, 1), (1, 1), (0, 0)))
    if stride == 2 and xp.shape[2] % 2:
        xp = jnp.pad(xp, ((0, 0), (0, 0), (0, 1), (0, 0)))

    # Three tap-row views (glue).  Column taps are taken inside the kernel, so
    # HBM traffic is ~3x (stride 1) / ~1.5x (stride 2) of the input instead of
    # the 9x-expanded im2col matrix of the previous version.
    views = []
    for ky in range(3):
        v = xp[:, ky: ky + (Ho - 1) * stride + 1: stride, :, :]    # (B, Ho, Wp, cin)
        if stride == 2:
            # fold column parity into channels: col 2*w2 + h -> (w2, h*cin + c)
            v = v.reshape(B, Ho, v.shape[2] // 2, 2 * cin)
        views.append(v.reshape(B * Ho, v.shape[2], v.shape[3]))
    Wv, Cv = views[0].shape[1], views[0].shape[2]

    taps = []
    for ky in range(3):
        for kx in range(3):
            if stride == 1:
                taps.append((ky, kx, 0))
            else:
                taps.append((ky, kx // 2, (kx % 2) * cin))

    M = B * Ho
    row_bytes = (3 * Wv * Cv + Wo * cout) * 2
    tr = _rows_per_step(M, row_bytes)
    Mpad = _round_up(M, tr)
    if Mpad != M:
        views = [jnp.pad(v, ((0, Mpad - M), (0, 0), (0, 0))) for v in views]

    vmem = int(min(48 * 2 ** 20,
                   max(32 * 2 ** 20,
                       2 * tr * row_bytes + w_mat.size * 2 + (4 << 20))))
    cost = pl.CostEstimate(
        flops=2 * Mpad * Wo * 9 * cin * cout,
        transcendentals=0,
        bytes_accessed=(3 * Mpad * Wv * Cv + Mpad * Wo * cout) * 2 + w_mat.size * 2)

    out = pl.pallas_call(
        _make_conv_kernel(tuple(taps), cin, cout, Wo, tr),
        out_shape=jax.ShapeDtypeStruct((Mpad, Wo, cout), ACT_DTYPE),
        grid=(Mpad // tr,),
        in_specs=[
            pl.BlockSpec((tr, Wv, Cv), lambda r: (r, 0, 0)),
            pl.BlockSpec((tr, Wv, Cv), lambda r: (r, 0, 0)),
            pl.BlockSpec((tr, Wv, Cv), lambda r: (r, 0, 0)),
            pl.BlockSpec(w_mat.shape, lambda r: (0, 0)),
            pl.BlockSpec((1, cout), lambda r: (0, 0)),
            pl.BlockSpec((1, cout), lambda r: (0, 0)),
        ],
        out_specs=pl.BlockSpec((tr, Wo, cout), lambda r: (r, 0, 0)),
        compiler_params=pltpu.CompilerParams(
            dimension_semantics=("parallel",),
            vmem_limit_bytes=vmem),
        cost_estimate=cost,
    )(views[0], views[1], views[2], w_mat, cp["b"], cp["a"])
    return out[:M].reshape(B, Ho, Wo, cout)


# ----------------------------------------------------------------------------
# Pallas kernel 2: warp == grid_sample(bilinear, padding='border',
#                  align_corners=True) as a tiled 4-tap gather + weighted sum.
# ----------------------------------------------------------------------------
def _make_warp_kernel(H, W, TP):
    def kernel(x_ref, px_ref, py_ref, o_ref):
        img = x_ref[0]                                   # (P, C) bf16, resident across tiles
        # border padding: clamp sample coordinates into the image
        px = jnp.clip(px_ref[0], 0.0, W - 1.0)           # (1, TP)
        py = jnp.clip(py_ref[0], 0.0, H - 1.0)
        x0f = jnp.floor(px)
        y0f = jnp.floor(py)
        x0 = x0f.astype(jnp.int32)
        y0 = y0f.astype(jnp.int32)
        x1 = jnp.minimum(x0 + 1, W - 1)
        y1 = jnp.minimum(y0 + 1, H - 1)
        # only two lane->sublane relayouts; the 4 bilinear weights are VPU ops
        wx = (px - x0f).reshape(TP, 1)
        wy = (py - y0f).reshape(TP, 1)
        w00 = (1.0 - wx) * (1.0 - wy)
        w01 = wx * (1.0 - wy)
        w10 = (1.0 - wx) * wy
        w11 = wx * wy

        def tap(yi, xi):
            flat = (yi * W + xi).reshape(TP)             # in-bounds by construction
            return jnp.take(img, flat, axis=0,
                            mode="promise_in_bounds").astype(jnp.float32)

        out = (tap(y0, x0) * w00 + tap(y0, x1) * w01
               + tap(y1, x0) * w10 + tap(y1, x1) * w11)
        o_ref[0] = out.astype(o_ref.dtype)

    return kernel


def _pixel_coords(flow):
    """Sample coords in pixel units (normalized grid+flow collapses to j+fx, i+fy)."""
    B, H, W, _ = flow.shape
    jj = jnp.arange(W, dtype=jnp.float32)[None, None, :]
    ii = jnp.arange(H, dtype=jnp.float32)[None, :, None]
    px = jj + flow[..., 0].astype(jnp.float32)
    py = ii + flow[..., 1].astype(jnp.float32)
    return px, py


def warp_pallas(x, flow):
    """x: (B,H,W,C) features, flow: (B,H,W,2) in pixel units of x's resolution."""
    B, H, W, C = x.shape
    P = H * W
    TP = min(_WARP_TP, _round_up(P, 128))
    Ppad = _round_up(P, TP)
    px, py = _pixel_coords(flow)
    px = px.reshape(B, 1, P)
    py = py.reshape(B, 1, P)
    if Ppad != P:
        pad = ((0, 0), (0, 0), (0, Ppad - P))
        px = jnp.pad(px, pad)
        py = jnp.pad(py, pad)
    xb = x.reshape(B, P, C)

    img_bytes = P * C * xb.dtype.itemsize
    vmem = int(min(48 * 2 ** 20,
                   max(16 * 2 ** 20,
                       2 * img_bytes + 2 * TP * C * 4 + 8 * TP * 4 + (4 << 20))))
    cost = pl.CostEstimate(
        flops=B * Ppad * (8 * C + 32),
        transcendentals=0,
        bytes_accessed=B * (img_bytes + 2 * Ppad * 4 + Ppad * C * 4))

    out = pl.pallas_call(
        _make_warp_kernel(H, W, TP),
        out_shape=jax.ShapeDtypeStruct((B, Ppad, C), jnp.float32),
        grid=(B, Ppad // TP),
        in_specs=[
            pl.BlockSpec((1, P, C), lambda b, t: (b, 0, 0)),     # image resident over t
            pl.BlockSpec((1, 1, TP), lambda b, t: (b, 0, t)),
            pl.BlockSpec((1, 1, TP), lambda b, t: (b, 0, t)),
        ],
        out_specs=pl.BlockSpec((1, TP, C), lambda b, t: (b, t, 0)),
        compiler_params=pltpu.CompilerParams(
            dimension_semantics=("parallel", "parallel"),
            vmem_limit_bytes=vmem),
        cost_estimate=cost,
    )(xb, px, py)
    return out[:, :P, :].reshape(B, H, W, C)


def warp_reference(x, flow):
    """Pure-XLA warp with identical semantics (fallback for huge / non-lowering shapes)."""
    B, H, W, C = x.shape
    px, py = _pixel_coords(flow)
    px = jnp.clip(px, 0.0, W - 1.0)
    py = jnp.clip(py, 0.0, H - 1.0)
    x0f = jnp.floor(px)
    y0f = jnp.floor(py)
    wx = (px - x0f)[..., None]
    wy = (py - y0f)[..., None]
    x0 = x0f.astype(jnp.int32)
    y0 = y0f.astype(jnp.int32)
    x1 = jnp.minimum(x0 + 1, W - 1)
    y1 = jnp.minimum(y0 + 1, H - 1)
    bidx = jnp.arange(B)[:, None, None]
    xf = x.astype(jnp.float32)

    def tap(yi, xi):
        return xf[bidx, yi, xi]                           # (B,H,W,C)

    return (tap(y0, x0) * (1.0 - wx) * (1.0 - wy) + tap(y0, x1) * wx * (1.0 - wy)
            + tap(y1, x0) * (1.0 - wx) * wy + tap(y1, x1) * wx * wy)


# Per-shape, compile-only (no device execution) probe + VMEM size gate.
_WARP_COMPILE_CACHE = {}


def _use_pallas_warp(x_shape, dtype):
    B, H, W, C = x_shape
    if H * W * C * jnp.dtype(dtype).itemsize > _WARP_PALLAS_MAX_IMG_BYTES:
        # TODO(synk): HBM-resident DMA-gather warp for very large level-1 images
        # (v7x only has 64 MiB VMEM per core); fall back to the XLA gather warp.
        return False
    key = (tuple(x_shape), jnp.dtype(dtype).name)
    if key not in _WARP_COMPILE_CACHE:
        try:
            jax.jit(warp_pallas).lower(
                jax.ShapeDtypeStruct(tuple(x_shape), dtype),
                jax.ShapeDtypeStruct((B, H, W, 2), jnp.float32)).compile()
            _WARP_COMPILE_CACHE[key] = True
        except Exception:
            _WARP_COMPILE_CACHE[key] = False
    return _WARP_COMPILE_CACHE[key]


# ----------------------------------------------------------------------------
# Glue: F.interpolate(flow, scale_factor=0.5, bilinear, align_corners=False)*0.5
# Exact 0.5x bilinear downsample == 2x2 average (no border effects).
# ----------------------------------------------------------------------------
def downsample_flow(flow):
    B, H, W, C = flow.shape
    f = flow.reshape(B, H // 2, 2, W // 2, 2, C).mean(axis=(2, 4))
    return f * 0.5


# ----------------------------------------------------------------------------
# Parameters: synthetic init (PReLU alpha = 0.25 like PyTorch) + one-time prep
# of matmul-ready bf16 weights (hoisted out of the forward pass).
# ----------------------------------------------------------------------------
def init_params(key):
    chans = [(3, C_BASE), (C_BASE, 2 * C_BASE), (2 * C_BASE, 4 * C_BASE),
             (4 * C_BASE, 8 * C_BASE)]
    params = []
    for (cin, cout) in chans:
        key, k1, k2, k3, k4 = jax.random.split(key, 5)
        params.append({
            "w1": 0.1 * jax.random.normal(k1, (cout, cin, 3, 3), jnp.float32),
            "b1": 0.01 * jax.random.normal(k2, (cout,), jnp.float32),
            "a1": jnp.full((cout,), 0.25, jnp.float32),
            "w2": 0.1 * jax.random.normal(k3, (cout, cout, 3, 3), jnp.float32),
            "b2": 0.01 * jax.random.normal(k4, (cout,), jnp.float32),
            "a2": jnp.full((cout,), 0.25, jnp.float32),
        })
    return params


def _prep_conv(w, b, a):
    cout, cin = int(w.shape[0]), int(w.shape[1])
    cin_p = max(8, _round_up(cin, 8))       # pad tiny Cin (RGB) for lane/DMA friendliness
    # (Cout,Cin,3,3) -> (ky,kx,cin,cout), zero-pad cin, flatten tap-major rows.
    w_mat = jnp.transpose(w, (2, 3, 1, 0))
    if cin_p != cin:
        w_mat = jnp.pad(w_mat, ((0, 0), (0, 0), (0, cin_p - cin), (0, 0)))
    w_mat = w_mat.reshape(9 * cin_p, cout).astype(ACT_DTYPE)
    return {"w": w_mat,
            "b": b.reshape(1, cout).astype(jnp.float32),
            "a": a.reshape(1, cout).astype(jnp.float32)}


def prepare_params(raw):
    return [{"conv1": _prep_conv(p["w1"], p["b1"], p["a1"]),
             "conv2": _prep_conv(p["w2"], p["b2"], p["a2"])} for p in raw]


# ----------------------------------------------------------------------------
# Contextnet forward
# ----------------------------------------------------------------------------
@functools.partial(jax.jit, static_argnames=("warp_fns",))
def _forward_impl(x_nchw, flow_nchw, params, warp_fns):
    x = jnp.transpose(x_nchw, (0, 2, 3, 1)).astype(ACT_DTYPE)     # NCHW -> NHWC bf16
    flow = jnp.transpose(flow_nchw, (0, 2, 3, 1)).astype(jnp.float32)
    feats = []
    for cp, warp_fn in zip(params, warp_fns):
        # Conv2 block: stride-2 conv+PReLU then stride-1 conv+PReLU.
        # TODO(synk): fuse the two convs of a level into one pallas_call to skip
        # the intermediate activation's HBM round trip.
        x = conv3x3_prelu(x, cp["conv1"], stride=2)
        x = conv3x3_prelu(x, cp["conv2"], stride=1)
        flow = downsample_flow(flow)
        feats.append(warp_fn(x, flow))
    return [jnp.transpose(f, (0, 3, 1, 2)) for f in feats]        # back to NCHW, f32


def contextnet_forward(x_nchw, flow_nchw, params):
    B, _, H, W = x_nchw.shape
    warp_fns = []
    h, w = H, W
    for lvl in range(4):
        h = (h - 1) // 2 + 1
        w = (w - 1) // 2 + 1
        ch = C_BASE << lvl
        warp_fns.append(warp_pallas if _use_pallas_warp((B, h, w, ch), ACT_DTYPE)
                        else warp_reference)
    return _forward_impl(x_nchw, flow_nchw, params, warp_fns=tuple(warp_fns))


# ----------------------------------------------------------------------------
# XLA conv reference (self-check only)
# ----------------------------------------------------------------------------
def _conv_reference(x_nhwc, w, b, a, stride):
    xf = x_nhwc.astype(jnp.float32)
    wf = w.astype(ACT_DTYPE).astype(jnp.float32)     # match the kernel's bf16 weights
    w_hwio = jnp.transpose(wf, (2, 3, 1, 0))
    y = lax.conv_general_dilated(xf, w_hwio, window_strides=(stride, stride),
                                 padding=((1, 1), (1, 1)),
                                 dimension_numbers=("NHWC", "HWIO", "NHWC"))
    y = y + b[None, None, None, :]
    return jnp.where(y >= 0.0, y, a[None, None, None, :] * y)


if __name__ == "__main__":
    key = jax.random.PRNGKey(0)
    kx, kf, kp, kw1, kw2 = jax.random.split(key, 5)

    B, H, W = 2, 32, 32  # keeps the deepest warp at 2x2 (well-defined pyramid)
    x = jax.random.normal(kx, (B, 3, H, W), jnp.float32)
    flow = 2.0 * jax.random.normal(kf, (B, 2, H, W), jnp.float32)
    raw = init_params(kp)
    params = prepare_params(raw)

    feats = contextnet_forward(x, flow, params)
    feats = jax.block_until_ready(feats)

    f1, f2, f3, f4 = feats
    assert f1.shape == (B, C_BASE, H // 2, W // 2)
    assert f2.shape == (B, 2 * C_BASE, H // 4, W // 4)
    assert f3.shape == (B, 4 * C_BASE, H // 8, W // 8)
    assert f4.shape == (B, 8 * C_BASE, H // 16, W // 16)
    assert all(bool(jnp.all(jnp.isfinite(f))) for f in feats)

    # Self-check 1: Pallas conv vs XLA conv (bf16 operands, f32 accumulation).
    x_nhwc = jnp.transpose(x, (0, 2, 3, 1)).astype(ACT_DTYPE)
    got = conv3x3_prelu(x_nhwc, params[0]["conv1"], stride=2).astype(jnp.float32)
    want = _conv_reference(x_nhwc, raw[0]["w1"], raw[0]["b1"], raw[0]["a1"], stride=2)
    np.testing.assert_allclose(np.asarray(got), np.asarray(want), rtol=5e-2, atol=5e-2)

    # Self-check 2: Pallas warp vs XLA warp on the level-1 feature shape.
    xw = jax.random.normal(kw1, (B, H // 2, W // 2, C_BASE), jnp.float32).astype(ACT_DTYPE)
    fw = 3.0 * jax.random.normal(kw2, (B, H // 2, W // 2, 2), jnp.float32)
    if _use_pallas_warp(xw.shape, xw.dtype):
        np.testing.assert_allclose(np.asarray(warp_pallas(xw, fw)),
                                   np.asarray(warp_reference(xw, fw)),
                                   rtol=2e-2, atol=2e-2)

    print("KERNEL_OK")
</pallas_src>

<mosaic_0001>
module attributes {stable_mosaic.version = 11 : i64} {
  func.func @kernel(%arg0: i32, %arg1: memref<32x17x16xbf16, #tpu.memory_space<vmem>>, %arg2: memref<32x17x16xbf16, #tpu.memory_space<vmem>>, %arg3: memref<32x17x16xbf16, #tpu.memory_space<vmem>>, %arg4: memref<72x16xbf16, #tpu.memory_space<vmem>>, %arg5: memref<1x16xf32, #tpu.memory_space<vmem>>, %arg6: memref<1x16xf32, #tpu.memory_space<vmem>>, %arg7: memref<32x16x16xbf16, #tpu.memory_space<vmem>>) attributes {dimension_semantics = [#tpu.dimension_semantics<parallel>], iteration_bounds = array<i64: 1>, scalar_prefetch = 0 : i64, scratch_operands = 0 : i64, tpu.core_type = #tpu.core_type<tc>, window_params = [{transform_indices = @transform_0, window_bounds = array<i64: 32, 17, 16>}, {transform_indices = @transform_1, window_bounds = array<i64: 32, 17, 16>}, {transform_indices = @transform_2, window_bounds = array<i64: 32, 17, 16>}, {pipeline_mode = #tpu.pipeline_mode<synchronous>, transform_indices = @transform_3, window_bounds = array<i64: 72, 16>}, {pipeline_mode = #tpu.pipeline_mode<synchronous>, transform_indices = @transform_4, window_bounds = array<i64: 1, 16>}, {pipeline_mode = #tpu.pipeline_mode<synchronous>, transform_indices = @transform_5, window_bounds = array<i64: 1, 16>}, {transform_indices = @transform_6, window_bounds = array<i64: 32, 16, 16>}]} {
    %c0_i32 = arith.constant 0 : i32
    %c32_i32 = arith.constant 32 : i32
    %0 = arith.addi %c0_i32, %c32_i32 : i32
    %c1_i32 = arith.constant 1 : i32
    scf.for %arg8 = %c0_i32 to %0 step %c1_i32  : i32 {
      %cst = arith.constant 0.000000e+00 : f32
      %1 = vector.broadcast %cst : f32 to vector<16x16xf32>
      %2 = arith.index_cast %arg8 : i32 to index
      %c0 = arith.constant 0 : index
      %c0_1 = arith.constant 0 : index
      %3 = vector.load %arg1[%2, %c0, %c0_1] : memref<32x17x16xbf16, #tpu.memory_space<vmem>>, vector<1x16x8xbf16>
      %4 = vector.shape_cast %3 : vector<1x16x8xbf16> to vector<16x8xbf16>
      %c0_2 = arith.constant 0 : index
      %c0_3 = arith.constant 0 : index
      %5 = vector.load %arg4[%c0_2, %c0_3] : memref<72x16xbf16, #tpu.memory_space<vmem>>, vector<8x16xbf16>
      %cst_4 = arith.constant dense<0.000000e+00> : vector<16x16xf32>
      %6 = tpu.matmul %4, %5, %cst_4 {dimension_numbers = #tpu.dot_dimension_numbers<[1], [0], [0], [1], [0, 0, 1, 1], [], []>} : vector<16x8xbf16>, vector<8x16xbf16>, vector<16x16xf32> -> vector<16x16xf32>
      %7 = arith.addf %1, %6 : vector<16x16xf32>
      %8 = arith.index_cast %arg8 : i32 to index
      %c0_5 = arith.constant 0 : index
      %c8 = arith.constant 8 : index
      %9 = vector.load %arg1[%8, %c0_5, %c8] : memref<32x17x16xbf16, #tpu.memory_space<vmem>>, vector<1x16x8xbf16>
      %10 = vector.shape_cast %9 : vector<1x16x8xbf16> to vector<16x8xbf16>
      %c8_6 = arith.constant 8 : index
      %c0_7 = arith.constant 0 : index
      %11 = vector.load %arg4[%c8_6, %c0_7] : memref<72x16xbf16, #tpu.memory_space<vmem>>, vector<8x16xbf16>
      %cst_8 = arith.constant dense<0.000000e+00> : vector<16x16xf32>
      %12 = tpu.matmul %10, %11, %cst_8 {dimension_numbers = #tpu.dot_dimension_numbers<[1], [0], [0], [1], [0, 0, 1, 1], [], []>} : vector<16x8xbf16>, vector<8x16xbf16>, vector<16x16xf32> -> vector<16x16xf32>
      %13 = arith.addf %7, %12 : vector<16x16xf32>
      %14 = arith.index_cast %arg8 : i32 to index
      %c1 = arith.constant 1 : index
      %c0_9 = arith.constant 0 : index
      %15 = vector.load %arg1[%14, %c1, %c0_9] : memref<32x17x16xbf16, #tpu.memory_space<vmem>>, vector<1x16x8xbf16>
      %16 = vector.shape_cast %15 : vector<1x16x8xbf16> to vector<16x8xbf16>
      %c16 = arith.constant 16 : index
      %c0_10 = arith.constant 0 : index
      %17 = vector.load %arg4[%c16, %c0_10] : memref<72x16xbf16, #tpu.memory_space<vmem>>, vector<8x16xbf16>
      %cst_11 = arith.constant dense<0.000000e+00> : vector<16x16xf32>
      %18 = tpu.matmul %16, %17, %cst_11 {dimension_numbers = #tpu.dot_dimension_numbers<[1], [0], [0], [1], [0, 0, 1, 1], [], []>} : vector<16x8xbf16>, vector<8x16xbf16>, vector<16x16xf32> -> vector<16x16xf32>
      %19 = arith.addf %13, %18 : vector<16x16xf32>
      %20 = arith.index_cast %arg8 : i32 to index
      %c0_12 = arith.constant 0 : index
      %c0_13 = arith.constant 0 : index
      %21 = vector.load %arg2[%20, %c0_12, %c0_13] : memref<32x17x16xbf16, #tpu.memory_space<vmem>>, vector<1x16x8xbf16>
      %22 = vector.shape_cast %21 : vector<1x16x8xbf16> to vector<16x8xbf16>
      %c24 = arith.constant 24 : index
      %c0_14 = arith.constant 0 : index
      %23 = vector.load %arg4[%c24, %c0_14] : memref<72x16xbf16, #tpu.memory_space<vmem>>, vector<8x16xbf16>
      %cst_15 = arith.constant dense<0.000000e+00> : vector<16x16xf32>
      %24 = tpu.matmul %22, %23, %cst_15 {dimension_numbers = #tpu.dot_dimension_numbers<[1], [0], [0], [1], [0, 0, 1, 1], [], []>} : vector<16x8xbf16>, vector<8x16xbf16>, vector<16x16xf32> -> vector<16x16xf32>
      %25 = arith.addf %19, %24 : vector<16x16xf32>
      %26 = arith.index_cast %arg8 : i32 to index
      %c0_16 = arith.constant 0 : index
      %c8_17 = arith.constant 8 : index
      %27 = vector.load %arg2[%26, %c0_16, %c8_17] : memref<32x17x16xbf16, #tpu.memory_space<vmem>>, vector<1x16x8xbf16>
      %28 = vector.shape_cast %27 : vector<1x16x8xbf16> to vector<16x8xbf16>
      %c32 = arith.constant 32 : index
      %c0_18 = arith.constant 0 : index
      %29 = vector.load %arg4[%c32, %c0_18] : memref<72x16xbf16, #tpu.memory_space<vmem>>, vector<8x16xbf16>
      %cst_19 = arith.constant dense<0.000000e+00> : vector<16x16xf32>
      %30 = tpu.matmul %28, %29, %cst_19 {dimension_numbers = #tpu.dot_dimension_numbers<[1], [0], [0], [1], [0, 0, 1, 1], [], []>} : vector<16x8xbf16>, vector<8x16xbf16>, vector<16x16xf32> -> vector<16x16xf32>
      %31 = arith.addf %25, %30 : vector<16x16xf32>
      %32 = arith.index_cast %arg8 : i32 to index
      %c1_20 = arith.constant 1 : index
      %c0_21 = arith.constant 0 : index
      %33 = vector.load %arg2[%32, %c1_20, %c0_21] : memref<32x17x16xbf16, #tpu.memory_space<vmem>>, vector<1x16x8xbf16>
      %34 = vector.shape_cast %33 : vector<1x16x8xbf16> to vector<16x8xbf16>
      %c40 = arith.constant 40 : index
      %c0_22 = arith.constant 0 : index
      %35 = vector.load %arg4[%c40, %c0_22] : memref<72x16xbf16, #tpu.memory_space<vmem>>, vector<8x16xbf16>
      %cst_23 = arith.constant dense<0.000000e+00> : vector<16x16xf32>
      %36 = tpu.matmul %34, %35, %cst_23 {dimension_numbers = #tpu.dot_dimension_numbers<[1], [0], [0], [1], [0, 0, 1, 1], [], []>} : vector<16x8xbf16>, vector<8x16xbf16>, vector<16x16xf32> -> vector<16x16xf32>
      %37 = arith.addf %31, %36 : vector<16x16xf32>
      %38 = arith.index_cast %arg8 : i32 to index
      %c0_24 = arith.constant 0 : index
      %c0_25 = arith.constant 0 : index
      %39 = vector.load %arg3[%38, %c0_24, %c0_25] : memref<32x17x16xbf16, #tpu.memory_space<vmem>>, vector<1x16x8xbf16>
      %40 = vector.shape_cast %39 : vector<1x16x8xbf16> to vector<16x8xbf16>
      %c48 = arith.constant 48 : index
      %c0_26 = arith.constant 0 : index
      %41 = vector.load %arg4[%c48, %c0_26] : memref<72x16xbf16, #tpu.memory_space<vmem>>, vector<8x16xbf16>
      %cst_27 = arith.constant dense<0.000000e+00> : vector<16x16xf32>
      %42 = tpu.matmul %40, %41, %cst_27 {dimension_numbers = #tpu.dot_dimension_numbers<[1], [0], [0], [1], [0, 0, 1, 1], [], []>} : vector<16x8xbf16>, vector<8x16xbf16>, vector<16x16xf32> -> vector<16x16xf32>
      %43 = arith.addf %37, %42 : vector<16x16xf32>
      %44 = arith.index_cast %arg8 : i32 to index
      %c0_28 = arith.constant 0 : index
      %c8_29 = arith.constant 8 : index
      %45 = vector.load %arg3[%44, %c0_28, %c8_29] : memref<32x17x16xbf16, #tpu.memory_space<vmem>>, vector<1x16x8xbf16>
      %46 = vector.shape_cast %45 : vector<1x16x8xbf16> to vector<16x8xbf16>
      %c56 = arith.constant 56 : index
      %c0_30 = arith.constant 0 : index
      %47 = vector.load %arg4[%c56, %c0_30] : memref<72x16xbf16, #tpu.memory_space<vmem>>, vector<8x16xbf16>
      %cst_31 = arith.constant dense<0.000000e+00> : vector<16x16xf32>
      %48 = tpu.matmul %46, %47, %cst_31 {dimension_numbers = #tpu.dot_dimension_numbers<[1], [0], [0], [1], [0, 0, 1, 1], [], []>} : vector<16x8xbf16>, vector<8x16xbf16>, vector<16x16xf32> -> vector<16x16xf32>
      %49 = arith.addf %43, %48 : vector<16x16xf32>
      %50 = arith.index_cast %arg8 : i32 to index
      %c1_32 = arith.constant 1 : index
      %c0_33 = arith.constant 0 : index
      %51 = vector.load %arg3[%50, %c1_32, %c0_33] : memref<32x17x16xbf16, #tpu.memory_space<vmem>>, vector<1x16x8xbf16>
      %52 = vector.shape_cast %51 : vector<1x16x8xbf16> to vector<16x8xbf16>
      %c64 = arith.constant 64 : index
      %c0_34 = arith.constant 0 : index
      %53 = vector.load %arg4[%c64, %c0_34] : memref<72x16xbf16, #tpu.memory_space<vmem>>, vector<8x16xbf16>
      %cst_35 = arith.constant dense<0.000000e+00> : vector<16x16xf32>
      %54 = tpu.matmul %52, %53, %cst_35 {dimension_numbers = #tpu.dot_dimension_numbers<[1], [0], [0], [1], [0, 0, 1, 1], [], []>} : vector<16x8xbf16>, vector<8x16xbf16>, vector<16x16xf32> -> vector<16x16xf32>
      %55 = arith.addf %49, %54 : vector<16x16xf32>
      %c0_36 = arith.constant 0 : index
      %c0_37 = arith.constant 0 : index
      %56 = vector.load %arg5[%c0_36, %c0_37] : memref<1x16xf32, #tpu.memory_space<vmem>>, vector<1x16xf32>
      %57 = vector.broadcast %56 : vector<1x16xf32> to vector<16x16xf32>
      %58 = arith.addf %55, %57 : vector<16x16xf32>
      %cst_38 = arith.constant 0.000000e+00 : f32
      %59 = vector.broadcast %cst_38 : f32 to vector<16x16xf32>
      %60 = arith.cmpf oge, %58, %59 : vector<16x16xf32>
      %c0_39 = arith.constant 0 : index
      %c0_40 = arith.constant 0 : index
      %61 = vector.load %arg6[%c0_39, %c0_40] : memref<1x16xf32, #tpu.memory_space<vmem>>, vector<1x16xf32>
      %62 = vector.broadcast %61 : vector<1x16xf32> to vector<16x16xf32>
      %63 = arith.mulf %62, %58 : vector<16x16xf32>
      %64 = arith.select %60, %58, %63 : vector<16x16xi1>, vector<16x16xf32>
      %65 = arith.truncf %64 : vector<16x16xf32> to vector<16x16xbf16>
      %66 = arith.index_cast %arg8 : i32 to index
      %c0_41 = arith.constant 0 : index
      %c0_42 = arith.constant 0 : index
      %67 = vector.load %arg7[%66, %c0_41, %c0_42] : memref<32x16x16xbf16, #tpu.memory_space<vmem>>, vector<1x16x16xbf16>
      %68 = vector.shape_cast %67 : vector<1x16x16xbf16> to vector<16x16xbf16>
      %69 = vector.shape_cast %65 : vector<16x16xbf16> to vector<1x16x16xbf16>
      tpu.vector_store %arg7[%66, %c0_41, %c0_42], %69 {strides = array<i32>} : memref<32x16x16xbf16, #tpu.memory_space<vmem>>, vector<1x16x16xbf16>,
    }
    %c32_i32_0 = arith.constant 32 : i32
    return
  }
  func.func @transform_0(%arg0: i32) -> (i32, i32, i32) {
    %c0_i32 = arith.constant 0 : i32
    %c0_i32_0 = arith.constant 0 : i32
    %c0_i32_1 = arith.constant 0 : i32
    return %arg0, %c0_i32, %c0_i32_0 : i32, i32, i32
  }
  func.func @transform_1(%arg0: i32) -> (i32, i32, i32) {
    %c0_i32 = arith.constant 0 : i32
    %c0_i32_0 = arith.constant 0 : i32
    %c0_i32_1 = arith.constant 0 : i32
    return %arg0, %c0_i32, %c0_i32_0 : i32, i32, i32
  }
  func.func @transform_2(%arg0: i32) -> (i32, i32, i32) {
    %c0_i32 = arith.constant 0 : i32
    %c0_i32_0 = arith.constant 0 : i32
    %c0_i32_1 = arith.constant 0 : i32
    return %arg0, %c0_i32, %c0_i32_0 : i32, i32, i32
  }
  func.func @transform_3(%arg0: i32) -> (i32, i32) {
    %c0_i32 = arith.constant 0 : i32
    %c0_i32_0 = arith.constant 0 : i32
    %c0_i32_1 = arith.constant 0 : i32
    return %c0_i32, %c0_i32_0 : i32, i32
  }
  func.func @transform_4(%arg0: i32) -> (i32, i32) {
    %c0_i32 = arith.constant 0 : i32
    %c0_i32_0 = arith.constant 0 : i32
    %c0_i32_1 = arith.constant 0 : i32
    return %c0_i32, %c0_i32_0 : i32, i32
  }
  func.func @transform_5(%arg0: i32) -> (i32, i32) {
    %c0_i32 = arith.constant 0 : i32
    %c0_i32_0 = arith.constant 0 : i32
    %c0_i32_1 = arith.constant 0 : i32
    return %c0_i32, %c0_i32_0 : i32, i32
  }
  func.func @transform_6(%arg0: i32) -> (i32, i32, i32) {
    %c0_i32 = arith.constant 0 : i32
    %c0_i32_0 = arith.constant 0 : i32
    %c0_i32_1 = arith.constant 0 : i32
    return %arg0, %c0_i32, %c0_i32_0 : i32, i32, i32
  }
}

module attributes {stable_mosaic.version = 11 : i64} {
  func.func @kernel(%arg0: i32, %arg1: memref<32x18x16xbf16, #tpu.memory_space<vmem>>, %arg2: memref<32x18x16xbf16, #tpu.memory_space<vmem>>, %arg3: memref<32x18x16xbf16, #tpu.memory_space<vmem>>, %arg4: memref<144x16xbf16, #tpu.memory_space<vmem>>, %arg5: memref<1x16xf32, #tpu.memory_space<vmem>>, %arg6: memref<1x16xf32, #tpu.memory_space<vmem>>, %arg7: memref<32x16x16xbf16, #tpu.memory_space<vmem>>) attributes {dimension_semantics = [#tpu.dimension_semantics<parallel>], iteration_bounds = array<i64: 1>, scalar_prefetch = 0 : i64, scratch_operands = 0 : i64, tpu.core_type = #tpu.core_type<tc>, window_params = [{transform_indices = @transform_0, window_bounds = array<i64: 32, 18, 16>}, {transform_indices = @transform_1, window_bounds = array<i64: 32, 18, 16>}, {transform_indices = @transform_2, window_bounds = array<i64: 32, 18, 16>}, {pipeline_mode = #tpu.pipeline_mode<synchronous>, transform_indices = @transform_3, window_bounds = array<i64: 144, 16>}, {pipeline_mode = #tpu.pipeline_mode<synchronous>, transform_indices = @transform_4, window_bounds = array<i64: 1, 16>}, {pipeline_mode = #tpu.pipeline_mode<synchronous>, transform_indices = @transform_5, window_bounds = array<i64: 1, 16>}, {transform_indices = @transform_6, window_bounds = array<i64: 32, 16, 16>}]} {
    %c0_i32 = arith.constant 0 : i32
    %c32_i32 = arith.constant 32 : i32
    %0 = arith.addi %c0_i32, %c32_i32 : i32
    %c1_i32 = arith.constant 1 : i32
    scf.for %arg8 = %c0_i32 to %0 step %c1_i32  : i32 {
      %cst = arith.constant 0.000000e+00 : f32
      %1 = vector.broadcast %cst : f32 to vector<16x16xf32>
      %2 = arith.index_cast %arg8 : i32 to index
      %c0 = arith.constant 0 : index
      %c0_1 = arith.constant 0 : index
      %3 = vector.load %arg1[%2, %c0, %c0_1] : memref<32x18x16xbf16, #tpu.memory_space<vmem>>, vector<1x16x16xbf16>
      %4 = vector.shape_cast %3 : vector<1x16x16xbf16> to vector<16x16xbf16>
      %c0_2 = arith.constant 0 : index
      %c0_3 = arith.constant 0 : index
      %5 = vector.load %arg4[%c0_2, %c0_3] : memref<144x16xbf16, #tpu.memory_space<vmem>>, vector<16x16xbf16>
      %cst_4 = arith.constant dense<0.000000e+00> : vector<16x16xf32>
      %6 = tpu.matmul %4, %5, %cst_4 {dimension_numbers = #tpu.dot_dimension_numbers<[1], [0], [0], [1], [0, 0, 1, 1], [], []>} : vector<16x16xbf16>, vector<16x16xbf16>, vector<16x16xf32> -> vector<16x16xf32>
      %7 = arith.addf %1, %6 : vector<16x16xf32>
      %8 = arith.index_cast %arg8 : i32 to index
      %c1 = arith.constant 1 : index
      %c0_5 = arith.constant 0 : index
      %9 = vector.load %arg1[%8, %c1, %c0_5] : memref<32x18x16xbf16, #tpu.memory_space<vmem>>, vector<1x16x16xbf16>
      %10 = vector.shape_cast %9 : vector<1x16x16xbf16> to vector<16x16xbf16>
      %c16 = arith.constant 16 : index
      %c0_6 = arith.constant 0 : index
      %11 = vector.load %arg4[%c16, %c0_6] : memref<144x16xbf16, #tpu.memory_space<vmem>>, vector<16x16xbf16>
      %cst_7 = arith.constant dense<0.000000e+00> : vector<16x16xf32>
      %12 = tpu.matmul %10, %11, %cst_7 {dimension_numbers = #tpu.dot_dimension_numbers<[1], [0], [0], [1], [0, 0, 1, 1], [], []>} : vector<16x16xbf16>, vector<16x16xbf16>, vector<16x16xf32> -> vector<16x16xf32>
      %13 = arith.addf %7, %12 : vector<16x16xf32>
      %14 = arith.index_cast %arg8 : i32 to index
      %c2 = arith.constant 2 : index
      %c0_8 = arith.constant 0 : index
      %15 = vector.load %arg1[%14, %c2, %c0_8] : memref<32x18x16xbf16, #tpu.memory_space<vmem>>, vector<1x16x16xbf16>
      %16 = vector.shape_cast %15 : vector<1x16x16xbf16> to vector<16x16xbf16>
      %c32 = arith.constant 32 : index
      %c0_9 = arith.constant 0 : index
      %17 = vector.load %arg4[%c32, %c0_9] : memref<144x16xbf16, #tpu.memory_space<vmem>>, vector<16x16xbf16>
      %cst_10 = arith.constant dense<0.000000e+00> : vector<16x16xf32>
      %18 = tpu.matmul %16, %17, %cst_10 {dimension_numbers = #tpu.dot_dimension_numbers<[1], [0], [0], [1], [0, 0, 1, 1], [], []>} : vector<16x16xbf16>, vector<16x16xbf16>, vector<16x16xf32> -> vector<16x16xf32>
      %19 = arith.addf %13, %18 : vector<16x16xf32>
      %20 = arith.index_cast %arg8 : i32 to index
      %c0_11 = arith.constant 0 : index
      %c0_12 = arith.constant 0 : index
      %21 = vector.load %arg2[%20, %c0_11, %c0_12] : memref<32x18x16xbf16, #tpu.memory_space<vmem>>, vector<1x16x16xbf16>
      %22 = vector.shape_cast %21 : vector<1x16x16xbf16> to vector<16x16xbf16>
      %c48 = arith.constant 48 : index
      %c0_13 = arith.constant 0 : index
      %23 = vector.load %arg4[%c48, %c0_13] : memref<144x16xbf16, #tpu.memory_space<vmem>>, vector<16x16xbf16>
      %cst_14 = arith.constant dense<0.000000e+00> : vector<16x16xf32>
      %24 = tpu.matmul %22, %23, %cst_14 {dimension_numbers = #tpu.dot_dimension_numbers<[1], [0], [0], [1], [0, 0, 1, 1], [], []>} : vector<16x16xbf16>, vector<16x16xbf16>, vector<16x16xf32> -> vector<16x16xf32>
      %25 = arith.addf %19, %24 : vector<16x16xf32>
      %26 = arith.index_cast %arg8 : i32 to index
      %c1_15 = arith.constant 1 : index
      %c0_16 = arith.constant 0 : index
      %27 = vector.load %arg2[%26, %c1_15, %c0_16] : memref<32x18x16xbf16, #tpu.memory_space<vmem>>, vector<1x16x16xbf16>
      %28 = vector.shape_cast %27 : vector<1x16x16xbf16> to vector<16x16xbf16>
      %c64 = arith.constant 64 : index
      %c0_17 = arith.constant 0 : index
      %29 = vector.load %arg4[%c64, %c0_17] : memref<144x16xbf16, #tpu.memory_space<vmem>>, vector<16x16xbf16>
      %cst_18 = arith.constant dense<0.000000e+00> : vector<16x16xf32>
      %30 = tpu.matmul %28, %29, %cst_18 {dimension_numbers = #tpu.dot_dimension_numbers<[1], [0], [0], [1], [0, 0, 1, 1], [], []>} : vector<16x16xbf16>, vector<16x16xbf16>, vector<16x16xf32> -> vector<16x16xf32>
      %31 = arith.addf %25, %30 : vector<16x16xf32>
      %32 = arith.index_cast %arg8 : i32 to index
      %c2_19 = arith.constant 2 : index
      %c0_20 = arith.constant 0 : index
      %33 = vector.load %arg2[%32, %c2_19, %c0_20] : memref<32x18x16xbf16, #tpu.memory_space<vmem>>, vector<1x16x16xbf16>
      %34 = vector.shape_cast %33 : vector<1x16x16xbf16> to vector<16x16xbf16>
      %c80 = arith.constant 80 : index
      %c0_21 = arith.constant 0 : index
      %35 = vector.load %arg4[%c80, %c0_21] : memref<144x16xbf16, #tpu.memory_space<vmem>>, vector<16x16xbf16>
      %cst_22 = arith.constant dense<0.000000e+00> : vector<16x16xf32>
      %36 = tpu.matmul %34, %35, %cst_22 {dimension_numbers = #tpu.dot_dimension_numbers<[1], [0], [0], [1], [0, 0, 1, 1], [], []>} : vector<16x16xbf16>, vector<16x16xbf16>, vector<16x16xf32> -> vector<16x16xf32>
      %37 = arith.addf %31, %36 : vector<16x16xf32>
      %38 = arith.index_cast %arg8 : i32 to index
      %c0_23 = arith.constant 0 : index
      %c0_24 = arith.constant 0 : index
      %39 = vector.load %arg3[%38, %c0_23, %c0_24] : memref<32x18x16xbf16, #tpu.memory_space<vmem>>, vector<1x16x16xbf16>
      %40 = vector.shape_cast %39 : vector<1x16x16xbf16> to vector<16x16xbf16>
      %c96 = arith.constant 96 : index
      %c0_25 = arith.constant 0 : index
      %41 = vector.load %arg4[%c96, %c0_25] : memref<144x16xbf16, #tpu.memory_space<vmem>>, vector<16x16xbf16>
      %cst_26 = arith.constant dense<0.000000e+00> : vector<16x16xf32>
      %42 = tpu.matmul %40, %41, %cst_26 {dimension_numbers = #tpu.dot_dimension_numbers<[1], [0], [0], [1], [0, 0, 1, 1], [], []>} : vector<16x16xbf16>, vector<16x16xbf16>, vector<16x16xf32> -> vector<16x16xf32>
      %43 = arith.addf %37, %42 : vector<16x16xf32>
      %44 = arith.index_cast %arg8 : i32 to index
      %c1_27 = arith.constant 1 : index
      %c0_28 = arith.constant 0 : index
      %45 = vector.load %arg3[%44, %c1_27, %c0_28] : memref<32x18x16xbf16, #tpu.memory_space<vmem>>, vector<1x16x16xbf16>
      %46 = vector.shape_cast %45 : vector<1x16x16xbf16> to vector<16x16xbf16>
      %c112 = arith.constant 112 : index
      %c0_29 = arith.constant 0 : index
      %47 = vector.load %arg4[%c112, %c0_29] : memref<144x16xbf16, #tpu.memory_space<vmem>>, vector<16x16xbf16>
      %cst_30 = arith.constant dense<0.000000e+00> : vector<16x16xf32>
      %48 = tpu.matmul %46, %47, %cst_30 {dimension_numbers = #tpu.dot_dimension_numbers<[1], [0], [0], [1], [0, 0, 1, 1], [], []>} : vector<16x16xbf16>, vector<16x16xbf16>, vector<16x16xf32> -> vector<16x16xf32>
      %49 = arith.addf %43, %48 : vector<16x16xf32>
      %50 = arith.index_cast %arg8 : i32 to index
      %c2_31 = arith.constant 2 : index
      %c0_32 = arith.constant 0 : index
      %51 = vector.load %arg3[%50, %c2_31, %c0_32] : memref<32x18x16xbf16, #tpu.memory_space<vmem>>, vector<1x16x16xbf16>
      %52 = vector.shape_cast %51 : vector<1x16x16xbf16> to vector<16x16xbf16>
      %c128 = arith.constant 128 : index
      %c0_33 = arith.constant 0 : index
      %53 = vector.load %arg4[%c128, %c0_33] : memref<144x16xbf16, #tpu.memory_space<vmem>>, vector<16x16xbf16>
      %cst_34 = arith.constant dense<0.000000e+00> : vector<16x16xf32>
      %54 = tpu.matmul %52, %53, %cst_34 {dimension_numbers = #tpu.dot_dimension_numbers<[1], [0], [0], [1], [0, 0, 1, 1], [], []>} : vector<16x16xbf16>, vector<16x16xbf16>, vector<16x16xf32> -> vector<16x16xf32>
      %55 = arith.addf %49, %54 : vector<16x16xf32>
      %c0_35 = arith.constant 0 : index
      %c0_36 = arith.constant 0 : index
      %56 = vector.load %arg5[%c0_35, %c0_36] : memref<1x16xf32, #tpu.memory_space<vmem>>, vector<1x16xf32>
      %57 = vector.broadcast %56 : vector<1x16xf32> to vector<16x16xf32>
      %58 = arith.addf %55, %57 : vector<16x16xf32>
      %cst_37 = arith.constant 0.000000e+00 : f32
      %59 = vector.broadcast %cst_37 : f32 to vector<16x16xf32>
      %60 = arith.cmpf oge, %58, %59 : vector<16x16xf32>
      %c0_38 = arith.constant 0 : index
      %c0_39 = arith.constant 0 : index
      %61 = vector.load %arg6[%c0_38, %c0_39] : memref<1x16xf32, #tpu.memory_space<vmem>>, vector<1x16xf32>
      %62 = vector.broadcast %61 : vector<1x16xf32> to vector<16x16xf32>
      %63 = arith.mulf %62, %58 : vector<16x16xf32>
      %64 = arith.select %60, %58, %63 : vector<16x16xi1>, vector<16x16xf32>
      %65 = arith.truncf %64 : vector<16x16xf32> to vector<16x16xbf16>
      %66 = arith.index_cast %arg8 : i32 to index
      %c0_40 = arith.constant 0 : index
      %c0_41 = arith.constant 0 : index
      %67 = vector.load %arg7[%66, %c0_40, %c0_41] : memref<32x16x16xbf16, #tpu.memory_space<vmem>>, vector<1x16x16xbf16>
      %68 = vector.shape_cast %67 : vector<1x16x16xbf16> to vector<16x16xbf16>
      %69 = vector.shape_cast %65 : vector<16x16xbf16> to vector<1x16x16xbf16>
      tpu.vector_store %arg7[%66, %c0_40, %c0_41], %69 {strides = array<i32>} : memref<32x16x16xbf16, #tpu.memory_space<vmem>>, vector<1x16x16xbf16>,
    }
    %c32_i32_0 = arith.constant 32 : i32
    return
  }
  func.func @transform_0(%arg0: i32) -> (i32, i32, i32) {
    %c0_i32 = arith.constant 0 : i32
    %c0_i32_0 = arith.constant 0 : i32
    %c0_i32_1 = arith.constant 0 : i32
    return %arg0, %c0_i32, %c0_i32_0 : i32, i32, i32
  }
  func.func @transform_1(%arg0: i32) -> (i32, i32, i32) {
    %c0_i32 = arith.constant 0 : i32
    %c0_i32_0 = arith.constant 0 : i32
    %c0_i32_1 = arith.constant 0 : i32
    return %arg0, %c0_i32, %c0_i32_0 : i32, i32, i32
  }
  func.func @transform_2(%arg0: i32) -> (i32, i32, i32) {
    %c0_i32 = arith.constant 0 : i32
    %c0_i32_0 = arith.constant 0 : i32
    %c0_i32_1 = arith.constant 0 : i32
    return %arg0, %c0_i32, %c0_i32_0 : i32, i32, i32
  }
  func.func @transform_3(%arg0: i32) -> (i32, i32) {
    %c0_i32 = arith.constant 0 : i32
    %c0_i32_0 = arith.constant 0 : i32
    %c0_i32_1 = arith.constant 0 : i32
    return %c0_i32, %c0_i32_0 : i32, i32
  }
  func.func @transform_4(%arg0: i32) -> (i32, i32) {
    %c0_i32 = arith.constant 0 : i32
    %c0_i32_0 = arith.constant 0 : i32
    %c0_i32_1 = arith.constant 0 : i32
    return %c0_i32, %c0_i32_0 : i32, i32
  }
  func.func @transform_5(%arg0: i32) -> (i32, i32) {
    %c0_i32 = arith.constant 0 : i32
    %c0_i32_0 = arith.constant 0 : i32
    %c0_i32_1 = arith.constant 0 : i32
    return %c0_i32, %c0_i32_0 : i32, i32
  }
  func.func @transform_6(%arg0: i32) -> (i32, i32, i32) {
    %c0_i32 = arith.constant 0 : i32
    %c0_i32_0 = arith.constant 0 : i32
    %c0_i32_1 = arith.constant 0 : i32
    return %arg0, %c0_i32, %c0_i32_0 : i32, i32, i32
  }
}

module attributes {stable_mosaic.version = 11 : i64} {
  func.func @kernel(%arg0: i32, %arg1: memref<16x10x32xbf16, #tpu.memory_space<vmem>>, %arg2: memref<16x10x32xbf16, #tpu.memory_space<vmem>>, %arg3: memref<16x10x32xbf16, #tpu.memory_space<vmem>>, %arg4: memref<288x32xbf16, #tpu.memory_space<vmem>>, %arg5: memref<1x32xf32, #tpu.memory_space<vmem>>, %arg6: memref<1x32xf32, #tpu.memory_space<vmem>>, %arg7: memref<16x8x32xbf16, #tpu.memory_space<vmem>>) attributes {dimension_semantics = [#tpu.dimension_semantics<parallel>], iteration_bounds = array<i64: 1>, scalar_prefetch = 0 : i64, scratch_operands = 0 : i64, tpu.core_type = #tpu.core_type<tc>, window_params = [{transform_indices = @transform_0, window_bounds = array<i64: 16, 10, 32>}, {transform_indices = @transform_1, window_bounds = array<i64: 16, 10, 32>}, {transform_indices = @transform_2, window_bounds = array<i64: 16, 10, 32>}, {pipeline_mode = #tpu.pipeline_mode<synchronous>, transform_indices = @transform_3, window_bounds = array<i64: 288, 32>}, {pipeline_mode = #tpu.pipeline_mode<synchronous>, transform_indices = @transform_4, window_bounds = array<i64: 1, 32>}, {pipeline_mode = #tpu.pipeline_mode<synchronous>, transform_indices = @transform_5, window_bounds = array<i64: 1, 32>}, {transform_indices = @transform_6, window_bounds = array<i64: 16, 8, 32>}]} {
    %c0_i32 = arith.constant 0 : i32
    %c16_i32 = arith.constant 16 : i32
    %0 = arith.addi %c0_i32, %c16_i32 : i32
    %c1_i32 = arith.constant 1 : i32
    scf.for %arg8 = %c0_i32 to %0 step %c1_i32  : i32 {
      %cst = arith.constant 0.000000e+00 : f32
      %1 = vector.broadcast %cst : f32 to vector<8x32xf32>
      %2 = arith.index_cast %arg8 : i32 to index
      %c0 = arith.constant 0 : index
      %c0_1 = arith.constant 0 : index
      %3 = vector.load %arg1[%2, %c0, %c0_1] : memref<16x10x32xbf16, #tpu.memory_space<vmem>>, vector<1x8x32xbf16>
      %4 = vector.shape_cast %3 : vector<1x8x32xbf16> to vector<8x32xbf16>
      %c0_2 = arith.constant 0 : index
      %c0_3 = arith.constant 0 : index
      %5 = vector.load %arg4[%c0_2, %c0_3] : memref<288x32xbf16, #tpu.memory_space<vmem>>, vector<32x32xbf16>
      %cst_4 = arith.constant dense<0.000000e+00> : vector<8x32xf32>
      %6 = tpu.matmul %4, %5, %cst_4 {dimension_numbers = #tpu.dot_dimension_numbers<[1], [0], [0], [1], [0, 0, 1, 1], [], []>} : vector<8x32xbf16>, vector<32x32xbf16>, vector<8x32xf32> -> vector<8x32xf32>
      %7 = arith.addf %1, %6 : vector<8x32xf32>
      %8 = arith.index_cast %arg8 : i32 to index
      %c1 = arith.constant 1 : index
      %c0_5 = arith.constant 0 : index
      %9 = vector.load %arg1[%8, %c1, %c0_5] : memref<16x10x32xbf16, #tpu.memory_space<vmem>>, vector<1x8x32xbf16>
      %10 = vector.shape_cast %9 : vector<1x8x32xbf16> to vector<8x32xbf16>
      %c32 = arith.constant 32 : index
      %c0_6 = arith.constant 0 : index
      %11 = vector.load %arg4[%c32, %c0_6] : memref<288x32xbf16, #tpu.memory_space<vmem>>, vector<32x32xbf16>
      %cst_7 = arith.constant dense<0.000000e+00> : vector<8x32xf32>
      %12 = tpu.matmul %10, %11, %cst_7 {dimension_numbers = #tpu.dot_dimension_numbers<[1], [0], [0], [1], [0, 0, 1, 1], [], []>} : vector<8x32xbf16>, vector<32x32xbf16>, vector<8x32xf32> -> vector<8x32xf32>
      %13 = arith.addf %7, %12 : vector<8x32xf32>
      %14 = arith.index_cast %arg8 : i32 to index
      %c2 = arith.constant 2 : index
      %c0_8 = arith.constant 0 : index
      %15 = vector.load %arg1[%14, %c2, %c0_8] : memref<16x10x32xbf16, #tpu.memory_space<vmem>>, vector<1x8x32xbf16>
      %16 = vector.shape_cast %15 : vector<1x8x32xbf16> to vector<8x32xbf16>
      %c64 = arith.constant 64 : index
      %c0_9 = arith.constant 0 : index
      %17 = vector.load %arg4[%c64, %c0_9] : memref<288x32xbf16, #tpu.memory_space<vmem>>, vector<32x32xbf16>
      %cst_10 = arith.constant dense<0.000000e+00> : vector<8x32xf32>
      %18 = tpu.matmul %16, %17, %cst_10 {dimension_numbers = #tpu.dot_dimension_numbers<[1], [0], [0], [1], [0, 0, 1, 1], [], []>} : vector<8x32xbf16>, vector<32x32xbf16>, vector<8x32xf32> -> vector<8x32xf32>
      %19 = arith.addf %13, %18 : vector<8x32xf32>
      %20 = arith.index_cast %arg8 : i32 to index
      %c0_11 = arith.constant 0 : index
      %c0_12 = arith.constant 0 : index
      %21 = vector.load %arg2[%20, %c0_11, %c0_12] : memref<16x10x32xbf16, #tpu.memory_space<vmem>>, vector<1x8x32xbf16>
      %22 = vector.shape_cast %21 : vector<1x8x32xbf16> to vector<8x32xbf16>
      %c96 = arith.constant 96 : index
      %c0_13 = arith.constant 0 : index
      %23 = vector.load %arg4[%c96, %c0_13] : memref<288x32xbf16, #tpu.memory_space<vmem>>, vector<32x32xbf16>
      %cst_14 = arith.constant dense<0.000000e+00> : vector<8x32xf32>
      %24 = tpu.matmul %22, %23, %cst_14 {dimension_numbers = #tpu.dot_dimension_numbers<[1], [0], [0], [1], [0, 0, 1, 1], [], []>} : vector<8x32xbf16>, vector<32x32xbf16>, vector<8x32xf32> -> vector<8x32xf32>
      %25 = arith.addf %19, %24 : vector<8x32xf32>
      %26 = arith.index_cast %arg8 : i32 to index
      %c1_15 = arith.constant 1 : index
      %c0_16 = arith.constant 0 : index
      %27 = vector.load %arg2[%26, %c1_15, %c0_16] : memref<16x10x32xbf16, #tpu.memory_space<vmem>>, vector<1x8x32xbf16>
      %28 = vector.shape_cast %27 : vector<1x8x32xbf16> to vector<8x32xbf16>
      %c128 = arith.constant 128 : index
      %c0_17 = arith.constant 0 : index
      %29 = vector.load %arg4[%c128, %c0_17] : memref<288x32xbf16, #tpu.memory_space<vmem>>, vector<32x32xbf16>
      %cst_18 = arith.constant dense<0.000000e+00> : vector<8x32xf32>
      %30 = tpu.matmul %28, %29, %cst_18 {dimension_numbers = #tpu.dot_dimension_numbers<[1], [0], [0], [1], [0, 0, 1, 1], [], []>} : vector<8x32xbf16>, vector<32x32xbf16>, vector<8x32xf32> -> vector<8x32xf32>
      %31 = arith.addf %25, %30 : vector<8x32xf32>
      %32 = arith.index_cast %arg8 : i32 to index
      %c2_19 = arith.constant 2 : index
      %c0_20 = arith.constant 0 : index
      %33 = vector.load %arg2[%32, %c2_19, %c0_20] : memref<16x10x32xbf16, #tpu.memory_space<vmem>>, vector<1x8x32xbf16>
      %34 = vector.shape_cast %33 : vector<1x8x32xbf16> to vector<8x32xbf16>
      %c160 = arith.constant 160 : index
      %c0_21 = arith.constant 0 : index
      %35 = vector.load %arg4[%c160, %c0_21] : memref<288x32xbf16, #tpu.memory_space<vmem>>, vector<32x32xbf16>
      %cst_22 = arith.constant dense<0.000000e+00> : vector<8x32xf32>
      %36 = tpu.matmul %34, %35, %cst_22 {dimension_numbers = #tpu.dot_dimension_numbers<[1], [0], [0], [1], [0, 0, 1, 1], [], []>} : vector<8x32xbf16>, vector<32x32xbf16>, vector<8x32xf32> -> vector<8x32xf32>
      %37 = arith.addf %31, %36 : vector<8x32xf32>
      %38 = arith.index_cast %arg8 : i32 to index
      %c0_23 = arith.constant 0 : index
      %c0_24 = arith.constant 0 : index
      %39 = vector.load %arg3[%38, %c0_23, %c0_24] : memref<16x10x32xbf16, #tpu.memory_space<vmem>>, vector<1x8x32xbf16>
      %40 = vector.shape_cast %39 : vector<1x8x32xbf16> to vector<8x32xbf16>
      %c192 = arith.constant 192 : index
      %c0_25 = arith.constant 0 : index
      %41 = vector.load %arg4[%c192, %c0_25] : memref<288x32xbf16, #tpu.memory_space<vmem>>, vector<32x32xbf16>
      %cst_26 = arith.constant dense<0.000000e+00> : vector<8x32xf32>
      %42 = tpu.matmul %40, %41, %cst_26 {dimension_numbers = #tpu.dot_dimension_numbers<[1], [0], [0], [1], [0, 0, 1, 1], [], []>} : vector<8x32xbf16>, vector<32x32xbf16>, vector<8x32xf32> -> vector<8x32xf32>
      %43 = arith.addf %37, %42 : vector<8x32xf32>
      %44 = arith.index_cast %arg8 : i32 to index
      %c1_27 = arith.constant 1 : index
      %c0_28 = arith.constant 0 : index
      %45 = vector.load %arg3[%44, %c1_27, %c0_28] : memref<16x10x32xbf16, #tpu.memory_space<vmem>>, vector<1x8x32xbf16>
      %46 = vector.shape_cast %45 : vector<1x8x32xbf16> to vector<8x32xbf16>
      %c224 = arith.constant 224 : index
      %c0_29 = arith.constant 0 : index
      %47 = vector.load %arg4[%c224, %c0_29] : memref<288x32xbf16, #tpu.memory_space<vmem>>, vector<32x32xbf16>
      %cst_30 = arith.constant dense<0.000000e+00> : vector<8x32xf32>
      %48 = tpu.matmul %46, %47, %cst_30 {dimension_numbers = #tpu.dot_dimension_numbers<[1], [0], [0], [1], [0, 0, 1, 1], [], []>} : vector<8x32xbf16>, vector<32x32xbf16>, vector<8x32xf32> -> vector<8x32xf32>
      %49 = arith.addf %43, %48 : vector<8x32xf32>
      %50 = arith.index_cast %arg8 : i32 to index
      %c2_31 = arith.constant 2 : index
      %c0_32 = arith.constant 0 : index
      %51 = vector.load %arg3[%50, %c2_31, %c0_32] : memref<16x10x32xbf16, #tpu.memory_space<vmem>>, vector<1x8x32xbf16>
      %52 = vector.shape_cast %51 : vector<1x8x32xbf16> to vector<8x32xbf16>
      %c256 = arith.constant 256 : index
      %c0_33 = arith.constant 0 : index
      %53 = vector.load %arg4[%c256, %c0_33] : memref<288x32xbf16, #tpu.memory_space<vmem>>, vector<32x32xbf16>
      %cst_34 = arith.constant dense<0.000000e+00> : vector<8x32xf32>
      %54 = tpu.matmul %52, %53, %cst_34 {dimension_numbers = #tpu.dot_dimension_numbers<[1], [0], [0], [1], [0, 0, 1, 1], [], []>} : vector<8x32xbf16>, vector<32x32xbf16>, vector<8x32xf32> -> vector<8x32xf32>
      %55 = arith.addf %49, %54 : vector<8x32xf32>
      %c0_35 = arith.constant 0 : index
      %c0_36 = arith.constant 0 : index
      %56 = vector.load %arg5[%c0_35, %c0_36] : memref<1x32xf32, #tpu.memory_space<vmem>>, vector<1x32xf32>
      %57 = vector.broadcast %56 : vector<1x32xf32> to vector<8x32xf32>
      %58 = arith.addf %55, %57 : vector<8x32xf32>
      %cst_37 = arith.constant 0.000000e+00 : f32
      %59 = vector.broadcast %cst_37 : f32 to vector<8x32xf32>
      %60 = arith.cmpf oge, %58, %59 : vector<8x32xf32>
      %c0_38 = arith.constant 0 : index
      %c0_39 = arith.constant 0 : index
      %61 = vector.load %arg6[%c0_38, %c0_39] : memref<1x32xf32, #tpu.memory_space<vmem>>, vector<1x32xf32>
      %62 = vector.broadcast %61 : vector<1x32xf32> to vector<8x32xf32>
      %63 = arith.mulf %62, %58 : vector<8x32xf32>
      %64 = arith.select %60, %58, %63 : vector<8x32xi1>, vector<8x32xf32>
      %65 = arith.truncf %64 : vector<8x32xf32> to vector<8x32xbf16>
      %66 = arith.index_cast %arg8 : i32 to index
      %c0_40 = arith.constant 0 : index
      %c0_41 = arith.constant 0 : index
      %67 = vector.load %arg7[%66, %c0_40, %c0_41] : memref<16x8x32xbf16, #tpu.memory_space<vmem>>, vector<1x8x32xbf16>
      %68 = vector.shape_cast %67 : vector<1x8x32xbf16> to vector<8x32xbf16>
      %69 = vector.shape_cast %65 : vector<8x32xbf16> to vector<1x8x32xbf16>
      tpu.vector_store %arg7[%66, %c0_40, %c0_41], %69 {strides = array<i32>} : memref<16x8x32xbf16, #tpu.memory_space<vmem>>, vector<1x8x32xbf16>,
    }
    %c16_i32_0 = arith.constant 16 : i32
    return
  }
  func.func @transform_0(%arg0: i32) -> (i32, i32, i32) {
    %c0_i32 = arith.constant 0 : i32
    %c0_i32_0 = arith.constant 0 : i32
    %c0_i32_1 = arith.constant 0 : i32
    return %arg0, %c0_i32, %c0_i32_0 : i32, i32, i32
  }
  func.func @transform_1(%arg0: i32) -> (i32, i32, i32) {
    %c0_i32 = arith.constant 0 : i32
    %c0_i32_0 = arith.constant 0 : i32
    %c0_i32_1 = arith.constant 0 : i32
    return %arg0, %c0_i32, %c0_i32_0 : i32, i32, i32
  }
  func.func @transform_2(%arg0: i32) -> (i32, i32, i32) {
    %c0_i32 = arith.constant 0 : i32
    %c0_i32_0 = arith.constant 0 : i32
    %c0_i32_1 = arith.constant 0 : i32
    return %arg0, %c0_i32, %c0_i32_0 : i32, i32, i32
  }
  func.func @transform_3(%arg0: i32) -> (i32, i32) {
    %c0_i32 = arith.constant 0 : i32
    %c0_i32_0 = arith.constant 0 : i32
    %c0_i32_1 = arith.constant 0 : i32
    return %c0_i32, %c0_i32_0 : i32, i32
  }
  func.func @transform_4(%arg0: i32) -> (i32, i32) {
    %c0_i32 = arith.constant 0 : i32
    %c0_i32_0 = arith.constant 0 : i32
    %c0_i32_1 = arith.constant 0 : i32
    return %c0_i32, %c0_i32_0 : i32, i32
  }
  func.func @transform_5(%arg0: i32) -> (i32, i32) {
    %c0_i32 = arith.constant 0 : i32
    %c0_i32_0 = arith.constant 0 : i32
    %c0_i32_1 = arith.constant 0 : i32
    return %c0_i32, %c0_i32_0 : i32, i32
  }
  func.func @transform_6(%arg0: i32) -> (i32, i32, i32) {
    %c0_i32 = arith.constant 0 : i32
    %c0_i32_0 = arith.constant 0 : i32
    %c0_i32_1 = arith.constant 0 : i32
    return %arg0, %c0_i32, %c0_i32_0 : i32, i32, i32
  }
}

module attributes {stable_mosaic.version = 11 : i64} {
  func.func @kernel(%arg0: i32, %arg1: memref<16x9x32xbf16, #tpu.memory_space<vmem>>, %arg2: memref<16x9x32xbf16, #tpu.memory_space<vmem>>, %arg3: memref<16x9x32xbf16, #tpu.memory_space<vmem>>, %arg4: memref<144x32xbf16, #tpu.memory_space<vmem>>, %arg5: memref<1x32xf32, #tpu.memory_space<vmem>>, %arg6: memref<1x32xf32, #tpu.memory_space<vmem>>, %arg7: memref<16x8x32xbf16, #tpu.memory_space<vmem>>) attributes {dimension_semantics = [#tpu.dimension_semantics<parallel>], iteration_bounds = array<i64: 1>, scalar_prefetch = 0 : i64, scratch_operands = 0 : i64, tpu.core_type = #tpu.core_type<tc>, window_params = [{transform_indices = @transform_0, window_bounds = array<i64: 16, 9, 32>}, {transform_indices = @transform_1, window_bounds = array<i64: 16, 9, 32>}, {transform_indices = @transform_2, window_bounds = array<i64: 16, 9, 32>}, {pipeline_mode = #tpu.pipeline_mode<synchronous>, transform_indices = @transform_3, window_bounds = array<i64: 144, 32>}, {pipeline_mode = #tpu.pipeline_mode<synchronous>, transform_indices = @transform_4, window_bounds = array<i64: 1, 32>}, {pipeline_mode = #tpu.pipeline_mode<synchronous>, transform_indices = @transform_5, window_bounds = array<i64: 1, 32>}, {transform_indices = @transform_6, window_bounds = array<i64: 16, 8, 32>}]} {
    %c0_i32 = arith.constant 0 : i32
    %c16_i32 = arith.constant 16 : i32
    %0 = arith.addi %c0_i32, %c16_i32 : i32
    %c1_i32 = arith.constant 1 : i32
    scf.for %arg8 = %c0_i32 to %0 step %c1_i32  : i32 {
      %cst = arith.constant 0.000000e+00 : f32
      %1 = vector.broadcast %cst : f32 to vector<8x32xf32>
      %2 = arith.index_cast %arg8 : i32 to index
      %c0 = arith.constant 0 : index
      %c0_1 = arith.constant 0 : index
      %3 = vector.load %arg1[%2, %c0, %c0_1] : memref<16x9x32xbf16, #tpu.memory_space<vmem>>, vector<1x8x16xbf16>
      %4 = vector.shape_cast %3 : vector<1x8x16xbf16> to vector<8x16xbf16>
      %c0_2 = arith.constant 0 : index
      %c0_3 = arith.constant 0 : index
      %5 = vector.load %arg4[%c0_2, %c0_3] : memref<144x32xbf16, #tpu.memory_space<vmem>>, vector<16x32xbf16>
      %cst_4 = arith.constant dense<0.000000e+00> : vector<8x32xf32>
      %6 = tpu.matmul %4, %5, %cst_4 {dimension_numbers = #tpu.dot_dimension_numbers<[1], [0], [0], [1], [0, 0, 1, 1], [], []>} : vector<8x16xbf16>, vector<16x32xbf16>, vector<8x32xf32> -> vector<8x32xf32>
      %7 = arith.addf %1, %6 : vector<8x32xf32>
      %8 = arith.index_cast %arg8 : i32 to index
      %c0_5 = arith.constant 0 : index
      %c16 = arith.constant 16 : index
      %9 = vector.load %arg1[%8, %c0_5, %c16] : memref<16x9x32xbf16, #tpu.memory_space<vmem>>, vector<1x8x16xbf16>
      %10 = vector.shape_cast %9 : vector<1x8x16xbf16> to vector<8x16xbf16>
      %c16_6 = arith.constant 16 : index
      %c0_7 = arith.constant 0 : index
      %11 = vector.load %arg4[%c16_6, %c0_7] : memref<144x32xbf16, #tpu.memory_space<vmem>>, vector<16x32xbf16>
      %cst_8 = arith.constant dense<0.000000e+00> : vector<8x32xf32>
      %12 = tpu.matmul %10, %11, %cst_8 {dimension_numbers = #tpu.dot_dimension_numbers<[1], [0], [0], [1], [0, 0, 1, 1], [], []>} : vector<8x16xbf16>, vector<16x32xbf16>, vector<8x32xf32> -> vector<8x32xf32>
      %13 = arith.addf %7, %12 : vector<8x32xf32>
      %14 = arith.index_cast %arg8 : i32 to index
      %c1 = arith.constant 1 : index
      %c0_9 = arith.constant 0 : index
      %15 = vector.load %arg1[%14, %c1, %c0_9] : memref<16x9x32xbf16, #tpu.memory_space<vmem>>, vector<1x8x16xbf16>
      %16 = vector.shape_cast %15 : vector<1x8x16xbf16> to vector<8x16xbf16>
      %c32 = arith.constant 32 : index
      %c0_10 = arith.constant 0 : index
      %17 = vector.load %arg4[%c32, %c0_10] : memref<144x32xbf16, #tpu.memory_space<vmem>>, vector<16x32xbf16>
      %cst_11 = arith.constant dense<0.000000e+00> : vector<8x32xf32>
      %18 = tpu.matmul %16, %17, %cst_11 {dimension_numbers = #tpu.dot_dimension_numbers<[1], [0], [0], [1], [0, 0, 1, 1], [], []>} : vector<8x16xbf16>, vector<16x32xbf16>, vector<8x32xf32> -> vector<8x32xf32>
      %19 = arith.addf %13, %18 : vector<8x32xf32>
      %20 = arith.index_cast %arg8 : i32 to index
      %c0_12 = arith.constant 0 : index
      %c0_13 = arith.constant 0 : index
      %21 = vector.load %arg2[%20, %c0_12, %c0_13] : memref<16x9x32xbf16, #tpu.memory_space<vmem>>, vector<1x8x16xbf16>
      %22 = vector.shape_cast %21 : vector<1x8x16xbf16> to vector<8x16xbf16>
      %c48 = arith.constant 48 : index
      %c0_14 = arith.constant 0 : index
      %23 = vector.load %arg4[%c48, %c0_14] : memref<144x32xbf16, #tpu.memory_space<vmem>>, vector<16x32xbf16>
      %cst_15 = arith.constant dense<0.000000e+00> : vector<8x32xf32>
      %24 = tpu.matmul %22, %23, %cst_15 {dimension_numbers = #tpu.dot_dimension_numbers<[1], [0], [0], [1], [0, 0, 1, 1], [], []>} : vector<8x16xbf16>, vector<16x32xbf16>, vector<8x32xf32> -> vector<8x32xf32>
      %25 = arith.addf %19, %24 : vector<8x32xf32>
      %26 = arith.index_cast %arg8 : i32 to index
      %c0_16 = arith.constant 0 : index
      %c16_17 = arith.constant 16 : index
      %27 = vector.load %arg2[%26, %c0_16, %c16_17] : memref<16x9x32xbf16, #tpu.memory_space<vmem>>, vector<1x8x16xbf16>
      %28 = vector.shape_cast %27 : vector<1x8x16xbf16> to vector<8x16xbf16>
      %c64 = arith.constant 64 : index
      %c0_18 = arith.constant 0 : index
      %29 = vector.load %arg4[%c64, %c0_18] : memref<144x32xbf16, #tpu.memory_space<vmem>>, vector<16x32xbf16>
      %cst_19 = arith.constant dense<0.000000e+00> : vector<8x32xf32>
      %30 = tpu.matmul %28, %29, %cst_19 {dimension_numbers = #tpu.dot_dimension_numbers<[1], [0], [0], [1], [0, 0, 1, 1], [], []>} : vector<8x16xbf16>, vector<16x32xbf16>, vector<8x32xf32> -> vector<8x32xf32>
      %31 = arith.addf %25, %30 : vector<8x32xf32>
      %32 = arith.index_cast %arg8 : i32 to index
      %c1_20 = arith.constant 1 : index
      %c0_21 = arith.constant 0 : index
      %33 = vector.load %arg2[%32, %c1_20, %c0_21] : memref<16x9x32xbf16, #tpu.memory_space<vmem>>, vector<1x8x16xbf16>
      %34 = vector.shape_cast %33 : vector<1x8x16xbf16> to vector<8x16xbf16>
      %c80 = arith.constant 80 : index
      %c0_22 = arith.constant 0 : index
      %35 = vector.load %arg4[%c80, %c0_22] : memref<144x32xbf16, #tpu.memory_space<vmem>>, vector<16x32xbf16>
      %cst_23 = arith.constant dense<0.000000e+00> : vector<8x32xf32>
      %36 = tpu.matmul %34, %35, %cst_23 {dimension_numbers = #tpu.dot_dimension_numbers<[1], [0], [0], [1], [0, 0, 1, 1], [], []>} : vector<8x16xbf16>, vector<16x32xbf16>, vector<8x32xf32> -> vector<8x32xf32>
      %37 = arith.addf %31, %36 : vector<8x32xf32>
      %38 = arith.index_cast %arg8 : i32 to index
      %c0_24 = arith.constant 0 : index
      %c0_25 = arith.constant 0 : index
      %39 = vector.load %arg3[%38, %c0_24, %c0_25] : memref<16x9x32xbf16, #tpu.memory_space<vmem>>, vector<1x8x16xbf16>
      %40 = vector.shape_cast %39 : vector<1x8x16xbf16> to vector<8x16xbf16>
      %c96 = arith.constant 96 : index
      %c0_26 = arith.constant 0 : index
      %41 = vector.load %arg4[%c96, %c0_26] : memref<144x32xbf16, #tpu.memory_space<vmem>>, vector<16x32xbf16>
      %cst_27 = arith.constant dense<0.000000e+00> : vector<8x32xf32>
      %42 = tpu.matmul %40, %41, %cst_27 {dimension_numbers = #tpu.dot_dimension_numbers<[1], [0], [0], [1], [0, 0, 1, 1], [], []>} : vector<8x16xbf16>, vector<16x32xbf16>, vector<8x32xf32> -> vector<8x32xf32>
      %43 = arith.addf %37, %42 : vector<8x32xf32>
      %44 = arith.index_cast %arg8 : i32 to index
      %c0_28 = arith.constant 0 : index
      %c16_29 = arith.constant 16 : index
      %45 = vector.load %arg3[%44, %c0_28, %c16_29] : memref<16x9x32xbf16, #tpu.memory_space<vmem>>, vector<1x8x16xbf16>
      %46 = vector.shape_cast %45 : vector<1x8x16xbf16> to vector<8x16xbf16>
      %c112 = arith.constant 112 : index
      %c0_30 = arith.constant 0 : index
      %47 = vector.load %arg4[%c112, %c0_30] : memref<144x32xbf16, #tpu.memory_space<vmem>>, vector<16x32xbf16>
      %cst_31 = arith.constant dense<0.000000e+00> : vector<8x32xf32>
      %48 = tpu.matmul %46, %47, %cst_31 {dimension_numbers = #tpu.dot_dimension_numbers<[1], [0], [0], [1], [0, 0, 1, 1], [], []>} : vector<8x16xbf16>, vector<16x32xbf16>, vector<8x32xf32> -> vector<8x32xf32>
      %49 = arith.addf %43, %48 : vector<8x32xf32>
      %50 = arith.index_cast %arg8 : i32 to index
      %c1_32 = arith.constant 1 : index
      %c0_33 = arith.constant 0 : index
      %51 = vector.load %arg3[%50, %c1_32, %c0_33] : memref<16x9x32xbf16, #tpu.memory_space<vmem>>, vector<1x8x16xbf16>
      %52 = vector.shape_cast %51 : vector<1x8x16xbf16> to vector<8x16xbf16>
      %c128 = arith.constant 128 : index
      %c0_34 = arith.constant 0 : index
      %53 = vector.load %arg4[%c128, %c0_34] : memref<144x32xbf16, #tpu.memory_space<vmem>>, vector<16x32xbf16>
      %cst_35 = arith.constant dense<0.000000e+00> : vector<8x32xf32>
      %54 = tpu.matmul %52, %53, %cst_35 {dimension_numbers = #tpu.dot_dimension_numbers<[1], [0], [0], [1], [0, 0, 1, 1], [], []>} : vector<8x16xbf16>, vector<16x32xbf16>, vector<8x32xf32> -> vector<8x32xf32>
      %55 = arith.addf %49, %54 : vector<8x32xf32>
      %c0_36 = arith.constant 0 : index
      %c0_37 = arith.constant 0 : index
      %56 = vector.load %arg5[%c0_36, %c0_37] : memref<1x32xf32, #tpu.memory_space<vmem>>, vector<1x32xf32>
      %57 = vector.broadcast %56 : vector<1x32xf32> to vector<8x32xf32>
      %58 = arith.addf %55, %57 : vector<8x32xf32>
      %cst_38 = arith.constant 0.000000e+00 : f32
      %59 = vector.broadcast %cst_38 : f32 to vector<8x32xf32>
      %60 = arith.cmpf oge, %58, %59 : vector<8x32xf32>
      %c0_39 = arith.constant 0 : index
      %c0_40 = arith.constant 0 : index
      %61 = vector.load %arg6[%c0_39, %c0_40] : memref<1x32xf32, #tpu.memory_space<vmem>>, vector<1x32xf32>
      %62 = vector.broadcast %61 : vector<1x32xf32> to vector<8x32xf32>
      %63 = arith.mulf %62, %58 : vector<8x32xf32>
      %64 = arith.select %60, %58, %63 : vector<8x32xi1>, vector<8x32xf32>
      %65 = arith.truncf %64 : vector<8x32xf32> to vector<8x32xbf16>
      %66 = arith.index_cast %arg8 : i32 to index
      %c0_41 = arith.constant 0 : index
      %c0_42 = arith.constant 0 : index
      %67 = vector.load %arg7[%66, %c0_41, %c0_42] : memref<16x8x32xbf16, #tpu.memory_space<vmem>>, vector<1x8x32xbf16>
      %68 = vector.shape_cast %67 : vector<1x8x32xbf16> to vector<8x32xbf16>
      %69 = vector.shape_cast %65 : vector<8x32xbf16> to vector<1x8x32xbf16>
      tpu.vector_store %arg7[%66, %c0_41, %c0_42], %69 {strides = array<i32>} : memref<16x8x32xbf16, #tpu.memory_space<vmem>>, vector<1x8x32xbf16>,
    }
    %c16_i32_0 = arith.constant 16 : i32
    return
  }
  func.func @transform_0(%arg0: i32) -> (i32, i32, i32) {
    %c0_i32 = arith.constant 0 : i32
    %c0_i32_0 = arith.constant 0 : i32
    %c0_i32_1 = arith.constant 0 : i32
    return %arg0, %c0_i32, %c0_i32_0 : i32, i32, i32
  }
  func.func @transform_1(%arg0: i32) -> (i32, i32, i32) {
    %c0_i32 = arith.constant 0 : i32
    %c0_i32_0 = arith.constant 0 : i32
    %c0_i32_1 = arith.constant 0 : i32
    return %arg0, %c0_i32, %c0_i32_0 : i32, i32, i32
  }
  func.func @transform_2(%arg0: i32) -> (i32, i32, i32) {
    %c0_i32 = arith.constant 0 : i32
    %c0_i32_0 = arith.constant 0 : i32
    %c0_i32_1 = arith.constant 0 : i32
    return %arg0, %c0_i32, %c0_i32_0 : i32, i32, i32
  }
  func.func @transform_3(%arg0: i32) -> (i32, i32) {
    %c0_i32 = arith.constant 0 : i32
    %c0_i32_0 = arith.constant 0 : i32
    %c0_i32_1 = arith.constant 0 : i32
    return %c0_i32, %c0_i32_0 : i32, i32
  }
  func.func @transform_4(%arg0: i32) -> (i32, i32) {
    %c0_i32 = arith.constant 0 : i32
    %c0_i32_0 = arith.constant 0 : i32
    %c0_i32_1 = arith.constant 0 : i32
    return %c0_i32, %c0_i32_0 : i32, i32
  }
  func.func @transform_5(%arg0: i32) -> (i32, i32) {
    %c0_i32 = arith.constant 0 : i32
    %c0_i32_0 = arith.constant 0 : i32
    %c0_i32_1 = arith.constant 0 : i32
    return %c0_i32, %c0_i32_0 : i32, i32
  }
  func.func @transform_6(%arg0: i32) -> (i32, i32, i32) {
    %c0_i32 = arith.constant 0 : i32
    %c0_i32_0 = arith.constant 0 : i32
    %c0_i32_1 = arith.constant 0 : i32
    return %arg0, %c0_i32, %c0_i32_0 : i32, i32, i32
  }
}

module attributes {stable_mosaic.version = 11 : i64} {
  func.func @kernel(%arg0: i32, %arg1: memref<8x5x64xbf16, #tpu.memory_space<vmem>>, %arg2: memref<8x5x64xbf16, #tpu.memory_space<vmem>>, %arg3: memref<8x5x64xbf16, #tpu.memory_space<vmem>>, %arg4: memref<288x64xbf16, #tpu.memory_space<vmem>>, %arg5: memref<1x64xf32, #tpu.memory_space<vmem>>, %arg6: memref<1x64xf32, #tpu.memory_space<vmem>>, %arg7: memref<8x4x64xbf16, #tpu.memory_space<vmem>>) attributes {dimension_semantics = [#tpu.dimension_semantics<parallel>], iteration_bounds = array<i64: 1>, scalar_prefetch = 0 : i64, scratch_operands = 0 : i64, tpu.core_type = #tpu.core_type<tc>, window_params = [{transform_indices = @transform_0, window_bounds = array<i64: 8, 5, 64>}, {transform_indices = @transform_1, window_bounds = array<i64: 8, 5, 64>}, {transform_indices = @transform_2, window_bounds = array<i64: 8, 5, 64>}, {pipeline_mode = #tpu.pipeline_mode<synchronous>, transform_indices = @transform_3, window_bounds = array<i64: 288, 64>}, {pipeline_mode = #tpu.pipeline_mode<synchronous>, transform_indices = @transform_4, window_bounds = array<i64: 1, 64>}, {pipeline_mode = #tpu.pipeline_mode<synchronous>, transform_indices = @transform_5, window_bounds = array<i64: 1, 64>}, {transform_indices = @transform_6, window_bounds = array<i64: 8, 4, 64>}]} {
    %c0_i32 = arith.constant 0 : i32
    %c8_i32 = arith.constant 8 : i32
    %0 = arith.addi %c0_i32, %c8_i32 : i32
    %c1_i32 = arith.constant 1 : i32
    scf.for %arg8 = %c0_i32 to %0 step %c1_i32  : i32 {
      %cst = arith.constant 0.000000e+00 : f32
      %1 = vector.broadcast %cst : f32 to vector<4x64xf32>
      %2 = arith.index_cast %arg8 : i32 to index
      %c0 = arith.constant 0 : index
      %c0_1 = arith.constant 0 : index
      %3 = vector.load %arg1[%2, %c0, %c0_1] : memref<8x5x64xbf16, #tpu.memory_space<vmem>>, vector<1x4x32xbf16>
      %4 = vector.shape_cast %3 : vector<1x4x32xbf16> to vector<4x32xbf16>
      %c0_2 = arith.constant 0 : index
      %c0_3 = arith.constant 0 : index
      %5 = vector.load %arg4[%c0_2, %c0_3] : memref<288x64xbf16, #tpu.memory_space<vmem>>, vector<32x64xbf16>
      %cst_4 = arith.constant dense<0.000000e+00> : vector<4x64xf32>
      %6 = tpu.matmul %4, %5, %cst_4 {dimension_numbers = #tpu.dot_dimension_numbers<[1], [0], [0], [1], [0, 0, 1, 1], [], []>} : vector<4x32xbf16>, vector<32x64xbf16>, vector<4x64xf32> -> vector<4x64xf32>
      %7 = arith.addf %1, %6 : vector<4x64xf32>
      %8 = arith.index_cast %arg8 : i32 to index
      %c0_5 = arith.constant 0 : index
      %c32 = arith.constant 32 : index
      %9 = vector.load %arg1[%8, %c0_5, %c32] : memref<8x5x64xbf16, #tpu.memory_space<vmem>>, vector<1x4x32xbf16>
      %10 = vector.shape_cast %9 : vector<1x4x32xbf16> to vector<4x32xbf16>
      %c32_6 = arith.constant 32 : index
      %c0_7 = arith.constant 0 : index
      %11 = vector.load %arg4[%c32_6, %c0_7] : memref<288x64xbf16, #tpu.memory_space<vmem>>, vector<32x64xbf16>
      %cst_8 = arith.constant dense<0.000000e+00> : vector<4x64xf32>
      %12 = tpu.matmul %10, %11, %cst_8 {dimension_numbers = #tpu.dot_dimension_numbers<[1], [0], [0], [1], [0, 0, 1, 1], [], []>} : vector<4x32xbf16>, vector<32x64xbf16>, vector<4x64xf32> -> vector<4x64xf32>
      %13 = arith.addf %7, %12 : vector<4x64xf32>
      %14 = arith.index_cast %arg8 : i32 to index
      %c1 = arith.constant 1 : index
      %c0_9 = arith.constant 0 : index
      %15 = vector.load %arg1[%14, %c1, %c0_9] : memref<8x5x64xbf16, #tpu.memory_space<vmem>>, vector<1x4x32xbf16>
      %16 = vector.shape_cast %15 : vector<1x4x32xbf16> to vector<4x32xbf16>
      %c64 = arith.constant 64 : index
      %c0_10 = arith.constant 0 : index
      %17 = vector.load %arg4[%c64, %c0_10] : memref<288x64xbf16, #tpu.memory_space<vmem>>, vector<32x64xbf16>
      %cst_11 = arith.constant dense<0.000000e+00> : vector<4x64xf32>
      %18 = tpu.matmul %16, %17, %cst_11 {dimension_numbers = #tpu.dot_dimension_numbers<[1], [0], [0], [1], [0, 0, 1, 1], [], []>} : vector<4x32xbf16>, vector<32x64xbf16>, vector<4x64xf32> -> vector<4x64xf32>
      %19 = arith.addf %13, %18 : vector<4x64xf32>
      %20 = arith.index_cast %arg8 : i32 to index
      %c0_12 = arith.constant 0 : index
      %c0_13 = arith.constant 0 : index
      %21 = vector.load %arg2[%20, %c0_12, %c0_13] : memref<8x5x64xbf16, #tpu.memory_space<vmem>>, vector<1x4x32xbf16>
      %22 = vector.shape_cast %21 : vector<1x4x32xbf16> to vector<4x32xbf16>
      %c96 = arith.constant 96 : index
      %c0_14 = arith.constant 0 : index
      %23 = vector.load %arg4[%c96, %c0_14] : memref<288x64xbf16, #tpu.memory_space<vmem>>, vector<32x64xbf16>
      %cst_15 = arith.constant dense<0.000000e+00> : vector<4x64xf32>
      %24 = tpu.matmul %22, %23, %cst_15 {dimension_numbers = #tpu.dot_dimension_numbers<[1], [0], [0], [1], [0, 0, 1, 1], [], []>} : vector<4x32xbf16>, vector<32x64xbf16>, vector<4x64xf32> -> vector<4x64xf32>
      %25 = arith.addf %19, %24 : vector<4x64xf32>
      %26 = arith.index_cast %arg8 : i32 to index
      %c0_16 = arith.constant 0 : index
      %c32_17 = arith.constant 32 : index
      %27 = vector.load %arg2[%26, %c0_16, %c32_17] : memref<8x5x64xbf16, #tpu.memory_space<vmem>>, vector<1x4x32xbf16>
      %28 = vector.shape_cast %27 : vector<1x4x32xbf16> to vector<4x32xbf16>
      %c128 = arith.constant 128 : index
      %c0_18 = arith.constant 0 : index
      %29 = vector.load %arg4[%c128, %c0_18] : memref<288x64xbf16, #tpu.memory_space<vmem>>, vector<32x64xbf16>
      %cst_19 = arith.constant dense<0.000000e+00> : vector<4x64xf32>
      %30 = tpu.matmul %28, %29, %cst_19 {dimension_numbers = #tpu.dot_dimension_numbers<[1], [0], [0], [1], [0, 0, 1, 1], [], []>} : vector<4x32xbf16>, vector<32x64xbf16>, vector<4x64xf32> -> vector<4x64xf32>
      %31 = arith.addf %25, %30 : vector<4x64xf32>
      %32 = arith.index_cast %arg8 : i32 to index
      %c1_20 = arith.constant 1 : index
      %c0_21 = arith.constant 0 : index
      %33 = vector.load %arg2[%32, %c1_20, %c0_21] : memref<8x5x64xbf16, #tpu.memory_space<vmem>>, vector<1x4x32xbf16>
      %34 = vector.shape_cast %33 : vector<1x4x32xbf16> to vector<4x32xbf16>
      %c160 = arith.constant 160 : index
      %c0_22 = arith.constant 0 : index
      %35 = vector.load %arg4[%c160, %c0_22] : memref<288x64xbf16, #tpu.memory_space<vmem>>, vector<32x64xbf16>
      %cst_23 = arith.constant dense<0.000000e+00> : vector<4x64xf32>
      %36 = tpu.matmul %34, %35, %cst_23 {dimension_numbers = #tpu.dot_dimension_numbers<[1], [0], [0], [1], [0, 0, 1, 1], [], []>} : vector<4x32xbf16>, vector<32x64xbf16>, vector<4x64xf32> -> vector<4x64xf32>
      %37 = arith.addf %31, %36 : vector<4x64xf32>
      %38 = arith.index_cast %arg8 : i32 to index
      %c0_24 = arith.constant 0 : index
      %c0_25 = arith.constant 0 : index
      %39 = vector.load %arg3[%38, %c0_24, %c0_25] : memref<8x5x64xbf16, #tpu.memory_space<vmem>>, vector<1x4x32xbf16>
      %40 = vector.shape_cast %39 : vector<1x4x32xbf16> to vector<4x32xbf16>
      %c192 = arith.constant 192 : index
      %c0_26 = arith.constant 0 : index
      %41 = vector.load %arg4[%c192, %c0_26] : memref<288x64xbf16, #tpu.memory_space<vmem>>, vector<32x64xbf16>
      %cst_27 = arith.constant dense<0.000000e+00> : vector<4x64xf32>
      %42 = tpu.matmul %40, %41, %cst_27 {dimension_numbers = #tpu.dot_dimension_numbers<[1], [0], [0], [1], [0, 0, 1, 1], [], []>} : vector<4x32xbf16>, vector<32x64xbf16>, vector<4x64xf32> -> vector<4x64xf32>
      %43 = arith.addf %37, %42 : vector<4x64xf32>
      %44 = arith.index_cast %arg8 : i32 to index
      %c0_28 = arith.constant 0 : index
      %c32_29 = arith.constant 32 : index
      %45 = vector.load %arg3[%44, %c0_28, %c32_29] : memref<8x5x64xbf16, #tpu.memory_space<vmem>>, vector<1x4x32xbf16>
      %46 = vector.shape_cast %45 : vector<1x4x32xbf16> to vector<4x32xbf16>
      %c224 = arith.constant 224 : index
      %c0_30 = arith.constant 0 : index
      %47 = vector.load %arg4[%c224, %c0_30] : memref<288x64xbf16, #tpu.memory_space<vmem>>, vector<32x64xbf16>
      %cst_31 = arith.constant dense<0.000000e+00> : vector<4x64xf32>
      %48 = tpu.matmul %46, %47, %cst_31 {dimension_numbers = #tpu.dot_dimension_numbers<[1], [0], [0], [1], [0, 0, 1, 1], [], []>} : vector<4x32xbf16>, vector<32x64xbf16>, vector<4x64xf32> -> vector<4x64xf32>
      %49 = arith.addf %43, %48 : vector<4x64xf32>
      %50 = arith.index_cast %arg8 : i32 to index
      %c1_32 = arith.constant 1 : index
      %c0_33 = arith.constant 0 : index
      %51 = vector.load %arg3[%50, %c1_32, %c0_33] : memref<8x5x64xbf16, #tpu.memory_space<vmem>>, vector<1x4x32xbf16>
      %52 = vector.shape_cast %51 : vector<1x4x32xbf16> to vector<4x32xbf16>
      %c256 = arith.constant 256 : index
      %c0_34 = arith.constant 0 : index
      %53 = vector.load %arg4[%c256, %c0_34] : memref<288x64xbf16, #tpu.memory_space<vmem>>, vector<32x64xbf16>
      %cst_35 = arith.constant dense<0.000000e+00> : vector<4x64xf32>
      %54 = tpu.matmul %52, %53, %cst_35 {dimension_numbers = #tpu.dot_dimension_numbers<[1], [0], [0], [1], [0, 0, 1, 1], [], []>} : vector<4x32xbf16>, vector<32x64xbf16>, vector<4x64xf32> -> vector<4x64xf32>
      %55 = arith.addf %49, %54 : vector<4x64xf32>
      %c0_36 = arith.constant 0 : index
      %c0_37 = arith.constant 0 : index
      %56 = vector.load %arg5[%c0_36, %c0_37] : memref<1x64xf32, #tpu.memory_space<vmem>>, vector<1x64xf32>
      %57 = vector.broadcast %56 : vector<1x64xf32> to vector<4x64xf32>
      %58 = arith.addf %55, %57 : vector<4x64xf32>
      %cst_38 = arith.constant 0.000000e+00 : f32
      %59 = vector.broadcast %cst_38 : f32 to vector<4x64xf32>
      %60 = arith.cmpf oge, %58, %59 : vector<4x64xf32>
      %c0_39 = arith.constant 0 : index
      %c0_40 = arith.constant 0 : index
      %61 = vector.load %arg6[%c0_39, %c0_40] : memref<1x64xf32, #tpu.memory_space<vmem>>, vector<1x64xf32>
      %62 = vector.broadcast %61 : vector<1x64xf32> to vector<4x64xf32>
      %63 = arith.mulf %62, %58 : vector<4x64xf32>
      %64 = arith.select %60, %58, %63 : vector<4x64xi1>, vector<4x64xf32>
      %65 = arith.truncf %64 : vector<4x64xf32> to vector<4x64xbf16>
      %66 = arith.index_cast %arg8 : i32 to index
      %c0_41 = arith.constant 0 : index
      %c0_42 = arith.constant 0 : index
      %67 = vector.load %arg7[%66, %c0_41, %c0_42] : memref<8x4x64xbf16, #tpu.memory_space<vmem>>, vector<1x4x64xbf16>
      %68 = vector.shape_cast %67 : vector<1x4x64xbf16> to vector<4x64xbf16>
      %69 = vector.shape_cast %65 : vector<4x64xbf16> to vector<1x4x64xbf16>
      tpu.vector_store %arg7[%66, %c0_41, %c0_42], %69 {strides = array<i32>} : memref<8x4x64xbf16, #tpu.memory_space<vmem>>, vector<1x4x64xbf16>,
    }
    %c8_i32_0 = arith.constant 8 : i32
    return
  }
  func.func @transform_0(%arg0: i32) -> (i32, i32, i32) {
    %c0_i32 = arith.constant 0 : i32
    %c0_i32_0 = arith.constant 0 : i32
    %c0_i32_1 = arith.constant 0 : i32
    return %arg0, %c0_i32, %c0_i32_0 : i32, i32, i32
  }
  func.func @transform_1(%arg0: i32) -> (i32, i32, i32) {
    %c0_i32 = arith.constant 0 : i32
    %c0_i32_0 = arith.constant 0 : i32
    %c0_i32_1 = arith.constant 0 : i32
    return %arg0, %c0_i32, %c0_i32_0 : i32, i32, i32
  }
  func.func @transform_2(%arg0: i32) -> (i32, i32, i32) {
    %c0_i32 = arith.constant 0 : i32
    %c0_i32_0 = arith.constant 0 : i32
    %c0_i32_1 = arith.constant 0 : i32
    return %arg0, %c0_i32, %c0_i32_0 : i32, i32, i32
  }
  func.func @transform_3(%arg0: i32) -> (i32, i32) {
    %c0_i32 = arith.constant 0 : i32
    %c0_i32_0 = arith.constant 0 : i32
    %c0_i32_1 = arith.constant 0 : i32
    return %c0_i32, %c0_i32_0 : i32, i32
  }
  func.func @transform_4(%arg0: i32) -> (i32, i32) {
    %c0_i32 = arith.constant 0 : i32
    %c0_i32_0 = arith.constant 0 : i32
    %c0_i32_1 = arith.constant 0 : i32
    return %c0_i32, %c0_i32_0 : i32, i32
  }
  func.func @transform_5(%arg0: i32) -> (i32, i32) {
    %c0_i32 = arith.constant 0 : i32
    %c0_i32_0 = arith.constant 0 : i32
    %c0_i32_1 = arith.constant 0 : i32
    return %c0_i32, %c0_i32_0 : i32, i32
  }
  func.func @transform_6(%arg0: i32) -> (i32, i32, i32) {
    %c0_i32 = arith.constant 0 : i32
    %c0_i32_0 = arith.constant 0 : i32
    %c0_i32_1 = arith.constant 0 : i32
    return %arg0, %c0_i32, %c0_i32_0 : i32, i32, i32
  }
}

module attributes {stable_mosaic.version = 11 : i64} {
  func.func @kernel(%arg0: i32, %arg1: memref<8x6x64xbf16, #tpu.memory_space<vmem>>, %arg2: memref<8x6x64xbf16, #tpu.memory_space<vmem>>, %arg3: memref<8x6x64xbf16, #tpu.memory_space<vmem>>, %arg4: memref<576x64xbf16, #tpu.memory_space<vmem>>, %arg5: memref<1x64xf32, #tpu.memory_space<vmem>>, %arg6: memref<1x64xf32, #tpu.memory_space<vmem>>, %arg7: memref<8x4x64xbf16, #tpu.memory_space<vmem>>) attributes {dimension_semantics = [#tpu.dimension_semantics<parallel>], iteration_bounds = array<i64: 1>, scalar_prefetch = 0 : i64, scratch_operands = 0 : i64, tpu.core_type = #tpu.core_type<tc>, window_params = [{transform_indices = @transform_0, window_bounds = array<i64: 8, 6, 64>}, {transform_indices = @transform_1, window_bounds = array<i64: 8, 6, 64>}, {transform_indices = @transform_2, window_bounds = array<i64: 8, 6, 64>}, {pipeline_mode = #tpu.pipeline_mode<synchronous>, transform_indices = @transform_3, window_bounds = array<i64: 576, 64>}, {pipeline_mode = #tpu.pipeline_mode<synchronous>, transform_indices = @transform_4, window_bounds = array<i64: 1, 64>}, {pipeline_mode = #tpu.pipeline_mode<synchronous>, transform_indices = @transform_5, window_bounds = array<i64: 1, 64>}, {transform_indices = @transform_6, window_bounds = array<i64: 8, 4, 64>}]} {
    %c0_i32 = arith.constant 0 : i32
    %c8_i32 = arith.constant 8 : i32
    %0 = arith.addi %c0_i32, %c8_i32 : i32
    %c1_i32 = arith.constant 1 : i32
    scf.for %arg8 = %c0_i32 to %0 step %c1_i32  : i32 {
      %cst = arith.constant 0.000000e+00 : f32
      %1 = vector.broadcast %cst : f32 to vector<4x64xf32>
      %2 = arith.index_cast %arg8 : i32 to index
      %c0 = arith.constant 0 : index
      %c0_1 = arith.constant 0 : index
      %3 = vector.load %arg1[%2, %c0, %c0_1] : memref<8x6x64xbf16, #tpu.memory_space<vmem>>, vector<1x4x64xbf16>
      %4 = vector.shape_cast %3 : vector<1x4x64xbf16> to vector<4x64xbf16>
      %c0_2 = arith.constant 0 : index
      %c0_3 = arith.constant 0 : index
      %5 = vector.load %arg4[%c0_2, %c0_3] : memref<576x64xbf16, #tpu.memory_space<vmem>>, vector<64x64xbf16>
      %cst_4 = arith.constant dense<0.000000e+00> : vector<4x64xf32>
      %6 = tpu.matmul %4, %5, %cst_4 {dimension_numbers = #tpu.dot_dimension_numbers<[1], [0], [0], [1], [0, 0, 1, 1], [], []>} : vector<4x64xbf16>, vector<64x64xbf16>, vector<4x64xf32> -> vector<4x64xf32>
      %7 = arith.addf %1, %6 : vector<4x64xf32>
      %8 = arith.index_cast %arg8 : i32 to index
      %c1 = arith.constant 1 : index
      %c0_5 = arith.constant 0 : index
      %9 = vector.load %arg1[%8, %c1, %c0_5] : memref<8x6x64xbf16, #tpu.memory_space<vmem>>, vector<1x4x64xbf16>
      %10 = vector.shape_cast %9 : vector<1x4x64xbf16> to vector<4x64xbf16>
      %c64 = arith.constant 64 : index
      %c0_6 = arith.constant 0 : index
      %11 = vector.load %arg4[%c64, %c0_6] : memref<576x64xbf16, #tpu.memory_space<vmem>>, vector<64x64xbf16>
      %cst_7 = arith.constant dense<0.000000e+00> : vector<4x64xf32>
      %12 = tpu.matmul %10, %11, %cst_7 {dimension_numbers = #tpu.dot_dimension_numbers<[1], [0], [0], [1], [0, 0, 1, 1], [], []>} : vector<4x64xbf16>, vector<64x64xbf16>, vector<4x64xf32> -> vector<4x64xf32>
      %13 = arith.addf %7, %12 : vector<4x64xf32>
      %14 = arith.index_cast %arg8 : i32 to index
      %c2 = arith.constant 2 : index
      %c0_8 = arith.constant 0 : index
      %15 = vector.load %arg1[%14, %c2, %c0_8] : memref<8x6x64xbf16, #tpu.memory_space<vmem>>, vector<1x4x64xbf16>
      %16 = vector.shape_cast %15 : vector<1x4x64xbf16> to vector<4x64xbf16>
      %c128 = arith.constant 128 : index
      %c0_9 = arith.constant 0 : index
      %17 = vector.load %arg4[%c128, %c0_9] : memref<576x64xbf16, #tpu.memory_space<vmem>>, vector<64x64xbf16>
      %cst_10 = arith.constant dense<0.000000e+00> : vector<4x64xf32>
      %18 = tpu.matmul %16, %17, %cst_10 {dimension_numbers = #tpu.dot_dimension_numbers<[1], [0], [0], [1], [0, 0, 1, 1], [], []>} : vector<4x64xbf16>, vector<64x64xbf16>, vector<4x64xf32> -> vector<4x64xf32>
      %19 = arith.addf %13, %18 : vector<4x64xf32>
      %20 = arith.index_cast %arg8 : i32 to index
      %c0_11 = arith.constant 0 : index
      %c0_12 = arith.constant 0 : index
      %21 = vector.load %arg2[%20, %c0_11, %c0_12] : memref<8x6x64xbf16, #tpu.memory_space<vmem>>, vector<1x4x64xbf16>
      %22 = vector.shape_cast %21 : vector<1x4x64xbf16> to vector<4x64xbf16>
      %c192 = arith.constant 192 : index
      %c0_13 = arith.constant 0 : index
      %23 = vector.load %arg4[%c192, %c0_13] : memref<576x64xbf16, #tpu.memory_space<vmem>>, vector<64x64xbf16>
      %cst_14 = arith.constant dense<0.000000e+00> : vector<4x64xf32>
      %24 = tpu.matmul %22, %23, %cst_14 {dimension_numbers = #tpu.dot_dimension_numbers<[1], [0], [0], [1], [0, 0, 1, 1], [], []>} : vector<4x64xbf16>, vector<64x64xbf16>, vector<4x64xf32> -> vector<4x64xf32>
      %25 = arith.addf %19, %24 : vector<4x64xf32>
      %26 = arith.index_cast %arg8 : i32 to index
      %c1_15 = arith.constant 1 : index
      %c0_16 = arith.constant 0 : index
      %27 = vector.load %arg2[%26, %c1_15, %c0_16] : memref<8x6x64xbf16, #tpu.memory_space<vmem>>, vector<1x4x64xbf16>
      %28 = vector.shape_cast %27 : vector<1x4x64xbf16> to vector<4x64xbf16>
      %c256 = arith.constant 256 : index
      %c0_17 = arith.constant 0 : index
      %29 = vector.load %arg4[%c256, %c0_17] : memref<576x64xbf16, #tpu.memory_space<vmem>>, vector<64x64xbf16>
      %cst_18 = arith.constant dense<0.000000e+00> : vector<4x64xf32>
      %30 = tpu.matmul %28, %29, %cst_18 {dimension_numbers = #tpu.dot_dimension_numbers<[1], [0], [0], [1], [0, 0, 1, 1], [], []>} : vector<4x64xbf16>, vector<64x64xbf16>, vector<4x64xf32> -> vector<4x64xf32>
      %31 = arith.addf %25, %30 : vector<4x64xf32>
      %32 = arith.index_cast %arg8 : i32 to index
      %c2_19 = arith.constant 2 : index
      %c0_20 = arith.constant 0 : index
      %33 = vector.load %arg2[%32, %c2_19, %c0_20] : memref<8x6x64xbf16, #tpu.memory_space<vmem>>, vector<1x4x64xbf16>
      %34 = vector.shape_cast %33 : vector<1x4x64xbf16> to vector<4x64xbf16>
      %c320 = arith.constant 320 : index
      %c0_21 = arith.constant 0 : index
      %35 = vector.load %arg4[%c320, %c0_21] : memref<576x64xbf16, #tpu.memory_space<vmem>>, vector<64x64xbf16>
      %cst_22 = arith.constant dense<0.000000e+00> : vector<4x64xf32>
      %36 = tpu.matmul %34, %35, %cst_22 {dimension_numbers = #tpu.dot_dimension_numbers<[1], [0], [0], [1], [0, 0, 1, 1], [], []>} : vector<4x64xbf16>, vector<64x64xbf16>, vector<4x64xf32> -> vector<4x64xf32>
      %37 = arith.addf %31, %36 : vector<4x64xf32>
      %38 = arith.index_cast %arg8 : i32 to index
      %c0_23 = arith.constant 0 : index
      %c0_24 = arith.constant 0 : index
      %39 = vector.load %arg3[%38, %c0_23, %c0_24] : memref<8x6x64xbf16, #tpu.memory_space<vmem>>, vector<1x4x64xbf16>
      %40 = vector.shape_cast %39 : vector<1x4x64xbf16> to vector<4x64xbf16>
      %c384 = arith.constant 384 : index
      %c0_25 = arith.constant 0 : index
      %41 = vector.load %arg4[%c384, %c0_25] : memref<576x64xbf16, #tpu.memory_space<vmem>>, vector<64x64xbf16>
      %cst_26 = arith.constant dense<0.000000e+00> : vector<4x64xf32>
      %42 = tpu.matmul %40, %41, %cst_26 {dimension_numbers = #tpu.dot_dimension_numbers<[1], [0], [0], [1], [0, 0, 1, 1], [], []>} : vector<4x64xbf16>, vector<64x64xbf16>, vector<4x64xf32> -> vector<4x64xf32>
      %43 = arith.addf %37, %42 : vector<4x64xf32>
      %44 = arith.index_cast %arg8 : i32 to index
      %c1_27 = arith.constant 1 : index
      %c0_28 = arith.constant 0 : index
      %45 = vector.load %arg3[%44, %c1_27, %c0_28] : memref<8x6x64xbf16, #tpu.memory_space<vmem>>, vector<1x4x64xbf16>
      %46 = vector.shape_cast %45 : vector<1x4x64xbf16> to vector<4x64xbf16>
      %c448 = arith.constant 448 : index
      %c0_29 = arith.constant 0 : index
      %47 = vector.load %arg4[%c448, %c0_29] : memref<576x64xbf16, #tpu.memory_space<vmem>>, vector<64x64xbf16>
      %cst_30 = arith.constant dense<0.000000e+00> : vector<4x64xf32>
      %48 = tpu.matmul %46, %47, %cst_30 {dimension_numbers = #tpu.dot_dimension_numbers<[1], [0], [0], [1], [0, 0, 1, 1], [], []>} : vector<4x64xbf16>, vector<64x64xbf16>, vector<4x64xf32> -> vector<4x64xf32>
      %49 = arith.addf %43, %48 : vector<4x64xf32>
      %50 = arith.index_cast %arg8 : i32 to index
      %c2_31 = arith.constant 2 : index
      %c0_32 = arith.constant 0 : index
      %51 = vector.load %arg3[%50, %c2_31, %c0_32] : memref<8x6x64xbf16, #tpu.memory_space<vmem>>, vector<1x4x64xbf16>
      %52 = vector.shape_cast %51 : vector<1x4x64xbf16> to vector<4x64xbf16>
      %c512 = arith.constant 512 : index
      %c0_33 = arith.constant 0 : index
      %53 = vector.load %arg4[%c512, %c0_33] : memref<576x64xbf16, #tpu.memory_space<vmem>>, vector<64x64xbf16>
      %cst_34 = arith.constant dense<0.000000e+00> : vector<4x64xf32>
      %54 = tpu.matmul %52, %53, %cst_34 {dimension_numbers = #tpu.dot_dimension_numbers<[1], [0], [0], [1], [0, 0, 1, 1], [], []>} : vector<4x64xbf16>, vector<64x64xbf16>, vector<4x64xf32> -> vector<4x64xf32>
      %55 = arith.addf %49, %54 : vector<4x64xf32>
      %c0_35 = arith.constant 0 : index
      %c0_36 = arith.constant 0 : index
      %56 = vector.load %arg5[%c0_35, %c0_36] : memref<1x64xf32, #tpu.memory_space<vmem>>, vector<1x64xf32>
      %57 = vector.broadcast %56 : vector<1x64xf32> to vector<4x64xf32>
      %58 = arith.addf %55, %57 : vector<4x64xf32>
      %cst_37 = arith.constant 0.000000e+00 : f32
      %59 = vector.broadcast %cst_37 : f32 to vector<4x64xf32>
      %60 = arith.cmpf oge, %58, %59 : vector<4x64xf32>
      %c0_38 = arith.constant 0 : index
      %c0_39 = arith.constant 0 : index
      %61 = vector.load %arg6[%c0_38, %c0_39] : memref<1x64xf32, #tpu.memory_space<vmem>>, vector<1x64xf32>
      %62 = vector.broadcast %61 : vector<1x64xf32> to vector<4x64xf32>
      %63 = arith.mulf %62, %58 : vector<4x64xf32>
      %64 = arith.select %60, %58, %63 : vector<4x64xi1>, vector<4x64xf32>
      %65 = arith.truncf %64 : vector<4x64xf32> to vector<4x64xbf16>
      %66 = arith.index_cast %arg8 : i32 to index
      %c0_40 = arith.constant 0 : index
      %c0_41 = arith.constant 0 : index
      %67 = vector.load %arg7[%66, %c0_40, %c0_41] : memref<8x4x64xbf16, #tpu.memory_space<vmem>>, vector<1x4x64xbf16>
      %68 = vector.shape_cast %67 : vector<1x4x64xbf16> to vector<4x64xbf16>
      %69 = vector.shape_cast %65 : vector<4x64xbf16> to vector<1x4x64xbf16>
      tpu.vector_store %arg7[%66, %c0_40, %c0_41], %69 {strides = array<i32>} : memref<8x4x64xbf16, #tpu.memory_space<vmem>>, vector<1x4x64xbf16>,
    }
    %c8_i32_0 = arith.constant 8 : i32
    return
  }
  func.func @transform_0(%arg0: i32) -> (i32, i32, i32) {
    %c0_i32 = arith.constant 0 : i32
    %c0_i32_0 = arith.constant 0 : i32
    %c0_i32_1 = arith.constant 0 : i32
    return %arg0, %c0_i32, %c0_i32_0 : i32, i32, i32
  }
  func.func @transform_1(%arg0: i32) -> (i32, i32, i32) {
    %c0_i32 = arith.constant 0 : i32
    %c0_i32_0 = arith.constant 0 : i32
    %c0_i32_1 = arith.constant 0 : i32
    return %arg0, %c0_i32, %c0_i32_0 : i32, i32, i32
  }
  func.func @transform_2(%arg0: i32) -> (i32, i32, i32) {
    %c0_i32 = arith.constant 0 : i32
    %c0_i32_0 = arith.constant 0 : i32
    %c0_i32_1 = arith.constant 0 : i32
    return %arg0, %c0_i32, %c0_i32_0 : i32, i32, i32
  }
  func.func @transform_3(%arg0: i32) -> (i32, i32) {
    %c0_i32 = arith.constant 0 : i32
    %c0_i32_0 = arith.constant 0 : i32
    %c0_i32_1 = arith.constant 0 : i32
    return %c0_i32, %c0_i32_0 : i32, i32
  }
  func.func @transform_4(%arg0: i32) -> (i32, i32) {
    %c0_i32 = arith.constant 0 : i32
    %c0_i32_0 = arith.constant 0 : i32
    %c0_i32_1 = arith.constant 0 : i32
    return %c0_i32, %c0_i32_0 : i32, i32
  }
  func.func @transform_5(%arg0: i32) -> (i32, i32) {
    %c0_i32 = arith.constant 0 : i32
    %c0_i32_0 = arith.constant 0 : i32
    %c0_i32_1 = arith.constant 0 : i32
    return %c0_i32, %c0_i32_0 : i32, i32
  }
  func.func @transform_6(%arg0: i32) -> (i32, i32, i32) {
    %c0_i32 = arith.constant 0 : i32
    %c0_i32_0 = arith.constant 0 : i32
    %c0_i32_1 = arith.constant 0 : i32
    return %arg0, %c0_i32, %c0_i32_0 : i32, i32, i32
  }
}

module attributes {stable_mosaic.version = 11 : i64} {
  func.func @kernel(%arg0: i32, %arg1: memref<4x4x128xbf16, #tpu.memory_space<vmem>>, %arg2: memref<4x4x128xbf16, #tpu.memory_space<vmem>>, %arg3: memref<4x4x128xbf16, #tpu.memory_space<vmem>>, %arg4: memref<1152x128xbf16, #tpu.memory_space<vmem>>, %arg5: memref<1x128xf32, #tpu.memory_space<vmem>>, %arg6: memref<1x128xf32, #tpu.memory_space<vmem>>, %arg7: memref<4x2x128xbf16, #tpu.memory_space<vmem>>) attributes {dimension_semantics = [#tpu.dimension_semantics<parallel>], iteration_bounds = array<i64: 1>, scalar_prefetch = 0 : i64, scratch_operands = 0 : i64, tpu.core_type = #tpu.core_type<tc>, window_params = [{transform_indices = @transform_0, window_bounds = array<i64: 4, 4, 128>}, {transform_indices = @transform_1, window_bounds = array<i64: 4, 4, 128>}, {transform_indices = @transform_2, window_bounds = array<i64: 4, 4, 128>}, {pipeline_mode = #tpu.pipeline_mode<synchronous>, transform_indices = @transform_3, window_bounds = array<i64: 1152, 128>}, {pipeline_mode = #tpu.pipeline_mode<synchronous>, transform_indices = @transform_4, window_bounds = array<i64: 1, 128>}, {pipeline_mode = #tpu.pipeline_mode<synchronous>, transform_indices = @transform_5, window_bounds = array<i64: 1, 128>}, {transform_indices = @transform_6, window_bounds = array<i64: 4, 2, 128>}]} {
    %c0_i32 = arith.constant 0 : i32
    %c4_i32 = arith.constant 4 : i32
    %0 = arith.addi %c0_i32, %c4_i32 : i32
    %c1_i32 = arith.constant 1 : i32
    scf.for %arg8 = %c0_i32 to %0 step %c1_i32  : i32 {
      %cst = arith.constant 0.000000e+00 : f32
      %1 = vector.broadcast %cst : f32 to vector<2x128xf32>
      %2 = arith.index_cast %arg8 : i32 to index
      %c0 = arith.constant 0 : index
      %c0_1 = arith.constant 0 : index
      %3 = vector.load %arg1[%2, %c0, %c0_1] : memref<4x4x128xbf16, #tpu.memory_space<vmem>>, vector<1x2x128xbf16>
      %4 = vector.shape_cast %3 : vector<1x2x128xbf16> to vector<2x128xbf16>
      %c0_2 = arith.constant 0 : index
      %c0_3 = arith.constant 0 : index
      %5 = vector.load %arg4[%c0_2, %c0_3] : memref<1152x128xbf16, #tpu.memory_space<vmem>>, vector<128x128xbf16>
      %cst_4 = arith.constant dense<0.000000e+00> : vector<2x128xf32>
      %6 = tpu.matmul %4, %5, %cst_4 {dimension_numbers = #tpu.dot_dimension_numbers<[1], [0], [0], [1], [0, 0, 1, 1], [], []>} : vector<2x128xbf16>, vector<128x128xbf16>, vector<2x128xf32> -> vector<2x128xf32>
      %7 = arith.addf %1, %6 : vector<2x128xf32>
      %8 = arith.index_cast %arg8 : i32 to index
      %c1 = arith.constant 1 : index
      %c0_5 = arith.constant 0 : index
      %9 = vector.load %arg1[%8, %c1, %c0_5] : memref<4x4x128xbf16, #tpu.memory_space<vmem>>, vector<1x2x128xbf16>
      %10 = vector.shape_cast %9 : vector<1x2x128xbf16> to vector<2x128xbf16>
      %c128 = arith.constant 128 : index
      %c0_6 = arith.constant 0 : index
      %11 = vector.load %arg4[%c128, %c0_6] : memref<1152x128xbf16, #tpu.memory_space<vmem>>, vector<128x128xbf16>
      %cst_7 = arith.constant dense<0.000000e+00> : vector<2x128xf32>
      %12 = tpu.matmul %10, %11, %cst_7 {dimension_numbers = #tpu.dot_dimension_numbers<[1], [0], [0], [1], [0, 0, 1, 1], [], []>} : vector<2x128xbf16>, vector<128x128xbf16>, vector<2x128xf32> -> vector<2x128xf32>
      %13 = arith.addf %7, %12 : vector<2x128xf32>
      %14 = arith.index_cast %arg8 : i32 to index
      %c2 = arith.constant 2 : index
      %c0_8 = arith.constant 0 : index
      %15 = vector.load %arg1[%14, %c2, %c0_8] : memref<4x4x128xbf16, #tpu.memory_space<vmem>>, vector<1x2x128xbf16>
      %16 = vector.shape_cast %15 : vector<1x2x128xbf16> to vector<2x128xbf16>
      %c256 = arith.constant 256 : index
      %c0_9 = arith.constant 0 : index
      %17 = vector.load %arg4[%c256, %c0_9] : memref<1152x128xbf16, #tpu.memory_space<vmem>>, vector<128x128xbf16>
      %cst_10 = arith.constant dense<0.000000e+00> : vector<2x128xf32>
      %18 = tpu.matmul %16, %17, %cst_10 {dimension_numbers = #tpu.dot_dimension_numbers<[1], [0], [0], [1], [0, 0, 1, 1], [], []>} : vector<2x128xbf16>, vector<128x128xbf16>, vector<2x128xf32> -> vector<2x128xf32>
      %19 = arith.addf %13, %18 : vector<2x128xf32>
      %20 = arith.index_cast %arg8 : i32 to index
      %c0_11 = arith.constant 0 : index
      %c0_12 = arith.constant 0 : index
      %21 = vector.load %arg2[%20, %c0_11, %c0_12] : memref<4x4x128xbf16, #tpu.memory_space<vmem>>, vector<1x2x128xbf16>
      %22 = vector.shape_cast %21 : vector<1x2x128xbf16> to vector<2x128xbf16>
      %c384 = arith.constant 384 : index
      %c0_13 = arith.constant 0 : index
      %23 = vector.load %arg4[%c384, %c0_13] : memref<1152x128xbf16, #tpu.memory_space<vmem>>, vector<128x128xbf16>
      %cst_14 = arith.constant dense<0.000000e+00> : vector<2x128xf32>
      %24 = tpu.matmul %22, %23, %cst_14 {dimension_numbers = #tpu.dot_dimension_numbers<[1], [0], [0], [1], [0, 0, 1, 1], [], []>} : vector<2x128xbf16>, vector<128x128xbf16>, vector<2x128xf32> -> vector<2x128xf32>
      %25 = arith.addf %19, %24 : vector<2x128xf32>
      %26 = arith.index_cast %arg8 : i32 to index
      %c1_15 = arith.constant 1 : index
      %c0_16 = arith.constant 0 : index
      %27 = vector.load %arg2[%26, %c1_15, %c0_16] : memref<4x4x128xbf16, #tpu.memory_space<vmem>>, vector<1x2x128xbf16>
      %28 = vector.shape_cast %27 : vector<1x2x128xbf16> to vector<2x128xbf16>
      %c512 = arith.constant 512 : index
      %c0_17 = arith.constant 0 : index
      %29 = vector.load %arg4[%c512, %c0_17] : memref<1152x128xbf16, #tpu.memory_space<vmem>>, vector<128x128xbf16>
      %cst_18 = arith.constant dense<0.000000e+00> : vector<2x128xf32>
      %30 = tpu.matmul %28, %29, %cst_18 {dimension_numbers = #tpu.dot_dimension_numbers<[1], [0], [0], [1], [0, 0, 1, 1], [], []>} : vector<2x128xbf16>, vector<128x128xbf16>, vector<2x128xf32> -> vector<2x128xf32>
      %31 = arith.addf %25, %30 : vector<2x128xf32>
      %32 = arith.index_cast %arg8 : i32 to index
      %c2_19 = arith.constant 2 : index
      %c0_20 = arith.constant 0 : index
      %33 = vector.load %arg2[%32, %c2_19, %c0_20] : memref<4x4x128xbf16, #tpu.memory_space<vmem>>, vector<1x2x128xbf16>
      %34 = vector.shape_cast %33 : vector<1x2x128xbf16> to vector<2x128xbf16>
      %c640 = arith.constant 640 : index
      %c0_21 = arith.constant 0 : index
      %35 = vector.load %arg4[%c640, %c0_21] : memref<1152x128xbf16, #tpu.memory_space<vmem>>, vector<128x128xbf16>
      %cst_22 = arith.constant dense<0.000000e+00> : vector<2x128xf32>
      %36 = tpu.matmul %34, %35, %cst_22 {dimension_numbers = #tpu.dot_dimension_numbers<[1], [0], [0], [1], [0, 0, 1, 1], [], []>} : vector<2x128xbf16>, vector<128x128xbf16>, vector<2x128xf32> -> vector<2x128xf32>
      %37 = arith.addf %31, %36 : vector<2x128xf32>
      %38 = arith.index_cast %arg8 : i32 to index
      %c0_23 = arith.constant 0 : index
      %c0_24 = arith.constant 0 : index
      %39 = vector.load %arg3[%38, %c0_23, %c0_24] : memref<4x4x128xbf16, #tpu.memory_space<vmem>>, vector<1x2x128xbf16>
      %40 = vector.shape_cast %39 : vector<1x2x128xbf16> to vector<2x128xbf16>
      %c768 = arith.constant 768 : index
      %c0_25 = arith.constant 0 : index
      %41 = vector.load %arg4[%c768, %c0_25] : memref<1152x128xbf16, #tpu.memory_space<vmem>>, vector<128x128xbf16>
      %cst_26 = arith.constant dense<0.000000e+00> : vector<2x128xf32>
      %42 = tpu.matmul %40, %41, %cst_26 {dimension_numbers = #tpu.dot_dimension_numbers<[1], [0], [0], [1], [0, 0, 1, 1], [], []>} : vector<2x128xbf16>, vector<128x128xbf16>, vector<2x128xf32> -> vector<2x128xf32>
      %43 = arith.addf %37, %42 : vector<2x128xf32>
      %44 = arith.index_cast %arg8 : i32 to index
      %c1_27 = arith.constant 1 : index
      %c0_28 = arith.constant 0 : index
      %45 = vector.load %arg3[%44, %c1_27, %c0_28] : memref<4x4x128xbf16, #tpu.memory_space<vmem>>, vector<1x2x128xbf16>
      %46 = vector.shape_cast %45 : vector<1x2x128xbf16> to vector<2x128xbf16>
      %c896 = arith.constant 896 : index
      %c0_29 = arith.constant 0 : index
      %47 = vector.load %arg4[%c896, %c0_29] : memref<1152x128xbf16, #tpu.memory_space<vmem>>, vector<128x128xbf16>
      %cst_30 = arith.constant dense<0.000000e+00> : vector<2x128xf32>
      %48 = tpu.matmul %46, %47, %cst_30 {dimension_numbers = #tpu.dot_dimension_numbers<[1], [0], [0], [1], [0, 0, 1, 1], [], []>} : vector<2x128xbf16>, vector<128x128xbf16>, vector<2x128xf32> -> vector<2x128xf32>
      %49 = arith.addf %43, %48 : vector<2x128xf32>
      %50 = arith.index_cast %arg8 : i32 to index
      %c2_31 = arith.constant 2 : index
      %c0_32 = arith.constant 0 : index
      %51 = vector.load %arg3[%50, %c2_31, %c0_32] : memref<4x4x128xbf16, #tpu.memory_space<vmem>>, vector<1x2x128xbf16>
      %52 = vector.shape_cast %51 : vector<1x2x128xbf16> to vector<2x128xbf16>
      %c1024 = arith.constant 1024 : index
      %c0_33 = arith.constant 0 : index
      %53 = vector.load %arg4[%c1024, %c0_33] : memref<1152x128xbf16, #tpu.memory_space<vmem>>, vector<128x128xbf16>
      %cst_34 = arith.constant dense<0.000000e+00> : vector<2x128xf32>
      %54 = tpu.matmul %52, %53, %cst_34 {dimension_numbers = #tpu.dot_dimension_numbers<[1], [0], [0], [1], [0, 0, 1, 1], [], []>} : vector<2x128xbf16>, vector<128x128xbf16>, vector<2x128xf32> -> vector<2x128xf32>
      %55 = arith.addf %49, %54 : vector<2x128xf32>
      %c0_35 = arith.constant 0 : index
      %c0_36 = arith.constant 0 : index
      %56 = vector.load %arg5[%c0_35, %c0_36] : memref<1x128xf32, #tpu.memory_space<vmem>>, vector<1x128xf32>
      %57 = vector.broadcast %56 : vector<1x128xf32> to vector<2x128xf32>
      %58 = arith.addf %55, %57 : vector<2x128xf32>
      %cst_37 = arith.constant 0.000000e+00 : f32
      %59 = vector.broadcast %cst_37 : f32 to vector<2x128xf32>
      %60 = arith.cmpf oge, %58, %59 : vector<2x128xf32>
      %c0_38 = arith.constant 0 : index
      %c0_39 = arith.constant 0 : index
      %61 = vector.load %arg6[%c0_38, %c0_39] : memref<1x128xf32, #tpu.memory_space<vmem>>, vector<1x128xf32>
      %62 = vector.broadcast %61 : vector<1x128xf32> to vector<2x128xf32>
      %63 = arith.mulf %62, %58 : vector<2x128xf32>
      %64 = arith.select %60, %58, %63 : vector<2x128xi1>, vector<2x128xf32>
      %65 = arith.truncf %64 : vector<2x128xf32> to vector<2x128xbf16>
      %66 = arith.index_cast %arg8 : i32 to index
      %c0_40 = arith.constant 0 : index
      %c0_41 = arith.constant 0 : index
      %67 = vector.load %arg7[%66, %c0_40, %c0_41] : memref<4x2x128xbf16, #tpu.memory_space<vmem>>, vector<1x2x128xbf16>
      %68 = vector.shape_cast %67 : vector<1x2x128xbf16> to vector<2x128xbf16>
      %69 = vector.shape_cast %65 : vector<2x128xbf16> to vector<1x2x128xbf16>
      tpu.vector_store %arg7[%66, %c0_40, %c0_41], %69 {strides = array<i32>} : memref<4x2x128xbf16, #tpu.memory_space<vmem>>, vector<1x2x128xbf16>,
    }
    %c4_i32_0 = arith.constant 4 : i32
    return
  }
  func.func @transform_0(%arg0: i32) -> (i32, i32, i32) {
    %c0_i32 = arith.constant 0 : i32
    %c0_i32_0 = arith.constant 0 : i32
    %c0_i32_1 = arith.constant 0 : i32
    return %arg0, %c0_i32, %c0_i32_0 : i32, i32, i32
  }
  func.func @transform_1(%arg0: i32) -> (i32, i32, i32) {
    %c0_i32 = arith.constant 0 : i32
    %c0_i32_0 = arith.constant 0 : i32
    %c0_i32_1 = arith.constant 0 : i32
    return %arg0, %c0_i32, %c0_i32_0 : i32, i32, i32
  }
  func.func @transform_2(%arg0: i32) -> (i32, i32, i32) {
    %c0_i32 = arith.constant 0 : i32
    %c0_i32_0 = arith.constant 0 : i32
    %c0_i32_1 = arith.constant 0 : i32
    return %arg0, %c0_i32, %c0_i32_0 : i32, i32, i32
  }
  func.func @transform_3(%arg0: i32) -> (i32, i32) {
    %c0_i32 = arith.constant 0 : i32
    %c0_i32_0 = arith.constant 0 : i32
    %c0_i32_1 = arith.constant 0 : i32
    return %c0_i32, %c0_i32_0 : i32, i32
  }
  func.func @transform_4(%arg0: i32) -> (i32, i32) {
    %c0_i32 = arith.constant 0 : i32
    %c0_i32_0 = arith.constant 0 : i32
    %c0_i32_1 = arith.constant 0 : i32
    return %c0_i32, %c0_i32_0 : i32, i32
  }
  func.func @transform_5(%arg0: i32) -> (i32, i32) {
    %c0_i32 = arith.constant 0 : i32
    %c0_i32_0 = arith.constant 0 : i32
    %c0_i32_1 = arith.constant 0 : i32
    return %c0_i32, %c0_i32_0 : i32, i32
  }
  func.func @transform_6(%arg0: i32) -> (i32, i32, i32) {
    %c0_i32 = arith.constant 0 : i32
    %c0_i32_0 = arith.constant 0 : i32
    %c0_i32_1 = arith.constant 0 : i32
    return %arg0, %c0_i32, %c0_i32_0 : i32, i32, i32
  }
}

module attributes {stable_mosaic.version = 11 : i64} {
  func.func @kernel(%arg0: i32, %arg1: memref<4x3x128xbf16, #tpu.memory_space<vmem>>, %arg2: memref<4x3x128xbf16, #tpu.memory_space<vmem>>, %arg3: memref<4x3x128xbf16, #tpu.memory_space<vmem>>, %arg4: memref<576x128xbf16, #tpu.memory_space<vmem>>, %arg5: memref<1x128xf32, #tpu.memory_space<vmem>>, %arg6: memref<1x128xf32, #tpu.memory_space<vmem>>, %arg7: memref<4x2x128xbf16, #tpu.memory_space<vmem>>) attributes {dimension_semantics = [#tpu.dimension_semantics<parallel>], iteration_bounds = array<i64: 1>, scalar_prefetch = 0 : i64, scratch_operands = 0 : i64, tpu.core_type = #tpu.core_type<tc>, window_params = [{transform_indices = @transform_0, window_bounds = array<i64: 4, 3, 128>}, {transform_indices = @transform_1, window_bounds = array<i64: 4, 3, 128>}, {transform_indices = @transform_2, window_bounds = array<i64: 4, 3, 128>}, {pipeline_mode = #tpu.pipeline_mode<synchronous>, transform_indices = @transform_3, window_bounds = array<i64: 576, 128>}, {pipeline_mode = #tpu.pipeline_mode<synchronous>, transform_indices = @transform_4, window_bounds = array<i64: 1, 128>}, {pipeline_mode = #tpu.pipeline_mode<synchronous>, transform_indices = @transform_5, window_bounds = array<i64: 1, 128>}, {transform_indices = @transform_6, window_bounds = array<i64: 4, 2, 128>}]} {
    %c0_i32 = arith.constant 0 : i32
    %c4_i32 = arith.constant 4 : i32
    %0 = arith.addi %c0_i32, %c4_i32 : i32
    %c1_i32 = arith.constant 1 : i32
    scf.for %arg8 = %c0_i32 to %0 step %c1_i32  : i32 {
      %cst = arith.constant 0.000000e+00 : f32
      %1 = vector.broadcast %cst : f32 to vector<2x128xf32>
      %2 = arith.index_cast %arg8 : i32 to index
      %c0 = arith.constant 0 : index
      %c0_1 = arith.constant 0 : index
      %3 = vector.load %arg1[%2, %c0, %c0_1] : memref<4x3x128xbf16, #tpu.memory_space<vmem>>, vector<1x2x64xbf16>
      %4 = vector.shape_cast %3 : vector<1x2x64xbf16> to vector<2x64xbf16>
      %c0_2 = arith.constant 0 : index
      %c0_3 = arith.constant 0 : index
      %5 = vector.load %arg4[%c0_2, %c0_3] : memref<576x128xbf16, #tpu.memory_space<vmem>>, vector<64x128xbf16>
      %cst_4 = arith.constant dense<0.000000e+00> : vector<2x128xf32>
      %6 = tpu.matmul %4, %5, %cst_4 {dimension_numbers = #tpu.dot_dimension_numbers<[1], [0], [0], [1], [0, 0, 1, 1], [], []>} : vector<2x64xbf16>, vector<64x128xbf16>, vector<2x128xf32> -> vector<2x128xf32>
      %7 = arith.addf %1, %6 : vector<2x128xf32>
      %8 = arith.index_cast %arg8 : i32 to index
      %c0_5 = arith.constant 0 : index
      %c64 = arith.constant 64 : index
      %9 = vector.load %arg1[%8, %c0_5, %c64] : memref<4x3x128xbf16, #tpu.memory_space<vmem>>, vector<1x2x64xbf16>
      %10 = vector.shape_cast %9 : vector<1x2x64xbf16> to vector<2x64xbf16>
      %c64_6 = arith.constant 64 : index
      %c0_7 = arith.constant 0 : index
      %11 = vector.load %arg4[%c64_6, %c0_7] : memref<576x128xbf16, #tpu.memory_space<vmem>>, vector<64x128xbf16>
      %cst_8 = arith.constant dense<0.000000e+00> : vector<2x128xf32>
      %12 = tpu.matmul %10, %11, %cst_8 {dimension_numbers = #tpu.dot_dimension_numbers<[1], [0], [0], [1], [0, 0, 1, 1], [], []>} : vector<2x64xbf16>, vector<64x128xbf16>, vector<2x128xf32> -> vector<2x128xf32>
      %13 = arith.addf %7, %12 : vector<2x128xf32>
      %14 = arith.index_cast %arg8 : i32 to index
      %c1 = arith.constant 1 : index
      %c0_9 = arith.constant 0 : index
      %15 = vector.load %arg1[%14, %c1, %c0_9] : memref<4x3x128xbf16, #tpu.memory_space<vmem>>, vector<1x2x64xbf16>
      %16 = vector.shape_cast %15 : vector<1x2x64xbf16> to vector<2x64xbf16>
      %c128 = arith.constant 128 : index
      %c0_10 = arith.constant 0 : index
      %17 = vector.load %arg4[%c128, %c0_10] : memref<576x128xbf16, #tpu.memory_space<vmem>>, vector<64x128xbf16>
      %cst_11 = arith.constant dense<0.000000e+00> : vector<2x128xf32>
      %18 = tpu.matmul %16, %17, %cst_11 {dimension_numbers = #tpu.dot_dimension_numbers<[1], [0], [0], [1], [0, 0, 1, 1], [], []>} : vector<2x64xbf16>, vector<64x128xbf16>, vector<2x128xf32> -> vector<2x128xf32>
      %19 = arith.addf %13, %18 : vector<2x128xf32>
      %20 = arith.index_cast %arg8 : i32 to index
      %c0_12 = arith.constant 0 : index
      %c0_13 = arith.constant 0 : index
      %21 = vector.load %arg2[%20, %c0_12, %c0_13] : memref<4x3x128xbf16, #tpu.memory_space<vmem>>, vector<1x2x64xbf16>
      %22 = vector.shape_cast %21 : vector<1x2x64xbf16> to vector<2x64xbf16>
      %c192 = arith.constant 192 : index
      %c0_14 = arith.constant 0 : index
      %23 = vector.load %arg4[%c192, %c0_14] : memref<576x128xbf16, #tpu.memory_space<vmem>>, vector<64x128xbf16>
      %cst_15 = arith.constant dense<0.000000e+00> : vector<2x128xf32>
      %24 = tpu.matmul %22, %23, %cst_15 {dimension_numbers = #tpu.dot_dimension_numbers<[1], [0], [0], [1], [0, 0, 1, 1], [], []>} : vector<2x64xbf16>, vector<64x128xbf16>, vector<2x128xf32> -> vector<2x128xf32>
      %25 = arith.addf %19, %24 : vector<2x128xf32>
      %26 = arith.index_cast %arg8 : i32 to index
      %c0_16 = arith.constant 0 : index
      %c64_17 = arith.constant 64 : index
      %27 = vector.load %arg2[%26, %c0_16, %c64_17] : memref<4x3x128xbf16, #tpu.memory_space<vmem>>, vector<1x2x64xbf16>
      %28 = vector.shape_cast %27 : vector<1x2x64xbf16> to vector<2x64xbf16>
      %c256 = arith.constant 256 : index
      %c0_18 = arith.constant 0 : index
      %29 = vector.load %arg4[%c256, %c0_18] : memref<576x128xbf16, #tpu.memory_space<vmem>>, vector<64x128xbf16>
      %cst_19 = arith.constant dense<0.000000e+00> : vector<2x128xf32>
      %30 = tpu.matmul %28, %29, %cst_19 {dimension_numbers = #tpu.dot_dimension_numbers<[1], [0], [0], [1], [0, 0, 1, 1], [], []>} : vector<2x64xbf16>, vector<64x128xbf16>, vector<2x128xf32> -> vector<2x128xf32>
      %31 = arith.addf %25, %30 : vector<2x128xf32>
      %32 = arith.index_cast %arg8 : i32 to index
      %c1_20 = arith.constant 1 : index
      %c0_21 = arith.constant 0 : index
      %33 = vector.load %arg2[%32, %c1_20, %c0_21] : memref<4x3x128xbf16, #tpu.memory_space<vmem>>, vector<1x2x64xbf16>
      %34 = vector.shape_cast %33 : vector<1x2x64xbf16> to vector<2x64xbf16>
      %c320 = arith.constant 320 : index
      %c0_22 = arith.constant 0 : index
      %35 = vector.load %arg4[%c320, %c0_22] : memref<576x128xbf16, #tpu.memory_space<vmem>>, vector<64x128xbf16>
      %cst_23 = arith.constant dense<0.000000e+00> : vector<2x128xf32>
      %36 = tpu.matmul %34, %35, %cst_23 {dimension_numbers = #tpu.dot_dimension_numbers<[1], [0], [0], [1], [0, 0, 1, 1], [], []>} : vector<2x64xbf16>, vector<64x128xbf16>, vector<2x128xf32> -> vector<2x128xf32>
      %37 = arith.addf %31, %36 : vector<2x128xf32>
      %38 = arith.index_cast %arg8 : i32 to index
      %c0_24 = arith.constant 0 : index
      %c0_25 = arith.constant 0 : index
      %39 = vector.load %arg3[%38, %c0_24, %c0_25] : memref<4x3x128xbf16, #tpu.memory_space<vmem>>, vector<1x2x64xbf16>
      %40 = vector.shape_cast %39 : vector<1x2x64xbf16> to vector<2x64xbf16>
      %c384 = arith.constant 384 : index
      %c0_26 = arith.constant 0 : index
      %41 = vector.load %arg4[%c384, %c0_26] : memref<576x128xbf16, #tpu.memory_space<vmem>>, vector<64x128xbf16>
      %cst_27 = arith.constant dense<0.000000e+00> : vector<2x128xf32>
      %42 = tpu.matmul %40, %41, %cst_27 {dimension_numbers = #tpu.dot_dimension_numbers<[1], [0], [0], [1], [0, 0, 1, 1], [], []>} : vector<2x64xbf16>, vector<64x128xbf16>, vector<2x128xf32> -> vector<2x128xf32>
      %43 = arith.addf %37, %42 : vector<2x128xf32>
      %44 = arith.index_cast %arg8 : i32 to index
      %c0_28 = arith.constant 0 : index
      %c64_29 = arith.constant 64 : index
      %45 = vector.load %arg3[%44, %c0_28, %c64_29] : memref<4x3x128xbf16, #tpu.memory_space<vmem>>, vector<1x2x64xbf16>
      %46 = vector.shape_cast %45 : vector<1x2x64xbf16> to vector<2x64xbf16>
      %c448 = arith.constant 448 : index
      %c0_30 = arith.constant 0 : index
      %47 = vector.load %arg4[%c448, %c0_30] : memref<576x128xbf16, #tpu.memory_space<vmem>>, vector<64x128xbf16>
      %cst_31 = arith.constant dense<0.000000e+00> : vector<2x128xf32>
      %48 = tpu.matmul %46, %47, %cst_31 {dimension_numbers = #tpu.dot_dimension_numbers<[1], [0], [0], [1], [0, 0, 1, 1], [], []>} : vector<2x64xbf16>, vector<64x128xbf16>, vector<2x128xf32> -> vector<2x128xf32>
      %49 = arith.addf %43, %48 : vector<2x128xf32>
      %50 = arith.index_cast %arg8 : i32 to index
      %c1_32 = arith.constant 1 : index
      %c0_33 = arith.constant 0 : index
      %51 = vector.load %arg3[%50, %c1_32, %c0_33] : memref<4x3x128xbf16, #tpu.memory_space<vmem>>, vector<1x2x64xbf16>
      %52 = vector.shape_cast %51 : vector<1x2x64xbf16> to vector<2x64xbf16>
      %c512 = arith.constant 512 : index
      %c0_34 = arith.constant 0 : index
      %53 = vector.load %arg4[%c512, %c0_34] : memref<576x128xbf16, #tpu.memory_space<vmem>>, vector<64x128xbf16>
      %cst_35 = arith.constant dense<0.000000e+00> : vector<2x128xf32>
      %54 = tpu.matmul %52, %53, %cst_35 {dimension_numbers = #tpu.dot_dimension_numbers<[1], [0], [0], [1], [0, 0, 1, 1], [], []>} : vector<2x64xbf16>, vector<64x128xbf16>, vector<2x128xf32> -> vector<2x128xf32>
      %55 = arith.addf %49, %54 : vector<2x128xf32>
      %c0_36 = arith.constant 0 : index
      %c0_37 = arith.constant 0 : index
      %56 = vector.load %arg5[%c0_36, %c0_37] : memref<1x128xf32, #tpu.memory_space<vmem>>, vector<1x128xf32>
      %57 = vector.broadcast %56 : vector<1x128xf32> to vector<2x128xf32>
      %58 = arith.addf %55, %57 : vector<2x128xf32>
      %cst_38 = arith.constant 0.000000e+00 : f32
      %59 = vector.broadcast %cst_38 : f32 to vector<2x128xf32>
      %60 = arith.cmpf oge, %58, %59 : vector<2x128xf32>
      %c0_39 = arith.constant 0 : index
      %c0_40 = arith.constant 0 : index
      %61 = vector.load %arg6[%c0_39, %c0_40] : memref<1x128xf32, #tpu.memory_space<vmem>>, vector<1x128xf32>
      %62 = vector.broadcast %61 : vector<1x128xf32> to vector<2x128xf32>
      %63 = arith.mulf %62, %58 : vector<2x128xf32>
      %64 = arith.select %60, %58, %63 : vector<2x128xi1>, vector<2x128xf32>
      %65 = arith.truncf %64 : vector<2x128xf32> to vector<2x128xbf16>
      %66 = arith.index_cast %arg8 : i32 to index
      %c0_41 = arith.constant 0 : index
      %c0_42 = arith.constant 0 : index
      %67 = vector.load %arg7[%66, %c0_41, %c0_42] : memref<4x2x128xbf16, #tpu.memory_space<vmem>>, vector<1x2x128xbf16>
      %68 = vector.shape_cast %67 : vector<1x2x128xbf16> to vector<2x128xbf16>
      %69 = vector.shape_cast %65 : vector<2x128xbf16> to vector<1x2x128xbf16>
      tpu.vector_store %arg7[%66, %c0_41, %c0_42], %69 {strides = array<i32>} : memref<4x2x128xbf16, #tpu.memory_space<vmem>>, vector<1x2x128xbf16>,
    }
    %c4_i32_0 = arith.constant 4 : i32
    return
  }
  func.func @transform_0(%arg0: i32) -> (i32, i32, i32) {
    %c0_i32 = arith.constant 0 : i32
    %c0_i32_0 = arith.constant 0 : i32
    %c0_i32_1 = arith.constant 0 : i32
    return %arg0, %c0_i32, %c0_i32_0 : i32, i32, i32
  }
  func.func @transform_1(%arg0: i32) -> (i32, i32, i32) {
    %c0_i32 = arith.constant 0 : i32
    %c0_i32_0 = arith.constant 0 : i32
    %c0_i32_1 = arith.constant 0 : i32
    return %arg0, %c0_i32, %c0_i32_0 : i32, i32, i32
  }
  func.func @transform_2(%arg0: i32) -> (i32, i32, i32) {
    %c0_i32 = arith.constant 0 : i32
    %c0_i32_0 = arith.constant 0 : i32
    %c0_i32_1 = arith.constant 0 : i32
    return %arg0, %c0_i32, %c0_i32_0 : i32, i32, i32
  }
  func.func @transform_3(%arg0: i32) -> (i32, i32) {
    %c0_i32 = arith.constant 0 : i32
    %c0_i32_0 = arith.constant 0 : i32
    %c0_i32_1 = arith.constant 0 : i32
    return %c0_i32, %c0_i32_0 : i32, i32
  }
  func.func @transform_4(%arg0: i32) -> (i32, i32) {
    %c0_i32 = arith.constant 0 : i32
    %c0_i32_0 = arith.constant 0 : i32
    %c0_i32_1 = arith.constant 0 : i32
    return %c0_i32, %c0_i32_0 : i32, i32
  }
  func.func @transform_5(%arg0: i32) -> (i32, i32) {
    %c0_i32 = arith.constant 0 : i32
    %c0_i32_0 = arith.constant 0 : i32
    %c0_i32_1 = arith.constant 0 : i32
    return %c0_i32, %c0_i32_0 : i32, i32
  }
  func.func @transform_6(%arg0: i32) -> (i32, i32, i32) {
    %c0_i32 = arith.constant 0 : i32
    %c0_i32_0 = arith.constant 0 : i32
    %c0_i32_1 = arith.constant 0 : i32
    return %arg0, %c0_i32, %c0_i32_0 : i32, i32, i32
  }
}

</mosaic_0001>

<llo_original>
// kernel: _forward_impl.8
$region0: #{_forward_impl.8}
  #allocation0 [shape = 'u32[]', space=smem, size = 0x4, offset = 0x4, fixed_abs, tag = 'smem constant byte address 0x4 - core index']
  #allocation1 [shape = 'u32[144,128]{1,0:T(1,128)}', space=vmem, size = 0x12000, scoped, tag = 'internal scratch']
  %s0 = inlined_call_operand.vmem [shape: bf16[32,17,16], index: 0, kind: input, shape index: {}]
  %s1 = inlined_call_operand.vmem [shape: bf16[32,17,16], index: 1, kind: input, shape index: {}]
  %s2 = inlined_call_operand.vmem [shape: bf16[32,17,16], index: 2, kind: input, shape index: {}]
  %s3 = inlined_call_operand.vmem [shape: bf16[72,16], index: 3, kind: input, shape index: {}]
  %s4 = inlined_call_operand.vmem [shape: f32[1,16], index: 4, kind: input, shape index: {}]
  %s5 = inlined_call_operand.vmem [shape: f32[1,16], index: 5, kind: input, shape index: {}]
  %s6 = inlined_call_operand.vmem [shape: bf16[32,16,16], index: 6, kind: output, shape index: {}]
  %s7 = sld [smem:[#allocation0]]
  $region41: #{_forward_impl.8} parent=0
    _
  %s9 = ssub.s32 1, %s7
  %s10 = scalar_select 0, %s9, %s7
  // Predicated region
  $region2: #{_forward_impl.8} parent=0 // pred_check
    _
  $region3: #{_forward_impl.8} parent=0 // pred_check_branch
    %12 = sbr.rel (0) target = $region5
  $region4: #{_forward_impl.8} parent=0 // pred_region
    _
  $region5: #{_forward_impl.8} parent=0 // pred_fallthru
    _
  // Predicated region
  $region6: #{_forward_impl.8} parent=0 // pred_check
    _
  $region7: #{_forward_impl.8} parent=0 // pred_check_branch
    %14 = sbr.rel (0) target = $region9
  $region8: #{_forward_impl.8} parent=0 // pred_region
    _
  $region9: #{_forward_impl.8} parent=0 // pred_fallthru
    _
  // Predicated region
  $region10: #{_forward_impl.8} parent=0 // pred_check
    _
  $region11: #{_forward_impl.8} parent=0 // pred_check_branch
    %16 = sbr.rel (0) target = $region13
  $region12: #{_forward_impl.8} parent=0 // pred_region
    _
  $region13: #{_forward_impl.8} parent=0 // pred_fallthru
    _
  // Predicated region
  $region14: #{_forward_impl.8} parent=0 // pred_check
    _
  $region15: #{_forward_impl.8} parent=0 // pred_check_branch
    %18 = sbr.rel (0) target = $region17
  $region16: #{_forward_impl.8} parent=0 // pred_region
    _
  $region17: #{_forward_impl.8} parent=0 // pred_fallthru
    _
  // Predicated region
  $region18: #{_forward_impl.8} parent=0 // pred_check
    _
  $region19: #{_forward_impl.8} parent=0 // pred_check_branch
    %20 = sbr.rel (0) target = $region21
  $region20: #{_forward_impl.8} parent=0 // pred_region
    _
  $region21: #{_forward_impl.8} parent=0 // pred_fallthru
    _
  // Predicated region
  $region22: #{_forward_impl.8} parent=0 // pred_check
    _
  $region23: #{_forward_impl.8} parent=0 // pred_check_branch
    %22 = sbr.rel (0) target = $region25
  $region24: #{_forward_impl.8} parent=0 // pred_region
    _
  $region25: #{_forward_impl.8} parent=0 // pred_fallthru
    _
  loop: start=0, step=1, limit=32
  $region26: #{_forward_impl.8} parent=0 // loop_pre_header
    _
  $region27: #{_forward_impl.8} parent=0 // loop_header
    %s25 = sphi 0, %s29
    %p26 = scmp.ge.s32.totalorder %s25, 32
  $region28: #{_forward_impl.8} parent=0 // loop_header_branch
    %28 = sbr.rel (%p26) target = $region32
  $region29: #{_forward_impl.8} parent=0 // loop_body
    %s30 = smul.u32 %s25, 3
    %s31 = smul.addr %s30, 4
    %s32 = scalar_lea.vmem %s0, %s31
    %v33 = vld [vmem:[%s32] sm:$0xf]
    %v34 = vld [vmem:[%s32 + $0x4] sm:$0xf]
    %v35 = vld [vmem:[%s3] sm:$0xf]
    %v36 = vld [vmem:[%s3 + $0x4] sm:$0xf]
    %v39 = vunpack.c.l.b16 %v33
    %v40 = vunpack.c.l.b16 %v34
    %v41 = vpack.c.b16 %v40, %v39
    %42 = vrot.lane.b32.xlu0 %v41, 120
    %v43 = vpop.permute.xlu0 %42
    %vm44 = vcmask 64512
    %v46 = vsel %vm44, %v43, 0
    %vm48 = vcmask 1043456
    %v50 = vsel %vm48, %v36, 0
    %52 = vmatprep.subr.bf16.mxu0 0
    %53 = vmatpush1.bf16.msra.mxu0 %v50
    %54 = vmatprep.subr.bf16.mxu0 0
    %55 = vmatpush1.bf16.msra.mxu0 0
    %56 = vmatprep.subr.bf16.mxu0 0
    %57 = vmatpush1.bf16.msra.mxu0 0
    %58 = vmatprep.subr.bf16.mxu0 0
    %59 = vmatpush1.bf16.msra.mxu0 0
    %60 = vmatprep.subr.bf16.mxu0 0
    %61 = vmatpush1.bf16.msra.mxu0 0
    %62 = vmatprep.subr.bf16.mxu0 0
    %63 = vmatpush1.bf16.msra.mxu0 0
    %64 = vmatprep.subr.bf16.mxu0 0
    %65 = vmatpush1.bf16.msra.mxu0 0
    %66 = vmatprep.subr.bf16.mxu0 0
    %67 = vmatpush1.bf16.msra.mxu0 0
    %68 = vmatprep.subr.bf16.mxu0 0
    %69 = vmatpush1.bf16.msra.mxu0 0
    %70 = vmatprep.subr.bf16.mxu0 0
    %71 = vmatpush1.bf16.msra.mxu0 0
    %72 = vmatprep.subr.bf16.mxu0 0
    %73 = vmatpush1.bf16.msra.mxu0 0
    %74 = vmatprep.subr.bf16.mxu0 0
    %75 = vmatpush1.bf16.msra.mxu0 0
    %76 = vmatprep.subr.bf16.mxu0 0
    %77 = vmatpush1.bf16.msra.mxu0 0
    %78 = vmatprep.subr.bf16.mxu0 0
    %79 = vmatpush1.bf16.msra.mxu0 0
    %80 = vmatprep.subr.bf16.mxu0 0
    %81 = vmatpush1.bf16.msra.mxu0 0
    %82 = vmatprep.subr.bf16.mxu0 0
    %83 = vmatpush1.bf16.msra.mxu0 0
    %84 = vmatprep.mubr.bf16.mxu0 0
    %85 = vmatmul.mubr.bf16.gmra.mrb[0].mxu0 %v46
    %v86 = vpop.f32.mrb[0].mxu0
    %v87 = vadd.f32 0.0, %v86
    %v88 = vpop.f32.mrb[0].mxu0
    %v89 = vpop.f32.mrb[0].mxu0
    %v90 = vadd.f32 0.0, %v89
    %v91 = vpop.f32.mrb[0].mxu0
    %92 = vdwg.mxu0
    %v94 = vsel %vm44, %v41, 0
    %v97 = vsel %vm48, %v35, 0
    %99 = vmatprep.subr.bf16.mxu0 0
    %100 = vmatpush1.bf16.msra.mxu0 %v97
    %101 = vmatprep.subr.bf16.mxu0 0
    %102 = vmatpush1.bf16.msra.mxu0 0
    %103 = vmatprep.subr.bf16.mxu0 0
    %104 = vmatpush1.bf16.msra.mxu0 0
    %105 = vmatprep.subr.bf16.mxu0 0
    %106 = vmatpush1.bf16.msra.mxu0 0
    %107 = vmatprep.subr.bf16.mxu0 0
    %108 = vmatpush1.bf16.msra.mxu0 0
    %109 = vmatprep.subr.bf16.mxu0 0
    %110 = vmatpush1.bf16.msra.mxu0 0
    %111 = vmatprep.subr.bf16.mxu0 0
    %112 = vmatpush1.bf16.msra.mxu0 0
    %113 = vmatprep.subr.bf16.mxu0 0
    %114 = vmatpush1.bf16.msra.mxu0 0
    %115 = vmatprep.subr.bf16.mxu0 0
    %116 = vmatpush1.bf16.msra.mxu0 0
    %117 = vmatprep.subr.bf16.mxu0 0
    %118 = vmatpush1.bf16.msra.mxu0 0
    %119 = vmatprep.subr.bf16.mxu0 0
    %120 = vmatpush1.bf16.msra.mxu0 0
    %121 = vmatprep.subr.bf16.mxu0 0
    %122 = vmatpush1.bf16.msra.mxu0 0
    %123 = vmatprep.subr.bf16.mxu0 0
    %124 = vmatpush1.bf16.msra.mxu0 0
    %125 = vmatprep.subr.bf16.mxu0 0
    %126 = vmatpush1.bf16.msra.mxu0 0
    %127 = vmatprep.subr.bf16.mxu0 0
    %128 = vmatpush1.bf16.msra.mxu0 0
    %129 = vmatprep.subr.bf16.mxu0 0
    %130 = vmatpush1.bf16.msra.mxu0 0
    %131 = vmatprep.mubr.bf16.mxu0 0
    %132 = vmatmul.mubr.bf16.gmra.mrb[0].mxu0 %v94
    %v133 = vpop.f32.mrb[0].mxu0
    %v134 = vadd.f32 %v87, %v133
    %v135 = vpop.f32.mrb[0].mxu0
    %v136 = vpop.f32.mrb[0].mxu0
    %v137 = vadd.f32 %v90, %v136
    %v138 = vpop.f32.mrb[0].mxu0
    %139 = vdwg.mxu0
    %v140 = vld [vmem:[%s32] sm:$0xf]
    %v141 = vld [vmem:[%s32 + $0x4] sm:$0xf]
    %v142 = vld [vmem:[%s32 + $0x8] sm:$0x1]
    %v143 = vld [vmem:[%s3 + $0x8] sm:$0xf]
    %v147 = vunpack.c.l.b16 %v140
    %v148 = vunpack.c.l.b16 %v141
    %v149 = vunpack.c.l.b16 %v142
    %v150 = vpack.c.b16 %v148, %v147
    %v151 = vpack.c.b16 %v149, %v149
    %vm152 = vsmask.f32 7424
    %v154 = vshrl.u32 %v150, 16
    %v156 = vshll.u32 %v150, 16
    %v158 = vrot.slane %v156, 1
    %v159 = vor.u32 %v154, %v158
    %v161 = vshll.u32 %v151, 16
    %v163 = vrot.slane %v161, 1
    %v164 = vsel %vm152, %v159, %v163
    %v166 = vsel %vm44, %v164, 0
    %v169 = vsel %vm48, %v143, 0
    %171 = vmatprep.subr.bf16.mxu0 0
    %172 = vmatpush1.bf16.msra.mxu0 %v169
    %173 = vmatprep.subr.bf16.mxu0 0
    %174 = vmatpush1.bf16.msra.mxu0 0
    %175 = vmatprep.subr.bf16.mxu0 0
    %176 = vmatpush1.bf16.msra.mxu0 0
    %177 = vmatprep.subr.bf16.mxu0 0
    %178 = vmatpush1.bf16.msra.mxu0 0
    %179 = vmatprep.subr.bf16.mxu0 0
    %180 = vmatpush1.bf16.msra.mxu0 0
    %181 = vmatprep.subr.bf16.mxu0 0
    %182 = vmatpush1.bf16.msra.mxu0 0
    %183 = vmatprep.subr.bf16.mxu0 0
    %184 = vmatpush1.bf16.msra.mxu0 0
    %185 = vmatprep.subr.bf16.mxu0 0
    %186 = vmatpush1.bf16.msra.mxu0 0
    %187 = vmatprep.subr.bf16.mxu0 0
    %188 = vmatpush1.bf16.msra.mxu0 0
    %189 = vmatprep.subr.bf16.mxu0 0
    %190 = vmatpush1.bf16.msra.mxu0 0
    %191 = vmatprep.subr.bf16.mxu0 0
    %192 = vmatpush1.bf16.msra.mxu0 0
    %193 = vmatprep.subr.bf16.mxu0 0
    %194 = vmatpush1.bf16.msra.mxu0 0
    %195 = vmatprep.subr.bf16.mxu0 0
    %196 = vmatpush1.bf16.msra.mxu0 0
    %197 = vmatprep.subr.bf16.mxu0 0
    %198 = vmatpush1.bf16.msra.mxu0 0
    %199 = vmatprep.subr.bf16.mxu0 0
    %200 = vmatpush1.bf16.msra.mxu0 0
    %201 = vmatprep.subr.bf16.mxu0 0
    %202 = vmatpush1.bf16.msra.mxu0 0
    %203 = vmatprep.mubr.bf16.mxu0 0
    %204 = vmatmul.mubr.bf16.gmra.mrb[0].mxu0 %v166
    %v205 = vpop.f32.mrb[0].mxu0
    %v206 = vadd.f32 0.0, %v205
    %v207 = vpop.f32.mrb[0].mxu0
    %v208 = vpop.f32.mrb[0].mxu0
    %v209 = vadd.f32 0.0, %v208
    %v210 = vpop.f32.mrb[0].mxu0
    %211 = vdwg.mxu0
    %v212 = vadd.f32 %v134, %v206
    %v213 = vadd.f32 %v137, %v209
    %s214 = smul.addr %s30, 4
    %s215 = scalar_lea.vmem %s1, %s214
    %v216 = vld [vmem:[%s215] sm:$0xf]
    %v217 = vld [vmem:[%s215 + $0x4] sm:$0xf]
    %v218 = vld [vmem:[%s3 + $0xc] sm:$0xf]
    %v221 = vunpack.c.l.b16 %v216
    %v222 = vunpack.c.l.b16 %v217
    %v223 = vpack.c.b16 %v222, %v221
    %v225 = vsel %vm44, %v223, 0
    %v228 = vsel %vm48, %v218, 0
    %230 = vmatprep.subr.bf16.mxu0 0
    %231 = vmatpush1.bf16.msra.mxu0 %v228
    %232 = vmatprep.subr.bf16.mxu0 0
    %233 = vmatpush1.bf16.msra.mxu0 0
    %234 = vmatprep.subr.bf16.mxu0 0
    %235 = vmatpush1.bf16.msra.mxu0 0
    %236 = vmatprep.subr.bf16.mxu0 0
    %237 = vmatpush1.bf16.msra.mxu0 0
    %238 = vmatprep.subr.bf16.mxu0 0
    %239 = vmatpush1.bf16.msra.mxu0 0
    %240 = vmatprep.subr.bf16.mxu0 0
    %241 = vmatpush1.bf16.msra.mxu0 0
    %242 = vmatprep.subr.bf16.mxu0 0
    %243 = vmatpush1.bf16.msra.mxu0 0
    %244 = vmatprep.subr.bf16.mxu0 0
    %245 = vmatpush1.bf16.msra.mxu0 0
    %246 = vmatprep.subr.bf16.mxu0 0
    %247 = vmatpush1.bf16.msra.mxu0 0
    %248 = vmatprep.subr.bf16.mxu0 0
    %249 = vmatpush1.bf16.msra.mxu0 0
    %250 = vmatprep.subr.bf16.mxu0 0
    %251 = vmatpush1.bf16.msra.mxu0 0
    %252 = vmatprep.subr.bf16.mxu0 0
    %253 = vmatpush1.bf16.msra.mxu0 0
    %254 = vmatprep.subr.bf16.mxu0 0
    %255 = vmatpush1.bf16.msra.mxu0 0
    %256 = vmatprep.subr.bf16.mxu0 0
    %257 = vmatpush1.bf16.msra.mxu0 0
    %258 = vmatprep.subr.bf16.mxu0 0
    %259 = vmatpush1.bf16.msra.mxu0 0
    %260 = vmatprep.subr.bf16.mxu0 0
    %261 = vmatpush1.bf16.msra.mxu0 0
    %262 = vmatprep.mubr.bf16.mxu0 0
    %263 = vmatmul.mubr.bf16.gmra.mrb[0].mxu0 %v225
    %v264 = vpop.f32.mrb[0].mxu0
    %v265 = vadd.f32 0.0, %v264
    %v266 = vpop.f32.mrb[0].mxu0
    %v267 = vpop.f32.mrb[0].mxu0
    %v268 = vadd.f32 0.0, %v267
    %v269 = vpop.f32.mrb[0].mxu0
    %270 = vdwg.mxu0
    %v271 = vadd.f32 %v212, %v265
    %v272 = vadd.f32 %v213, %v268
    %v273 = vld [vmem:[%s3 + $0x10] sm:$0xf]
    %274 = vrot.lane.b32.xlu0 %v223, 120
    %v275 = vpop.permute.xlu0 %274
    %v277 = vsel %vm44, %v275, 0
    %v280 = vsel %vm48, %v273, 0
    %282 = vmatprep.subr.bf16.mxu0 0
    %283 = vmatpush1.bf16.msra.mxu0 %v280
    %284 = vmatprep.subr.bf16.mxu0 0
    %285 = vmatpush1.bf16.msra.mxu0 0
    %286 = vmatprep.subr.bf16.mxu0 0
    %287 = vmatpush1.bf16.msra.mxu0 0
    %288 = vmatprep.subr.bf16.mxu0 0
    %289 = vmatpush1.bf16.msra.mxu0 0
    %290 = vmatprep.subr.bf16.mxu0 0
    %291 = vmatpush1.bf16.msra.mxu0 0
    %292 = vmatprep.subr.bf16.mxu0 0
    %293 = vmatpush1.bf16.msra.mxu0 0
    %294 = vmatprep.subr.bf16.mxu0 0
    %295 = vmatpush1.bf16.msra.mxu0 0
    %296 = vmatprep.subr.bf16.mxu0 0
    %297 = vmatpush1.bf16.msra.mxu0 0
    %298 = vmatprep.subr.bf16.mxu0 0
    %299 = vmatpush1.bf16.msra.mxu0 0
    %300 = vmatprep.subr.bf16.mxu0 0
    %301 = vmatpush1.bf16.msra.mxu0 0
    %302 = vmatprep.subr.bf16.mxu0 0
    %303 = vmatpush1.bf16.msra.mxu0 0
    %304 = vmatprep.subr.bf16.mxu0 0
    %305 = vmatpush1.bf16.msra.mxu0 0
    %306 = vmatprep.subr.bf16.mxu0 0
    %307 = vmatpush1.bf16.msra.mxu0 0
    %308 = vmatprep.subr.bf16.mxu0 0
    %309 = vmatpush1.bf16.msra.mxu0 0
    %310 = vmatprep.subr.bf16.mxu0 0
    %311 = vmatpush1.bf16.msra.mxu0 0
    %312 = vmatprep.subr.bf16.mxu0 0
    %313 = vmatpush1.bf16.msra.mxu0 0
    %314 = vmatprep.mubr.bf16.mxu0 0
    %315 = vmatmul.mubr.bf16.gmra.mrb[0].mxu0 %v277
    %v316 = vpop.f32.mrb[0].mxu0
    %v317 = vadd.f32 0.0, %v316
    %v318 = vpop.f32.mrb[0].mxu0
    %v319 = vpop.f32.mrb[0].mxu0
    %v320 = vadd.f32 0.0, %v319
    %v321 = vpop.f32.mrb[0].mxu0
    %322 = vdwg.mxu0
    %v323 = vadd.f32 %v271, %v317
    %v324 = vadd.f32 %v272, %v320
    %v325 = vld [vmem:[%s215] sm:$0xf]
    %v326 = vld [vmem:[%s215 + $0x4] sm:$0xf]
    %v327 = vld [vmem:[%s215 + $0x8] sm:$0x1]
    %v328 = vld [vmem:[%s3 + $0x14] sm:$0xf]
    %v332 = vunpack.c.l.b16 %v325
    %v333 = vunpack.c.l.b16 %v326
    %v334 = vunpack.c.l.b16 %v327
    %v335 = vpack.c.b16 %v333, %v332
    %v336 = vpack.c.b16 %v334, %v334
    %v338 = vshrl.u32 %v335, 16
    %v340 = vshll.u32 %v335, 16
    %v342 = vrot.slane %v340, 1
    %v343 = vor.u32 %v338, %v342
    %v345 = vshll.u32 %v336, 16
    %v347 = vrot.slane %v345, 1
    %v348 = vsel %vm152, %v343, %v347
    %v350 = vsel %vm44, %v348, 0
    %v353 = vsel %vm48, %v328, 0
    %355 = vmatprep.subr.bf16.mxu0 0
    %356 = vmatpush1.bf16.msra.mxu0 %v353
    %357 = vmatprep.subr.bf16.mxu0 0
    %358 = vmatpush1.bf16.msra.mxu0 0
    %359 = vmatprep.subr.bf16.mxu0 0
    %360 = vmatpush1.bf16.msra.mxu0 0
    %361 = vmatprep.subr.bf16.mxu0 0
    %362 = vmatpush1.bf16.msra.mxu0 0
    %363 = vmatprep.subr.bf16.mxu0 0
    %364 = vmatpush1.bf16.msra.mxu0 0
    %365 = vmatprep.subr.bf16.mxu0 0
    %366 = vmatpush1.bf16.msra.mxu0 0
    %367 = vmatprep.subr.bf16.mxu0 0
    %368 = vmatpush1.bf16.msra.mxu0 0
    %369 = vmatprep.subr.bf16.mxu0 0
    %370 = vmatpush1.bf16.msra.mxu0 0
    %371 = vmatprep.subr.bf16.mxu0 0
    %372 = vmatpush1.bf16.msra.mxu0 0
    %373 = vmatprep.subr.bf16.mxu0 0
    %374 = vmatpush1.bf16.msra.mxu0 0
    %375 = vmatprep.subr.bf16.mxu0 0
    %376 = vmatpush1.bf16.msra.mxu0 0
    %377 = vmatprep.subr.bf16.mxu0 0
    %378 = vmatpush1.bf16.msra.mxu0 0
    %379 = vmatprep.subr.bf16.mxu0 0
    %380 = vmatpush1.bf16.msra.mxu0 0
    %381 = vmatprep.subr.bf16.mxu0 0
    %382 = vmatpush1.bf16.msra.mxu0 0
    %383 = vmatprep.subr.bf16.mxu0 0
    %384 = vmatpush1.bf16.msra.mxu0 0
    %385 = vmatprep.subr.bf16.mxu0 0
    %386 = vmatpush1.bf16.msra.mxu0 0
    %387 = vmatprep.mubr.bf16.mxu0 0
    %388 = vmatmul.mubr.bf16.gmra.mrb[0].mxu0 %v350
    %v389 = vpop.f32.mrb[0].mxu0
    %v390 = vadd.f32 0.0, %v389
    %v391 = vpop.f32.mrb[0].mxu0
    %v392 = vpop.f32.mrb[0].mxu0
    %v393 = vadd.f32 0.0, %v392
    %v394 = vpop.f32.mrb[0].mxu0
    %395 = vdwg.mxu0
    %v396 = vadd.f32 %v323, %v390
    %v397 = vadd.f32 %v324, %v393
    %s398 = smul.addr %s30, 4
    %s399 = scalar_lea.vmem %s2, %s398
    %v400 = vld [vmem:[%s399] sm:$0xf]
    %v401 = vld [vmem:[%s399 + $0x4] sm:$0xf]
    %v402 = vld [vmem:[%s3 + $0x18] sm:$0xf]
    %v405 = vunpack.c.l.b16 %v400
    %v406 = vunpack.c.l.b16 %v401
    %v407 = vpack.c.b16 %v406, %v405
    %v409 = vsel %vm44, %v407, 0
    %v412 = vsel %vm48, %v402, 0
    %414 = vmatprep.subr.bf16.mxu0 0
    %415 = vmatpush1.bf16.msra.mxu0 %v412
    %416 = vmatprep.subr.bf16.mxu0 0
    %417 = vmatpush1.bf16.msra.mxu0 0
    %418 = vmatprep.subr.bf16.mxu0 0
    %419 = vmatpush1.bf16.msra.mxu0 0
    %420 = vmatprep.subr.bf16.mxu0 0
    %421 = vmatpush1.bf16.msra.mxu0 0
    %422 = vmatprep.subr.bf16.mxu0 0
    %423 = vmatpush1.bf16.msra.mxu0 0
    %424 = vmatprep.subr.bf16.mxu0 0
    %425 = vmatpush1.bf16.msra.mxu0 0
    %426 = vmatprep.subr.bf16.mxu0 0
    %427 = vmatpush1.bf16.msra.mxu0 0
    %428 = vmatprep.subr.bf16.mxu0 0
    %429 = vmatpush1.bf16.msra.mxu0 0
    %430 = vmatprep.subr.bf16.mxu0 0
    %431 = vmatpush1.bf16.msra.mxu0 0
    %432 = vmatprep.subr.bf16.mxu0 0
    %433 = vmatpush1.bf16.msra.mxu0 0
    %434 = vmatprep.subr.bf16.mxu0 0
    %435 = vmatpush1.bf16.msra.mxu0 0
    %436 = vmatprep.subr.bf16.mxu0 0
    %437 = vmatpush1.bf16.msra.mxu0 0
    %438 = vmatprep.subr.bf16.mxu0 0
    %439 = vmatpush1.bf16.msra.mxu0 0
    %440 = vmatprep.subr.bf16.mxu0 0
    %441 = vmatpush1.bf16.msra.mxu0 0
    %442 = vmatprep.subr.bf16.mxu0 0
    %443 = vmatpush1.bf16.msra.mxu0 0
    %444 = vmatprep.subr.bf16.mxu0 0
    %445 = vmatpush1.bf16.msra.mxu0 0
    %446 = vmatprep.mubr.bf16.mxu0 0
    %447 = vmatmul.mubr.bf16.gmra.mrb[0].mxu0 %v409
    %v448 = vpop.f32.mrb[0].mxu0
    %v449 = vadd.f32 0.0, %v448
    %v450 = vpop.f32.mrb[0].mxu0
    %v451 = vpop.f32.mrb[0].mxu0
    %v452 = vadd.f32 0.0, %v451
    %v453 = vpop.f32.mrb[0].mxu0
    %454 = vdwg.mxu0
    %v455 = vadd.f32 %v396, %v449
    %v456 = vadd.f32 %v397, %v452
    %v457 = vld [vmem:[%s3 + $0x1c] sm:$0xf]
    %458 = vrot.lane.b32.xlu0 %v407, 120
    %v459 = vpop.permute.xlu0 %458
    %v461 = vsel %vm44, %v459, 0
    %v464 = vsel %vm48, %v457, 0
    %466 = vmatprep.subr.bf16.mxu0 0
    %467 = vmatpush1.bf16.msra.mxu0 %v464
    %468 = vmatprep.subr.bf16.mxu0 0
    %469 = vmatpush1.bf16.msra.mxu0 0
    %470 = vmatprep.subr.bf16.mxu0 0
    %471 = vmatpush1.bf16.msra.mxu0 0
    %472 = vmatprep.subr.bf16.mxu0 0
    %473 = vmatpush1.bf16.msra.mxu0 0
    %474 = vmatprep.subr.bf16.mxu0 0
    %475 = vmatpush1.bf16.msra.mxu0 0
    %476 = vmatprep.subr.bf16.mxu0 0
    %477 = vmatpush1.bf16.msra.mxu0 0
    %478 = vmatprep.subr.bf16.mxu0 0
    %479 = vmatpush1.bf16.msra.mxu0 0
    %480 = vmatprep.subr.bf16.mxu0 0
    %481 = vmatpush1.bf16.msra.mxu0 0
    %482 = vmatprep.subr.bf16.mxu0 0
    %483 = vmatpush1.bf16.msra.mxu0 0
    %484 = vmatprep.subr.bf16.mxu0 0
    %485 = vmatpush1.bf16.msra.mxu0 0
    %486 = vmatprep.subr.bf16.mxu0 0
    %487 = vmatpush1.bf16.msra.mxu0 0
    %488 = vmatprep.subr.bf16.mxu0 0
    %489 = vmatpush1.bf16.msra.mxu0 0
    %490 = vmatprep.subr.bf16.mxu0 0
    %491 = vmatpush1.bf16.msra.mxu0 0
    %492 = vmatprep.subr.bf16.mxu0 0
    %493 = vmatpush1.bf16.msra.mxu0 0
    %494 = vmatprep.subr.bf16.mxu0 0
    %495 = vmatpush1.bf16.msra.mxu0 0
    %496 = vmatprep.subr.bf16.mxu0 0
    %497 = vmatpush1.bf16.msra.mxu0 0
    %498 = vmatprep.mubr.bf16.mxu0 0
    %499 = vmatmul.mubr.bf16.gmra.mrb[0].mxu0 %v461
    %v500 = vpop.f32.mrb[0].mxu0
    %v501 = vadd.f32 0.0, %v500
    %v502 = vpop.f32.mrb[0].mxu0
    %v503 = vpop.f32.mrb[0].mxu0
    %v504 = vadd.f32 0.0, %v503
    %v505 = vpop.f32.mrb[0].mxu0
    %506 = vdwg.mxu0
    %v507 = vadd.f32 %v455, %v501
    %v508 = vadd.f32 %v456, %v504
    %v509 = vld [vmem:[%s399] sm:$0xf]
    %v510 = vld [vmem:[%s399 + $0x4] sm:$0xf]
    %v511 = vld [vmem:[%s399 + $0x8] sm:$0x1]
    %v512 = vld [vmem:[%s3 + $0x20] sm:$0xf]
    %v516 = vunpack.c.l.b16 %v509
    %v517 = vunpack.c.l.b16 %v510
    %v518 = vunpack.c.l.b16 %v511
    %v519 = vpack.c.b16 %v517, %v516
    %v520 = vpack.c.b16 %v518, %v518
    %v522 = vshrl.u32 %v519, 16
    %v524 = vshll.u32 %v519, 16
    %v526 = vrot.slane %v524, 1
    %v527 = vor.u32 %v522, %v526
    %v529 = vshll.u32 %v520, 16
    %v531 = vrot.slane %v529, 1
    %v532 = vsel %vm152, %v527, %v531
    %v534 = vsel %vm44, %v532, 0
    %v537 = vsel %vm48, %v512, 0
    %539 = vmatprep.subr.bf16.mxu0 0
    %540 = vmatpush1.bf16.msra.mxu0 %v537
    %541 = vmatprep.subr.bf16.mxu0 0
    %542 = vmatpush1.bf16.msra.mxu0 0
    %543 = vmatprep.subr.bf16.mxu0 0
    %544 = vmatpush1.bf16.msra.mxu0 0
    %545 = vmatprep.subr.bf16.mxu0 0
    %546 = vmatpush1.bf16.msra.mxu0 0
    %547 = vmatprep.subr.bf16.mxu0 0
    %548 = vmatpush1.bf16.msra.mxu0 0
    %549 = vmatprep.subr.bf16.mxu0 0
    %550 = vmatpush1.bf16.msra.mxu0 0
    %551 = vmatprep.subr.bf16.mxu0 0
    %552 = vmatpush1.bf16.msra.mxu0 0
    %553 = vmatprep.subr.bf16.mxu0 0
    %554 = vmatpush1.bf16.msra.mxu0 0
    %555 = vmatprep.subr.bf16.mxu0 0
    %556 = vmatpush1.bf16.msra.mxu0 0
    %557 = vmatprep.subr.bf16.mxu0 0
    %558 = vmatpush1.bf16.msra.mxu0 0
    %559 = vmatprep.subr.bf16.mxu0 0
    %560 = vmatpush1.bf16.msra.mxu0 0
    %561 = vmatprep.subr.bf16.mxu0 0
    %562 = vmatpush1.bf16.msra.mxu0 0
    %563 = vmatprep.subr.bf16.mxu0 0
    %564 = vmatpush1.bf16.msra.mxu0 0
    %565 = vmatprep.subr.bf16.mxu0 0
    %566 = vmatpush1.bf16.msra.mxu0 0
    %567 = vmatprep.subr.bf16.mxu0 0
    %568 = vmatpush1.bf16.msra.mxu0 0
    %569 = vmatprep.subr.bf16.mxu0 0
    %570 = vmatpush1.bf16.msra.mxu0 0
    %571 = vmatprep.mubr.bf16.mxu0 0
    %572 = vmatmul.mubr.bf16.gmra.mrb[0].mxu0 %v534
    %v573 = vpop.f32.mrb[0].mxu0
    %v574 = vadd.f32 0.0, %v573
    %v575 = vpop.f32.mrb[0].mxu0
    %v576 = vpop.f32.mrb[0].mxu0
    %v577 = vadd.f32 0.0, %v576
    %v578 = vpop.f32.mrb[0].mxu0
    %579 = vdwg.mxu0
    %v580 = vadd.f32 %v507, %v574
    %v581 = vadd.f32 %v508, %v577
    %v582 = vld [vmem:[%s4] sm:$0x1]
    %v584 = vlaneseq
    %v585 = vshrl.u32 %v584, 7
    %v586 = vsub.s32 0, %v585
    %v587 = vrot.slane %v582, %v586
    %v589 = vadd.f32 %v580, %v587
    %v590 = vadd.f32 %v581, %v587
    %vm591 = vcmp.ge.f32.partialorder %v589, 0.0
    %vm592 = vcmp.ge.f32.partialorder %v590, 0.0
    %v593 = vld [vmem:[%s5] sm:$0x1]
    %v595 = vlaneseq
    %v596 = vshrl.u32 %v595, 7
    %v597 = vsub.s32 0, %v596
    %v598 = vrot.slane %v593, %v597
    %v600 = vmul.f32 %v598, %v589
    %v601 = vmul.f32 %v598, %v590
    %v602 = vsel %vm591, %v589, %v600
    %v603 = vsel %vm592, %v590, %v601
    %v604 = vpack.c.bf16 %v603, %v602
    %v606 = vunpack.c.l.b16 %v604
    %v607 = vunpack.c.h.b16 %v604
    %v608 = vpack.c.b16 %v606, %v606
    %v609 = vpack.c.b16 %v607, %v607
    %s612 = smul.u32 %s25, 2
    %s613 = smul.addr %s612, 4
    %s614 = scalar_lea.vmem %s6, %s613
    %vm615 = vcmask 125952
    %616 = vst.msk [vmem:[%s614] sm:$0xf] %vm615, %v608
    %617 = vst.msk [vmem:[%s614 + $0x4] sm:$0xf] %vm615, %v609
  $region30: #{_forward_impl.8} parent=0 // loop_footer
    %s29 = sadd.s32 1, %s25
  $region31: #{_forward_impl.8} parent=0 // loop_footer_branch
    %24 = sbr.rel target = $region27
  $region32: #{_forward_impl.8} parent=0 // loop_exit
    _
  // Predicated region
  $region33: #{_forward_impl.8} parent=0 // pred_check
    _
  $region34: #{_forward_impl.8} parent=0 // pred_check_branch
    %619 = sbr.rel (0) target = $region36
  $region35: #{_forward_impl.8} parent=0 // pred_region
    _
  $region36: #{_forward_impl.8} parent=0 // pred_fallthru
    _
  // Predicated region
  $region37: #{_forward_impl.8} parent=0 // pred_check
    _
  $region38: #{_forward_impl.8} parent=0 // pred_check_branch
    %621 = sbr.rel (0) target = $region40
  $region39: #{_forward_impl.8} parent=0 // pred_region
    _
  $region40: #{_forward_impl.8} parent=0 // pred_fallthru
    _

// kernel: _forward_impl.9
$region0: #{_forward_impl.9}
  #allocation0 [shape = 'u32[]', space=smem, size = 0x4, offset = 0x4, fixed_abs, tag = 'smem constant byte address 0x4 - core index']
  #allocation1 [shape = 'u32[144,128]{1,0:T(1,128)}', space=vmem, size = 0x12000, scoped, tag = 'internal scratch']
  %s0 = inlined_call_operand.vmem [shape: bf16[32,18,16], index: 0, kind: input, shape index: {}]
  %s1 = inlined_call_operand.vmem [shape: bf16[32,18,16], index: 1, kind: input, shape index: {}]
  %s2 = inlined_call_operand.vmem [shape: bf16[32,18,16], index: 2, kind: input, shape index: {}]
  %s3 = inlined_call_operand.vmem [shape: bf16[144,16], index: 3, kind: input, shape index: {}]
  %s4 = inlined_call_operand.vmem [shape: f32[1,16], index: 4, kind: input, shape index: {}]
  %s5 = inlined_call_operand.vmem [shape: f32[1,16], index: 5, kind: input, shape index: {}]
  %s6 = inlined_call_operand.vmem [shape: bf16[32,16,16], index: 6, kind: output, shape index: {}]
  %s7 = sld [smem:[#allocation0]]
  $region41: #{_forward_impl.9} parent=0
    _
  %s9 = ssub.s32 1, %s7
  %s10 = scalar_select 0, %s9, %s7
  // Predicated region
  $region2: #{_forward_impl.9} parent=0 // pred_check
    _
  $region3: #{_forward_impl.9} parent=0 // pred_check_branch
    %12 = sbr.rel (0) target = $region5
  $region4: #{_forward_impl.9} parent=0 // pred_region
    _
  $region5: #{_forward_impl.9} parent=0 // pred_fallthru
    _
  // Predicated region
  $region6: #{_forward_impl.9} parent=0 // pred_check
    _
  $region7: #{_forward_impl.9} parent=0 // pred_check_branch
    %14 = sbr.rel (0) target = $region9
  $region8: #{_forward_impl.9} parent=0 // pred_region
    _
  $region9: #{_forward_impl.9} parent=0 // pred_fallthru
    _
  // Predicated region
  $region10: #{_forward_impl.9} parent=0 // pred_check
    _
  $region11: #{_forward_impl.9} parent=0 // pred_check_branch
    %16 = sbr.rel (0) target = $region13
  $region12: #{_forward_impl.9} parent=0 // pred_region
    _
  $region13: #{_forward_impl.9} parent=0 // pred_fallthru
    _
  // Predicated region
  $region14: #{_forward_impl.9} parent=0 // pred_check
    _
  $region15: #{_forward_impl.9} parent=0 // pred_check_branch
    %18 = sbr.rel (0) target = $region17
  $region16: #{_forward_impl.9} parent=0 // pred_region
    _
  $region17: #{_forward_impl.9} parent=0 // pred_fallthru
    _
  // Predicated region
  $region18: #{_forward_impl.9} parent=0 // pred_check
    _
  $region19: #{_forward_impl.9} parent=0 // pred_check_branch
    %20 = sbr.rel (0) target = $region21
  $region20: #{_forward_impl.9} parent=0 // pred_region
    _
  $region21: #{_forward_impl.9} parent=0 // pred_fallthru
    _
  // Predicated region
  $region22: #{_forward_impl.9} parent=0 // pred_check
    _
  $region23: #{_forward_impl.9} parent=0 // pred_check_branch
    %22 = sbr.rel (0) target = $region25
  $region24: #{_forward_impl.9} parent=0 // pred_region
    _
  $region25: #{_forward_impl.9} parent=0 // pred_fallthru
    _
  loop: start=0, step=1, limit=32
  $region26: #{_forward_impl.9} parent=0 // loop_pre_header
    _
  $region27: #{_forward_impl.9} parent=0 // loop_header
    %s25 = sphi 0, %s29
    %p26 = scmp.ge.s32.totalorder %s25, 32
  $region28: #{_forward_impl.9} parent=0 // loop_header_branch
    %28 = sbr.rel (%p26) target = $region32
  $region29: #{_forward_impl.9} parent=0 // loop_body
    %s30 = smul.u32 %s25, 3
    %s31 = smul.addr %s30, 4
    %s32 = scalar_lea.vmem %s0, %s31
    %v33 = vld [vmem:[%s32] sm:$0xf]
    %v34 = vld [vmem:[%s32 + $0x4] sm:$0xf]
    %v35 = vld [vmem:[%s3] sm:$0xf]
    %v36 = vld [vmem:[%s3 + $0x4] sm:$0xf]
    %v37 = vld [vmem:[%s32 + $0x8] sm:$0x1]
    %v38 = vld [vmem:[%s3 + $0x8] sm:$0xf]
    %v39 = vld [vmem:[%s3 + $0xc] sm:$0xf]
    %v43 = vunpack.c.l.b16 %v33
    %v44 = vunpack.c.l.b16 %v34
    %v45 = vunpack.c.l.b16 %v37
    %v46 = vpack.c.b16 %v44, %v43
    %v47 = vpack.c.b16 %v45, %v45
    %vm48 = vsmask.f32 7424
    %v50 = vshrl.u32 %v46, 16
    %v52 = vshll.u32 %v46, 16
    %v54 = vrot.slane %v52, 1
    %v55 = vor.u32 %v50, %v54
    %v57 = vshll.u32 %v47, 16
    %v59 = vrot.slane %v57, 1
    %v60 = vsel %vm48, %v55, %v59
    %v63 = vunpack.c.l.b16 %v38
    %v64 = vunpack.c.l.b16 %v39
    %v65 = vpack.c.b16 %v64, %v63
    %vm67 = vcmask 130048
    %v69 = vsel %vm67, %v60, 0
    %71 = vmatprep.subr.bf16.mxu0 0
    %72 = vmatpush1.bf16.msra.mxu0 %v65
    %73 = vmatprep.subr.bf16.mxu0 0
    %74 = vmatpush1.bf16.msra.mxu0 0
    %75 = vmatprep.subr.bf16.mxu0 0
    %76 = vmatpush1.bf16.msra.mxu0 0
    %77 = vmatprep.subr.bf16.mxu0 0
    %78 = vmatpush1.bf16.msra.mxu0 0
    %79 = vmatprep.subr.bf16.mxu0 0
    %80 = vmatpush1.bf16.msra.mxu0 0
    %81 = vmatprep.subr.bf16.mxu0 0
    %82 = vmatpush1.bf16.msra.mxu0 0
    %83 = vmatprep.subr.bf16.mxu0 0
    %84 = vmatpush1.bf16.msra.mxu0 0
    %85 = vmatprep.subr.bf16.mxu0 0
    %86 = vmatpush1.bf16.msra.mxu0 0
    %87 = vmatprep.subr.bf16.mxu0 0
    %88 = vmatpush1.bf16.msra.mxu0 0
    %89 = vmatprep.subr.bf16.mxu0 0
    %90 = vmatpush1.bf16.msra.mxu0 0
    %91 = vmatprep.subr.bf16.mxu0 0
    %92 = vmatpush1.bf16.msra.mxu0 0
    %93 = vmatprep.subr.bf16.mxu0 0
    %94 = vmatpush1.bf16.msra.mxu0 0
    %95 = vmatprep.subr.bf16.mxu0 0
    %96 = vmatpush1.bf16.msra.mxu0 0
    %97 = vmatprep.subr.bf16.mxu0 0
    %98 = vmatpush1.bf16.msra.mxu0 0
    %99 = vmatprep.subr.bf16.mxu0 0
    %100 = vmatpush1.bf16.msra.mxu0 0
    %101 = vmatprep.subr.bf16.mxu0 0
    %102 = vmatpush1.bf16.msra.mxu0 0
    %103 = vmatprep.mubr.bf16.mxu0 0
    %104 = vmatmul.mubr.bf16.gmra.mrb[0].mxu0 %v69
    %v105 = vpop.f32.mrb[0].mxu0
    %v106 = vadd.f32 0.0, %v105
    %v107 = vpop.f32.mrb[0].mxu0
    %v108 = vpop.f32.mrb[0].mxu0
    %v109 = vadd.f32 0.0, %v108
    %v110 = vpop.f32.mrb[0].mxu0
    %111 = vdwg.mxu0
    %v114 = vunpack.c.l.b16 %v35
    %v115 = vunpack.c.l.b16 %v36
    %v116 = vpack.c.b16 %v115, %v114
    %v118 = vsel %vm67, %v46, 0
    %120 = vmatprep.subr.bf16.mxu0 0
    %121 = vmatpush1.bf16.msra.mxu0 %v116
    %122 = vmatprep.subr.bf16.mxu0 0
    %123 = vmatpush1.bf16.msra.mxu0 0
    %124 = vmatprep.subr.bf16.mxu0 0
    %125 = vmatpush1.bf16.msra.mxu0 0
    %126 = vmatprep.subr.bf16.mxu0 0
    %127 = vmatpush1.bf16.msra.mxu0 0
    %128 = vmatprep.subr.bf16.mxu0 0
    %129 = vmatpush1.bf16.msra.mxu0 0
    %130 = vmatprep.subr.bf16.mxu0 0
    %131 = vmatpush1.bf16.msra.mxu0 0
    %132 = vmatprep.subr.bf16.mxu0 0
    %133 = vmatpush1.bf16.msra.mxu0 0
    %134 = vmatprep.subr.bf16.mxu0 0
    %135 = vmatpush1.bf16.msra.mxu0 0
    %136 = vmatprep.subr.bf16.mxu0 0
    %137 = vmatpush1.bf16.msra.mxu0 0
    %138 = vmatprep.subr.bf16.mxu0 0
    %139 = vmatpush1.bf16.msra.mxu0 0
    %140 = vmatprep.subr.bf16.mxu0 0
    %141 = vmatpush1.bf16.msra.mxu0 0
    %142 = vmatprep.subr.bf16.mxu0 0
    %143 = vmatpush1.bf16.msra.mxu0 0
    %144 = vmatprep.subr.bf16.mxu0 0
    %145 = vmatpush1.bf16.msra.mxu0 0
    %146 = vmatprep.subr.bf16.mxu0 0
    %147 = vmatpush1.bf16.msra.mxu0 0
    %148 = vmatprep.subr.bf16.mxu0 0
    %149 = vmatpush1.bf16.msra.mxu0 0
    %150 = vmatprep.subr.bf16.mxu0 0
    %151 = vmatpush1.bf16.msra.mxu0 0
    %152 = vmatprep.mubr.bf16.mxu0 0
    %153 = vmatmul.mubr.bf16.gmra.mrb[0].mxu0 %v118
    %v154 = vpop.f32.mrb[0].mxu0
    %v155 = vadd.f32 %v106, %v154
    %v156 = vpop.f32.mrb[0].mxu0
    %v157 = vpop.f32.mrb[0].mxu0
    %v158 = vadd.f32 %v109, %v157
    %v159 = vpop.f32.mrb[0].mxu0
    %160 = vdwg.mxu0
    %v161 = vld [vmem:[%s32] sm:$0xe]
    %v162 = vld [vmem:[%s3 + $0x10] sm:$0xf]
    %v163 = vld [vmem:[%s3 + $0x14] sm:$0xf]
    %v165 = vunpack.c.l.b16 %v161
    %v166 = vpack.c.b16 %v44, %v165
    %vm167 = vcmask 1046528
    %v168 = vrot.slane %v166, 1
    %v169 = vrot.slane %v47, 1
    %v170 = vsel %vm167, %v168, %v169
    %v173 = vunpack.c.l.b16 %v162
    %v174 = vunpack.c.l.b16 %v163
    %v175 = vpack.c.b16 %v174, %v173
    %v178 = vsel %vm67, %v170, 0
    %180 = vmatprep.subr.bf16.mxu0 0
    %181 = vmatpush1.bf16.msra.mxu0 %v175
    %182 = vmatprep.subr.bf16.mxu0 0
    %183 = vmatpush1.bf16.msra.mxu0 0
    %184 = vmatprep.subr.bf16.mxu0 0
    %185 = vmatpush1.bf16.msra.mxu0 0
    %186 = vmatprep.subr.bf16.mxu0 0
    %187 = vmatpush1.bf16.msra.mxu0 0
    %188 = vmatprep.subr.bf16.mxu0 0
    %189 = vmatpush1.bf16.msra.mxu0 0
    %190 = vmatprep.subr.bf16.mxu0 0
    %191 = vmatpush1.bf16.msra.mxu0 0
    %192 = vmatprep.subr.bf16.mxu0 0
    %193 = vmatpush1.bf16.msra.mxu0 0
    %194 = vmatprep.subr.bf16.mxu0 0
    %195 = vmatpush1.bf16.msra.mxu0 0
    %196 = vmatprep.subr.bf16.mxu0 0
    %197 = vmatpush1.bf16.msra.mxu0 0
    %198 = vmatprep.subr.bf16.mxu0 0
    %199 = vmatpush1.bf16.msra.mxu0 0
    %200 = vmatprep.subr.bf16.mxu0 0
    %201 = vmatpush1.bf16.msra.mxu0 0
    %202 = vmatprep.subr.bf16.mxu0 0
    %203 = vmatpush1.bf16.msra.mxu0 0
    %204 = vmatprep.subr.bf16.mxu0 0
    %205 = vmatpush1.bf16.msra.mxu0 0
    %206 = vmatprep.subr.bf16.mxu0 0
    %207 = vmatpush1.bf16.msra.mxu0 0
    %208 = vmatprep.subr.bf16.mxu0 0
    %209 = vmatpush1.bf16.msra.mxu0 0
    %210 = vmatprep.subr.bf16.mxu0 0
    %211 = vmatpush1.bf16.msra.mxu0 0
    %212 = vmatprep.mubr.bf16.mxu0 0
    %213 = vmatmul.mubr.bf16.gmra.mrb[0].mxu0 %v178
    %v214 = vpop.f32.mrb[0].mxu0
    %v215 = vadd.f32 0.0, %v214
    %v216 = vpop.f32.mrb[0].mxu0
    %v217 = vpop.f32.mrb[0].mxu0
    %v218 = vadd.f32 0.0, %v217
    %v219 = vpop.f32.mrb[0].mxu0
    %220 = vdwg.mxu0
    %v221 = vadd.f32 %v155, %v215
    %v222 = vadd.f32 %v158, %v218
    %s223 = smul.addr %s30, 4
    %s224 = scalar_lea.vmem %s1, %s223
    %v225 = vld [vmem:[%s224] sm:$0xf]
    %v226 = vld [vmem:[%s224 + $0x4] sm:$0xf]
    %v227 = vld [vmem:[%s3 + $0x18] sm:$0xf]
    %v228 = vld [vmem:[%s3 + $0x1c] sm:$0xf]
    %v231 = vunpack.c.l.b16 %v225
    %v232 = vunpack.c.l.b16 %v226
    %v233 = vpack.c.b16 %v232, %v231
    %v236 = vunpack.c.l.b16 %v227
    %v237 = vunpack.c.l.b16 %v228
    %v238 = vpack.c.b16 %v237, %v236
    %v241 = vsel %vm67, %v233, 0
    %243 = vmatprep.subr.bf16.mxu0 0
    %244 = vmatpush1.bf16.msra.mxu0 %v238
    %245 = vmatprep.subr.bf16.mxu0 0
    %246 = vmatpush1.bf16.msra.mxu0 0
    %247 = vmatprep.subr.bf16.mxu0 0
    %248 = vmatpush1.bf16.msra.mxu0 0
    %249 = vmatprep.subr.bf16.mxu0 0
    %250 = vmatpush1.bf16.msra.mxu0 0
    %251 = vmatprep.subr.bf16.mxu0 0
    %252 = vmatpush1.bf16.msra.mxu0 0
    %253 = vmatprep.subr.bf16.mxu0 0
    %254 = vmatpush1.bf16.msra.mxu0 0
    %255 = vmatprep.subr.bf16.mxu0 0
    %256 = vmatpush1.bf16.msra.mxu0 0
    %257 = vmatprep.subr.bf16.mxu0 0
    %258 = vmatpush1.bf16.msra.mxu0 0
    %259 = vmatprep.subr.bf16.mxu0 0
    %260 = vmatpush1.bf16.msra.mxu0 0
    %261 = vmatprep.subr.bf16.mxu0 0
    %262 = vmatpush1.bf16.msra.mxu0 0
    %263 = vmatprep.subr.bf16.mxu0 0
    %264 = vmatpush1.bf16.msra.mxu0 0
    %265 = vmatprep.subr.bf16.mxu0 0
    %266 = vmatpush1.bf16.msra.mxu0 0
    %267 = vmatprep.subr.bf16.mxu0 0
    %268 = vmatpush1.bf16.msra.mxu0 0
    %269 = vmatprep.subr.bf16.mxu0 0
    %270 = vmatpush1.bf16.msra.mxu0 0
    %271 = vmatprep.subr.bf16.mxu0 0
    %272 = vmatpush1.bf16.msra.mxu0 0
    %273 = vmatprep.subr.bf16.mxu0 0
    %274 = vmatpush1.bf16.msra.mxu0 0
    %275 = vmatprep.mubr.bf16.mxu0 0
    %276 = vmatmul.mubr.bf16.gmra.mrb[0].mxu0 %v241
    %v277 = vpop.f32.mrb[0].mxu0
    %v278 = vadd.f32 0.0, %v277
    %v279 = vpop.f32.mrb[0].mxu0
    %v280 = vpop.f32.mrb[0].mxu0
    %v281 = vadd.f32 0.0, %v280
    %v282 = vpop.f32.mrb[0].mxu0
    %283 = vdwg.mxu0
    %v284 = vadd.f32 %v221, %v278
    %v285 = vadd.f32 %v222, %v281
    %v286 = vld [vmem:[%s224] sm:$0xf]
    %v287 = vld [vmem:[%s224 + $0x4] sm:$0xf]
    %v288 = vld [vmem:[%s224 + $0x8] sm:$0x1]
    %v289 = vld [vmem:[%s3 + $0x20] sm:$0xf]
    %v290 = vld [vmem:[%s3 + $0x24] sm:$0xf]
    %v294 = vunpack.c.l.b16 %v286
    %v295 = vunpack.c.l.b16 %v287
    %v296 = vunpack.c.l.b16 %v288
    %v297 = vpack.c.b16 %v295, %v294
    %v298 = vpack.c.b16 %v296, %v296
    %v300 = vshrl.u32 %v297, 16
    %v302 = vshll.u32 %v297, 16
    %v304 = vrot.slane %v302, 1
    %v305 = vor.u32 %v300, %v304
    %v307 = vshll.u32 %v298, 16
    %v309 = vrot.slane %v307, 1
    %v310 = vsel %vm48, %v305, %v309
    %v313 = vunpack.c.l.b16 %v289
    %v314 = vunpack.c.l.b16 %v290
    %v315 = vpack.c.b16 %v314, %v313
    %v318 = vsel %vm67, %v310, 0
    %320 = vmatprep.subr.bf16.mxu0 0
    %321 = vmatpush1.bf16.msra.mxu0 %v315
    %322 = vmatprep.subr.bf16.mxu0 0
    %323 = vmatpush1.bf16.msra.mxu0 0
    %324 = vmatprep.subr.bf16.mxu0 0
    %325 = vmatpush1.bf16.msra.mxu0 0
    %326 = vmatprep.subr.bf16.mxu0 0
    %327 = vmatpush1.bf16.msra.mxu0 0
    %328 = vmatprep.subr.bf16.mxu0 0
    %329 = vmatpush1.bf16.msra.mxu0 0
    %330 = vmatprep.subr.bf16.mxu0 0
    %331 = vmatpush1.bf16.msra.mxu0 0
    %332 = vmatprep.subr.bf16.mxu0 0
    %333 = vmatpush1.bf16.msra.mxu0 0
    %334 = vmatprep.subr.bf16.mxu0 0
    %335 = vmatpush1.bf16.msra.mxu0 0
    %336 = vmatprep.subr.bf16.mxu0 0
    %337 = vmatpush1.bf16.msra.mxu0 0
    %338 = vmatprep.subr.bf16.mxu0 0
    %339 = vmatpush1.bf16.msra.mxu0 0
    %340 = vmatprep.subr.bf16.mxu0 0
    %341 = vmatpush1.bf16.msra.mxu0 0
    %342 = vmatprep.subr.bf16.mxu0 0
    %343 = vmatpush1.bf16.msra.mxu0 0
    %344 = vmatprep.subr.bf16.mxu0 0
    %345 = vmatpush1.bf16.msra.mxu0 0
    %346 = vmatprep.subr.bf16.mxu0 0
    %347 = vmatpush1.bf16.msra.mxu0 0
    %348 = vmatprep.subr.bf16.mxu0 0
    %349 = vmatpush1.bf16.msra.mxu0 0
    %350 = vmatprep.subr.bf16.mxu0 0
    %351 = vmatpush1.bf16.msra.mxu0 0
    %352 = vmatprep.mubr.bf16.mxu0 0
    %353 = vmatmul.mubr.bf16.gmra.mrb[0].mxu0 %v318
    %v354 = vpop.f32.mrb[0].mxu0
    %v355 = vadd.f32 0.0, %v354
    %v356 = vpop.f32.mrb[0].mxu0
    %v357 = vpop.f32.mrb[0].mxu0
    %v358 = vadd.f32 0.0, %v357
    %v359 = vpop.f32.mrb[0].mxu0
    %360 = vdwg.mxu0
    %v361 = vadd.f32 %v284, %v355
    %v362 = vadd.f32 %v285, %v358
    %v363 = vld [vmem:[%s224] sm:$0xe]
    %v364 = vld [vmem:[%s3 + $0x28] sm:$0xf]
    %v365 = vld [vmem:[%s3 + $0x2c] sm:$0xf]
    %v367 = vunpack.c.l.b16 %v363
    %v368 = vpack.c.b16 %v295, %v367
    %v369 = vrot.slane %v368, 1
    %v370 = vrot.slane %v298, 1
    %v371 = vsel %vm167, %v369, %v370
    %v374 = vunpack.c.l.b16 %v364
    %v375 = vunpack.c.l.b16 %v365
    %v376 = vpack.c.b16 %v375, %v374
    %v379 = vsel %vm67, %v371, 0
    %381 = vmatprep.subr.bf16.mxu0 0
    %382 = vmatpush1.bf16.msra.mxu0 %v376
    %383 = vmatprep.subr.bf16.mxu0 0
    %384 = vmatpush1.bf16.msra.mxu0 0
    %385 = vmatprep.subr.bf16.mxu0 0
    %386 = vmatpush1.bf16.msra.mxu0 0
    %387 = vmatprep.subr.bf16.mxu0 0
    %388 = vmatpush1.bf16.msra.mxu0 0
    %389 = vmatprep.subr.bf16.mxu0 0
    %390 = vmatpush1.bf16.msra.mxu0 0
    %391 = vmatprep.subr.bf16.mxu0 0
    %392 = vmatpush1.bf16.msra.mxu0 0
    %393 = vmatprep.subr.bf16.mxu0 0
    %394 = vmatpush1.bf16.msra.mxu0 0
    %395 = vmatprep.subr.bf16.mxu0 0
    %396 = vmatpush1.bf16.msra.mxu0 0
    %397 = vmatprep.subr.bf16.mxu0 0
    %398 = vmatpush1.bf16.msra.mxu0 0
    %399 = vmatprep.subr.bf16.mxu0 0
    %400 = vmatpush1.bf16.msra.mxu0 0
    %401 = vmatprep.subr.bf16.mxu0 0
    %402 = vmatpush1.bf16.msra.mxu0 0
    %403 = vmatprep.subr.bf16.mxu0 0
    %404 = vmatpush1.bf16.msra.mxu0 0
    %405 = vmatprep.subr.bf16.mxu0 0
    %406 = vmatpush1.bf16.msra.mxu0 0
    %407 = vmatprep.subr.bf16.mxu0 0
    %408 = vmatpush1.bf16.msra.mxu0 0
    %409 = vmatprep.subr.bf16.mxu0 0
    %410 = vmatpush1.bf16.msra.mxu0 0
    %411 = vmatprep.subr.bf16.mxu0 0
    %412 = vmatpush1.bf16.msra.mxu0 0
    %413 = vmatprep.mubr.bf16.mxu0 0
    %414 = vmatmul.mubr.bf16.gmra.mrb[0].mxu0 %v379
    %v415 = vpop.f32.mrb[0].mxu0
    %v416 = vadd.f32 0.0, %v415
    %v417 = vpop.f32.mrb[0].mxu0
    %v418 = vpop.f32.mrb[0].mxu0
    %v419 = vadd.f32 0.0, %v418
    %v420 = vpop.f32.mrb[0].mxu0
    %421 = vdwg.mxu0
    %v422 = vadd.f32 %v361, %v416
    %v423 = vadd.f32 %v362, %v419
    %s424 = smul.addr %s30, 4
    %s425 = scalar_lea.vmem %s2, %s424
    %v426 = vld [vmem:[%s425] sm:$0xf]
    %v427 = vld [vmem:[%s425 + $0x4] sm:$0xf]
    %v428 = vld [vmem:[%s3 + $0x30] sm:$0xf]
    %v429 = vld [vmem:[%s3 + $0x34] sm:$0xf]
    %v432 = vunpack.c.l.b16 %v426
    %v433 = vunpack.c.l.b16 %v427
    %v434 = vpack.c.b16 %v433, %v432
    %v437 = vunpack.c.l.b16 %v428
    %v438 = vunpack.c.l.b16 %v429
    %v439 = vpack.c.b16 %v438, %v437
    %v442 = vsel %vm67, %v434, 0
    %444 = vmatprep.subr.bf16.mxu0 0
    %445 = vmatpush1.bf16.msra.mxu0 %v439
    %446 = vmatprep.subr.bf16.mxu0 0
    %447 = vmatpush1.bf16.msra.mxu0 0
    %448 = vmatprep.subr.bf16.mxu0 0
    %449 = vmatpush1.bf16.msra.mxu0 0
    %450 = vmatprep.subr.bf16.mxu0 0
    %451 = vmatpush1.bf16.msra.mxu0 0
    %452 = vmatprep.subr.bf16.mxu0 0
    %453 = vmatpush1.bf16.msra.mxu0 0
    %454 = vmatprep.subr.bf16.mxu0 0
    %455 = vmatpush1.bf16.msra.mxu0 0
    %456 = vmatprep.subr.bf16.mxu0 0
    %457 = vmatpush1.bf16.msra.mxu0 0
    %458 = vmatprep.subr.bf16.mxu0 0
    %459 = vmatpush1.bf16.msra.mxu0 0
    %460 = vmatprep.subr.bf16.mxu0 0
    %461 = vmatpush1.bf16.msra.mxu0 0
    %462 = vmatprep.subr.bf16.mxu0 0
    %463 = vmatpush1.bf16.msra.mxu0 0
    %464 = vmatprep.subr.bf16.mxu0 0
    %465 = vmatpush1.bf16.msra.mxu0 0
    %466 = vmatprep.subr.bf16.mxu0 0
    %467 = vmatpush1.bf16.msra.mxu0 0
    %468 = vmatprep.subr.bf16.mxu0 0
    %469 = vmatpush1.bf16.msra.mxu0 0
    %470 = vmatprep.subr.bf16.mxu0 0
    %471 = vmatpush1.bf16.msra.mxu0 0
    %472 = vmatprep.subr.bf16.mxu0 0
    %473 = vmatpush1.bf16.msra.mxu0 0
    %474 = vmatprep.subr.bf16.mxu0 0
    %475 = vmatpush1.bf16.msra.mxu0 0
    %476 = vmatprep.mubr.bf16.mxu0 0
    %477 = vmatmul.mubr.bf16.gmra.mrb[0].mxu0 %v442
    %v478 = vpop.f32.mrb[0].mxu0
    %v479 = vadd.f32 0.0, %v478
    %v480 = vpop.f32.mrb[0].mxu0
    %v481 = vpop.f32.mrb[0].mxu0
    %v482 = vadd.f32 0.0, %v481
    %v483 = vpop.f32.mrb[0].mxu0
    %484 = vdwg.mxu0
    %v485 = vadd.f32 %v422, %v479
    %v486 = vadd.f32 %v423, %v482
    %v487 = vld [vmem:[%s425] sm:$0xf]
    %v488 = vld [vmem:[%s425 + $0x4] sm:$0xf]
    %v489 = vld [vmem:[%s425 + $0x8] sm:$0x1]
    %v490 = vld [vmem:[%s3 + $0x38] sm:$0xf]
    %v491 = vld [vmem:[%s3 + $0x3c] sm:$0xf]
    %v495 = vunpack.c.l.b16 %v487
    %v496 = vunpack.c.l.b16 %v488
    %v497 = vunpack.c.l.b16 %v489
    %v498 = vpack.c.b16 %v496, %v495
    %v499 = vpack.c.b16 %v497, %v497
    %v501 = vshrl.u32 %v498, 16
    %v503 = vshll.u32 %v498, 16
    %v505 = vrot.slane %v503, 1
    %v506 = vor.u32 %v501, %v505
    %v508 = vshll.u32 %v499, 16
    %v510 = vrot.slane %v508, 1
    %v511 = vsel %vm48, %v506, %v510
    %v514 = vunpack.c.l.b16 %v490
    %v515 = vunpack.c.l.b16 %v491
    %v516 = vpack.c.b16 %v515, %v514
    %v519 = vsel %vm67, %v511, 0
    %521 = vmatprep.subr.bf16.mxu0 0
    %522 = vmatpush1.bf16.msra.mxu0 %v516
    %523 = vmatprep.subr.bf16.mxu0 0
    %524 = vmatpush1.bf16.msra.mxu0 0
    %525 = vmatprep.subr.bf16.mxu0 0
    %526 = vmatpush1.bf16.msra.mxu0 0
    %527 = vmatprep.subr.bf16.mxu0 0
    %528 = vmatpush1.bf16.msra.mxu0 0
    %529 = vmatprep.subr.bf16.mxu0 0
    %530 = vmatpush1.bf16.msra.mxu0 0
    %531 = vmatprep.subr.bf16.mxu0 0
    %532 = vmatpush1.bf16.msra.mxu0 0
    %533 = vmatprep.subr.bf16.mxu0 0
    %534 = vmatpush1.bf16.msra.mxu0 0
    %535 = vmatprep.subr.bf16.mxu0 0
    %536 = vmatpush1.bf16.msra.mxu0 0
    %537 = vmatprep.subr.bf16.mxu0 0
    %538 = vmatpush1.bf16.msra.mxu0 0
    %539 = vmatprep.subr.bf16.mxu0 0
    %540 = vmatpush1.bf16.msra.mxu0 0
    %541 = vmatprep.subr.bf16.mxu0 0
    %542 = vmatpush1.bf16.msra.mxu0 0
    %543 = vmatprep.subr.bf16.mxu0 0
    %544 = vmatpush1.bf16.msra.mxu0 0
    %545 = vmatprep.subr.bf16.mxu0 0
    %546 = vmatpush1.bf16.msra.mxu0 0
    %547 = vmatprep.subr.bf16.mxu0 0
    %548 = vmatpush1.bf16.msra.mxu0 0
    %549 = vmatprep.subr.bf16.mxu0 0
    %550 = vmatpush1.bf16.msra.mxu0 0
    %551 = vmatprep.subr.bf16.mxu0 0
    %552 = vmatpush1.bf16.msra.mxu0 0
    %553 = vmatprep.mubr.bf16.mxu0 0
    %554 = vmatmul.mubr.bf16.gmra.mrb[0].mxu0 %v519
    %v555 = vpop.f32.mrb[0].mxu0
    %v556 = vadd.f32 0.0, %v555
    %v557 = vpop.f32.mrb[0].mxu0
    %v558 = vpop.f32.mrb[0].mxu0
    %v559 = vadd.f32 0.0, %v558
    %v560 = vpop.f32.mrb[0].mxu0
    %561 = vdwg.mxu0
    %v562 = vadd.f32 %v485, %v556
    %v563 = vadd.f32 %v486, %v559
    %v564 = vld [vmem:[%s425] sm:$0xe]
    %v565 = vld [vmem:[%s3 + $0x40] sm:$0xf]
    %v566 = vld [vmem:[%s3 + $0x44] sm:$0xf]
    %v568 = vunpack.c.l.b16 %v564
    %v569 = vpack.c.b16 %v496, %v568
    %v570 = vrot.slane %v569, 1
    %v571 = vrot.slane %v499, 1
    %v572 = vsel %vm167, %v570, %v571
    %v575 = vunpack.c.l.b16 %v565
    %v576 = vunpack.c.l.b16 %v566
    %v577 = vpack.c.b16 %v576, %v575
    %v580 = vsel %vm67, %v572, 0
    %582 = vmatprep.subr.bf16.mxu0 0
    %583 = vmatpush1.bf16.msra.mxu0 %v577
    %584 = vmatprep.subr.bf16.mxu0 0
    %585 = vmatpush1.bf16.msra.mxu0 0
    %586 = vmatprep.subr.bf16.mxu0 0
    %587 = vmatpush1.bf16.msra.mxu0 0
    %588 = vmatprep.subr.bf16.mxu0 0
    %589 = vmatpush1.bf16.msra.mxu0 0
    %590 = vmatprep.subr.bf16.mxu0 0
    %591 = vmatpush1.bf16.msra.mxu0 0
    %592 = vmatprep.subr.bf16.mxu0 0
    %593 = vmatpush1.bf16.msra.mxu0 0
    %594 = vmatprep.subr.bf16.mxu0 0
    %595 = vmatpush1.bf16.msra.mxu0 0
    %596 = vmatprep.subr.bf16.mxu0 0
    %597 = vmatpush1.bf16.msra.mxu0 0
    %598 = vmatprep.subr.bf16.mxu0 0
    %599 = vmatpush1.bf16.msra.mxu0 0
    %600 = vmatprep.subr.bf16.mxu0 0
    %601 = vmatpush1.bf16.msra.mxu0 0
    %602 = vmatprep.subr.bf16.mxu0 0
    %603 = vmatpush1.bf16.msra.mxu0 0
    %604 = vmatprep.subr.bf16.mxu0 0
    %605 = vmatpush1.bf16.msra.mxu0 0
    %606 = vmatprep.subr.bf16.mxu0 0
    %607 = vmatpush1.bf16.msra.mxu0 0
    %608 = vmatprep.subr.bf16.mxu0 0
    %609 = vmatpush1.bf16.msra.mxu0 0
    %610 = vmatprep.subr.bf16.mxu0 0
    %611 = vmatpush1.bf16.msra.mxu0 0
    %612 = vmatprep.subr.bf16.mxu0 0
    %613 = vmatpush1.bf16.msra.mxu0 0
    %614 = vmatprep.mubr.bf16.mxu0 0
    %615 = vmatmul.mubr.bf16.gmra.mrb[0].mxu0 %v580
    %v616 = vpop.f32.mrb[0].mxu0
    %v617 = vadd.f32 0.0, %v616
    %v618 = vpop.f32.mrb[0].mxu0
    %v619 = vpop.f32.mrb[0].mxu0
    %v620 = vadd.f32 0.0, %v619
    %v621 = vpop.f32.mrb[0].mxu0
    %622 = vdwg.mxu0
    %v623 = vadd.f32 %v562, %v617
    %v624 = vadd.f32 %v563, %v620
    %v625 = vld [vmem:[%s4] sm:$0x1]
    %v627 = vlaneseq
    %v628 = vshrl.u32 %v627, 7
    %v629 = vsub.s32 0, %v628
    %v630 = vrot.slane %v625, %v629
    %v632 = vadd.f32 %v623, %v630
    %v633 = vadd.f32 %v624, %v630
    %vm634 = vcmp.ge.f32.partialorder %v632, 0.0
    %vm635 = vcmp.ge.f32.partialorder %v633, 0.0
    %v636 = vld [vmem:[%s5] sm:$0x1]
    %v638 = vlaneseq
    %v639 = vshrl.u32 %v638, 7
    %v640 = vsub.s32 0, %v639
    %v641 = vrot.slane %v636, %v640
    %v643 = vmul.f32 %v641, %v632
    %v644 = vmul.f32 %v641, %v633
    %v645 = vsel %vm634, %v632, %v643
    %v646 = vsel %vm635, %v633, %v644
    %v647 = vpack.c.bf16 %v646, %v645
    %v649 = vunpack.c.l.b16 %v647
    %v650 = vunpack.c.h.b16 %v647
    %v651 = vpack.c.b16 %v649, %v649
    %v652 = vpack.c.b16 %v650, %v650
    %s655 = smul.u32 %s25, 2
    %s656 = smul.addr %s655, 4
    %s657 = scalar_lea.vmem %s6, %s656
    %vm658 = vcmask 125952
    %659 = vst.msk [vmem:[%s657] sm:$0xf] %vm658, %v651
    %660 = vst.msk [vmem:[%s657 + $0x4] sm:$0xf] %vm658, %v652
  $region30: #{_forward_impl.9} parent=0 // loop_footer
    %s29 = sadd.s32 1, %s25
  $region31: #{_forward_impl.9} parent=0 // loop_footer_branch
    %24 = sbr.rel target = $region27
  $region32: #{_forward_impl.9} parent=0 // loop_exit
    _
  // Predicated region
  $region33: #{_forward_impl.9} parent=0 // pred_check
    _
  $region34: #{_forward_impl.9} parent=0 // pred_check_branch
    %662 = sbr.rel (0) target = $region36
  $region35: #{_forward_impl.9} parent=0 // pred_region
    _
  $region36: #{_forward_impl.9} parent=0 // pred_fallthru
    _
  // Predicated region
  $region37: #{_forward_impl.9} parent=0 // pred_check
    _
  $region38: #{_forward_impl.9} parent=0 // pred_check_branch
    %664 = sbr.rel (0) target = $region40
  $region39: #{_forward_impl.9} parent=0 // pred_region
    _
  $region40: #{_forward_impl.9} parent=0 // pred_fallthru
    _

// kernel: _forward_impl.10
$region0: #{_forward_impl.10}
  #allocation0 [shape = 'u32[]', space=smem, size = 0x4, offset = 0x4, fixed_abs, tag = 'smem constant byte address 0x4 - core index']
  #allocation1 [shape = 'u32[144,128]{1,0:T(1,128)}', space=vmem, size = 0x12000, scoped, tag = 'internal scratch']
  %s0 = inlined_call_operand.vmem [shape: bf16[16,9,32], index: 0, kind: input, shape index: {}]
  %s1 = inlined_call_operand.vmem [shape: bf16[16,9,32], index: 1, kind: input, shape index: {}]
  %s2 = inlined_call_operand.vmem [shape: bf16[16,9,32], index: 2, kind: input, shape index: {}]
  %s3 = inlined_call_operand.vmem [shape: bf16[144,32], index: 3, kind: input, shape index: {}]
  %s4 = inlined_call_operand.vmem [shape: f32[1,32], index: 4, kind: input, shape index: {}]
  %s5 = inlined_call_operand.vmem [shape: f32[1,32], index: 5, kind: input, shape index: {}]
  %s6 = inlined_call_operand.vmem [shape: bf16[16,8,32], index: 6, kind: output, shape index: {}]
  %s7 = sld [smem:[#allocation0]]
  $region41: #{_forward_impl.10} parent=0
    _
  %s9 = ssub.s32 1, %s7
  %s10 = scalar_select 0, %s9, %s7
  // Predicated region
  $region2: #{_forward_impl.10} parent=0 // pred_check
    _
  $region3: #{_forward_impl.10} parent=0 // pred_check_branch
    %12 = sbr.rel (0) target = $region5
  $region4: #{_forward_impl.10} parent=0 // pred_region
    _
  $region5: #{_forward_impl.10} parent=0 // pred_fallthru
    _
  // Predicated region
  $region6: #{_forward_impl.10} parent=0 // pred_check
    _
  $region7: #{_forward_impl.10} parent=0 // pred_check_branch
    %14 = sbr.rel (0) target = $region9
  $region8: #{_forward_impl.10} parent=0 // pred_region
    _
  $region9: #{_forward_impl.10} parent=0 // pred_fallthru
    _
  // Predicated region
  $region10: #{_forward_impl.10} parent=0 // pred_check
    _
  $region11: #{_forward_impl.10} parent=0 // pred_check_branch
    %16 = sbr.rel (0) target = $region13
  $region12: #{_forward_impl.10} parent=0 // pred_region
    _
  $region13: #{_forward_impl.10} parent=0 // pred_fallthru
    _
  // Predicated region
  $region14: #{_forward_impl.10} parent=0 // pred_check
    _
  $region15: #{_forward_impl.10} parent=0 // pred_check_branch
    %18 = sbr.rel (0) target = $region17
  $region16: #{_forward_impl.10} parent=0 // pred_region
    _
  $region17: #{_forward_impl.10} parent=0 // pred_fallthru
    _
  // Predicated region
  $region18: #{_forward_impl.10} parent=0 // pred_check
    _
  $region19: #{_forward_impl.10} parent=0 // pred_check_branch
    %20 = sbr.rel (0) target = $region21
  $region20: #{_forward_impl.10} parent=0 // pred_region
    _
  $region21: #{_forward_impl.10} parent=0 // pred_fallthru
    _
  // Predicated region
  $region22: #{_forward_impl.10} parent=0 // pred_check
    _
  $region23: #{_forward_impl.10} parent=0 // pred_check_branch
    %22 = sbr.rel (0) target = $region25
  $region24: #{_forward_impl.10} parent=0 // pred_region
    _
  $region25: #{_forward_impl.10} parent=0 // pred_fallthru
    _
  loop: start=0, step=1, limit=16
  $region26: #{_forward_impl.10} parent=0 // loop_pre_header
    _
  $region27: #{_forward_impl.10} parent=0 // loop_header
    %s25 = sphi 0, %s29
    %p26 = scmp.ge.s32.totalorder %s25, 16
  $region28: #{_forward_impl.10} parent=0 // loop_header_branch
    %28 = sbr.rel (%p26) target = $region32
  $region29: #{_forward_impl.10} parent=0 // loop_body
    %s30 = smul.u32 %s25, 2
    %s31 = smul.addr %s30, 4
    %s32 = scalar_lea.vmem %s0, %s31
    %v33 = vld [vmem:[%s32] sm:$0xf]
    %v34 = vld [vmem:[%s3] sm:$0xf]
    %v35 = vld [vmem:[%s3 + $0x4] sm:$0xf]
    %v36 = vld [vmem:[%s3 + $0x8] sm:$0xf]
    %v37 = vld [vmem:[%s3 + $0xc] sm:$0xf]
    %v39 = vunpack.c.l.b16 %v33
    %v40 = vpack.c.b16 %v39, %v39
    %41 = vrot.lane.b32.xlu0 %v40, 112
    %v42 = vpop.permute.xlu0 %41
    %v45 = vunpack.c.l.b16 %v36
    %v46 = vunpack.c.l.b16 %v37
    %v47 = vpack.c.b16 %v46, %v45
    %vm49 = vcmask 130048
    %v51 = vsel %vm49, %v42, 0
    %53 = vmatprep.subr.bf16.mxu0 0
    %54 = vmatpush1.bf16.msra.mxu0 %v47
    %55 = vmatprep.subr.bf16.mxu0 0
    %56 = vmatpush1.bf16.msra.mxu0 0
    %57 = vmatprep.subr.bf16.mxu0 0
    %58 = vmatpush1.bf16.msra.mxu0 0
    %59 = vmatprep.subr.bf16.mxu0 0
    %60 = vmatpush1.bf16.msra.mxu0 0
    %61 = vmatprep.subr.bf16.mxu0 0
    %62 = vmatpush1.bf16.msra.mxu0 0
    %63 = vmatprep.subr.bf16.mxu0 0
    %64 = vmatpush1.bf16.msra.mxu0 0
    %65 = vmatprep.subr.bf16.mxu0 0
    %66 = vmatpush1.bf16.msra.mxu0 0
    %67 = vmatprep.subr.bf16.mxu0 0
    %68 = vmatpush1.bf16.msra.mxu0 0
    %69 = vmatprep.subr.bf16.mxu0 0
    %70 = vmatpush1.bf16.msra.mxu0 0
    %71 = vmatprep.subr.bf16.mxu0 0
    %72 = vmatpush1.bf16.msra.mxu0 0
    %73 = vmatprep.subr.bf16.mxu0 0
    %74 = vmatpush1.bf16.msra.mxu0 0
    %75 = vmatprep.subr.bf16.mxu0 0
    %76 = vmatpush1.bf16.msra.mxu0 0
    %77 = vmatprep.subr.bf16.mxu0 0
    %78 = vmatpush1.bf16.msra.mxu0 0
    %79 = vmatprep.subr.bf16.mxu0 0
    %80 = vmatpush1.bf16.msra.mxu0 0
    %81 = vmatprep.subr.bf16.mxu0 0
    %82 = vmatpush1.bf16.msra.mxu0 0
    %83 = vmatprep.subr.bf16.mxu0 0
    %84 = vmatpush1.bf16.msra.mxu0 0
    %85 = vmatprep.mubr.bf16.mxu0 0
    %86 = vmatmul.mubr.bf16.gmra.mrb[0].mxu0 %v51
    %v87 = vpop.f32.mrb[0].mxu0
    %v88 = vadd.f32 0.0, %v87
    %v89 = vpop.f32.mrb[0].mxu0
    %v90 = vpop.f32.mrb[0].mxu0
    %v91 = vpop.f32.mrb[0].mxu0
    %92 = vdwg.mxu0
    %v95 = vunpack.c.l.b16 %v34
    %v96 = vunpack.c.l.b16 %v35
    %v97 = vpack.c.b16 %v96, %v95
    %v100 = vsel %vm49, %v33, 0
    %102 = vmatprep.subr.bf16.mxu0 0
    %103 = vmatpush1.bf16.msra.mxu0 %v97
    %104 = vmatprep.subr.bf16.mxu0 0
    %105 = vmatpush1.bf16.msra.mxu0 0
    %106 = vmatprep.subr.bf16.mxu0 0
    %107 = vmatpush1.bf16.msra.mxu0 0
    %108 = vmatprep.subr.bf16.mxu0 0
    %109 = vmatpush1.bf16.msra.mxu0 0
    %110 = vmatprep.subr.bf16.mxu0 0
    %111 = vmatpush1.bf16.msra.mxu0 0
    %112 = vmatprep.subr.bf16.mxu0 0
    %113 = vmatpush1.bf16.msra.mxu0 0
    %114 = vmatprep.subr.bf16.mxu0 0
    %115 = vmatpush1.bf16.msra.mxu0 0
    %116 = vmatprep.subr.bf16.mxu0 0
    %117 = vmatpush1.bf16.msra.mxu0 0
    %118 = vmatprep.subr.bf16.mxu0 0
    %119 = vmatpush1.bf16.msra.mxu0 0
    %120 = vmatprep.subr.bf16.mxu0 0
    %121 = vmatpush1.bf16.msra.mxu0 0
    %122 = vmatprep.subr.bf16.mxu0 0
    %123 = vmatpush1.bf16.msra.mxu0 0
    %124 = vmatprep.subr.bf16.mxu0 0
    %125 = vmatpush1.bf16.msra.mxu0 0
    %126 = vmatprep.subr.bf16.mxu0 0
    %127 = vmatpush1.bf16.msra.mxu0 0
    %128 = vmatprep.subr.bf16.mxu0 0
    %129 = vmatpush1.bf16.msra.mxu0 0
    %130 = vmatprep.subr.bf16.mxu0 0
    %131 = vmatpush1.bf16.msra.mxu0 0
    %132 = vmatprep.subr.bf16.mxu0 0
    %133 = vmatpush1.bf16.msra.mxu0 0
    %134 = vmatprep.mubr.bf16.mxu0 0
    %135 = vmatmul.mubr.bf16.gmra.mrb[0].mxu0 %v100
    %v136 = vpop.f32.mrb[0].mxu0
    %v137 = vadd.f32 %v88, %v136
    %v138 = vpop.f32.mrb[0].mxu0
    %v139 = vpop.f32.mrb[0].mxu0
    %v140 = vpop.f32.mrb[0].mxu0
    %141 = vdwg.mxu0
    %v142 = vld [vmem:[%s32] sm:$0xf]
    %v143 = vld [vmem:[%s32 + $0x4] sm:$0x1]
    %v144 = vld [vmem:[%s3 + $0x10] sm:$0xf]
    %v145 = vld [vmem:[%s3 + $0x14] sm:$0xf]
    %v148 = vunpack.c.l.b16 %v142
    %v149 = vunpack.c.l.b16 %v143
    %v150 = vpack.c.b16 %v149, %v148
    %v152 = vshrl.u32 %v150, 16
    %v154 = vshll.u32 %v150, 16
    %v156 = vrot.slane %v154, 1
    %v157 = vor.u32 %v152, %v156
    %v160 = vunpack.c.l.b16 %v144
    %v161 = vunpack.c.l.b16 %v145
    %v162 = vpack.c.b16 %v161, %v160
    %v165 = vsel %vm49, %v157, 0
    %167 = vmatprep.subr.bf16.mxu0 0
    %168 = vmatpush1.bf16.msra.mxu0 %v162
    %169 = vmatprep.subr.bf16.mxu0 0
    %170 = vmatpush1.bf16.msra.mxu0 0
    %171 = vmatprep.subr.bf16.mxu0 0
    %172 = vmatpush1.bf16.msra.mxu0 0
    %173 = vmatprep.subr.bf16.mxu0 0
    %174 = vmatpush1.bf16.msra.mxu0 0
    %175 = vmatprep.subr.bf16.mxu0 0
    %176 = vmatpush1.bf16.msra.mxu0 0
    %177 = vmatprep.subr.bf16.mxu0 0
    %178 = vmatpush1.bf16.msra.mxu0 0
    %179 = vmatprep.subr.bf16.mxu0 0
    %180 = vmatpush1.bf16.msra.mxu0 0
    %181 = vmatprep.subr.bf16.mxu0 0
    %182 = vmatpush1.bf16.msra.mxu0 0
    %183 = vmatprep.subr.bf16.mxu0 0
    %184 = vmatpush1.bf16.msra.mxu0 0
    %185 = vmatprep.subr.bf16.mxu0 0
    %186 = vmatpush1.bf16.msra.mxu0 0
    %187 = vmatprep.subr.bf16.mxu0 0
    %188 = vmatpush1.bf16.msra.mxu0 0
    %189 = vmatprep.subr.bf16.mxu0 0
    %190 = vmatpush1.bf16.msra.mxu0 0
    %191 = vmatprep.subr.bf16.mxu0 0
    %192 = vmatpush1.bf16.msra.mxu0 0
    %193 = vmatprep.subr.bf16.mxu0 0
    %194 = vmatpush1.bf16.msra.mxu0 0
    %195 = vmatprep.subr.bf16.mxu0 0
    %196 = vmatpush1.bf16.msra.mxu0 0
    %197 = vmatprep.subr.bf16.mxu0 0
    %198 = vmatpush1.bf16.msra.mxu0 0
    %199 = vmatprep.mubr.bf16.mxu0 0
    %200 = vmatmul.mubr.bf16.gmra.mrb[0].mxu0 %v165
    %v201 = vpop.f32.mrb[0].mxu0
    %v202 = vadd.f32 0.0, %v201
    %v203 = vpop.f32.mrb[0].mxu0
    %v204 = vpop.f32.mrb[0].mxu0
    %v205 = vpop.f32.mrb[0].mxu0
    %206 = vdwg.mxu0
    %v207 = vadd.f32 %v137, %v202
    %s208 = smul.addr %s30, 4
    %s209 = scalar_lea.vmem %s1, %s208
    %v210 = vld [vmem:[%s209] sm:$0xf]
    %v211 = vld [vmem:[%s3 + $0x18] sm:$0xf]
    %v212 = vld [vmem:[%s3 + $0x1c] sm:$0xf]
    %v215 = vunpack.c.l.b16 %v211
    %v216 = vunpack.c.l.b16 %v212
    %v217 = vpack.c.b16 %v216, %v215
    %v220 = vsel %vm49, %v210, 0
    %222 = vmatprep.subr.bf16.mxu0 0
    %223 = vmatpush1.bf16.msra.mxu0 %v217
    %224 = vmatprep.subr.bf16.mxu0 0
    %225 = vmatpush1.bf16.msra.mxu0 0
    %226 = vmatprep.subr.bf16.mxu0 0
    %227 = vmatpush1.bf16.msra.mxu0 0
    %228 = vmatprep.subr.bf16.mxu0 0
    %229 = vmatpush1.bf16.msra.mxu0 0
    %230 = vmatprep.subr.bf16.mxu0 0
    %231 = vmatpush1.bf16.msra.mxu0 0
    %232 = vmatprep.subr.bf16.mxu0 0
    %233 = vmatpush1.bf16.msra.mxu0 0
    %234 = vmatprep.subr.bf16.mxu0 0
    %235 = vmatpush1.bf16.msra.mxu0 0
    %236 = vmatprep.subr.bf16.mxu0 0
    %237 = vmatpush1.bf16.msra.mxu0 0
    %238 = vmatprep.subr.bf16.mxu0 0
    %239 = vmatpush1.bf16.msra.mxu0 0
    %240 = vmatprep.subr.bf16.mxu0 0
    %241 = vmatpush1.bf16.msra.mxu0 0
    %242 = vmatprep.subr.bf16.mxu0 0
    %243 = vmatpush1.bf16.msra.mxu0 0
    %244 = vmatprep.subr.bf16.mxu0 0
    %245 = vmatpush1.bf16.msra.mxu0 0
    %246 = vmatprep.subr.bf16.mxu0 0
    %247 = vmatpush1.bf16.msra.mxu0 0
    %248 = vmatprep.subr.bf16.mxu0 0
    %249 = vmatpush1.bf16.msra.mxu0 0
    %250 = vmatprep.subr.bf16.mxu0 0
    %251 = vmatpush1.bf16.msra.mxu0 0
    %252 = vmatprep.subr.bf16.mxu0 0
    %253 = vmatpush1.bf16.msra.mxu0 0
    %254 = vmatprep.mubr.bf16.mxu0 0
    %255 = vmatmul.mubr.bf16.gmra.mrb[0].mxu0 %v220
    %v256 = vpop.f32.mrb[0].mxu0
    %v257 = vadd.f32 0.0, %v256
    %v258 = vpop.f32.mrb[0].mxu0
    %v259 = vpop.f32.mrb[0].mxu0
    %v260 = vpop.f32.mrb[0].mxu0
    %261 = vdwg.mxu0
    %v262 = vadd.f32 %v207, %v257
    %v263 = vld [vmem:[%s3 + $0x20] sm:$0xf]
    %v264 = vld [vmem:[%s3 + $0x24] sm:$0xf]
    %v266 = vunpack.c.l.b16 %v210
    %v267 = vpack.c.b16 %v266, %v266
    %268 = vrot.lane.b32.xlu0 %v267, 112
    %v269 = vpop.permute.xlu0 %268
    %v272 = vunpack.c.l.b16 %v263
    %v273 = vunpack.c.l.b16 %v264
    %v274 = vpack.c.b16 %v273, %v272
    %v277 = vsel %vm49, %v269, 0
    %279 = vmatprep.subr.bf16.mxu0 0
    %280 = vmatpush1.bf16.msra.mxu0 %v274
    %281 = vmatprep.subr.bf16.mxu0 0
    %282 = vmatpush1.bf16.msra.mxu0 0
    %283 = vmatprep.subr.bf16.mxu0 0
    %284 = vmatpush1.bf16.msra.mxu0 0
    %285 = vmatprep.subr.bf16.mxu0 0
    %286 = vmatpush1.bf16.msra.mxu0 0
    %287 = vmatprep.subr.bf16.mxu0 0
    %288 = vmatpush1.bf16.msra.mxu0 0
    %289 = vmatprep.subr.bf16.mxu0 0
    %290 = vmatpush1.bf16.msra.mxu0 0
    %291 = vmatprep.subr.bf16.mxu0 0
    %292 = vmatpush1.bf16.msra.mxu0 0
    %293 = vmatprep.subr.bf16.mxu0 0
    %294 = vmatpush1.bf16.msra.mxu0 0
    %295 = vmatprep.subr.bf16.mxu0 0
    %296 = vmatpush1.bf16.msra.mxu0 0
    %297 = vmatprep.subr.bf16.mxu0 0
    %298 = vmatpush1.bf16.msra.mxu0 0
    %299 = vmatprep.subr.bf16.mxu0 0
    %300 = vmatpush1.bf16.msra.mxu0 0
    %301 = vmatprep.subr.bf16.mxu0 0
    %302 = vmatpush1.bf16.msra.mxu0 0
    %303 = vmatprep.subr.bf16.mxu0 0
    %304 = vmatpush1.bf16.msra.mxu0 0
    %305 = vmatprep.subr.bf16.mxu0 0
    %306 = vmatpush1.bf16.msra.mxu0 0
    %307 = vmatprep.subr.bf16.mxu0 0
    %308 = vmatpush1.bf16.msra.mxu0 0
    %309 = vmatprep.subr.bf16.mxu0 0
    %310 = vmatpush1.bf16.msra.mxu0 0
    %311 = vmatprep.mubr.bf16.mxu0 0
    %312 = vmatmul.mubr.bf16.gmra.mrb[0].mxu0 %v277
    %v313 = vpop.f32.mrb[0].mxu0
    %v314 = vadd.f32 0.0, %v313
    %v315 = vpop.f32.mrb[0].mxu0
    %v316 = vpop.f32.mrb[0].mxu0
    %v317 = vpop.f32.mrb[0].mxu0
    %318 = vdwg.mxu0
    %v319 = vadd.f32 %v262, %v314
    %v320 = vld [vmem:[%s209] sm:$0xf]
    %v321 = vld [vmem:[%s209 + $0x4] sm:$0x1]
    %v322 = vld [vmem:[%s3 + $0x28] sm:$0xf]
    %v323 = vld [vmem:[%s3 + $0x2c] sm:$0xf]
    %v326 = vunpack.c.l.b16 %v320
    %v327 = vunpack.c.l.b16 %v321
    %v328 = vpack.c.b16 %v327, %v326
    %v330 = vshrl.u32 %v328, 16
    %v332 = vshll.u32 %v328, 16
    %v334 = vrot.slane %v332, 1
    %v335 = vor.u32 %v330, %v334
    %v338 = vunpack.c.l.b16 %v322
    %v339 = vunpack.c.l.b16 %v323
    %v340 = vpack.c.b16 %v339, %v338
    %v343 = vsel %vm49, %v335, 0
    %345 = vmatprep.subr.bf16.mxu0 0
    %346 = vmatpush1.bf16.msra.mxu0 %v340
    %347 = vmatprep.subr.bf16.mxu0 0
    %348 = vmatpush1.bf16.msra.mxu0 0
    %349 = vmatprep.subr.bf16.mxu0 0
    %350 = vmatpush1.bf16.msra.mxu0 0
    %351 = vmatprep.subr.bf16.mxu0 0
    %352 = vmatpush1.bf16.msra.mxu0 0
    %353 = vmatprep.subr.bf16.mxu0 0
    %354 = vmatpush1.bf16.msra.mxu0 0
    %355 = vmatprep.subr.bf16.mxu0 0
    %356 = vmatpush1.bf16.msra.mxu0 0
    %357 = vmatprep.subr.bf16.mxu0 0
    %358 = vmatpush1.bf16.msra.mxu0 0
    %359 = vmatprep.subr.bf16.mxu0 0
    %360 = vmatpush1.bf16.msra.mxu0 0
    %361 = vmatprep.subr.bf16.mxu0 0
    %362 = vmatpush1.bf16.msra.mxu0 0
    %363 = vmatprep.subr.bf16.mxu0 0
    %364 = vmatpush1.bf16.msra.mxu0 0
    %365 = vmatprep.subr.bf16.mxu0 0
    %366 = vmatpush1.bf16.msra.mxu0 0
    %367 = vmatprep.subr.bf16.mxu0 0
    %368 = vmatpush1.bf16.msra.mxu0 0
    %369 = vmatprep.subr.bf16.mxu0 0
    %370 = vmatpush1.bf16.msra.mxu0 0
    %371 = vmatprep.subr.bf16.mxu0 0
    %372 = vmatpush1.bf16.msra.mxu0 0
    %373 = vmatprep.subr.bf16.mxu0 0
    %374 = vmatpush1.bf16.msra.mxu0 0
    %375 = vmatprep.subr.bf16.mxu0 0
    %376 = vmatpush1.bf16.msra.mxu0 0
    %377 = vmatprep.mubr.bf16.mxu0 0
    %378 = vmatmul.mubr.bf16.gmra.mrb[0].mxu0 %v343
    %v379 = vpop.f32.mrb[0].mxu0
    %v380 = vadd.f32 0.0, %v379
    %v381 = vpop.f32.mrb[0].mxu0
    %v382 = vpop.f32.mrb[0].mxu0
    %v383 = vpop.f32.mrb[0].mxu0
    %384 = vdwg.mxu0
    %v385 = vadd.f32 %v319, %v380
    %s386 = smul.addr %s30, 4
    %s387 = scalar_lea.vmem %s2, %s386
    %v388 = vld [vmem:[%s387] sm:$0xf]
    %v389 = vld [vmem:[%s3 + $0x30] sm:$0xf]
    %v390 = vld [vmem:[%s3 + $0x34] sm:$0xf]
    %v393 = vunpack.c.l.b16 %v389
    %v394 = vunpack.c.l.b16 %v390
    %v395 = vpack.c.b16 %v394, %v393
    %v398 = vsel %vm49, %v388, 0
    %400 = vmatprep.subr.bf16.mxu0 0
    %401 = vmatpush1.bf16.msra.mxu0 %v395
    %402 = vmatprep.subr.bf16.mxu0 0
    %403 = vmatpush1.bf16.msra.mxu0 0
    %404 = vmatprep.subr.bf16.mxu0 0
    %405 = vmatpush1.bf16.msra.mxu0 0
    %406 = vmatprep.subr.bf16.mxu0 0
    %407 = vmatpush1.bf16.msra.mxu0 0
    %408 = vmatprep.subr.bf16.mxu0 0
    %409 = vmatpush1.bf16.msra.mxu0 0
    %410 = vmatprep.subr.bf16.mxu0 0
    %411 = vmatpush1.bf16.msra.mxu0 0
    %412 = vmatprep.subr.bf16.mxu0 0
    %413 = vmatpush1.bf16.msra.mxu0 0
    %414 = vmatprep.subr.bf16.mxu0 0
    %415 = vmatpush1.bf16.msra.mxu0 0
    %416 = vmatprep.subr.bf16.mxu0 0
    %417 = vmatpush1.bf16.msra.mxu0 0
    %418 = vmatprep.subr.bf16.mxu0 0
    %419 = vmatpush1.bf16.msra.mxu0 0
    %420 = vmatprep.subr.bf16.mxu0 0
    %421 = vmatpush1.bf16.msra.mxu0 0
    %422 = vmatprep.subr.bf16.mxu0 0
    %423 = vmatpush1.bf16.msra.mxu0 0
    %424 = vmatprep.subr.bf16.mxu0 0
    %425 = vmatpush1.bf16.msra.mxu0 0
    %426 = vmatprep.subr.bf16.mxu0 0
    %427 = vmatpush1.bf16.msra.mxu0 0
    %428 = vmatprep.subr.bf16.mxu0 0
    %429 = vmatpush1.bf16.msra.mxu0 0
    %430 = vmatprep.subr.bf16.mxu0 0
    %431 = vmatpush1.bf16.msra.mxu0 0
    %432 = vmatprep.mubr.bf16.mxu0 0
    %433 = vmatmul.mubr.bf16.gmra.mrb[0].mxu0 %v398
    %v434 = vpop.f32.mrb[0].mxu0
    %v435 = vadd.f32 0.0, %v434
    %v436 = vpop.f32.mrb[0].mxu0
    %v437 = vpop.f32.mrb[0].mxu0
    %v438 = vpop.f32.mrb[0].mxu0
    %439 = vdwg.mxu0
    %v440 = vadd.f32 %v385, %v435
    %v441 = vld [vmem:[%s3 + $0x38] sm:$0xf]
    %v442 = vld [vmem:[%s3 + $0x3c] sm:$0xf]
    %v444 = vunpack.c.l.b16 %v388
    %v445 = vpack.c.b16 %v444, %v444
    %446 = vrot.lane.b32.xlu0 %v445, 112
    %v447 = vpop.permute.xlu0 %446
    %v450 = vunpack.c.l.b16 %v441
    %v451 = vunpack.c.l.b16 %v442
    %v452 = vpack.c.b16 %v451, %v450
    %v455 = vsel %vm49, %v447, 0
    %457 = vmatprep.subr.bf16.mxu0 0
    %458 = vmatpush1.bf16.msra.mxu0 %v452
    %459 = vmatprep.subr.bf16.mxu0 0
    %460 = vmatpush1.bf16.msra.mxu0 0
    %461 = vmatprep.subr.bf16.mxu0 0
    %462 = vmatpush1.bf16.msra.mxu0 0
    %463 = vmatprep.subr.bf16.mxu0 0
    %464 = vmatpush1.bf16.msra.mxu0 0
    %465 = vmatprep.subr.bf16.mxu0 0
    %466 = vmatpush1.bf16.msra.mxu0 0
    %467 = vmatprep.subr.bf16.mxu0 0
    %468 = vmatpush1.bf16.msra.mxu0 0
    %469 = vmatprep.subr.bf16.mxu0 0
    %470 = vmatpush1.bf16.msra.mxu0 0
    %471 = vmatprep.subr.bf16.mxu0 0
    %472 = vmatpush1.bf16.msra.mxu0 0
    %473 = vmatprep.subr.bf16.mxu0 0
    %474 = vmatpush1.bf16.msra.mxu0 0
    %475 = vmatprep.subr.bf16.mxu0 0
    %476 = vmatpush1.bf16.msra.mxu0 0
    %477 = vmatprep.subr.bf16.mxu0 0
    %478 = vmatpush1.bf16.msra.mxu0 0
    %479 = vmatprep.subr.bf16.mxu0 0
    %480 = vmatpush1.bf16.msra.mxu0 0
    %481 = vmatprep.subr.bf16.mxu0 0
    %482 = vmatpush1.bf16.msra.mxu0 0
    %483 = vmatprep.subr.bf16.mxu0 0
    %484 = vmatpush1.bf16.msra.mxu0 0
    %485 = vmatprep.subr.bf16.mxu0 0
    %486 = vmatpush1.bf16.msra.mxu0 0
    %487 = vmatprep.subr.bf16.mxu0 0
    %488 = vmatpush1.bf16.msra.mxu0 0
    %489 = vmatprep.mubr.bf16.mxu0 0
    %490 = vmatmul.mubr.bf16.gmra.mrb[0].mxu0 %v455
    %v491 = vpop.f32.mrb[0].mxu0
    %v492 = vadd.f32 0.0, %v491
    %v493 = vpop.f32.mrb[0].mxu0
    %v494 = vpop.f32.mrb[0].mxu0
    %v495 = vpop.f32.mrb[0].mxu0
    %496 = vdwg.mxu0
    %v497 = vadd.f32 %v440, %v492
    %v498 = vld [vmem:[%s387] sm:$0xf]
    %v499 = vld [vmem:[%s387 + $0x4] sm:$0x1]
    %v500 = vld [vmem:[%s3 + $0x40] sm:$0xf]
    %v501 = vld [vmem:[%s3 + $0x44] sm:$0xf]
    %v504 = vunpack.c.l.b16 %v498
    %v505 = vunpack.c.l.b16 %v499
    %v506 = vpack.c.b16 %v505, %v504
    %v508 = vshrl.u32 %v506, 16
    %v510 = vshll.u32 %v506, 16
    %v512 = vrot.slane %v510, 1
    %v513 = vor.u32 %v508, %v512
    %v516 = vunpack.c.l.b16 %v500
    %v517 = vunpack.c.l.b16 %v501
    %v518 = vpack.c.b16 %v517, %v516
    %v521 = vsel %vm49, %v513, 0
    %523 = vmatprep.subr.bf16.mxu0 0
    %524 = vmatpush1.bf16.msra.mxu0 %v518
    %525 = vmatprep.subr.bf16.mxu0 0
    %526 = vmatpush1.bf16.msra.mxu0 0
    %527 = vmatprep.subr.bf16.mxu0 0
    %528 = vmatpush1.bf16.msra.mxu0 0
    %529 = vmatprep.subr.bf16.mxu0 0
    %530 = vmatpush1.bf16.msra.mxu0 0
    %531 = vmatprep.subr.bf16.mxu0 0
    %532 = vmatpush1.bf16.msra.mxu0 0
    %533 = vmatprep.subr.bf16.mxu0 0
    %534 = vmatpush1.bf16.msra.mxu0 0
    %535 = vmatprep.subr.bf16.mxu0 0
    %536 = vmatpush1.bf16.msra.mxu0 0
    %537 = vmatprep.subr.bf16.mxu0 0
    %538 = vmatpush1.bf16.msra.mxu0 0
    %539 = vmatprep.subr.bf16.mxu0 0
    %540 = vmatpush1.bf16.msra.mxu0 0
    %541 = vmatprep.subr.bf16.mxu0 0
    %542 = vmatpush1.bf16.msra.mxu0 0
    %543 = vmatprep.subr.bf16.mxu0 0
    %544 = vmatpush1.bf16.msra.mxu0 0
    %545 = vmatprep.subr.bf16.mxu0 0
    %546 = vmatpush1.bf16.msra.mxu0 0
    %547 = vmatprep.subr.bf16.mxu0 0
    %548 = vmatpush1.bf16.msra.mxu0 0
    %549 = vmatprep.subr.bf16.mxu0 0
    %550 = vmatpush1.bf16.msra.mxu0 0
    %551 = vmatprep.subr.bf16.mxu0 0
    %552 = vmatpush1.bf16.msra.mxu0 0
    %553 = vmatprep.subr.bf16.mxu0 0
    %554 = vmatpush1.bf16.msra.mxu0 0
    %555 = vmatprep.mubr.bf16.mxu0 0
    %556 = vmatmul.mubr.bf16.gmra.mrb[0].mxu0 %v521
    %v557 = vpop.f32.mrb[0].mxu0
    %v558 = vadd.f32 0.0, %v557
    %v559 = vpop.f32.mrb[0].mxu0
    %v560 = vpop.f32.mrb[0].mxu0
    %v561 = vpop.f32.mrb[0].mxu0
    %562 = vdwg.mxu0
    %v563 = vadd.f32 %v497, %v558
    %v564 = vld [vmem:[%s4] sm:$0x1]
    %v566 = vlaneseq
    %v567 = vshrl.u32 %v566, 7
    %v568 = vsub.s32 0, %v567
    %v569 = vrot.slane %v564, %v568
    %v571 = vadd.f32 %v563, %v569
    %vm572 = vcmp.ge.f32.partialorder %v571, 0.0
    %v573 = vld [vmem:[%s5] sm:$0x1]
    %v575 = vlaneseq
    %v576 = vshrl.u32 %v575, 7
    %v577 = vsub.s32 0, %v576
    %v578 = vrot.slane %v573, %v577
    %v580 = vmul.f32 %v578, %v571
    %v581 = vsel %vm572, %v571, %v580
    %v582 = vpack.c.bf16 %v581, %v581
    %s583 = smul.addr %s25, 4
    %s584 = scalar_lea.vmem %s6, %s583
    %vm585 = vcmask 257024
    %586 = vst.msk [vmem:[%s584] sm:$0xf] %vm585, %v582
  $region30: #{_forward_impl.10} parent=0 // loop_footer
    %s29 = sadd.s32 1, %s25
  $region31: #{_forward_impl.10} parent=0 // loop_footer_branch
    %24 = sbr.rel target = $region27
  $region32: #{_forward_impl.10} parent=0 // loop_exit
    _
  // Predicated region
  $region33: #{_forward_impl.10} parent=0 // pred_check
    _
  $region34: #{_forward_impl.10} parent=0 // pred_check_branch
    %588 = sbr.rel (0) target = $region36
  $region35: #{_forward_impl.10} parent=0 // pred_region
    _
  $region36: #{_forward_impl.10} parent=0 // pred_fallthru
    _
  // Predicated region
  $region37: #{_forward_impl.10} parent=0 // pred_check
    _
  $region38: #{_forward_impl.10} parent=0 // pred_check_branch
    %590 = sbr.rel (0) target = $region40
  $region39: #{_forward_impl.10} parent=0 // pred_region
    _
  $region40: #{_forward_impl.10} parent=0 // pred_fallthru
    _

// kernel: _forward_impl.11
$region0: #{_forward_impl.11}
  #allocation0 [shape = 'u32[]', space=smem, size = 0x4, offset = 0x4, fixed_abs, tag = 'smem constant byte address 0x4 - core index']
  #allocation1 [shape = 'u32[144,128]{1,0:T(1,128)}', space=vmem, size = 0x12000, scoped, tag = 'internal scratch']
  %s0 = inlined_call_operand.vmem [shape: bf16[16,10,32], index: 0, kind: input, shape index: {}]
  %s1 = inlined_call_operand.vmem [shape: bf16[16,10,32], index: 1, kind: input, shape index: {}]
  %s2 = inlined_call_operand.vmem [shape: bf16[16,10,32], index: 2, kind: input, shape index: {}]
  %s3 = inlined_call_operand.vmem [shape: bf16[288,32], index: 3, kind: input, shape index: {}]
  %s4 = inlined_call_operand.vmem [shape: f32[1,32], index: 4, kind: input, shape index: {}]
  %s5 = inlined_call_operand.vmem [shape: f32[1,32], index: 5, kind: input, shape index: {}]
  %s6 = inlined_call_operand.vmem [shape: bf16[16,8,32], index: 6, kind: output, shape index: {}]
  %s7 = sld [smem:[#allocation0]]
  $region41: #{_forward_impl.11} parent=0
    _
  %s9 = ssub.s32 1, %s7
  %s10 = scalar_select 0, %s9, %s7
  // Predicated region
  $region2: #{_forward_impl.11} parent=0 // pred_check
    _
  $region3: #{_forward_impl.11} parent=0 // pred_check_branch
    %12 = sbr.rel (0) target = $region5
  $region4: #{_forward_impl.11} parent=0 // pred_region
    _
  $region5: #{_forward_impl.11} parent=0 // pred_fallthru
    _
  // Predicated region
  $region6: #{_forward_impl.11} parent=0 // pred_check
    _
  $region7: #{_forward_impl.11} parent=0 // pred_check_branch
    %14 = sbr.rel (0) target = $region9
  $region8: #{_forward_impl.11} parent=0 // pred_region
    _
  $region9: #{_forward_impl.11} parent=0 // pred_fallthru
    _
  // Predicated region
  $region10: #{_forward_impl.11} parent=0 // pred_check
    _
  $region11: #{_forward_impl.11} parent=0 // pred_check_branch
    %16 = sbr.rel (0) target = $region13
  $region12: #{_forward_impl.11} parent=0 // pred_region
    _
  $region13: #{_forward_impl.11} parent=0 // pred_fallthru
    _
  // Predicated region
  $region14: #{_forward_impl.11} parent=0 // pred_check
    _
  $region15: #{_forward_impl.11} parent=0 // pred_check_branch
    %18 = sbr.rel (0) target = $region17
  $region16: #{_forward_impl.11} parent=0 // pred_region
    _
  $region17: #{_forward_impl.11} parent=0 // pred_fallthru
    _
  // Predicated region
  $region18: #{_forward_impl.11} parent=0 // pred_check
    _
  $region19: #{_forward_impl.11} parent=0 // pred_check_branch
    %20 = sbr.rel (0) target = $region21
  $region20: #{_forward_impl.11} parent=0 // pred_region
    _
  $region21: #{_forward_impl.11} parent=0 // pred_fallthru
    _
  // Predicated region
  $region22: #{_forward_impl.11} parent=0 // pred_check
    _
  $region23: #{_forward_impl.11} parent=0 // pred_check_branch
    %22 = sbr.rel (0) target = $region25
  $region24: #{_forward_impl.11} parent=0 // pred_region
    _
  $region25: #{_forward_impl.11} parent=0 // pred_fallthru
    _
  loop: start=0, step=1, limit=16
  $region26: #{_forward_impl.11} parent=0 // loop_pre_header
    _
  $region27: #{_forward_impl.11} parent=0 // loop_header
    %s25 = sphi 0, %s29
    %p26 = scmp.ge.s32.totalorder %s25, 16
  $region28: #{_forward_impl.11} parent=0 // loop_header_branch
    %28 = sbr.rel (%p26) target = $region32
  $region29: #{_forward_impl.11} parent=0 // loop_body
    %s30 = smul.u32 %s25, 2
    %s31 = smul.addr %s30, 4
    %s32 = scalar_lea.vmem %s0, %s31
    %v33 = vld [vmem:[%s32] sm:$0xf]
    %v34 = vld [vmem:[%s3] sm:$0xf]
    %v35 = vld [vmem:[%s3 + $0x4] sm:$0xf]
    %v36 = vld [vmem:[%s3 + $0x8] sm:$0xf]
    %v37 = vld [vmem:[%s3 + $0xc] sm:$0xf]
    %v38 = vld [vmem:[%s32 + $0x4] sm:$0x1]
    %v39 = vld [vmem:[%s3 + $0x10] sm:$0xf]
    %v40 = vld [vmem:[%s3 + $0x14] sm:$0xf]
    %v41 = vld [vmem:[%s3 + $0x18] sm:$0xf]
    %v42 = vld [vmem:[%s3 + $0x1c] sm:$0xf]
    %v45 = vunpack.c.l.b16 %v33
    %v46 = vunpack.c.l.b16 %v38
    %v47 = vpack.c.b16 %v46, %v45
    %v49 = vshrl.u32 %v47, 16
    %v51 = vshll.u32 %v47, 16
    %v53 = vrot.slane %v51, 1
    %v54 = vor.u32 %v49, %v53
    %v59 = vunpack.c.l.b16 %v39
    %v60 = vunpack.c.l.b16 %v40
    %v61 = vunpack.c.l.b16 %v41
    %v62 = vunpack.c.l.b16 %v42
    %v63 = vpack.c.b16 %v60, %v59
    %v64 = vpack.c.b16 %v62, %v61
    %vm67 = vcmask 261120
    %v69 = vsel %vm67, %v54, 0
    %71 = vmatprep.subr.bf16.mxu0 0
    %72 = vmatpush1.bf16.msra.mxu0 %v63
    %73 = vmatprep.subr.bf16.mxu0 0
    %74 = vmatpush1.bf16.msra.mxu0 %v64
    %75 = vmatprep.subr.bf16.mxu0 0
    %76 = vmatpush1.bf16.msra.mxu0 0
    %77 = vmatprep.subr.bf16.mxu0 0
    %78 = vmatpush1.bf16.msra.mxu0 0
    %79 = vmatprep.subr.bf16.mxu0 0
    %80 = vmatpush1.bf16.msra.mxu0 0
    %81 = vmatprep.subr.bf16.mxu0 0
    %82 = vmatpush1.bf16.msra.mxu0 0
    %83 = vmatprep.subr.bf16.mxu0 0
    %84 = vmatpush1.bf16.msra.mxu0 0
    %85 = vmatprep.subr.bf16.mxu0 0
    %86 = vmatpush1.bf16.msra.mxu0 0
    %87 = vmatprep.subr.bf16.mxu0 0
    %88 = vmatpush1.bf16.msra.mxu0 0
    %89 = vmatprep.subr.bf16.mxu0 0
    %90 = vmatpush1.bf16.msra.mxu0 0
    %91 = vmatprep.subr.bf16.mxu0 0
    %92 = vmatpush1.bf16.msra.mxu0 0
    %93 = vmatprep.subr.bf16.mxu0 0
    %94 = vmatpush1.bf16.msra.mxu0 0
    %95 = vmatprep.subr.bf16.mxu0 0
    %96 = vmatpush1.bf16.msra.mxu0 0
    %97 = vmatprep.subr.bf16.mxu0 0
    %98 = vmatpush1.bf16.msra.mxu0 0
    %99 = vmatprep.subr.bf16.mxu0 0
    %100 = vmatpush1.bf16.msra.mxu0 0
    %101 = vmatprep.subr.bf16.mxu0 0
    %102 = vmatpush1.bf16.msra.mxu0 0
    %103 = vmatprep.mubr.bf16.mxu0 0
    %104 = vmatmul.mubr.bf16.gmra.mrb[0].mxu0 %v69
    %v105 = vpop.f32.mrb[0].mxu0
    %v106 = vadd.f32 0.0, %v105
    %v107 = vpop.f32.mrb[0].mxu0
    %v108 = vpop.f32.mrb[0].mxu0
    %v109 = vpop.f32.mrb[0].mxu0
    %110 = vdwg.mxu0
    %v115 = vunpack.c.l.b16 %v34
    %v116 = vunpack.c.l.b16 %v35
    %v117 = vunpack.c.l.b16 %v36
    %v118 = vunpack.c.l.b16 %v37
    %v119 = vpack.c.b16 %v116, %v115
    %v120 = vpack.c.b16 %v118, %v117
    %v124 = vsel %vm67, %v33, 0
    %126 = vmatprep.subr.bf16.mxu0 0
    %127 = vmatpush1.bf16.msra.mxu0 %v119
    %128 = vmatprep.subr.bf16.mxu0 0
    %129 = vmatpush1.bf16.msra.mxu0 %v120
    %130 = vmatprep.subr.bf16.mxu0 0
    %131 = vmatpush1.bf16.msra.mxu0 0
    %132 = vmatprep.subr.bf16.mxu0 0
    %133 = vmatpush1.bf16.msra.mxu0 0
    %134 = vmatprep.subr.bf16.mxu0 0
    %135 = vmatpush1.bf16.msra.mxu0 0
    %136 = vmatprep.subr.bf16.mxu0 0
    %137 = vmatpush1.bf16.msra.mxu0 0
    %138 = vmatprep.subr.bf16.mxu0 0
    %139 = vmatpush1.bf16.msra.mxu0 0
    %140 = vmatprep.subr.bf16.mxu0 0
    %141 = vmatpush1.bf16.msra.mxu0 0
    %142 = vmatprep.subr.bf16.mxu0 0
    %143 = vmatpush1.bf16.msra.mxu0 0
    %144 = vmatprep.subr.bf16.mxu0 0
    %145 = vmatpush1.bf16.msra.mxu0 0
    %146 = vmatprep.subr.bf16.mxu0 0
    %147 = vmatpush1.bf16.msra.mxu0 0
    %148 = vmatprep.subr.bf16.mxu0 0
    %149 = vmatpush1.bf16.msra.mxu0 0
    %150 = vmatprep.subr.bf16.mxu0 0
    %151 = vmatpush1.bf16.msra.mxu0 0
    %152 = vmatprep.subr.bf16.mxu0 0
    %153 = vmatpush1.bf16.msra.mxu0 0
    %154 = vmatprep.subr.bf16.mxu0 0
    %155 = vmatpush1.bf16.msra.mxu0 0
    %156 = vmatprep.subr.bf16.mxu0 0
    %157 = vmatpush1.bf16.msra.mxu0 0
    %158 = vmatprep.mubr.bf16.mxu0 0
    %159 = vmatmul.mubr.bf16.gmra.mrb[0].mxu0 %v124
    %v160 = vpop.f32.mrb[0].mxu0
    %v161 = vadd.f32 %v106, %v160
    %v162 = vpop.f32.mrb[0].mxu0
    %v163 = vpop.f32.mrb[0].mxu0
    %v164 = vpop.f32.mrb[0].mxu0
    %165 = vdwg.mxu0
    %v166 = vld [vmem:[%s32] sm:$0xe]
    %v167 = vld [vmem:[%s3 + $0x20] sm:$0xf]
    %v168 = vld [vmem:[%s3 + $0x24] sm:$0xf]
    %v169 = vld [vmem:[%s3 + $0x28] sm:$0xf]
    %v170 = vld [vmem:[%s3 + $0x2c] sm:$0xf]
    %v172 = vunpack.c.l.b16 %v166
    %v173 = vpack.c.b16 %v46, %v172
    %v174 = vrot.slane %v173, 1
    %v179 = vunpack.c.l.b16 %v167
    %v180 = vunpack.c.l.b16 %v168
    %v181 = vunpack.c.l.b16 %v169
    %v182 = vunpack.c.l.b16 %v170
    %v183 = vpack.c.b16 %v180, %v179
    %v184 = vpack.c.b16 %v182, %v181
    %v188 = vsel %vm67, %v174, 0
    %190 = vmatprep.subr.bf16.mxu0 0
    %191 = vmatpush1.bf16.msra.mxu0 %v183
    %192 = vmatprep.subr.bf16.mxu0 0
    %193 = vmatpush1.bf16.msra.mxu0 %v184
    %194 = vmatprep.subr.bf16.mxu0 0
    %195 = vmatpush1.bf16.msra.mxu0 0
    %196 = vmatprep.subr.bf16.mxu0 0
    %197 = vmatpush1.bf16.msra.mxu0 0
    %198 = vmatprep.subr.bf16.mxu0 0
    %199 = vmatpush1.bf16.msra.mxu0 0
    %200 = vmatprep.subr.bf16.mxu0 0
    %201 = vmatpush1.bf16.msra.mxu0 0
    %202 = vmatprep.subr.bf16.mxu0 0
    %203 = vmatpush1.bf16.msra.mxu0 0
    %204 = vmatprep.subr.bf16.mxu0 0
    %205 = vmatpush1.bf16.msra.mxu0 0
    %206 = vmatprep.subr.bf16.mxu0 0
    %207 = vmatpush1.bf16.msra.mxu0 0
    %208 = vmatprep.subr.bf16.mxu0 0
    %209 = vmatpush1.bf16.msra.mxu0 0
    %210 = vmatprep.subr.bf16.mxu0 0
    %211 = vmatpush1.bf16.msra.mxu0 0
    %212 = vmatprep.subr.bf16.mxu0 0
    %213 = vmatpush1.bf16.msra.mxu0 0
    %214 = vmatprep.subr.bf16.mxu0 0
    %215 = vmatpush1.bf16.msra.mxu0 0
    %216 = vmatprep.subr.bf16.mxu0 0
    %217 = vmatpush1.bf16.msra.mxu0 0
    %218 = vmatprep.subr.bf16.mxu0 0
    %219 = vmatpush1.bf16.msra.mxu0 0
    %220 = vmatprep.subr.bf16.mxu0 0
    %221 = vmatpush1.bf16.msra.mxu0 0
    %222 = vmatprep.mubr.bf16.mxu0 0
    %223 = vmatmul.mubr.bf16.gmra.mrb[0].mxu0 %v188
    %v224 = vpop.f32.mrb[0].mxu0
    %v225 = vadd.f32 0.0, %v224
    %v226 = vpop.f32.mrb[0].mxu0
    %v227 = vpop.f32.mrb[0].mxu0
    %v228 = vpop.f32.mrb[0].mxu0
    %229 = vdwg.mxu0
    %v230 = vadd.f32 %v161, %v225
    %s231 = smul.addr %s30, 4
    %s232 = scalar_lea.vmem %s1, %s231
    %v233 = vld [vmem:[%s232] sm:$0xf]
    %v234 = vld [vmem:[%s3 + $0x30] sm:$0xf]
    %v235 = vld [vmem:[%s3 + $0x34] sm:$0xf]
    %v236 = vld [vmem:[%s3 + $0x38] sm:$0xf]
    %v237 = vld [vmem:[%s3 + $0x3c] sm:$0xf]
    %v242 = vunpack.c.l.b16 %v234
    %v243 = vunpack.c.l.b16 %v235
    %v244 = vunpack.c.l.b16 %v236
    %v245 = vunpack.c.l.b16 %v237
    %v246 = vpack.c.b16 %v243, %v242
    %v247 = vpack.c.b16 %v245, %v244
    %v251 = vsel %vm67, %v233, 0
    %253 = vmatprep.subr.bf16.mxu0 0
    %254 = vmatpush1.bf16.msra.mxu0 %v246
    %255 = vmatprep.subr.bf16.mxu0 0
    %256 = vmatpush1.bf16.msra.mxu0 %v247
    %257 = vmatprep.subr.bf16.mxu0 0
    %258 = vmatpush1.bf16.msra.mxu0 0
    %259 = vmatprep.subr.bf16.mxu0 0
    %260 = vmatpush1.bf16.msra.mxu0 0
    %261 = vmatprep.subr.bf16.mxu0 0
    %262 = vmatpush1.bf16.msra.mxu0 0
    %263 = vmatprep.subr.bf16.mxu0 0
    %264 = vmatpush1.bf16.msra.mxu0 0
    %265 = vmatprep.subr.bf16.mxu0 0
    %266 = vmatpush1.bf16.msra.mxu0 0
    %267 = vmatprep.subr.bf16.mxu0 0
    %268 = vmatpush1.bf16.msra.mxu0 0
    %269 = vmatprep.subr.bf16.mxu0 0
    %270 = vmatpush1.bf16.msra.mxu0 0
    %271 = vmatprep.subr.bf16.mxu0 0
    %272 = vmatpush1.bf16.msra.mxu0 0
    %273 = vmatprep.subr.bf16.mxu0 0
    %274 = vmatpush1.bf16.msra.mxu0 0
    %275 = vmatprep.subr.bf16.mxu0 0
    %276 = vmatpush1.bf16.msra.mxu0 0
    %277 = vmatprep.subr.bf16.mxu0 0
    %278 = vmatpush1.bf16.msra.mxu0 0
    %279 = vmatprep.subr.bf16.mxu0 0
    %280 = vmatpush1.bf16.msra.mxu0 0
    %281 = vmatprep.subr.bf16.mxu0 0
    %282 = vmatpush1.bf16.msra.mxu0 0
    %283 = vmatprep.subr.bf16.mxu0 0
    %284 = vmatpush1.bf16.msra.mxu0 0
    %285 = vmatprep.mubr.bf16.mxu0 0
    %286 = vmatmul.mubr.bf16.gmra.mrb[0].mxu0 %v251
    %v287 = vpop.f32.mrb[0].mxu0
    %v288 = vadd.f32 0.0, %v287
    %v289 = vpop.f32.mrb[0].mxu0
    %v290 = vpop.f32.mrb[0].mxu0
    %v291 = vpop.f32.mrb[0].mxu0
    %292 = vdwg.mxu0
    %v293 = vadd.f32 %v230, %v288
    %v294 = vld [vmem:[%s232] sm:$0xf]
    %v295 = vld [vmem:[%s232 + $0x4] sm:$0x1]
    %v296 = vld [vmem:[%s3 + $0x40] sm:$0xf]
    %v297 = vld [vmem:[%s3 + $0x44] sm:$0xf]
    %v298 = vld [vmem:[%s3 + $0x48] sm:$0xf]
    %v299 = vld [vmem:[%s3 + $0x4c] sm:$0xf]
    %v302 = vunpack.c.l.b16 %v294
    %v303 = vunpack.c.l.b16 %v295
    %v304 = vpack.c.b16 %v303, %v302
    %v306 = vshrl.u32 %v304, 16
    %v308 = vshll.u32 %v304, 16
    %v310 = vrot.slane %v308, 1
    %v311 = vor.u32 %v306, %v310
    %v316 = vunpack.c.l.b16 %v296
    %v317 = vunpack.c.l.b16 %v297
    %v318 = vunpack.c.l.b16 %v298
    %v319 = vunpack.c.l.b16 %v299
    %v320 = vpack.c.b16 %v317, %v316
    %v321 = vpack.c.b16 %v319, %v318
    %v325 = vsel %vm67, %v311, 0
    %327 = vmatprep.subr.bf16.mxu0 0
    %328 = vmatpush1.bf16.msra.mxu0 %v320
    %329 = vmatprep.subr.bf16.mxu0 0
    %330 = vmatpush1.bf16.msra.mxu0 %v321
    %331 = vmatprep.subr.bf16.mxu0 0
    %332 = vmatpush1.bf16.msra.mxu0 0
    %333 = vmatprep.subr.bf16.mxu0 0
    %334 = vmatpush1.bf16.msra.mxu0 0
    %335 = vmatprep.subr.bf16.mxu0 0
    %336 = vmatpush1.bf16.msra.mxu0 0
    %337 = vmatprep.subr.bf16.mxu0 0
    %338 = vmatpush1.bf16.msra.mxu0 0
    %339 = vmatprep.subr.bf16.mxu0 0
    %340 = vmatpush1.bf16.msra.mxu0 0
    %341 = vmatprep.subr.bf16.mxu0 0
    %342 = vmatpush1.bf16.msra.mxu0 0
    %343 = vmatprep.subr.bf16.mxu0 0
    %344 = vmatpush1.bf16.msra.mxu0 0
    %345 = vmatprep.subr.bf16.mxu0 0
    %346 = vmatpush1.bf16.msra.mxu0 0
    %347 = vmatprep.subr.bf16.mxu0 0
    %348 = vmatpush1.bf16.msra.mxu0 0
    %349 = vmatprep.subr.bf16.mxu0 0
    %350 = vmatpush1.bf16.msra.mxu0 0
    %351 = vmatprep.subr.bf16.mxu0 0
    %352 = vmatpush1.bf16.msra.mxu0 0
    %353 = vmatprep.subr.bf16.mxu0 0
    %354 = vmatpush1.bf16.msra.mxu0 0
    %355 = vmatprep.subr.bf16.mxu0 0
    %356 = vmatpush1.bf16.msra.mxu0 0
    %357 = vmatprep.subr.bf16.mxu0 0
    %358 = vmatpush1.bf16.msra.mxu0 0
    %359 = vmatprep.mubr.bf16.mxu0 0
    %360 = vmatmul.mubr.bf16.gmra.mrb[0].mxu0 %v325
    %v361 = vpop.f32.mrb[0].mxu0
    %v362 = vadd.f32 0.0, %v361
    %v363 = vpop.f32.mrb[0].mxu0
    %v364 = vpop.f32.mrb[0].mxu0
    %v365 = vpop.f32.mrb[0].mxu0
    %366 = vdwg.mxu0
    %v367 = vadd.f32 %v293, %v362
    %v368 = vld [vmem:[%s232] sm:$0xe]
    %v369 = vld [vmem:[%s3 + $0x50] sm:$0xf]
    %v370 = vld [vmem:[%s3 + $0x54] sm:$0xf]
    %v371 = vld [vmem:[%s3 + $0x58] sm:$0xf]
    %v372 = vld [vmem:[%s3 + $0x5c] sm:$0xf]
    %v374 = vunpack.c.l.b16 %v368
    %v375 = vpack.c.b16 %v303, %v374
    %v376 = vrot.slane %v375, 1
    %v381 = vunpack.c.l.b16 %v369
    %v382 = vunpack.c.l.b16 %v370
    %v383 = vunpack.c.l.b16 %v371
    %v384 = vunpack.c.l.b16 %v372
    %v385 = vpack.c.b16 %v382, %v381
    %v386 = vpack.c.b16 %v384, %v383
    %v390 = vsel %vm67, %v376, 0
    %392 = vmatprep.subr.bf16.mxu0 0
    %393 = vmatpush1.bf16.msra.mxu0 %v385
    %394 = vmatprep.subr.bf16.mxu0 0
    %395 = vmatpush1.bf16.msra.mxu0 %v386
    %396 = vmatprep.subr.bf16.mxu0 0
    %397 = vmatpush1.bf16.msra.mxu0 0
    %398 = vmatprep.subr.bf16.mxu0 0
    %399 = vmatpush1.bf16.msra.mxu0 0
    %400 = vmatprep.subr.bf16.mxu0 0
    %401 = vmatpush1.bf16.msra.mxu0 0
    %402 = vmatprep.subr.bf16.mxu0 0
    %403 = vmatpush1.bf16.msra.mxu0 0
    %404 = vmatprep.subr.bf16.mxu0 0
    %405 = vmatpush1.bf16.msra.mxu0 0
    %406 = vmatprep.subr.bf16.mxu0 0
    %407 = vmatpush1.bf16.msra.mxu0 0
    %408 = vmatprep.subr.bf16.mxu0 0
    %409 = vmatpush1.bf16.msra.mxu0 0
    %410 = vmatprep.subr.bf16.mxu0 0
    %411 = vmatpush1.bf16.msra.mxu0 0
    %412 = vmatprep.subr.bf16.mxu0 0
    %413 = vmatpush1.bf16.msra.mxu0 0
    %414 = vmatprep.subr.bf16.mxu0 0
    %415 = vmatpush1.bf16.msra.mxu0 0
    %416 = vmatprep.subr.bf16.mxu0 0
    %417 = vmatpush1.bf16.msra.mxu0 0
    %418 = vmatprep.subr.bf16.mxu0 0
    %419 = vmatpush1.bf16.msra.mxu0 0
    %420 = vmatprep.subr.bf16.mxu0 0
    %421 = vmatpush1.bf16.msra.mxu0 0
    %422 = vmatprep.subr.bf16.mxu0 0
    %423 = vmatpush1.bf16.msra.mxu0 0
    %424 = vmatprep.mubr.bf16.mxu0 0
    %425 = vmatmul.mubr.bf16.gmra.mrb[0].mxu0 %v390
    %v426 = vpop.f32.mrb[0].mxu0
    %v427 = vadd.f32 0.0, %v426
    %v428 = vpop.f32.mrb[0].mxu0
    %v429 = vpop.f32.mrb[0].mxu0
    %v430 = vpop.f32.mrb[0].mxu0
    %431 = vdwg.mxu0
    %v432 = vadd.f32 %v367, %v427
    %s433 = smul.addr %s30, 4
    %s434 = scalar_lea.vmem %s2, %s433
    %v435 = vld [vmem:[%s434] sm:$0xf]
    %v436 = vld [vmem:[%s3 + $0x60] sm:$0xf]
    %v437 = vld [vmem:[%s3 + $0x64] sm:$0xf]
    %v438 = vld [vmem:[%s3 + $0x68] sm:$0xf]
    %v439 = vld [vmem:[%s3 + $0x6c] sm:$0xf]
    %v444 = vunpack.c.l.b16 %v436
    %v445 = vunpack.c.l.b16 %v437
    %v446 = vunpack.c.l.b16 %v438
    %v447 = vunpack.c.l.b16 %v439
    %v448 = vpack.c.b16 %v445, %v444
    %v449 = vpack.c.b16 %v447, %v446
    %v453 = vsel %vm67, %v435, 0
    %455 = vmatprep.subr.bf16.mxu0 0
    %456 = vmatpush1.bf16.msra.mxu0 %v448
    %457 = vmatprep.subr.bf16.mxu0 0
    %458 = vmatpush1.bf16.msra.mxu0 %v449
    %459 = vmatprep.subr.bf16.mxu0 0
    %460 = vmatpush1.bf16.msra.mxu0 0
    %461 = vmatprep.subr.bf16.mxu0 0
    %462 = vmatpush1.bf16.msra.mxu0 0
    %463 = vmatprep.subr.bf16.mxu0 0
    %464 = vmatpush1.bf16.msra.mxu0 0
    %465 = vmatprep.subr.bf16.mxu0 0
    %466 = vmatpush1.bf16.msra.mxu0 0
    %467 = vmatprep.subr.bf16.mxu0 0
    %468 = vmatpush1.bf16.msra.mxu0 0
    %469 = vmatprep.subr.bf16.mxu0 0
    %470 = vmatpush1.bf16.msra.mxu0 0
    %471 = vmatprep.subr.bf16.mxu0 0
    %472 = vmatpush1.bf16.msra.mxu0 0
    %473 = vmatprep.subr.bf16.mxu0 0
    %474 = vmatpush1.bf16.msra.mxu0 0
    %475 = vmatprep.subr.bf16.mxu0 0
    %476 = vmatpush1.bf16.msra.mxu0 0
    %477 = vmatprep.subr.bf16.mxu0 0
    %478 = vmatpush1.bf16.msra.mxu0 0
    %479 = vmatprep.subr.bf16.mxu0 0
    %480 = vmatpush1.bf16.msra.mxu0 0
    %481 = vmatprep.subr.bf16.mxu0 0
    %482 = vmatpush1.bf16.msra.mxu0 0
    %483 = vmatprep.subr.bf16.mxu0 0
    %484 = vmatpush1.bf16.msra.mxu0 0
    %485 = vmatprep.subr.bf16.mxu0 0
    %486 = vmatpush1.bf16.msra.mxu0 0
    %487 = vmatprep.mubr.bf16.mxu0 0
    %488 = vmatmul.mubr.bf16.gmra.mrb[0].mxu0 %v453
    %v489 = vpop.f32.mrb[0].mxu0
    %v490 = vadd.f32 0.0, %v489
    %v491 = vpop.f32.mrb[0].mxu0
    %v492 = vpop.f32.mrb[0].mxu0
    %v493 = vpop.f32.mrb[0].mxu0
    %494 = vdwg.mxu0
    %v495 = vadd.f32 %v432, %v490
    %v496 = vld [vmem:[%s434] sm:$0xf]
    %v497 = vld [vmem:[%s434 + $0x4] sm:$0x1]
    %v498 = vld [vmem:[%s3 + $0x70] sm:$0xf]
    %v499 = vld [vmem:[%s3 + $0x74] sm:$0xf]
    %v500 = vld [vmem:[%s3 + $0x78] sm:$0xf]
    %v501 = vld [vmem:[%s3 + $0x7c] sm:$0xf]
    %v504 = vunpack.c.l.b16 %v496
    %v505 = vunpack.c.l.b16 %v497
    %v506 = vpack.c.b16 %v505, %v504
    %v508 = vshrl.u32 %v506, 16
    %v510 = vshll.u32 %v506, 16
    %v512 = vrot.slane %v510, 1
    %v513 = vor.u32 %v508, %v512
    %v518 = vunpack.c.l.b16 %v498
    %v519 = vunpack.c.l.b16 %v499
    %v520 = vunpack.c.l.b16 %v500
    %v521 = vunpack.c.l.b16 %v501
    %v522 = vpack.c.b16 %v519, %v518
    %v523 = vpack.c.b16 %v521, %v520
    %v527 = vsel %vm67, %v513, 0
    %529 = vmatprep.subr.bf16.mxu0 0
    %530 = vmatpush1.bf16.msra.mxu0 %v522
    %531 = vmatprep.subr.bf16.mxu0 0
    %532 = vmatpush1.bf16.msra.mxu0 %v523
    %533 = vmatprep.subr.bf16.mxu0 0
    %534 = vmatpush1.bf16.msra.mxu0 0
    %535 = vmatprep.subr.bf16.mxu0 0
    %536 = vmatpush1.bf16.msra.mxu0 0
    %537 = vmatprep.subr.bf16.mxu0 0
    %538 = vmatpush1.bf16.msra.mxu0 0
    %539 = vmatprep.subr.bf16.mxu0 0
    %540 = vmatpush1.bf16.msra.mxu0 0
    %541 = vmatprep.subr.bf16.mxu0 0
    %542 = vmatpush1.bf16.msra.mxu0 0
    %543 = vmatprep.subr.bf16.mxu0 0
    %544 = vmatpush1.bf16.msra.mxu0 0
    %545 = vmatprep.subr.bf16.mxu0 0
    %546 = vmatpush1.bf16.msra.mxu0 0
    %547 = vmatprep.subr.bf16.mxu0 0
    %548 = vmatpush1.bf16.msra.mxu0 0
    %549 = vmatprep.subr.bf16.mxu0 0
    %550 = vmatpush1.bf16.msra.mxu0 0
    %551 = vmatprep.subr.bf16.mxu0 0
    %552 = vmatpush1.bf16.msra.mxu0 0
    %553 = vmatprep.subr.bf16.mxu0 0
    %554 = vmatpush1.bf16.msra.mxu0 0
    %555 = vmatprep.subr.bf16.mxu0 0
    %556 = vmatpush1.bf16.msra.mxu0 0
    %557 = vmatprep.subr.bf16.mxu0 0
    %558 = vmatpush1.bf16.msra.mxu0 0
    %559 = vmatprep.subr.bf16.mxu0 0
    %560 = vmatpush1.bf16.msra.mxu0 0
    %561 = vmatprep.mubr.bf16.mxu0 0
    %562 = vmatmul.mubr.bf16.gmra.mrb[0].mxu0 %v527
    %v563 = vpop.f32.mrb[0].mxu0
    %v564 = vadd.f32 0.0, %v563
    %v565 = vpop.f32.mrb[0].mxu0
    %v566 = vpop.f32.mrb[0].mxu0
    %v567 = vpop.f32.mrb[0].mxu0
    %568 = vdwg.mxu0
    %v569 = vadd.f32 %v495, %v564
    %v570 = vld [vmem:[%s434] sm:$0xe]
    %v571 = vld [vmem:[%s3 + $0x80] sm:$0xf]
    %v572 = vld [vmem:[%s3 + $0x84] sm:$0xf]
    %v573 = vld [vmem:[%s3 + $0x88] sm:$0xf]
    %v574 = vld [vmem:[%s3 + $0x8c] sm:$0xf]
    %v576 = vunpack.c.l.b16 %v570
    %v577 = vpack.c.b16 %v505, %v576
    %v578 = vrot.slane %v577, 1
    %v583 = vunpack.c.l.b16 %v571
    %v584 = vunpack.c.l.b16 %v572
    %v585 = vunpack.c.l.b16 %v573
    %v586 = vunpack.c.l.b16 %v574
    %v587 = vpack.c.b16 %v584, %v583
    %v588 = vpack.c.b16 %v586, %v585
    %v592 = vsel %vm67, %v578, 0
    %594 = vmatprep.subr.bf16.mxu0 0
    %595 = vmatpush1.bf16.msra.mxu0 %v587
    %596 = vmatprep.subr.bf16.mxu0 0
    %597 = vmatpush1.bf16.msra.mxu0 %v588
    %598 = vmatprep.subr.bf16.mxu0 0
    %599 = vmatpush1.bf16.msra.mxu0 0
    %600 = vmatprep.subr.bf16.mxu0 0
    %601 = vmatpush1.bf16.msra.mxu0 0
    %602 = vmatprep.subr.bf16.mxu0 0
    %603 = vmatpush1.bf16.msra.mxu0 0
    %604 = vmatprep.subr.bf16.mxu0 0
    %605 = vmatpush1.bf16.msra.mxu0 0
    %606 = vmatprep.subr.bf16.mxu0 0
    %607 = vmatpush1.bf16.msra.mxu0 0
    %608 = vmatprep.subr.bf16.mxu0 0
    %609 = vmatpush1.bf16.msra.mxu0 0
    %610 = vmatprep.subr.bf16.mxu0 0
    %611 = vmatpush1.bf16.msra.mxu0 0
    %612 = vmatprep.subr.bf16.mxu0 0
    %613 = vmatpush1.bf16.msra.mxu0 0
    %614 = vmatprep.subr.bf16.mxu0 0
    %615 = vmatpush1.bf16.msra.mxu0 0
    %616 = vmatprep.subr.bf16.mxu0 0
    %617 = vmatpush1.bf16.msra.mxu0 0
    %618 = vmatprep.subr.bf16.mxu0 0
    %619 = vmatpush1.bf16.msra.mxu0 0
    %620 = vmatprep.subr.bf16.mxu0 0
    %621 = vmatpush1.bf16.msra.mxu0 0
    %622 = vmatprep.subr.bf16.mxu0 0
    %623 = vmatpush1.bf16.msra.mxu0 0
    %624 = vmatprep.subr.bf16.mxu0 0
    %625 = vmatpush1.bf16.msra.mxu0 0
    %626 = vmatprep.mubr.bf16.mxu0 0
    %627 = vmatmul.mubr.bf16.gmra.mrb[0].mxu0 %v592
    %v628 = vpop.f32.mrb[0].mxu0
    %v629 = vadd.f32 0.0, %v628
    %v630 = vpop.f32.mrb[0].mxu0
    %v631 = vpop.f32.mrb[0].mxu0
    %v632 = vpop.f32.mrb[0].mxu0
    %633 = vdwg.mxu0
    %v634 = vadd.f32 %v569, %v629
    %v635 = vld [vmem:[%s4] sm:$0x1]
    %v637 = vlaneseq
    %v638 = vshrl.u32 %v637, 7
    %v639 = vsub.s32 0, %v638
    %v640 = vrot.slane %v635, %v639
    %v642 = vadd.f32 %v634, %v640
    %vm643 = vcmp.ge.f32.partialorder %v642, 0.0
    %v644 = vld [vmem:[%s5] sm:$0x1]
    %v646 = vlaneseq
    %v647 = vshrl.u32 %v646, 7
    %v648 = vsub.s32 0, %v647
    %v649 = vrot.slane %v644, %v648
    %v651 = vmul.f32 %v649, %v642
    %v652 = vsel %vm643, %v642, %v651
    %v653 = vpack.c.bf16 %v652, %v652
    %s654 = smul.addr %s25, 4
    %s655 = scalar_lea.vmem %s6, %s654
    %vm656 = vcmask 257024
    %657 = vst.msk [vmem:[%s655] sm:$0xf] %vm656, %v653
  $region30: #{_forward_impl.11} parent=0 // loop_footer
    %s29 = sadd.s32 1, %s25
  $region31: #{_forward_impl.11} parent=0 // loop_footer_branch
    %24 = sbr.rel target = $region27
  $region32: #{_forward_impl.11} parent=0 // loop_exit
    _
  // Predicated region
  $region33: #{_forward_impl.11} parent=0 // pred_check
    _
  $region34: #{_forward_impl.11} parent=0 // pred_check_branch
    %659 = sbr.rel (0) target = $region36
  $region35: #{_forward_impl.11} parent=0 // pred_region
    _
  $region36: #{_forward_impl.11} parent=0 // pred_fallthru
    _
  // Predicated region
  $region37: #{_forward_impl.11} parent=0 // pred_check
    _
  $region38: #{_forward_impl.11} parent=0 // pred_check_branch
    %661 = sbr.rel (0) target = $region40
  $region39: #{_forward_impl.11} parent=0 // pred_region
    _
  $region40: #{_forward_impl.11} parent=0 // pred_fallthru
    _

// kernel: _forward_impl.12
$region0: #{_forward_impl.12}
  #allocation0 [shape = 'u32[]', space=smem, size = 0x4, offset = 0x4, fixed_abs, tag = 'smem constant byte address 0x4 - core index']
  #allocation1 [shape = 'u32[144,128]{1,0:T(1,128)}', space=vmem, size = 0x12000, scoped, tag = 'internal scratch']
  %s0 = inlined_call_operand.vmem [shape: bf16[8,5,64], index: 0, kind: input, shape index: {}]
  %s1 = inlined_call_operand.vmem [shape: bf16[8,5,64], index: 1, kind: input, shape index: {}]
  %s2 = inlined_call_operand.vmem [shape: bf16[8,5,64], index: 2, kind: input, shape index: {}]
  %s3 = inlined_call_operand.vmem [shape: bf16[288,64], index: 3, kind: input, shape index: {}]
  %s4 = inlined_call_operand.vmem [shape: f32[1,64], index: 4, kind: input, shape index: {}]
  %s5 = inlined_call_operand.vmem [shape: f32[1,64], index: 5, kind: input, shape index: {}]
  %s6 = inlined_call_operand.vmem [shape: bf16[8,4,64], index: 6, kind: output, shape index: {}]
  %s7 = sld [smem:[#allocation0]]
  $region41: #{_forward_impl.12} parent=0
    _
  %s9 = ssub.s32 1, %s7
  %s10 = scalar_select 0, %s9, %s7
  // Predicated region
  $region2: #{_forward_impl.12} parent=0 // pred_check
    _
  $region3: #{_forward_impl.12} parent=0 // pred_check_branch
    %12 = sbr.rel (0) target = $region5
  $region4: #{_forward_impl.12} parent=0 // pred_region
    _
  $region5: #{_forward_impl.12} parent=0 // pred_fallthru
    _
  // Predicated region
  $region6: #{_forward_impl.12} parent=0 // pred_check
    _
  $region7: #{_forward_impl.12} parent=0 // pred_check_branch
    %14 = sbr.rel (0) target = $region9
  $region8: #{_forward_impl.12} parent=0 // pred_region
    _
  $region9: #{_forward_impl.12} parent=0 // pred_fallthru
    _
  // Predicated region
  $region10: #{_forward_impl.12} parent=0 // pred_check
    _
  $region11: #{_forward_impl.12} parent=0 // pred_check_branch
    %16 = sbr.rel (0) target = $region13
  $region12: #{_forward_impl.12} parent=0 // pred_region
    _
  $region13: #{_forward_impl.12} parent=0 // pred_fallthru
    _
  // Predicated region
  $region14: #{_forward_impl.12} parent=0 // pred_check
    _
  $region15: #{_forward_impl.12} parent=0 // pred_check_branch
    %18 = sbr.rel (0) target = $region17
  $region16: #{_forward_impl.12} parent=0 // pred_region
    _
  $region17: #{_forward_impl.12} parent=0 // pred_fallthru
    _
  // Predicated region
  $region18: #{_forward_impl.12} parent=0 // pred_check
    _
  $region19: #{_forward_impl.12} parent=0 // pred_check_branch
    %20 = sbr.rel (0) target = $region21
  $region20: #{_forward_impl.12} parent=0 // pred_region
    _
  $region21: #{_forward_impl.12} parent=0 // pred_fallthru
    _
  // Predicated region
  $region22: #{_forward_impl.12} parent=0 // pred_check
    _
  $region23: #{_forward_impl.12} parent=0 // pred_check_branch
    %22 = sbr.rel (0) target = $region25
  $region24: #{_forward_impl.12} parent=0 // pred_region
    _
  $region25: #{_forward_impl.12} parent=0 // pred_fallthru
    _
  loop: start=0, step=1, limit=8
  $region26: #{_forward_impl.12} parent=0 // loop_pre_header
    _
  $region27: #{_forward_impl.12} parent=0 // loop_header
    %s25 = sphi 0, %s29
    %p26 = scmp.ge.s32.totalorder %s25, 8
  $region28: #{_forward_impl.12} parent=0 // loop_header_branch
    %28 = sbr.rel (%p26) target = $region32
  $region29: #{_forward_impl.12} parent=0 // loop_body
    %s30 = smul.addr %s25, 4
    %s31 = scalar_lea.vmem %s0, %s30
    %v32 = vld [vmem:[%s31] sm:$0x3]
    %v33 = vld [vmem:[%s3] sm:$0xf]
    %v34 = vld [vmem:[%s3 + $0x4] sm:$0xf]
    %v35 = vld [vmem:[%s3 + $0x8] sm:$0xf]
    %v36 = vld [vmem:[%s3 + $0xc] sm:$0xf]
    %v37 = vld [vmem:[%s3 + $0x10] sm:$0xf]
    %v38 = vld [vmem:[%s3 + $0x14] sm:$0xf]
    %v39 = vld [vmem:[%s3 + $0x18] sm:$0xf]
    %v40 = vld [vmem:[%s3 + $0x1c] sm:$0xf]
    %v42 = vunpack.c.l.b16 %v32
    %v43 = vpack.c.b16 %v42, %v42
    %44 = vrot.lane.b32.xlu0 %v43, 96
    %v45 = vpop.permute.xlu0 %44
    %v50 = vunpack.c.l.b16 %v37
    %v51 = vunpack.c.l.b16 %v38
    %v52 = vunpack.c.l.b16 %v39
    %v53 = vunpack.c.l.b16 %v40
    %v54 = vpack.c.b16 %v51, %v50
    %v55 = vpack.c.b16 %v53, %v52
    %vm58 = vcmask 261120
    %v60 = vsel %vm58, %v45, 0
    %62 = vmatprep.subr.bf16.mxu0 0
    %63 = vmatpush1.bf16.msra.mxu0 %v54
    %64 = vmatprep.subr.bf16.mxu0 0
    %65 = vmatpush1.bf16.msra.mxu0 %v55
    %66 = vmatprep.subr.bf16.mxu0 0
    %67 = vmatpush1.bf16.msra.mxu0 0
    %68 = vmatprep.subr.bf16.mxu0 0
    %69 = vmatpush1.bf16.msra.mxu0 0
    %70 = vmatprep.subr.bf16.mxu0 0
    %71 = vmatpush1.bf16.msra.mxu0 0
    %72 = vmatprep.subr.bf16.mxu0 0
    %73 = vmatpush1.bf16.msra.mxu0 0
    %74 = vmatprep.subr.bf16.mxu0 0
    %75 = vmatpush1.bf16.msra.mxu0 0
    %76 = vmatprep.subr.bf16.mxu0 0
    %77 = vmatpush1.bf16.msra.mxu0 0
    %78 = vmatprep.subr.bf16.mxu0 0
    %79 = vmatpush1.bf16.msra.mxu0 0
    %80 = vmatprep.subr.bf16.mxu0 0
    %81 = vmatpush1.bf16.msra.mxu0 0
    %82 = vmatprep.subr.bf16.mxu0 0
    %83 = vmatpush1.bf16.msra.mxu0 0
    %84 = vmatprep.subr.bf16.mxu0 0
    %85 = vmatpush1.bf16.msra.mxu0 0
    %86 = vmatprep.subr.bf16.mxu0 0
    %87 = vmatpush1.bf16.msra.mxu0 0
    %88 = vmatprep.subr.bf16.mxu0 0
    %89 = vmatpush1.bf16.msra.mxu0 0
    %90 = vmatprep.subr.bf16.mxu0 0
    %91 = vmatpush1.bf16.msra.mxu0 0
    %92 = vmatprep.subr.bf16.mxu0 0
    %93 = vmatpush1.bf16.msra.mxu0 0
    %94 = vmatprep.mubr.bf16.mxu0 0
    %95 = vmatmul.mubr.bf16.gmra.mrb[0].mxu0 %v60
    %v96 = vpop.f32.mrb[0].mxu0
    %v97 = vadd.f32 0.0, %v96
    %v98 = vpop.f32.mrb[0].mxu0
    %v99 = vpop.f32.mrb[0].mxu0
    %v100 = vpop.f32.mrb[0].mxu0
    %101 = vdwg.mxu0
    %v106 = vunpack.c.l.b16 %v33
    %v107 = vunpack.c.l.b16 %v34
    %v108 = vunpack.c.l.b16 %v35
    %v109 = vunpack.c.l.b16 %v36
    %v110 = vpack.c.b16 %v107, %v106
    %v111 = vpack.c.b16 %v109, %v108
    %v115 = vsel %vm58, %v32, 0
    %117 = vmatprep.subr.bf16.mxu0 0
    %118 = vmatpush1.bf16.msra.mxu0 %v110
    %119 = vmatprep.subr.bf16.mxu0 0
    %120 = vmatpush1.bf16.msra.mxu0 %v111
    %121 = vmatprep.subr.bf16.mxu0 0
    %122 = vmatpush1.bf16.msra.mxu0 0
    %123 = vmatprep.subr.bf16.mxu0 0
    %124 = vmatpush1.bf16.msra.mxu0 0
    %125 = vmatprep.subr.bf16.mxu0 0
    %126 = vmatpush1.bf16.msra.mxu0 0
    %127 = vmatprep.subr.bf16.mxu0 0
    %128 = vmatpush1.bf16.msra.mxu0 0
    %129 = vmatprep.subr.bf16.mxu0 0
    %130 = vmatpush1.bf16.msra.mxu0 0
    %131 = vmatprep.subr.bf16.mxu0 0
    %132 = vmatpush1.bf16.msra.mxu0 0
    %133 = vmatprep.subr.bf16.mxu0 0
    %134 = vmatpush1.bf16.msra.mxu0 0
    %135 = vmatprep.subr.bf16.mxu0 0
    %136 = vmatpush1.bf16.msra.mxu0 0
    %137 = vmatprep.subr.bf16.mxu0 0
    %138 = vmatpush1.bf16.msra.mxu0 0
    %139 = vmatprep.subr.bf16.mxu0 0
    %140 = vmatpush1.bf16.msra.mxu0 0
    %141 = vmatprep.subr.bf16.mxu0 0
    %142 = vmatpush1.bf16.msra.mxu0 0
    %143 = vmatprep.subr.bf16.mxu0 0
    %144 = vmatpush1.bf16.msra.mxu0 0
    %145 = vmatprep.subr.bf16.mxu0 0
    %146 = vmatpush1.bf16.msra.mxu0 0
    %147 = vmatprep.subr.bf16.mxu0 0
    %148 = vmatpush1.bf16.msra.mxu0 0
    %149 = vmatprep.mubr.bf16.mxu0 0
    %150 = vmatmul.mubr.bf16.gmra.mrb[0].mxu0 %v115
    %v151 = vpop.f32.mrb[0].mxu0
    %v152 = vadd.f32 %v97, %v151
    %v153 = vpop.f32.mrb[0].mxu0
    %v154 = vpop.f32.mrb[0].mxu0
    %v155 = vpop.f32.mrb[0].mxu0
    %156 = vdwg.mxu0
    %v157 = vld [vmem:[%s31] sm:$0x7]
    %v158 = vld [vmem:[%s3 + $0x20] sm:$0xf]
    %v159 = vld [vmem:[%s3 + $0x24] sm:$0xf]
    %v160 = vld [vmem:[%s3 + $0x28] sm:$0xf]
    %v161 = vld [vmem:[%s3 + $0x2c] sm:$0xf]
    %v163 = vunpack.c.l.b16 %v157
    %v164 = vpack.c.b16 %v163, %v163
    %v166 = vshrl.u32 %v164, 16
    %v168 = vshll.u32 %v164, 16
    %v170 = vrot.slane %v168, 1
    %v171 = vor.u32 %v166, %v170
    %v176 = vunpack.c.l.b16 %v158
    %v177 = vunpack.c.l.b16 %v159
    %v178 = vunpack.c.l.b16 %v160
    %v179 = vunpack.c.l.b16 %v161
    %v180 = vpack.c.b16 %v177, %v176
    %v181 = vpack.c.b16 %v179, %v178
    %v185 = vsel %vm58, %v171, 0
    %187 = vmatprep.subr.bf16.mxu0 0
    %188 = vmatpush1.bf16.msra.mxu0 %v180
    %189 = vmatprep.subr.bf16.mxu0 0
    %190 = vmatpush1.bf16.msra.mxu0 %v181
    %191 = vmatprep.subr.bf16.mxu0 0
    %192 = vmatpush1.bf16.msra.mxu0 0
    %193 = vmatprep.subr.bf16.mxu0 0
    %194 = vmatpush1.bf16.msra.mxu0 0
    %195 = vmatprep.subr.bf16.mxu0 0
    %196 = vmatpush1.bf16.msra.mxu0 0
    %197 = vmatprep.subr.bf16.mxu0 0
    %198 = vmatpush1.bf16.msra.mxu0 0
    %199 = vmatprep.subr.bf16.mxu0 0
    %200 = vmatpush1.bf16.msra.mxu0 0
    %201 = vmatprep.subr.bf16.mxu0 0
    %202 = vmatpush1.bf16.msra.mxu0 0
    %203 = vmatprep.subr.bf16.mxu0 0
    %204 = vmatpush1.bf16.msra.mxu0 0
    %205 = vmatprep.subr.bf16.mxu0 0
    %206 = vmatpush1.bf16.msra.mxu0 0
    %207 = vmatprep.subr.bf16.mxu0 0
    %208 = vmatpush1.bf16.msra.mxu0 0
    %209 = vmatprep.subr.bf16.mxu0 0
    %210 = vmatpush1.bf16.msra.mxu0 0
    %211 = vmatprep.subr.bf16.mxu0 0
    %212 = vmatpush1.bf16.msra.mxu0 0
    %213 = vmatprep.subr.bf16.mxu0 0
    %214 = vmatpush1.bf16.msra.mxu0 0
    %215 = vmatprep.subr.bf16.mxu0 0
    %216 = vmatpush1.bf16.msra.mxu0 0
    %217 = vmatprep.subr.bf16.mxu0 0
    %218 = vmatpush1.bf16.msra.mxu0 0
    %219 = vmatprep.mubr.bf16.mxu0 0
    %220 = vmatmul.mubr.bf16.gmra.mrb[0].mxu0 %v185
    %v221 = vpop.f32.mrb[0].mxu0
    %v222 = vadd.f32 0.0, %v221
    %v223 = vpop.f32.mrb[0].mxu0
    %v224 = vpop.f32.mrb[0].mxu0
    %v225 = vpop.f32.mrb[0].mxu0
    %226 = vdwg.mxu0
    %v227 = vadd.f32 %v152, %v222
    %s228 = smul.addr %s25, 4
    %s229 = scalar_lea.vmem %s1, %s228
    %v230 = vld [vmem:[%s229] sm:$0x3]
    %v231 = vld [vmem:[%s3 + $0x30] sm:$0xf]
    %v232 = vld [vmem:[%s3 + $0x34] sm:$0xf]
    %v233 = vld [vmem:[%s3 + $0x38] sm:$0xf]
    %v234 = vld [vmem:[%s3 + $0x3c] sm:$0xf]
    %v239 = vunpack.c.l.b16 %v231
    %v240 = vunpack.c.l.b16 %v232
    %v241 = vunpack.c.l.b16 %v233
    %v242 = vunpack.c.l.b16 %v234
    %v243 = vpack.c.b16 %v240, %v239
    %v244 = vpack.c.b16 %v242, %v241
    %v248 = vsel %vm58, %v230, 0
    %250 = vmatprep.subr.bf16.mxu0 0
    %251 = vmatpush1.bf16.msra.mxu0 %v243
    %252 = vmatprep.subr.bf16.mxu0 0
    %253 = vmatpush1.bf16.msra.mxu0 %v244
    %254 = vmatprep.subr.bf16.mxu0 0
    %255 = vmatpush1.bf16.msra.mxu0 0
    %256 = vmatprep.subr.bf16.mxu0 0
    %257 = vmatpush1.bf16.msra.mxu0 0
    %258 = vmatprep.subr.bf16.mxu0 0
    %259 = vmatpush1.bf16.msra.mxu0 0
    %260 = vmatprep.subr.bf16.mxu0 0
    %261 = vmatpush1.bf16.msra.mxu0 0
    %262 = vmatprep.subr.bf16.mxu0 0
    %263 = vmatpush1.bf16.msra.mxu0 0
    %264 = vmatprep.subr.bf16.mxu0 0
    %265 = vmatpush1.bf16.msra.mxu0 0
    %266 = vmatprep.subr.bf16.mxu0 0
    %267 = vmatpush1.bf16.msra.mxu0 0
    %268 = vmatprep.subr.bf16.mxu0 0
    %269 = vmatpush1.bf16.msra.mxu0 0
    %270 = vmatprep.subr.bf16.mxu0 0
    %271 = vmatpush1.bf16.msra.mxu0 0
    %272 = vmatprep.subr.bf16.mxu0 0
    %273 = vmatpush1.bf16.msra.mxu0 0
    %274 = vmatprep.subr.bf16.mxu0 0
    %275 = vmatpush1.bf16.msra.mxu0 0
    %276 = vmatprep.subr.bf16.mxu0 0
    %277 = vmatpush1.bf16.msra.mxu0 0
    %278 = vmatprep.subr.bf16.mxu0 0
    %279 = vmatpush1.bf16.msra.mxu0 0
    %280 = vmatprep.subr.bf16.mxu0 0
    %281 = vmatpush1.bf16.msra.mxu0 0
    %282 = vmatprep.mubr.bf16.mxu0 0
    %283 = vmatmul.mubr.bf16.gmra.mrb[0].mxu0 %v248
    %v284 = vpop.f32.mrb[0].mxu0
    %v285 = vadd.f32 0.0, %v284
    %v286 = vpop.f32.mrb[0].mxu0
    %v287 = vpop.f32.mrb[0].mxu0
    %v288 = vpop.f32.mrb[0].mxu0
    %289 = vdwg.mxu0
    %v290 = vadd.f32 %v227, %v285
    %v291 = vld [vmem:[%s3 + $0x40] sm:$0xf]
    %v292 = vld [vmem:[%s3 + $0x44] sm:$0xf]
    %v293 = vld [vmem:[%s3 + $0x48] sm:$0xf]
    %v294 = vld [vmem:[%s3 + $0x4c] sm:$0xf]
    %v296 = vunpack.c.l.b16 %v230
    %v297 = vpack.c.b16 %v296, %v296
    %298 = vrot.lane.b32.xlu0 %v297, 96
    %v299 = vpop.permute.xlu0 %298
    %v304 = vunpack.c.l.b16 %v291
    %v305 = vunpack.c.l.b16 %v292
    %v306 = vunpack.c.l.b16 %v293
    %v307 = vunpack.c.l.b16 %v294
    %v308 = vpack.c.b16 %v305, %v304
    %v309 = vpack.c.b16 %v307, %v306
    %v313 = vsel %vm58, %v299, 0
    %315 = vmatprep.subr.bf16.mxu0 0
    %316 = vmatpush1.bf16.msra.mxu0 %v308
    %317 = vmatprep.subr.bf16.mxu0 0
    %318 = vmatpush1.bf16.msra.mxu0 %v309
    %319 = vmatprep.subr.bf16.mxu0 0
    %320 = vmatpush1.bf16.msra.mxu0 0
    %321 = vmatprep.subr.bf16.mxu0 0
    %322 = vmatpush1.bf16.msra.mxu0 0
    %323 = vmatprep.subr.bf16.mxu0 0
    %324 = vmatpush1.bf16.msra.mxu0 0
    %325 = vmatprep.subr.bf16.mxu0 0
    %326 = vmatpush1.bf16.msra.mxu0 0
    %327 = vmatprep.subr.bf16.mxu0 0
    %328 = vmatpush1.bf16.msra.mxu0 0
    %329 = vmatprep.subr.bf16.mxu0 0
    %330 = vmatpush1.bf16.msra.mxu0 0
    %331 = vmatprep.subr.bf16.mxu0 0
    %332 = vmatpush1.bf16.msra.mxu0 0
    %333 = vmatprep.subr.bf16.mxu0 0
    %334 = vmatpush1.bf16.msra.mxu0 0
    %335 = vmatprep.subr.bf16.mxu0 0
    %336 = vmatpush1.bf16.msra.mxu0 0
    %337 = vmatprep.subr.bf16.mxu0 0
    %338 = vmatpush1.bf16.msra.mxu0 0
    %339 = vmatprep.subr.bf16.mxu0 0
    %340 = vmatpush1.bf16.msra.mxu0 0
    %341 = vmatprep.subr.bf16.mxu0 0
    %342 = vmatpush1.bf16.msra.mxu0 0
    %343 = vmatprep.subr.bf16.mxu0 0
    %344 = vmatpush1.bf16.msra.mxu0 0
    %345 = vmatprep.subr.bf16.mxu0 0
    %346 = vmatpush1.bf16.msra.mxu0 0
    %347 = vmatprep.mubr.bf16.mxu0 0
    %348 = vmatmul.mubr.bf16.gmra.mrb[0].mxu0 %v313
    %v349 = vpop.f32.mrb[0].mxu0
    %v350 = vadd.f32 0.0, %v349
    %v351 = vpop.f32.mrb[0].mxu0
    %v352 = vpop.f32.mrb[0].mxu0
    %v353 = vpop.f32.mrb[0].mxu0
    %354 = vdwg.mxu0
    %v355 = vadd.f32 %v290, %v350
    %v356 = vld [vmem:[%s229] sm:$0x7]
    %v357 = vld [vmem:[%s3 + $0x50] sm:$0xf]
    %v358 = vld [vmem:[%s3 + $0x54] sm:$0xf]
    %v359 = vld [vmem:[%s3 + $0x58] sm:$0xf]
    %v360 = vld [vmem:[%s3 + $0x5c] sm:$0xf]
    %v362 = vunpack.c.l.b16 %v356
    %v363 = vpack.c.b16 %v362, %v362
    %v365 = vshrl.u32 %v363, 16
    %v367 = vshll.u32 %v363, 16
    %v369 = vrot.slane %v367, 1
    %v370 = vor.u32 %v365, %v369
    %v375 = vunpack.c.l.b16 %v357
    %v376 = vunpack.c.l.b16 %v358
    %v377 = vunpack.c.l.b16 %v359
    %v378 = vunpack.c.l.b16 %v360
    %v379 = vpack.c.b16 %v376, %v375
    %v380 = vpack.c.b16 %v378, %v377
    %v384 = vsel %vm58, %v370, 0
    %386 = vmatprep.subr.bf16.mxu0 0
    %387 = vmatpush1.bf16.msra.mxu0 %v379
    %388 = vmatprep.subr.bf16.mxu0 0
    %389 = vmatpush1.bf16.msra.mxu0 %v380
    %390 = vmatprep.subr.bf16.mxu0 0
    %391 = vmatpush1.bf16.msra.mxu0 0
    %392 = vmatprep.subr.bf16.mxu0 0
    %393 = vmatpush1.bf16.msra.mxu0 0
    %394 = vmatprep.subr.bf16.mxu0 0
    %395 = vmatpush1.bf16.msra.mxu0 0
    %396 = vmatprep.subr.bf16.mxu0 0
    %397 = vmatpush1.bf16.msra.mxu0 0
    %398 = vmatprep.subr.bf16.mxu0 0
    %399 = vmatpush1.bf16.msra.mxu0 0
    %400 = vmatprep.subr.bf16.mxu0 0
    %401 = vmatpush1.bf16.msra.mxu0 0
    %402 = vmatprep.subr.bf16.mxu0 0
    %403 = vmatpush1.bf16.msra.mxu0 0
    %404 = vmatprep.subr.bf16.mxu0 0
    %405 = vmatpush1.bf16.msra.mxu0 0
    %406 = vmatprep.subr.bf16.mxu0 0
    %407 = vmatpush1.bf16.msra.mxu0 0
    %408 = vmatprep.subr.bf16.mxu0 0
    %409 = vmatpush1.bf16.msra.mxu0 0
    %410 = vmatprep.subr.bf16.mxu0 0
    %411 = vmatpush1.bf16.msra.mxu0 0
    %412 = vmatprep.subr.bf16.mxu0 0
    %413 = vmatpush1.bf16.msra.mxu0 0
    %414 = vmatprep.subr.bf16.mxu0 0
    %415 = vmatpush1.bf16.msra.mxu0 0
    %416 = vmatprep.subr.bf16.mxu0 0
    %417 = vmatpush1.bf16.msra.mxu0 0
    %418 = vmatprep.mubr.bf16.mxu0 0
    %419 = vmatmul.mubr.bf16.gmra.mrb[0].mxu0 %v384
    %v420 = vpop.f32.mrb[0].mxu0
    %v421 = vadd.f32 0.0, %v420
    %v422 = vpop.f32.mrb[0].mxu0
    %v423 = vpop.f32.mrb[0].mxu0
    %v424 = vpop.f32.mrb[0].mxu0
    %425 = vdwg.mxu0
    %v426 = vadd.f32 %v355, %v421
    %s427 = smul.addr %s25, 4
    %s428 = scalar_lea.vmem %s2, %s427
    %v429 = vld [vmem:[%s428] sm:$0x3]
    %v430 = vld [vmem:[%s3 + $0x60] sm:$0xf]
    %v431 = vld [vmem:[%s3 + $0x64] sm:$0xf]
    %v432 = vld [vmem:[%s3 + $0x68] sm:$0xf]
    %v433 = vld [vmem:[%s3 + $0x6c] sm:$0xf]
    %v438 = vunpack.c.l.b16 %v430
    %v439 = vunpack.c.l.b16 %v431
    %v440 = vunpack.c.l.b16 %v432
    %v441 = vunpack.c.l.b16 %v433
    %v442 = vpack.c.b16 %v439, %v438
    %v443 = vpack.c.b16 %v441, %v440
    %v447 = vsel %vm58, %v429, 0
    %449 = vmatprep.subr.bf16.mxu0 0
    %450 = vmatpush1.bf16.msra.mxu0 %v442
    %451 = vmatprep.subr.bf16.mxu0 0
    %452 = vmatpush1.bf16.msra.mxu0 %v443
    %453 = vmatprep.subr.bf16.mxu0 0
    %454 = vmatpush1.bf16.msra.mxu0 0
    %455 = vmatprep.subr.bf16.mxu0 0
    %456 = vmatpush1.bf16.msra.mxu0 0
    %457 = vmatprep.subr.bf16.mxu0 0
    %458 = vmatpush1.bf16.msra.mxu0 0
    %459 = vmatprep.subr.bf16.mxu0 0
    %460 = vmatpush1.bf16.msra.mxu0 0
    %461 = vmatprep.subr.bf16.mxu0 0
    %462 = vmatpush1.bf16.msra.mxu0 0
    %463 = vmatprep.subr.bf16.mxu0 0
    %464 = vmatpush1.bf16.msra.mxu0 0
    %465 = vmatprep.subr.bf16.mxu0 0
    %466 = vmatpush1.bf16.msra.mxu0 0
    %467 = vmatprep.subr.bf16.mxu0 0
    %468 = vmatpush1.bf16.msra.mxu0 0
    %469 = vmatprep.subr.bf16.mxu0 0
    %470 = vmatpush1.bf16.msra.mxu0 0
    %471 = vmatprep.subr.bf16.mxu0 0
    %472 = vmatpush1.bf16.msra.mxu0 0
    %473 = vmatprep.subr.bf16.mxu0 0
    %474 = vmatpush1.bf16.msra.mxu0 0
    %475 = vmatprep.subr.bf16.mxu0 0
    %476 = vmatpush1.bf16.msra.mxu0 0
    %477 = vmatprep.subr.bf16.mxu0 0
    %478 = vmatpush1.bf16.msra.mxu0 0
    %479 = vmatprep.subr.bf16.mxu0 0
    %480 = vmatpush1.bf16.msra.mxu0 0
    %481 = vmatprep.mubr.bf16.mxu0 0
    %482 = vmatmul.mubr.bf16.gmra.mrb[0].mxu0 %v447
    %v483 = vpop.f32.mrb[0].mxu0
    %v484 = vadd.f32 0.0, %v483
    %v485 = vpop.f32.mrb[0].mxu0
    %v486 = vpop.f32.mrb[0].mxu0
    %v487 = vpop.f32.mrb[0].mxu0
    %488 = vdwg.mxu0
    %v489 = vadd.f32 %v426, %v484
    %v490 = vld [vmem:[%s3 + $0x70] sm:$0xf]
    %v491 = vld [vmem:[%s3 + $0x74] sm:$0xf]
    %v492 = vld [vmem:[%s3 + $0x78] sm:$0xf]
    %v493 = vld [vmem:[%s3 + $0x7c] sm:$0xf]
    %v495 = vunpack.c.l.b16 %v429
    %v496 = vpack.c.b16 %v495, %v495
    %497 = vrot.lane.b32.xlu0 %v496, 96
    %v498 = vpop.permute.xlu0 %497
    %v503 = vunpack.c.l.b16 %v490
    %v504 = vunpack.c.l.b16 %v491
    %v505 = vunpack.c.l.b16 %v492
    %v506 = vunpack.c.l.b16 %v493
    %v507 = vpack.c.b16 %v504, %v503
    %v508 = vpack.c.b16 %v506, %v505
    %v512 = vsel %vm58, %v498, 0
    %514 = vmatprep.subr.bf16.mxu0 0
    %515 = vmatpush1.bf16.msra.mxu0 %v507
    %516 = vmatprep.subr.bf16.mxu0 0
    %517 = vmatpush1.bf16.msra.mxu0 %v508
    %518 = vmatprep.subr.bf16.mxu0 0
    %519 = vmatpush1.bf16.msra.mxu0 0
    %520 = vmatprep.subr.bf16.mxu0 0
    %521 = vmatpush1.bf16.msra.mxu0 0
    %522 = vmatprep.subr.bf16.mxu0 0
    %523 = vmatpush1.bf16.msra.mxu0 0
    %524 = vmatprep.subr.bf16.mxu0 0
    %525 = vmatpush1.bf16.msra.mxu0 0
    %526 = vmatprep.subr.bf16.mxu0 0
    %527 = vmatpush1.bf16.msra.mxu0 0
    %528 = vmatprep.subr.bf16.mxu0 0
    %529 = vmatpush1.bf16.msra.mxu0 0
    %530 = vmatprep.subr.bf16.mxu0 0
    %531 = vmatpush1.bf16.msra.mxu0 0
    %532 = vmatprep.subr.bf16.mxu0 0
    %533 = vmatpush1.bf16.msra.mxu0 0
    %534 = vmatprep.subr.bf16.mxu0 0
    %535 = vmatpush1.bf16.msra.mxu0 0
    %536 = vmatprep.subr.bf16.mxu0 0
    %537 = vmatpush1.bf16.msra.mxu0 0
    %538 = vmatprep.subr.bf16.mxu0 0
    %539 = vmatpush1.bf16.msra.mxu0 0
    %540 = vmatprep.subr.bf16.mxu0 0
    %541 = vmatpush1.bf16.msra.mxu0 0
    %542 = vmatprep.subr.bf16.mxu0 0
    %543 = vmatpush1.bf16.msra.mxu0 0
    %544 = vmatprep.subr.bf16.mxu0 0
    %545 = vmatpush1.bf16.msra.mxu0 0
    %546 = vmatprep.mubr.bf16.mxu0 0
    %547 = vmatmul.mubr.bf16.gmra.mrb[0].mxu0 %v512
    %v548 = vpop.f32.mrb[0].mxu0
    %v549 = vadd.f32 0.0, %v548
    %v550 = vpop.f32.mrb[0].mxu0
    %v551 = vpop.f32.mrb[0].mxu0
    %v552 = vpop.f32.mrb[0].mxu0
    %553 = vdwg.mxu0
    %v554 = vadd.f32 %v489, %v549
    %v555 = vld [vmem:[%s428] sm:$0x7]
    %v556 = vld [vmem:[%s3 + $0x80] sm:$0xf]
    %v557 = vld [vmem:[%s3 + $0x84] sm:$0xf]
    %v558 = vld [vmem:[%s3 + $0x88] sm:$0xf]
    %v559 = vld [vmem:[%s3 + $0x8c] sm:$0xf]
    %v561 = vunpack.c.l.b16 %v555
    %v562 = vpack.c.b16 %v561, %v561
    %v564 = vshrl.u32 %v562, 16
    %v566 = vshll.u32 %v562, 16
    %v568 = vrot.slane %v566, 1
    %v569 = vor.u32 %v564, %v568
    %v574 = vunpack.c.l.b16 %v556
    %v575 = vunpack.c.l.b16 %v557
    %v576 = vunpack.c.l.b16 %v558
    %v577 = vunpack.c.l.b16 %v559
    %v578 = vpack.c.b16 %v575, %v574
    %v579 = vpack.c.b16 %v577, %v576
    %v583 = vsel %vm58, %v569, 0
    %585 = vmatprep.subr.bf16.mxu0 0
    %586 = vmatpush1.bf16.msra.mxu0 %v578
    %587 = vmatprep.subr.bf16.mxu0 0
    %588 = vmatpush1.bf16.msra.mxu0 %v579
    %589 = vmatprep.subr.bf16.mxu0 0
    %590 = vmatpush1.bf16.msra.mxu0 0
    %591 = vmatprep.subr.bf16.mxu0 0
    %592 = vmatpush1.bf16.msra.mxu0 0
    %593 = vmatprep.subr.bf16.mxu0 0
    %594 = vmatpush1.bf16.msra.mxu0 0
    %595 = vmatprep.subr.bf16.mxu0 0
    %596 = vmatpush1.bf16.msra.mxu0 0
    %597 = vmatprep.subr.bf16.mxu0 0
    %598 = vmatpush1.bf16.msra.mxu0 0
    %599 = vmatprep.subr.bf16.mxu0 0
    %600 = vmatpush1.bf16.msra.mxu0 0
    %601 = vmatprep.subr.bf16.mxu0 0
    %602 = vmatpush1.bf16.msra.mxu0 0
    %603 = vmatprep.subr.bf16.mxu0 0
    %604 = vmatpush1.bf16.msra.mxu0 0
    %605 = vmatprep.subr.bf16.mxu0 0
    %606 = vmatpush1.bf16.msra.mxu0 0
    %607 = vmatprep.subr.bf16.mxu0 0
    %608 = vmatpush1.bf16.msra.mxu0 0
    %609 = vmatprep.subr.bf16.mxu0 0
    %610 = vmatpush1.bf16.msra.mxu0 0
    %611 = vmatprep.subr.bf16.mxu0 0
    %612 = vmatpush1.bf16.msra.mxu0 0
    %613 = vmatprep.subr.bf16.mxu0 0
    %614 = vmatpush1.bf16.msra.mxu0 0
    %615 = vmatprep.subr.bf16.mxu0 0
    %616 = vmatpush1.bf16.msra.mxu0 0
    %617 = vmatprep.mubr.bf16.mxu0 0
    %618 = vmatmul.mubr.bf16.gmra.mrb[0].mxu0 %v583
    %v619 = vpop.f32.mrb[0].mxu0
    %v620 = vadd.f32 0.0, %v619
    %v621 = vpop.f32.mrb[0].mxu0
    %v622 = vpop.f32.mrb[0].mxu0
    %v623 = vpop.f32.mrb[0].mxu0
    %624 = vdwg.mxu0
    %v625 = vadd.f32 %v554, %v620
    %v626 = vld [vmem:[%s4] sm:$0x1]
    %v628 = vlaneseq
    %v629 = vshrl.u32 %v628, 7
    %v630 = vsub.s32 0, %v629
    %v631 = vrot.slane %v626, %v630
    %v633 = vadd.f32 %v625, %v631
    %vm634 = vcmp.ge.f32.partialorder %v633, 0.0
    %v635 = vld [vmem:[%s5] sm:$0x1]
    %v637 = vlaneseq
    %v638 = vshrl.u32 %v637, 7
    %v639 = vsub.s32 0, %v638
    %v640 = vrot.slane %v635, %v639
    %v642 = vmul.f32 %v640, %v633
    %v643 = vsel %vm634, %v633, %v642
    %v644 = vpack.c.bf16 %v643, %v643
    %s645 = smul.addr %s25, 2
    %s646 = scalar_lea.vmem %s6, %s645
    %vm647 = vcmask 517120
    %648 = vst.msk [vmem:[%s646] sm:$0x3] %vm647, %v644
  $region30: #{_forward_impl.12} parent=0 // loop_footer
    %s29 = sadd.s32 1, %s25
  $region31: #{_forward_impl.12} parent=0 // loop_footer_branch
    %24 = sbr.rel target = $region27
  $region32: #{_forward_impl.12} parent=0 // loop_exit
    _
  // Predicated region
  $region33: #{_forward_impl.12} parent=0 // pred_check
    _
  $region34: #{_forward_impl.12} parent=0 // pred_check_branch
    %650 = sbr.rel (0) target = $region36
  $region35: #{_forward_impl.12} parent=0 // pred_region
    _
  $region36: #{_forward_impl.12} parent=0 // pred_fallthru
    _
  // Predicated region
  $region37: #{_forward_impl.12} parent=0 // pred_check
    _
  $region38: #{_forward_impl.12} parent=0 // pred_check_branch
    %652 = sbr.rel (0) target = $region40
  $region39: #{_forward_impl.12} parent=0 // pred_region
    _
  $region40: #{_forward_impl.12} parent=0 // pred_fallthru
    _

// kernel: _forward_impl.13
$region0: #{_forward_impl.13}
  #allocation0 [shape = 'u32[]', space=smem, size = 0x4, offset = 0x4, fixed_abs, tag = 'smem constant byte address 0x4 - core index']
  #allocation1 [shape = 'u32[144,128]{1,0:T(1,128)}', space=vmem, size = 0x12000, scoped, tag = 'internal scratch']
  %s0 = inlined_call_operand.vmem [shape: bf16[8,6,64], index: 0, kind: input, shape index: {}]
  %s1 = inlined_call_operand.vmem [shape: bf16[8,6,64], index: 1, kind: input, shape index: {}]
  %s2 = inlined_call_operand.vmem [shape: bf16[8,6,64], index: 2, kind: input, shape index: {}]
  %s3 = inlined_call_operand.vmem [shape: bf16[576,64], index: 3, kind: input, shape index: {}]
  %s4 = inlined_call_operand.vmem [shape: f32[1,64], index: 4, kind: input, shape index: {}]
  %s5 = inlined_call_operand.vmem [shape: f32[1,64], index: 5, kind: input, shape index: {}]
  %s6 = inlined_call_operand.vmem [shape: bf16[8,4,64], index: 6, kind: output, shape index: {}]
  %s7 = sld [smem:[#allocation0]]
  $region41: #{_forward_impl.13} parent=0
    _
  %s9 = ssub.s32 1, %s7
  %s10 = scalar_select 0, %s9, %s7
  // Predicated region
  $region2: #{_forward_impl.13} parent=0 // pred_check
    _
  $region3: #{_forward_impl.13} parent=0 // pred_check_branch
    %12 = sbr.rel (0) target = $region5
  $region4: #{_forward_impl.13} parent=0 // pred_region
    _
  $region5: #{_forward_impl.13} parent=0 // pred_fallthru
    _
  // Predicated region
  $region6: #{_forward_impl.13} parent=0 // pred_check
    _
  $region7: #{_forward_impl.13} parent=0 // pred_check_branch
    %14 = sbr.rel (0) target = $region9
  $region8: #{_forward_impl.13} parent=0 // pred_region
    _
  $region9: #{_forward_impl.13} parent=0 // pred_fallthru
    _
  // Predicated region
  $region10: #{_forward_impl.13} parent=0 // pred_check
    _
  $region11: #{_forward_impl.13} parent=0 // pred_check_branch
    %16 = sbr.rel (0) target = $region13
  $region12: #{_forward_impl.13} parent=0 // pred_region
    _
  $region13: #{_forward_impl.13} parent=0 // pred_fallthru
    _
  // Predicated region
  $region14: #{_forward_impl.13} parent=0 // pred_check
    _
  $region15: #{_forward_impl.13} parent=0 // pred_check_branch
    %18 = sbr.rel (0) target = $region17
  $region16: #{_forward_impl.13} parent=0 // pred_region
    _
  $region17: #{_forward_impl.13} parent=0 // pred_fallthru
    _
  // Predicated region
  $region18: #{_forward_impl.13} parent=0 // pred_check
    _
  $region19: #{_forward_impl.13} parent=0 // pred_check_branch
    %20 = sbr.rel (0) target = $region21
  $region20: #{_forward_impl.13} parent=0 // pred_region
    _
  $region21: #{_forward_impl.13} parent=0 // pred_fallthru
    _
  // Predicated region
  $region22: #{_forward_impl.13} parent=0 // pred_check
    _
  $region23: #{_forward_impl.13} parent=0 // pred_check_branch
    %22 = sbr.rel (0) target = $region25
  $region24: #{_forward_impl.13} parent=0 // pred_region
    _
  $region25: #{_forward_impl.13} parent=0 // pred_fallthru
    _
  loop: start=0, step=1, limit=8
  $region26: #{_forward_impl.13} parent=0 // loop_pre_header
    _
  $region27: #{_forward_impl.13} parent=0 // loop_header
    %s25 = sphi 0, %s29
    %p26 = scmp.ge.s32.totalorder %s25, 8
  $region28: #{_forward_impl.13} parent=0 // loop_header_branch
    %28 = sbr.rel (%p26) target = $region32
  $region29: #{_forward_impl.13} parent=0 // loop_body
    %s30 = smul.addr %s25, 4
    %s31 = scalar_lea.vmem %s0, %s30
    %v32 = vld [vmem:[%s31] sm:$0x3]
    %v33 = vld [vmem:[%s3] sm:$0xf]
    %v34 = vld [vmem:[%s3 + $0x4] sm:$0xf]
    %v35 = vld [vmem:[%s3 + $0x8] sm:$0xf]
    %v36 = vld [vmem:[%s3 + $0xc] sm:$0xf]
    %v37 = vld [vmem:[%s3 + $0x10] sm:$0xf]
    %v38 = vld [vmem:[%s3 + $0x14] sm:$0xf]
    %v39 = vld [vmem:[%s3 + $0x18] sm:$0xf]
    %v40 = vld [vmem:[%s3 + $0x1c] sm:$0xf]
    %v41 = vld [vmem:[%s31] sm:$0x7]
    %v42 = vld [vmem:[%s3 + $0x20] sm:$0xf]
    %v43 = vld [vmem:[%s3 + $0x24] sm:$0xf]
    %v44 = vld [vmem:[%s3 + $0x28] sm:$0xf]
    %v45 = vld [vmem:[%s3 + $0x2c] sm:$0xf]
    %v46 = vld [vmem:[%s3 + $0x30] sm:$0xf]
    %v47 = vld [vmem:[%s3 + $0x34] sm:$0xf]
    %v48 = vld [vmem:[%s3 + $0x38] sm:$0xf]
    %v49 = vld [vmem:[%s3 + $0x3c] sm:$0xf]
    %v51 = vunpack.c.l.b16 %v41
    %v52 = vpack.c.b16 %v51, %v51
    %v54 = vshrl.u32 %v52, 16
    %v56 = vshll.u32 %v52, 16
    %v58 = vrot.slane %v56, 1
    %v59 = vor.u32 %v54, %v58
    %v68 = vunpack.c.l.b16 %v42
    %v69 = vunpack.c.l.b16 %v43
    %v70 = vunpack.c.l.b16 %v44
    %v71 = vunpack.c.l.b16 %v45
    %v72 = vunpack.c.l.b16 %v46
    %v73 = vunpack.c.l.b16 %v47
    %v74 = vunpack.c.l.b16 %v48
    %v75 = vunpack.c.l.b16 %v49
    %v76 = vpack.c.b16 %v69, %v68
    %v77 = vpack.c.b16 %v71, %v70
    %v78 = vpack.c.b16 %v73, %v72
    %v79 = vpack.c.b16 %v75, %v74
    %vm84 = vcmask 523264
    %v86 = vsel %vm84, %v59, 0
    %88 = vmatprep.subr.bf16.mxu0 0
    %89 = vmatpush1.bf16.msra.mxu0 %v76
    %90 = vmatprep.subr.bf16.mxu0 0
    %91 = vmatpush1.bf16.msra.mxu0 %v77
    %92 = vmatprep.subr.bf16.mxu0 0
    %93 = vmatpush1.bf16.msra.mxu0 %v78
    %94 = vmatprep.subr.bf16.mxu0 0
    %95 = vmatpush1.bf16.msra.mxu0 %v79
    %96 = vmatprep.subr.bf16.mxu0 0
    %97 = vmatpush1.bf16.msra.mxu0 0
    %98 = vmatprep.subr.bf16.mxu0 0
    %99 = vmatpush1.bf16.msra.mxu0 0
    %100 = vmatprep.subr.bf16.mxu0 0
    %101 = vmatpush1.bf16.msra.mxu0 0
    %102 = vmatprep.subr.bf16.mxu0 0
    %103 = vmatpush1.bf16.msra.mxu0 0
    %104 = vmatprep.subr.bf16.mxu0 0
    %105 = vmatpush1.bf16.msra.mxu0 0
    %106 = vmatprep.subr.bf16.mxu0 0
    %107 = vmatpush1.bf16.msra.mxu0 0
    %108 = vmatprep.subr.bf16.mxu0 0
    %109 = vmatpush1.bf16.msra.mxu0 0
    %110 = vmatprep.subr.bf16.mxu0 0
    %111 = vmatpush1.bf16.msra.mxu0 0
    %112 = vmatprep.subr.bf16.mxu0 0
    %113 = vmatpush1.bf16.msra.mxu0 0
    %114 = vmatprep.subr.bf16.mxu0 0
    %115 = vmatpush1.bf16.msra.mxu0 0
    %116 = vmatprep.subr.bf16.mxu0 0
    %117 = vmatpush1.bf16.msra.mxu0 0
    %118 = vmatprep.subr.bf16.mxu0 0
    %119 = vmatpush1.bf16.msra.mxu0 0
    %120 = vmatprep.mubr.bf16.mxu0 0
    %121 = vmatmul.mubr.bf16.gmra.mrb[0].mxu0 %v86
    %v122 = vpop.f32.mrb[0].mxu0
    %v123 = vadd.f32 0.0, %v122
    %v124 = vpop.f32.mrb[0].mxu0
    %v125 = vpop.f32.mrb[0].mxu0
    %v126 = vpop.f32.mrb[0].mxu0
    %127 = vdwg.mxu0
    %v136 = vunpack.c.l.b16 %v33
    %v137 = vunpack.c.l.b16 %v34
    %v138 = vunpack.c.l.b16 %v35
    %v139 = vunpack.c.l.b16 %v36
    %v140 = vunpack.c.l.b16 %v37
    %v141 = vunpack.c.l.b16 %v38
    %v142 = vunpack.c.l.b16 %v39
    %v143 = vunpack.c.l.b16 %v40
    %v144 = vpack.c.b16 %v137, %v136
    %v145 = vpack.c.b16 %v139, %v138
    %v146 = vpack.c.b16 %v141, %v140
    %v147 = vpack.c.b16 %v143, %v142
    %v153 = vsel %vm84, %v32, 0
    %155 = vmatprep.subr.bf16.mxu0 0
    %156 = vmatpush1.bf16.msra.mxu0 %v144
    %157 = vmatprep.subr.bf16.mxu0 0
    %158 = vmatpush1.bf16.msra.mxu0 %v145
    %159 = vmatprep.subr.bf16.mxu0 0
    %160 = vmatpush1.bf16.msra.mxu0 %v146
    %161 = vmatprep.subr.bf16.mxu0 0
    %162 = vmatpush1.bf16.msra.mxu0 %v147
    %163 = vmatprep.subr.bf16.mxu0 0
    %164 = vmatpush1.bf16.msra.mxu0 0
    %165 = vmatprep.subr.bf16.mxu0 0
    %166 = vmatpush1.bf16.msra.mxu0 0
    %167 = vmatprep.subr.bf16.mxu0 0
    %168 = vmatpush1.bf16.msra.mxu0 0
    %169 = vmatprep.subr.bf16.mxu0 0
    %170 = vmatpush1.bf16.msra.mxu0 0
    %171 = vmatprep.subr.bf16.mxu0 0
    %172 = vmatpush1.bf16.msra.mxu0 0
    %173 = vmatprep.subr.bf16.mxu0 0
    %174 = vmatpush1.bf16.msra.mxu0 0
    %175 = vmatprep.subr.bf16.mxu0 0
    %176 = vmatpush1.bf16.msra.mxu0 0
    %177 = vmatprep.subr.bf16.mxu0 0
    %178 = vmatpush1.bf16.msra.mxu0 0
    %179 = vmatprep.subr.bf16.mxu0 0
    %180 = vmatpush1.bf16.msra.mxu0 0
    %181 = vmatprep.subr.bf16.mxu0 0
    %182 = vmatpush1.bf16.msra.mxu0 0
    %183 = vmatprep.subr.bf16.mxu0 0
    %184 = vmatpush1.bf16.msra.mxu0 0
    %185 = vmatprep.subr.bf16.mxu0 0
    %186 = vmatpush1.bf16.msra.mxu0 0
    %187 = vmatprep.mubr.bf16.mxu0 0
    %188 = vmatmul.mubr.bf16.gmra.mrb[0].mxu0 %v153
    %v189 = vpop.f32.mrb[0].mxu0
    %v190 = vadd.f32 %v123, %v189
    %v191 = vpop.f32.mrb[0].mxu0
    %v192 = vpop.f32.mrb[0].mxu0
    %v193 = vpop.f32.mrb[0].mxu0
    %194 = vdwg.mxu0
    %v195 = vld [vmem:[%s31] sm:$0x6]
    %v196 = vld [vmem:[%s3 + $0x40] sm:$0xf]
    %v197 = vld [vmem:[%s3 + $0x44] sm:$0xf]
    %v198 = vld [vmem:[%s3 + $0x48] sm:$0xf]
    %v199 = vld [vmem:[%s3 + $0x4c] sm:$0xf]
    %v200 = vld [vmem:[%s3 + $0x50] sm:$0xf]
    %v201 = vld [vmem:[%s3 + $0x54] sm:$0xf]
    %v202 = vld [vmem:[%s3 + $0x58] sm:$0xf]
    %v203 = vld [vmem:[%s3 + $0x5c] sm:$0xf]
    %v205 = vunpack.c.l.b16 %v195
    %v206 = vpack.c.b16 %v205, %v205
    %v207 = vrot.slane %v206, 1
    %v216 = vunpack.c.l.b16 %v196
    %v217 = vunpack.c.l.b16 %v197
    %v218 = vunpack.c.l.b16 %v198
    %v219 = vunpack.c.l.b16 %v199
    %v220 = vunpack.c.l.b16 %v200
    %v221 = vunpack.c.l.b16 %v201
    %v222 = vunpack.c.l.b16 %v202
    %v223 = vunpack.c.l.b16 %v203
    %v224 = vpack.c.b16 %v217, %v216
    %v225 = vpack.c.b16 %v219, %v218
    %v226 = vpack.c.b16 %v221, %v220
    %v227 = vpack.c.b16 %v223, %v222
    %v233 = vsel %vm84, %v207, 0
    %235 = vmatprep.subr.bf16.mxu0 0
    %236 = vmatpush1.bf16.msra.mxu0 %v224
    %237 = vmatprep.subr.bf16.mxu0 0
    %238 = vmatpush1.bf16.msra.mxu0 %v225
    %239 = vmatprep.subr.bf16.mxu0 0
    %240 = vmatpush1.bf16.msra.mxu0 %v226
    %241 = vmatprep.subr.bf16.mxu0 0
    %242 = vmatpush1.bf16.msra.mxu0 %v227
    %243 = vmatprep.subr.bf16.mxu0 0
    %244 = vmatpush1.bf16.msra.mxu0 0
    %245 = vmatprep.subr.bf16.mxu0 0
    %246 = vmatpush1.bf16.msra.mxu0 0
    %247 = vmatprep.subr.bf16.mxu0 0
    %248 = vmatpush1.bf16.msra.mxu0 0
    %249 = vmatprep.subr.bf16.mxu0 0
    %250 = vmatpush1.bf16.msra.mxu0 0
    %251 = vmatprep.subr.bf16.mxu0 0
    %252 = vmatpush1.bf16.msra.mxu0 0
    %253 = vmatprep.subr.bf16.mxu0 0
    %254 = vmatpush1.bf16.msra.mxu0 0
    %255 = vmatprep.subr.bf16.mxu0 0
    %256 = vmatpush1.bf16.msra.mxu0 0
    %257 = vmatprep.subr.bf16.mxu0 0
    %258 = vmatpush1.bf16.msra.mxu0 0
    %259 = vmatprep.subr.bf16.mxu0 0
    %260 = vmatpush1.bf16.msra.mxu0 0
    %261 = vmatprep.subr.bf16.mxu0 0
    %262 = vmatpush1.bf16.msra.mxu0 0
    %263 = vmatprep.subr.bf16.mxu0 0
    %264 = vmatpush1.bf16.msra.mxu0 0
    %265 = vmatprep.subr.bf16.mxu0 0
    %266 = vmatpush1.bf16.msra.mxu0 0
    %267 = vmatprep.mubr.bf16.mxu0 0
    %268 = vmatmul.mubr.bf16.gmra.mrb[0].mxu0 %v233
    %v269 = vpop.f32.mrb[0].mxu0
    %v270 = vadd.f32 0.0, %v269
    %v271 = vpop.f32.mrb[0].mxu0
    %v272 = vpop.f32.mrb[0].mxu0
    %v273 = vpop.f32.mrb[0].mxu0
    %274 = vdwg.mxu0
    %v275 = vadd.f32 %v190, %v270
    %s276 = smul.addr %s25, 4
    %s277 = scalar_lea.vmem %s1, %s276
    %v278 = vld [vmem:[%s277] sm:$0x3]
    %v279 = vld [vmem:[%s3 + $0x60] sm:$0xf]
    %v280 = vld [vmem:[%s3 + $0x64] sm:$0xf]
    %v281 = vld [vmem:[%s3 + $0x68] sm:$0xf]
    %v282 = vld [vmem:[%s3 + $0x6c] sm:$0xf]
    %v283 = vld [vmem:[%s3 + $0x70] sm:$0xf]
    %v284 = vld [vmem:[%s3 + $0x74] sm:$0xf]
    %v285 = vld [vmem:[%s3 + $0x78] sm:$0xf]
    %v286 = vld [vmem:[%s3 + $0x7c] sm:$0xf]
    %v295 = vunpack.c.l.b16 %v279
    %v296 = vunpack.c.l.b16 %v280
    %v297 = vunpack.c.l.b16 %v281
    %v298 = vunpack.c.l.b16 %v282
    %v299 = vunpack.c.l.b16 %v283
    %v300 = vunpack.c.l.b16 %v284
    %v301 = vunpack.c.l.b16 %v285
    %v302 = vunpack.c.l.b16 %v286
    %v303 = vpack.c.b16 %v296, %v295
    %v304 = vpack.c.b16 %v298, %v297
    %v305 = vpack.c.b16 %v300, %v299
    %v306 = vpack.c.b16 %v302, %v301
    %v312 = vsel %vm84, %v278, 0
    %314 = vmatprep.subr.bf16.mxu0 0
    %315 = vmatpush1.bf16.msra.mxu0 %v303
    %316 = vmatprep.subr.bf16.mxu0 0
    %317 = vmatpush1.bf16.msra.mxu0 %v304
    %318 = vmatprep.subr.bf16.mxu0 0
    %319 = vmatpush1.bf16.msra.mxu0 %v305
    %320 = vmatprep.subr.bf16.mxu0 0
    %321 = vmatpush1.bf16.msra.mxu0 %v306
    %322 = vmatprep.subr.bf16.mxu0 0
    %323 = vmatpush1.bf16.msra.mxu0 0
    %324 = vmatprep.subr.bf16.mxu0 0
    %325 = vmatpush1.bf16.msra.mxu0 0
    %326 = vmatprep.subr.bf16.mxu0 0
    %327 = vmatpush1.bf16.msra.mxu0 0
    %328 = vmatprep.subr.bf16.mxu0 0
    %329 = vmatpush1.bf16.msra.mxu0 0
    %330 = vmatprep.subr.bf16.mxu0 0
    %331 = vmatpush1.bf16.msra.mxu0 0
    %332 = vmatprep.subr.bf16.mxu0 0
    %333 = vmatpush1.bf16.msra.mxu0 0
    %334 = vmatprep.subr.bf16.mxu0 0
    %335 = vmatpush1.bf16.msra.mxu0 0
    %336 = vmatprep.subr.bf16.mxu0 0
    %337 = vmatpush1.bf16.msra.mxu0 0
    %338 = vmatprep.subr.bf16.mxu0 0
    %339 = vmatpush1.bf16.msra.mxu0 0
    %340 = vmatprep.subr.bf16.mxu0 0
    %341 = vmatpush1.bf16.msra.mxu0 0
    %342 = vmatprep.subr.bf16.mxu0 0
    %343 = vmatpush1.bf16.msra.mxu0 0
    %344 = vmatprep.subr.bf16.mxu0 0
    %345 = vmatpush1.bf16.msra.mxu0 0
    %346 = vmatprep.mubr.bf16.mxu0 0
    %347 = vmatmul.mubr.bf16.gmra.mrb[0].mxu0 %v312
    %v348 = vpop.f32.mrb[0].mxu0
    %v349 = vadd.f32 0.0, %v348
    %v350 = vpop.f32.mrb[0].mxu0
    %v351 = vpop.f32.mrb[0].mxu0
    %v352 = vpop.f32.mrb[0].mxu0
    %353 = vdwg.mxu0
    %v354 = vadd.f32 %v275, %v349
    %v355 = vld [vmem:[%s277] sm:$0x7]
    %v356 = vld [vmem:[%s3 + $0x80] sm:$0xf]
    %v357 = vld [vmem:[%s3 + $0x84] sm:$0xf]
    %v358 = vld [vmem:[%s3 + $0x88] sm:$0xf]
    %v359 = vld [vmem:[%s3 + $0x8c] sm:$0xf]
    %v360 = vld [vmem:[%s3 + $0x90] sm:$0xf]
    %v361 = vld [vmem:[%s3 + $0x94] sm:$0xf]
    %v362 = vld [vmem:[%s3 + $0x98] sm:$0xf]
    %v363 = vld [vmem:[%s3 + $0x9c] sm:$0xf]
    %v365 = vunpack.c.l.b16 %v355
    %v366 = vpack.c.b16 %v365, %v365
    %v368 = vshrl.u32 %v366, 16
    %v370 = vshll.u32 %v366, 16
    %v372 = vrot.slane %v370, 1
    %v373 = vor.u32 %v368, %v372
    %v382 = vunpack.c.l.b16 %v356
    %v383 = vunpack.c.l.b16 %v357
    %v384 = vunpack.c.l.b16 %v358
    %v385 = vunpack.c.l.b16 %v359
    %v386 = vunpack.c.l.b16 %v360
    %v387 = vunpack.c.l.b16 %v361
    %v388 = vunpack.c.l.b16 %v362
    %v389 = vunpack.c.l.b16 %v363
    %v390 = vpack.c.b16 %v383, %v382
    %v391 = vpack.c.b16 %v385, %v384
    %v392 = vpack.c.b16 %v387, %v386
    %v393 = vpack.c.b16 %v389, %v388
    %v399 = vsel %vm84, %v373, 0
    %401 = vmatprep.subr.bf16.mxu0 0
    %402 = vmatpush1.bf16.msra.mxu0 %v390
    %403 = vmatprep.subr.bf16.mxu0 0
    %404 = vmatpush1.bf16.msra.mxu0 %v391
    %405 = vmatprep.subr.bf16.mxu0 0
    %406 = vmatpush1.bf16.msra.mxu0 %v392
    %407 = vmatprep.subr.bf16.mxu0 0
    %408 = vmatpush1.bf16.msra.mxu0 %v393
    %409 = vmatprep.subr.bf16.mxu0 0
    %410 = vmatpush1.bf16.msra.mxu0 0
    %411 = vmatprep.subr.bf16.mxu0 0
    %412 = vmatpush1.bf16.msra.mxu0 0
    %413 = vmatprep.subr.bf16.mxu0 0
    %414 = vmatpush1.bf16.msra.mxu0 0
    %415 = vmatprep.subr.bf16.mxu0 0
    %416 = vmatpush1.bf16.msra.mxu0 0
    %417 = vmatprep.subr.bf16.mxu0 0
    %418 = vmatpush1.bf16.msra.mxu0 0
    %419 = vmatprep.subr.bf16.mxu0 0
    %420 = vmatpush1.bf16.msra.mxu0 0
    %421 = vmatprep.subr.bf16.mxu0 0
    %422 = vmatpush1.bf16.msra.mxu0 0
    %423 = vmatprep.subr.bf16.mxu0 0
    %424 = vmatpush1.bf16.msra.mxu0 0
    %425 = vmatprep.subr.bf16.mxu0 0
    %426 = vmatpush1.bf16.msra.mxu0 0
    %427 = vmatprep.subr.bf16.mxu0 0
    %428 = vmatpush1.bf16.msra.mxu0 0
    %429 = vmatprep.subr.bf16.mxu0 0
    %430 = vmatpush1.bf16.msra.mxu0 0
    %431 = vmatprep.subr.bf16.mxu0 0
    %432 = vmatpush1.bf16.msra.mxu0 0
    %433 = vmatprep.mubr.bf16.mxu0 0
    %434 = vmatmul.mubr.bf16.gmra.mrb[0].mxu0 %v399
    %v435 = vpop.f32.mrb[0].mxu0
    %v436 = vadd.f32 0.0, %v435
    %v437 = vpop.f32.mrb[0].mxu0
    %v438 = vpop.f32.mrb[0].mxu0
    %v439 = vpop.f32.mrb[0].mxu0
    %440 = vdwg.mxu0
    %v441 = vadd.f32 %v354, %v436
    %v442 = vld [vmem:[%s277] sm:$0x6]
    %v443 = vld [vmem:[%s3 + $0xa0] sm:$0xf]
    %v444 = vld [vmem:[%s3 + $0xa4] sm:$0xf]
    %v445 = vld [vmem:[%s3 + $0xa8] sm:$0xf]
    %v446 = vld [vmem:[%s3 + $0xac] sm:$0xf]
    %v447 = vld [vmem:[%s3 + $0xb0] sm:$0xf]
    %v448 = vld [vmem:[%s3 + $0xb4] sm:$0xf]
    %v449 = vld [vmem:[%s3 + $0xb8] sm:$0xf]
    %v450 = vld [vmem:[%s3 + $0xbc] sm:$0xf]
    %v452 = vunpack.c.l.b16 %v442
    %v453 = vpack.c.b16 %v452, %v452
    %v454 = vrot.slane %v453, 1
    %v463 = vunpack.c.l.b16 %v443
    %v464 = vunpack.c.l.b16 %v444
    %v465 = vunpack.c.l.b16 %v445
    %v466 = vunpack.c.l.b16 %v446
    %v467 = vunpack.c.l.b16 %v447
    %v468 = vunpack.c.l.b16 %v448
    %v469 = vunpack.c.l.b16 %v449
    %v470 = vunpack.c.l.b16 %v450
    %v471 = vpack.c.b16 %v464, %v463
    %v472 = vpack.c.b16 %v466, %v465
    %v473 = vpack.c.b16 %v468, %v467
    %v474 = vpack.c.b16 %v470, %v469
    %v480 = vsel %vm84, %v454, 0
    %482 = vmatprep.subr.bf16.mxu0 0
    %483 = vmatpush1.bf16.msra.mxu0 %v471
    %484 = vmatprep.subr.bf16.mxu0 0
    %485 = vmatpush1.bf16.msra.mxu0 %v472
    %486 = vmatprep.subr.bf16.mxu0 0
    %487 = vmatpush1.bf16.msra.mxu0 %v473
    %488 = vmatprep.subr.bf16.mxu0 0
    %489 = vmatpush1.bf16.msra.mxu0 %v474
    %490 = vmatprep.subr.bf16.mxu0 0
    %491 = vmatpush1.bf16.msra.mxu0 0
    %492 = vmatprep.subr.bf16.mxu0 0
    %493 = vmatpush1.bf16.msra.mxu0 0
    %494 = vmatprep.subr.bf16.mxu0 0
    %495 = vmatpush1.bf16.msra.mxu0 0
    %496 = vmatprep.subr.bf16.mxu0 0
    %497 = vmatpush1.bf16.msra.mxu0 0
    %498 = vmatprep.subr.bf16.mxu0 0
    %499 = vmatpush1.bf16.msra.mxu0 0
    %500 = vmatprep.subr.bf16.mxu0 0
    %501 = vmatpush1.bf16.msra.mxu0 0
    %502 = vmatprep.subr.bf16.mxu0 0
    %503 = vmatpush1.bf16.msra.mxu0 0
    %504 = vmatprep.subr.bf16.mxu0 0
    %505 = vmatpush1.bf16.msra.mxu0 0
    %506 = vmatprep.subr.bf16.mxu0 0
    %507 = vmatpush1.bf16.msra.mxu0 0
    %508 = vmatprep.subr.bf16.mxu0 0
    %509 = vmatpush1.bf16.msra.mxu0 0
    %510 = vmatprep.subr.bf16.mxu0 0
    %511 = vmatpush1.bf16.msra.mxu0 0
    %512 = vmatprep.subr.bf16.mxu0 0
    %513 = vmatpush1.bf16.msra.mxu0 0
    %514 = vmatprep.mubr.bf16.mxu0 0
    %515 = vmatmul.mubr.bf16.gmra.mrb[0].mxu0 %v480
    %v516 = vpop.f32.mrb[0].mxu0
    %v517 = vadd.f32 0.0, %v516
    %v518 = vpop.f32.mrb[0].mxu0
    %v519 = vpop.f32.mrb[0].mxu0
    %v520 = vpop.f32.mrb[0].mxu0
    %521 = vdwg.mxu0
    %v522 = vadd.f32 %v441, %v517
    %s523 = smul.addr %s25, 4
    %s524 = scalar_lea.vmem %s2, %s523
    %v525 = vld [vmem:[%s524] sm:$0x3]
    %v526 = vld [vmem:[%s3 + $0xc0] sm:$0xf]
    %v527 = vld [vmem:[%s3 + $0xc4] sm:$0xf]
    %v528 = vld [vmem:[%s3 + $0xc8] sm:$0xf]
    %v529 = vld [vmem:[%s3 + $0xcc] sm:$0xf]
    %v530 = vld [vmem:[%s3 + $0xd0] sm:$0xf]
    %v531 = vld [vmem:[%s3 + $0xd4] sm:$0xf]
    %v532 = vld [vmem:[%s3 + $0xd8] sm:$0xf]
    %v533 = vld [vmem:[%s3 + $0xdc] sm:$0xf]
    %v542 = vunpack.c.l.b16 %v526
    %v543 = vunpack.c.l.b16 %v527
    %v544 = vunpack.c.l.b16 %v528
    %v545 = vunpack.c.l.b16 %v529
    %v546 = vunpack.c.l.b16 %v530
    %v547 = vunpack.c.l.b16 %v531
    %v548 = vunpack.c.l.b16 %v532
    %v549 = vunpack.c.l.b16 %v533
    %v550 = vpack.c.b16 %v543, %v542
    %v551 = vpack.c.b16 %v545, %v544
    %v552 = vpack.c.b16 %v547, %v546
    %v553 = vpack.c.b16 %v549, %v548
    %v559 = vsel %vm84, %v525, 0
    %561 = vmatprep.subr.bf16.mxu0 0
    %562 = vmatpush1.bf16.msra.mxu0 %v550
    %563 = vmatprep.subr.bf16.mxu0 0
    %564 = vmatpush1.bf16.msra.mxu0 %v551
    %565 = vmatprep.subr.bf16.mxu0 0
    %566 = vmatpush1.bf16.msra.mxu0 %v552
    %567 = vmatprep.subr.bf16.mxu0 0
    %568 = vmatpush1.bf16.msra.mxu0 %v553
    %569 = vmatprep.subr.bf16.mxu0 0
    %570 = vmatpush1.bf16.msra.mxu0 0
    %571 = vmatprep.subr.bf16.mxu0 0
    %572 = vmatpush1.bf16.msra.mxu0 0
    %573 = vmatprep.subr.bf16.mxu0 0
    %574 = vmatpush1.bf16.msra.mxu0 0
    %575 = vmatprep.subr.bf16.mxu0 0
    %576 = vmatpush1.bf16.msra.mxu0 0
    %577 = vmatprep.subr.bf16.mxu0 0
    %578 = vmatpush1.bf16.msra.mxu0 0
    %579 = vmatprep.subr.bf16.mxu0 0
    %580 = vmatpush1.bf16.msra.mxu0 0
    %581 = vmatprep.subr.bf16.mxu0 0
    %582 = vmatpush1.bf16.msra.mxu0 0
    %583 = vmatprep.subr.bf16.mxu0 0
    %584 = vmatpush1.bf16.msra.mxu0 0
    %585 = vmatprep.subr.bf16.mxu0 0
    %586 = vmatpush1.bf16.msra.mxu0 0
    %587 = vmatprep.subr.bf16.mxu0 0
    %588 = vmatpush1.bf16.msra.mxu0 0
    %589 = vmatprep.subr.bf16.mxu0 0
    %590 = vmatpush1.bf16.msra.mxu0 0
    %591 = vmatprep.subr.bf16.mxu0 0
    %592 = vmatpush1.bf16.msra.mxu0 0
    %593 = vmatprep.mubr.bf16.mxu0 0
    %594 = vmatmul.mubr.bf16.gmra.mrb[0].mxu0 %v559
    %v595 = vpop.f32.mrb[0].mxu0
    %v596 = vadd.f32 0.0, %v595
    %v597 = vpop.f32.mrb[0].mxu0
    %v598 = vpop.f32.mrb[0].mxu0
    %v599 = vpop.f32.mrb[0].mxu0
    %600 = vdwg.mxu0
    %v601 = vadd.f32 %v522, %v596
    %v602 = vld [vmem:[%s524] sm:$0x7]
    %v603 = vld [vmem:[%s3 + $0xe0] sm:$0xf]
    %v604 = vld [vmem:[%s3 + $0xe4] sm:$0xf]
    %v605 = vld [vmem:[%s3 + $0xe8] sm:$0xf]
    %v606 = vld [vmem:[%s3 + $0xec] sm:$0xf]
    %v607 = vld [vmem:[%s3 + $0xf0] sm:$0xf]
    %v608 = vld [vmem:[%s3 + $0xf4] sm:$0xf]
    %v609 = vld [vmem:[%s3 + $0xf8] sm:$0xf]
    %v610 = vld [vmem:[%s3 + $0xfc] sm:$0xf]
    %v612 = vunpack.c.l.b16 %v602
    %v613 = vpack.c.b16 %v612, %v612
    %v615 = vshrl.u32 %v613, 16
    %v617 = vshll.u32 %v613, 16
    %v619 = vrot.slane %v617, 1
    %v620 = vor.u32 %v615, %v619
    %v629 = vunpack.c.l.b16 %v603
    %v630 = vunpack.c.l.b16 %v604
    %v631 = vunpack.c.l.b16 %v605
    %v632 = vunpack.c.l.b16 %v606
    %v633 = vunpack.c.l.b16 %v607
    %v634 = vunpack.c.l.b16 %v608
    %v635 = vunpack.c.l.b16 %v609
    %v636 = vunpack.c.l.b16 %v610
    %v637 = vpack.c.b16 %v630, %v629
    %v638 = vpack.c.b16 %v632, %v631
    %v639 = vpack.c.b16 %v634, %v633
    %v640 = vpack.c.b16 %v636, %v635
    %v646 = vsel %vm84, %v620, 0
    %648 = vmatprep.subr.bf16.mxu0 0
    %649 = vmatpush1.bf16.msra.mxu0 %v637
    %650 = vmatprep.subr.bf16.mxu0 0
    %651 = vmatpush1.bf16.msra.mxu0 %v638
    %652 = vmatprep.subr.bf16.mxu0 0
    %653 = vmatpush1.bf16.msra.mxu0 %v639
    %654 = vmatprep.subr.bf16.mxu0 0
    %655 = vmatpush1.bf16.msra.mxu0 %v640
    %656 = vmatprep.subr.bf16.mxu0 0
    %657 = vmatpush1.bf16.msra.mxu0 0
    %658 = vmatprep.subr.bf16.mxu0 0
    %659 = vmatpush1.bf16.msra.mxu0 0
    %660 = vmatprep.subr.bf16.mxu0 0
    %661 = vmatpush1.bf16.msra.mxu0 0
    %662 = vmatprep.subr.bf16.mxu0 0
    %663 = vmatpush1.bf16.msra.mxu0 0
    %664 = vmatprep.subr.bf16.mxu0 0
    %665 = vmatpush1.bf16.msra.mxu0 0
    %666 = vmatprep.subr.bf16.mxu0 0
    %667 = vmatpush1.bf16.msra.mxu0 0
    %668 = vmatprep.subr.bf16.mxu0 0
    %669 = vmatpush1.bf16.msra.mxu0 0
    %670 = vmatprep.subr.bf16.mxu0 0
    %671 = vmatpush1.bf16.msra.mxu0 0
    %672 = vmatprep.subr.bf16.mxu0 0
    %673 = vmatpush1.bf16.msra.mxu0 0
    %674 = vmatprep.subr.bf16.mxu0 0
    %675 = vmatpush1.bf16.msra.mxu0 0
    %676 = vmatprep.subr.bf16.mxu0 0
    %677 = vmatpush1.bf16.msra.mxu0 0
    %678 = vmatprep.subr.bf16.mxu0 0
    %679 = vmatpush1.bf16.msra.mxu0 0
    %680 = vmatprep.mubr.bf16.mxu0 0
    %681 = vmatmul.mubr.bf16.gmra.mrb[0].mxu0 %v646
    %v682 = vpop.f32.mrb[0].mxu0
    %v683 = vadd.f32 0.0, %v682
    %v684 = vpop.f32.mrb[0].mxu0
    %v685 = vpop.f32.mrb[0].mxu0
    %v686 = vpop.f32.mrb[0].mxu0
    %687 = vdwg.mxu0
    %v688 = vadd.f32 %v601, %v683
    %v689 = vld [vmem:[%s524] sm:$0x6]
    %v690 = vld [vmem:[%s3 + $0x100] sm:$0xf]
    %v691 = vld [vmem:[%s3 + $0x104] sm:$0xf]
    %v692 = vld [vmem:[%s3 + $0x108] sm:$0xf]
    %v693 = vld [vmem:[%s3 + $0x10c] sm:$0xf]
    %v694 = vld [vmem:[%s3 + $0x110] sm:$0xf]
    %v695 = vld [vmem:[%s3 + $0x114] sm:$0xf]
    %v696 = vld [vmem:[%s3 + $0x118] sm:$0xf]
    %v697 = vld [vmem:[%s3 + $0x11c] sm:$0xf]
    %v699 = vunpack.c.l.b16 %v689
    %v700 = vpack.c.b16 %v699, %v699
    %v701 = vrot.slane %v700, 1
    %v710 = vunpack.c.l.b16 %v690
    %v711 = vunpack.c.l.b16 %v691
    %v712 = vunpack.c.l.b16 %v692
    %v713 = vunpack.c.l.b16 %v693
    %v714 = vunpack.c.l.b16 %v694
    %v715 = vunpack.c.l.b16 %v695
    %v716 = vunpack.c.l.b16 %v696
    %v717 = vunpack.c.l.b16 %v697
    %v718 = vpack.c.b16 %v711, %v710
    %v719 = vpack.c.b16 %v713, %v712
    %v720 = vpack.c.b16 %v715, %v714
    %v721 = vpack.c.b16 %v717, %v716
    %v727 = vsel %vm84, %v701, 0
    %729 = vmatprep.subr.bf16.mxu0 0
    %730 = vmatpush1.bf16.msra.mxu0 %v718
    %731 = vmatprep.subr.bf16.mxu0 0
    %732 = vmatpush1.bf16.msra.mxu0 %v719
    %733 = vmatprep.subr.bf16.mxu0 0
    %734 = vmatpush1.bf16.msra.mxu0 %v720
    %735 = vmatprep.subr.bf16.mxu0 0
    %736 = vmatpush1.bf16.msra.mxu0 %v721
    %737 = vmatprep.subr.bf16.mxu0 0
    %738 = vmatpush1.bf16.msra.mxu0 0
    %739 = vmatprep.subr.bf16.mxu0 0
    %740 = vmatpush1.bf16.msra.mxu0 0
    %741 = vmatprep.subr.bf16.mxu0 0
    %742 = vmatpush1.bf16.msra.mxu0 0
    %743 = vmatprep.subr.bf16.mxu0 0
    %744 = vmatpush1.bf16.msra.mxu0 0
    %745 = vmatprep.subr.bf16.mxu0 0
    %746 = vmatpush1.bf16.msra.mxu0 0
    %747 = vmatprep.subr.bf16.mxu0 0
    %748 = vmatpush1.bf16.msra.mxu0 0
    %749 = vmatprep.subr.bf16.mxu0 0
    %750 = vmatpush1.bf16.msra.mxu0 0
    %751 = vmatprep.subr.bf16.mxu0 0
    %752 = vmatpush1.bf16.msra.mxu0 0
    %753 = vmatprep.subr.bf16.mxu0 0
    %754 = vmatpush1.bf16.msra.mxu0 0
    %755 = vmatprep.subr.bf16.mxu0 0
    %756 = vmatpush1.bf16.msra.mxu0 0
    %757 = vmatprep.subr.bf16.mxu0 0
    %758 = vmatpush1.bf16.msra.mxu0 0
    %759 = vmatprep.subr.bf16.mxu0 0
    %760 = vmatpush1.bf16.msra.mxu0 0
    %761 = vmatprep.mubr.bf16.mxu0 0
    %762 = vmatmul.mubr.bf16.gmra.mrb[0].mxu0 %v727
    %v763 = vpop.f32.mrb[0].mxu0
    %v764 = vadd.f32 0.0, %v763
    %v765 = vpop.f32.mrb[0].mxu0
    %v766 = vpop.f32.mrb[0].mxu0
    %v767 = vpop.f32.mrb[0].mxu0
    %768 = vdwg.mxu0
    %v769 = vadd.f32 %v688, %v764
    %v770 = vld [vmem:[%s4] sm:$0x1]
    %v772 = vlaneseq
    %v773 = vshrl.u32 %v772, 7
    %v774 = vsub.s32 0, %v773
    %v775 = vrot.slane %v770, %v774
    %v777 = vadd.f32 %v769, %v775
    %vm778 = vcmp.ge.f32.partialorder %v777, 0.0
    %v779 = vld [vmem:[%s5] sm:$0x1]
    %v781 = vlaneseq
    %v782 = vshrl.u32 %v781, 7
    %v783 = vsub.s32 0, %v782
    %v784 = vrot.slane %v779, %v783
    %v786 = vmul.f32 %v784, %v777
    %v787 = vsel %vm778, %v777, %v786
    %v788 = vpack.c.bf16 %v787, %v787
    %s789 = smul.addr %s25, 2
    %s790 = scalar_lea.vmem %s6, %s789
    %vm791 = vcmask 517120
    %792 = vst.msk [vmem:[%s790] sm:$0x3] %vm791, %v788
  $region30: #{_forward_impl.13} parent=0 // loop_footer
    %s29 = sadd.s32 1, %s25
  $region31: #{_forward_impl.13} parent=0 // loop_footer_branch
    %24 = sbr.rel target = $region27
  $region32: #{_forward_impl.13} parent=0 // loop_exit
    _
  // Predicated region
  $region33: #{_forward_impl.13} parent=0 // pred_check
    _
  $region34: #{_forward_impl.13} parent=0 // pred_check_branch
    %794 = sbr.rel (0) target = $region36
  $region35: #{_forward_impl.13} parent=0 // pred_region
    _
  $region36: #{_forward_impl.13} parent=0 // pred_fallthru
    _
  // Predicated region
  $region37: #{_forward_impl.13} parent=0 // pred_check
    _
  $region38: #{_forward_impl.13} parent=0 // pred_check_branch
    %796 = sbr.rel (0) target = $region40
  $region39: #{_forward_impl.13} parent=0 // pred_region
    _
  $region40: #{_forward_impl.13} parent=0 // pred_fallthru
    _

// kernel: _forward_impl.14
$region0: #{_forward_impl.14}
  #allocation0 [shape = 'u32[]', space=smem, size = 0x4, offset = 0x4, fixed_abs, tag = 'smem constant byte address 0x4 - core index']
  #allocation1 [shape = 'u32[144,128]{1,0:T(1,128)}', space=vmem, size = 0x12000, scoped, tag = 'internal scratch']
  %s0 = inlined_call_operand.vmem [shape: bf16[4,3,128], index: 0, kind: input, shape index: {}]
  %s1 = inlined_call_operand.vmem [shape: bf16[4,3,128], index: 1, kind: input, shape index: {}]
  %s2 = inlined_call_operand.vmem [shape: bf16[4,3,128], index: 2, kind: input, shape index: {}]
  %s3 = inlined_call_operand.vmem [shape: bf16[576,128], index: 3, kind: input, shape index: {}]
  %s4 = inlined_call_operand.vmem [shape: f32[1,128], index: 4, kind: input, shape index: {}]
  %s5 = inlined_call_operand.vmem [shape: f32[1,128], index: 5, kind: input, shape index: {}]
  %s6 = inlined_call_operand.vmem [shape: bf16[4,2,128], index: 6, kind: output, shape index: {}]
  %s7 = sld [smem:[#allocation0]]
  $region41: #{_forward_impl.14} parent=0
    _
  %s9 = ssub.s32 1, %s7
  %s10 = scalar_select 0, %s9, %s7
  // Predicated region
  $region2: #{_forward_impl.14} parent=0 // pred_check
    _
  $region3: #{_forward_impl.14} parent=0 // pred_check_branch
    %12 = sbr.rel (0) target = $region5
  $region4: #{_forward_impl.14} parent=0 // pred_region
    _
  $region5: #{_forward_impl.14} parent=0 // pred_fallthru
    _
  // Predicated region
  $region6: #{_forward_impl.14} parent=0 // pred_check
    _
  $region7: #{_forward_impl.14} parent=0 // pred_check_branch
    %14 = sbr.rel (0) target = $region9
  $region8: #{_forward_impl.14} parent=0 // pred_region
    _
  $region9: #{_forward_impl.14} parent=0 // pred_fallthru
    _
  // Predicated region
  $region10: #{_forward_impl.14} parent=0 // pred_check
    _
  $region11: #{_forward_impl.14} parent=0 // pred_check_branch
    %16 = sbr.rel (0) target = $region13
  $region12: #{_forward_impl.14} parent=0 // pred_region
    _
  $region13: #{_forward_impl.14} parent=0 // pred_fallthru
    _
  // Predicated region
  $region14: #{_forward_impl.14} parent=0 // pred_check
    _
  $region15: #{_forward_impl.14} parent=0 // pred_check_branch
    %18 = sbr.rel (0) target = $region17
  $region16: #{_forward_impl.14} parent=0 // pred_region
    _
  $region17: #{_forward_impl.14} parent=0 // pred_fallthru
    _
  // Predicated region
  $region18: #{_forward_impl.14} parent=0 // pred_check
    _
  $region19: #{_forward_impl.14} parent=0 // pred_check_branch
    %20 = sbr.rel (0) target = $region21
  $region20: #{_forward_impl.14} parent=0 // pred_region
    _
  $region21: #{_forward_impl.14} parent=0 // pred_fallthru
    _
  // Predicated region
  $region22: #{_forward_impl.14} parent=0 // pred_check
    _
  $region23: #{_forward_impl.14} parent=0 // pred_check_branch
    %22 = sbr.rel (0) target = $region25
  $region24: #{_forward_impl.14} parent=0 // pred_region
    _
  $region25: #{_forward_impl.14} parent=0 // pred_fallthru
    _
  loop: start=0, step=1, limit=4
  $region26: #{_forward_impl.14} parent=0 // loop_pre_header
    _
  $region27: #{_forward_impl.14} parent=0 // loop_header
    %s25 = sphi 0, %s29
    %p26 = scmp.ge.s32.totalorder %s25, 4
  $region28: #{_forward_impl.14} parent=0 // loop_header_branch
    %28 = sbr.rel (%p26) target = $region32
  $region29: #{_forward_impl.14} parent=0 // loop_body
    %s30 = smul.addr %s25, 2
    %s31 = scalar_lea.vmem %s0, %s30
    %v32 = vld [vmem:[%s31] sm:$0x1]
    %v33 = vld [vmem:[%s3] sm:$0xf]
    %v34 = vld [vmem:[%s3 + $0x4] sm:$0xf]
    %v35 = vld [vmem:[%s3 + $0x8] sm:$0xf]
    %v36 = vld [vmem:[%s3 + $0xc] sm:$0xf]
    %v37 = vld [vmem:[%s3 + $0x10] sm:$0xf]
    %v38 = vld [vmem:[%s3 + $0x14] sm:$0xf]
    %v39 = vld [vmem:[%s3 + $0x18] sm:$0xf]
    %v40 = vld [vmem:[%s3 + $0x1c] sm:$0xf]
    %v41 = vld [vmem:[%s3 + $0x20] sm:$0xf]
    %v42 = vld [vmem:[%s3 + $0x24] sm:$0xf]
    %v43 = vld [vmem:[%s3 + $0x28] sm:$0xf]
    %v44 = vld [vmem:[%s3 + $0x2c] sm:$0xf]
    %v45 = vld [vmem:[%s3 + $0x30] sm:$0xf]
    %v46 = vld [vmem:[%s3 + $0x34] sm:$0xf]
    %v47 = vld [vmem:[%s3 + $0x38] sm:$0xf]
    %v48 = vld [vmem:[%s3 + $0x3c] sm:$0xf]
    %v51 = vunpack.c.l.s4 1983009808
    %v52 = vunpack.c.0.s8 %v51
    %v53 = vlaneseq
    %v54 = vshrl.u32 %v53, 7
    %v55 = vsub.s32 %v52, %v54
    %v56 = vrot.slane %v32, %v55
    %57 = vrot.lane.b32.xlu0 %v56, 64
    %v58 = vpop.permute.xlu0 %57
    %v67 = vunpack.c.l.b16 %v41
    %v68 = vunpack.c.l.b16 %v42
    %v69 = vunpack.c.l.b16 %v43
    %v70 = vunpack.c.l.b16 %v44
    %v71 = vunpack.c.l.b16 %v45
    %v72 = vunpack.c.l.b16 %v46
    %v73 = vunpack.c.l.b16 %v47
    %v74 = vunpack.c.l.b16 %v48
    %v75 = vpack.c.b16 %v68, %v67
    %v76 = vpack.c.b16 %v70, %v69
    %v77 = vpack.c.b16 %v72, %v71
    %v78 = vpack.c.b16 %v74, %v73
    %vm83 = vcmask 523264
    %v85 = vsel %vm83, %v58, 0
    %87 = vmatprep.subr.bf16.mxu0 0
    %88 = vmatpush1.bf16.msra.mxu0 %v75
    %89 = vmatprep.subr.bf16.mxu0 0
    %90 = vmatpush1.bf16.msra.mxu0 %v76
    %91 = vmatprep.subr.bf16.mxu0 0
    %92 = vmatpush1.bf16.msra.mxu0 %v77
    %93 = vmatprep.subr.bf16.mxu0 0
    %94 = vmatpush1.bf16.msra.mxu0 %v78
    %95 = vmatprep.subr.bf16.mxu0 0
    %96 = vmatpush1.bf16.msra.mxu0 0
    %97 = vmatprep.subr.bf16.mxu0 0
    %98 = vmatpush1.bf16.msra.mxu0 0
    %99 = vmatprep.subr.bf16.mxu0 0
    %100 = vmatpush1.bf16.msra.mxu0 0
    %101 = vmatprep.subr.bf16.mxu0 0
    %102 = vmatpush1.bf16.msra.mxu0 0
    %103 = vmatprep.subr.bf16.mxu0 0
    %104 = vmatpush1.bf16.msra.mxu0 0
    %105 = vmatprep.subr.bf16.mxu0 0
    %106 = vmatpush1.bf16.msra.mxu0 0
    %107 = vmatprep.subr.bf16.mxu0 0
    %108 = vmatpush1.bf16.msra.mxu0 0
    %109 = vmatprep.subr.bf16.mxu0 0
    %110 = vmatpush1.bf16.msra.mxu0 0
    %111 = vmatprep.subr.bf16.mxu0 0
    %112 = vmatpush1.bf16.msra.mxu0 0
    %113 = vmatprep.subr.bf16.mxu0 0
    %114 = vmatpush1.bf16.msra.mxu0 0
    %115 = vmatprep.subr.bf16.mxu0 0
    %116 = vmatpush1.bf16.msra.mxu0 0
    %117 = vmatprep.subr.bf16.mxu0 0
    %118 = vmatpush1.bf16.msra.mxu0 0
    %119 = vmatprep.mubr.bf16.mxu0 0
    %120 = vmatmul.mubr.bf16.gmra.mrb[0].mxu0 %v85
    %v121 = vpop.f32.mrb[0].mxu0
    %v122 = vadd.f32 0.0, %v121
    %v123 = vpop.f32.mrb[0].mxu0
    %v124 = vpop.f32.mrb[0].mxu0
    %v125 = vpop.f32.mrb[0].mxu0
    %126 = vdwg.mxu0
    %v135 = vunpack.c.l.b16 %v33
    %v136 = vunpack.c.l.b16 %v34
    %v137 = vunpack.c.l.b16 %v35
    %v138 = vunpack.c.l.b16 %v36
    %v139 = vunpack.c.l.b16 %v37
    %v140 = vunpack.c.l.b16 %v38
    %v141 = vunpack.c.l.b16 %v39
    %v142 = vunpack.c.l.b16 %v40
    %v143 = vpack.c.b16 %v136, %v135
    %v144 = vpack.c.b16 %v138, %v137
    %v145 = vpack.c.b16 %v140, %v139
    %v146 = vpack.c.b16 %v142, %v141
    %v152 = vsel %vm83, %v32, 0
    %154 = vmatprep.subr.bf16.mxu0 0
    %155 = vmatpush1.bf16.msra.mxu0 %v143
    %156 = vmatprep.subr.bf16.mxu0 0
    %157 = vmatpush1.bf16.msra.mxu0 %v144
    %158 = vmatprep.subr.bf16.mxu0 0
    %159 = vmatpush1.bf16.msra.mxu0 %v145
    %160 = vmatprep.subr.bf16.mxu0 0
    %161 = vmatpush1.bf16.msra.mxu0 %v146
    %162 = vmatprep.subr.bf16.mxu0 0
    %163 = vmatpush1.bf16.msra.mxu0 0
    %164 = vmatprep.subr.bf16.mxu0 0
    %165 = vmatpush1.bf16.msra.mxu0 0
    %166 = vmatprep.subr.bf16.mxu0 0
    %167 = vmatpush1.bf16.msra.mxu0 0
    %168 = vmatprep.subr.bf16.mxu0 0
    %169 = vmatpush1.bf16.msra.mxu0 0
    %170 = vmatprep.subr.bf16.mxu0 0
    %171 = vmatpush1.bf16.msra.mxu0 0
    %172 = vmatprep.subr.bf16.mxu0 0
    %173 = vmatpush1.bf16.msra.mxu0 0
    %174 = vmatprep.subr.bf16.mxu0 0
    %175 = vmatpush1.bf16.msra.mxu0 0
    %176 = vmatprep.subr.bf16.mxu0 0
    %177 = vmatpush1.bf16.msra.mxu0 0
    %178 = vmatprep.subr.bf16.mxu0 0
    %179 = vmatpush1.bf16.msra.mxu0 0
    %180 = vmatprep.subr.bf16.mxu0 0
    %181 = vmatpush1.bf16.msra.mxu0 0
    %182 = vmatprep.subr.bf16.mxu0 0
    %183 = vmatpush1.bf16.msra.mxu0 0
    %184 = vmatprep.subr.bf16.mxu0 0
    %185 = vmatpush1.bf16.msra.mxu0 0
    %186 = vmatprep.mubr.bf16.mxu0 0
    %187 = vmatmul.mubr.bf16.gmra.mrb[0].mxu0 %v152
    %v188 = vpop.f32.mrb[0].mxu0
    %v189 = vadd.f32 %v122, %v188
    %v190 = vpop.f32.mrb[0].mxu0
    %v191 = vpop.f32.mrb[0].mxu0
    %v192 = vpop.f32.mrb[0].mxu0
    %193 = vdwg.mxu0
    %v194 = vld [vmem:[%s31] sm:$0x3]
    %v195 = vld [vmem:[%s3 + $0x40] sm:$0xf]
    %v196 = vld [vmem:[%s3 + $0x44] sm:$0xf]
    %v197 = vld [vmem:[%s3 + $0x48] sm:$0xf]
    %v198 = vld [vmem:[%s3 + $0x4c] sm:$0xf]
    %v199 = vld [vmem:[%s3 + $0x50] sm:$0xf]
    %v200 = vld [vmem:[%s3 + $0x54] sm:$0xf]
    %v201 = vld [vmem:[%s3 + $0x58] sm:$0xf]
    %v202 = vld [vmem:[%s3 + $0x5c] sm:$0xf]
    %v205 = vunpack.c.l.s4 1983009808
    %v206 = vunpack.c.0.s8 %v205
    %v207 = vlaneseq
    %v208 = vshrl.u32 %v207, 7
    %v209 = vsub.s32 %v206, %v208
    %v210 = vrot.slane %v194, %v209
    %v212 = vshrl.u32 %v210, 16
    %v214 = vshll.u32 %v210, 16
    %v216 = vrot.slane %v214, 1
    %v217 = vor.u32 %v212, %v216
    %v226 = vunpack.c.l.b16 %v195
    %v227 = vunpack.c.l.b16 %v196
    %v228 = vunpack.c.l.b16 %v197
    %v229 = vunpack.c.l.b16 %v198
    %v230 = vunpack.c.l.b16 %v199
    %v231 = vunpack.c.l.b16 %v200
    %v232 = vunpack.c.l.b16 %v201
    %v233 = vunpack.c.l.b16 %v202
    %v234 = vpack.c.b16 %v227, %v226
    %v235 = vpack.c.b16 %v229, %v228
    %v236 = vpack.c.b16 %v231, %v230
    %v237 = vpack.c.b16 %v233, %v232
    %v243 = vsel %vm83, %v217, 0
    %245 = vmatprep.subr.bf16.mxu0 0
    %246 = vmatpush1.bf16.msra.mxu0 %v234
    %247 = vmatprep.subr.bf16.mxu0 0
    %248 = vmatpush1.bf16.msra.mxu0 %v235
    %249 = vmatprep.subr.bf16.mxu0 0
    %250 = vmatpush1.bf16.msra.mxu0 %v236
    %251 = vmatprep.subr.bf16.mxu0 0
    %252 = vmatpush1.bf16.msra.mxu0 %v237
    %253 = vmatprep.subr.bf16.mxu0 0
    %254 = vmatpush1.bf16.msra.mxu0 0
    %255 = vmatprep.subr.bf16.mxu0 0
    %256 = vmatpush1.bf16.msra.mxu0 0
    %257 = vmatprep.subr.bf16.mxu0 0
    %258 = vmatpush1.bf16.msra.mxu0 0
    %259 = vmatprep.subr.bf16.mxu0 0
    %260 = vmatpush1.bf16.msra.mxu0 0
    %261 = vmatprep.subr.bf16.mxu0 0
    %262 = vmatpush1.bf16.msra.mxu0 0
    %263 = vmatprep.subr.bf16.mxu0 0
    %264 = vmatpush1.bf16.msra.mxu0 0
    %265 = vmatprep.subr.bf16.mxu0 0
    %266 = vmatpush1.bf16.msra.mxu0 0
    %267 = vmatprep.subr.bf16.mxu0 0
    %268 = vmatpush1.bf16.msra.mxu0 0
    %269 = vmatprep.subr.bf16.mxu0 0
    %270 = vmatpush1.bf16.msra.mxu0 0
    %271 = vmatprep.subr.bf16.mxu0 0
    %272 = vmatpush1.bf16.msra.mxu0 0
    %273 = vmatprep.subr.bf16.mxu0 0
    %274 = vmatpush1.bf16.msra.mxu0 0
    %275 = vmatprep.subr.bf16.mxu0 0
    %276 = vmatpush1.bf16.msra.mxu0 0
    %277 = vmatprep.mubr.bf16.mxu0 0
    %278 = vmatmul.mubr.bf16.gmra.mrb[0].mxu0 %v243
    %v279 = vpop.f32.mrb[0].mxu0
    %v280 = vadd.f32 0.0, %v279
    %v281 = vpop.f32.mrb[0].mxu0
    %v282 = vpop.f32.mrb[0].mxu0
    %v283 = vpop.f32.mrb[0].mxu0
    %284 = vdwg.mxu0
    %v285 = vadd.f32 %v189, %v280
    %s286 = smul.addr %s25, 2
    %s287 = scalar_lea.vmem %s1, %s286
    %v288 = vld [vmem:[%s287] sm:$0x1]
    %v289 = vld [vmem:[%s3 + $0x60] sm:$0xf]
    %v290 = vld [vmem:[%s3 + $0x64] sm:$0xf]
    %v291 = vld [vmem:[%s3 + $0x68] sm:$0xf]
    %v292 = vld [vmem:[%s3 + $0x6c] sm:$0xf]
    %v293 = vld [vmem:[%s3 + $0x70] sm:$0xf]
    %v294 = vld [vmem:[%s3 + $0x74] sm:$0xf]
    %v295 = vld [vmem:[%s3 + $0x78] sm:$0xf]
    %v296 = vld [vmem:[%s3 + $0x7c] sm:$0xf]
    %v305 = vunpack.c.l.b16 %v289
    %v306 = vunpack.c.l.b16 %v290
    %v307 = vunpack.c.l.b16 %v291
    %v308 = vunpack.c.l.b16 %v292
    %v309 = vunpack.c.l.b16 %v293
    %v310 = vunpack.c.l.b16 %v294
    %v311 = vunpack.c.l.b16 %v295
    %v312 = vunpack.c.l.b16 %v296
    %v313 = vpack.c.b16 %v306, %v305
    %v314 = vpack.c.b16 %v308, %v307
    %v315 = vpack.c.b16 %v310, %v309
    %v316 = vpack.c.b16 %v312, %v311
    %v322 = vsel %vm83, %v288, 0
    %324 = vmatprep.subr.bf16.mxu0 0
    %325 = vmatpush1.bf16.msra.mxu0 %v313
    %326 = vmatprep.subr.bf16.mxu0 0
    %327 = vmatpush1.bf16.msra.mxu0 %v314
    %328 = vmatprep.subr.bf16.mxu0 0
    %329 = vmatpush1.bf16.msra.mxu0 %v315
    %330 = vmatprep.subr.bf16.mxu0 0
    %331 = vmatpush1.bf16.msra.mxu0 %v316
    %332 = vmatprep.subr.bf16.mxu0 0
    %333 = vmatpush1.bf16.msra.mxu0 0
    %334 = vmatprep.subr.bf16.mxu0 0
    %335 = vmatpush1.bf16.msra.mxu0 0
    %336 = vmatprep.subr.bf16.mxu0 0
    %337 = vmatpush1.bf16.msra.mxu0 0
    %338 = vmatprep.subr.bf16.mxu0 0
    %339 = vmatpush1.bf16.msra.mxu0 0
    %340 = vmatprep.subr.bf16.mxu0 0
    %341 = vmatpush1.bf16.msra.mxu0 0
    %342 = vmatprep.subr.bf16.mxu0 0
    %343 = vmatpush1.bf16.msra.mxu0 0
    %344 = vmatprep.subr.bf16.mxu0 0
    %345 = vmatpush1.bf16.msra.mxu0 0
    %346 = vmatprep.subr.bf16.mxu0 0
    %347 = vmatpush1.bf16.msra.mxu0 0
    %348 = vmatprep.subr.bf16.mxu0 0
    %349 = vmatpush1.bf16.msra.mxu0 0
    %350 = vmatprep.subr.bf16.mxu0 0
    %351 = vmatpush1.bf16.msra.mxu0 0
    %352 = vmatprep.subr.bf16.mxu0 0
    %353 = vmatpush1.bf16.msra.mxu0 0
    %354 = vmatprep.subr.bf16.mxu0 0
    %355 = vmatpush1.bf16.msra.mxu0 0
    %356 = vmatprep.mubr.bf16.mxu0 0
    %357 = vmatmul.mubr.bf16.gmra.mrb[0].mxu0 %v322
    %v358 = vpop.f32.mrb[0].mxu0
    %v359 = vadd.f32 0.0, %v358
    %v360 = vpop.f32.mrb[0].mxu0
    %v361 = vpop.f32.mrb[0].mxu0
    %v362 = vpop.f32.mrb[0].mxu0
    %363 = vdwg.mxu0
    %v364 = vadd.f32 %v285, %v359
    %v365 = vld [vmem:[%s3 + $0x80] sm:$0xf]
    %v366 = vld [vmem:[%s3 + $0x84] sm:$0xf]
    %v367 = vld [vmem:[%s3 + $0x88] sm:$0xf]
    %v368 = vld [vmem:[%s3 + $0x8c] sm:$0xf]
    %v369 = vld [vmem:[%s3 + $0x90] sm:$0xf]
    %v370 = vld [vmem:[%s3 + $0x94] sm:$0xf]
    %v371 = vld [vmem:[%s3 + $0x98] sm:$0xf]
    %v372 = vld [vmem:[%s3 + $0x9c] sm:$0xf]
    %v375 = vunpack.c.l.s4 1983009808
    %v376 = vunpack.c.0.s8 %v375
    %v377 = vlaneseq
    %v378 = vshrl.u32 %v377, 7
    %v379 = vsub.s32 %v376, %v378
    %v380 = vrot.slane %v288, %v379
    %381 = vrot.lane.b32.xlu0 %v380, 64
    %v382 = vpop.permute.xlu0 %381
    %v391 = vunpack.c.l.b16 %v365
    %v392 = vunpack.c.l.b16 %v366
    %v393 = vunpack.c.l.b16 %v367
    %v394 = vunpack.c.l.b16 %v368
    %v395 = vunpack.c.l.b16 %v369
    %v396 = vunpack.c.l.b16 %v370
    %v397 = vunpack.c.l.b16 %v371
    %v398 = vunpack.c.l.b16 %v372
    %v399 = vpack.c.b16 %v392, %v391
    %v400 = vpack.c.b16 %v394, %v393
    %v401 = vpack.c.b16 %v396, %v395
    %v402 = vpack.c.b16 %v398, %v397
    %v408 = vsel %vm83, %v382, 0
    %410 = vmatprep.subr.bf16.mxu0 0
    %411 = vmatpush1.bf16.msra.mxu0 %v399
    %412 = vmatprep.subr.bf16.mxu0 0
    %413 = vmatpush1.bf16.msra.mxu0 %v400
    %414 = vmatprep.subr.bf16.mxu0 0
    %415 = vmatpush1.bf16.msra.mxu0 %v401
    %416 = vmatprep.subr.bf16.mxu0 0
    %417 = vmatpush1.bf16.msra.mxu0 %v402
    %418 = vmatprep.subr.bf16.mxu0 0
    %419 = vmatpush1.bf16.msra.mxu0 0
    %420 = vmatprep.subr.bf16.mxu0 0
    %421 = vmatpush1.bf16.msra.mxu0 0
    %422 = vmatprep.subr.bf16.mxu0 0
    %423 = vmatpush1.bf16.msra.mxu0 0
    %424 = vmatprep.subr.bf16.mxu0 0
    %425 = vmatpush1.bf16.msra.mxu0 0
    %426 = vmatprep.subr.bf16.mxu0 0
    %427 = vmatpush1.bf16.msra.mxu0 0
    %428 = vmatprep.subr.bf16.mxu0 0
    %429 = vmatpush1.bf16.msra.mxu0 0
    %430 = vmatprep.subr.bf16.mxu0 0
    %431 = vmatpush1.bf16.msra.mxu0 0
    %432 = vmatprep.subr.bf16.mxu0 0
    %433 = vmatpush1.bf16.msra.mxu0 0
    %434 = vmatprep.subr.bf16.mxu0 0
    %435 = vmatpush1.bf16.msra.mxu0 0
    %436 = vmatprep.subr.bf16.mxu0 0
    %437 = vmatpush1.bf16.msra.mxu0 0
    %438 = vmatprep.subr.bf16.mxu0 0
    %439 = vmatpush1.bf16.msra.mxu0 0
    %440 = vmatprep.subr.bf16.mxu0 0
    %441 = vmatpush1.bf16.msra.mxu0 0
    %442 = vmatprep.mubr.bf16.mxu0 0
    %443 = vmatmul.mubr.bf16.gmra.mrb[0].mxu0 %v408
    %v444 = vpop.f32.mrb[0].mxu0
    %v445 = vadd.f32 0.0, %v444
    %v446 = vpop.f32.mrb[0].mxu0
    %v447 = vpop.f32.mrb[0].mxu0
    %v448 = vpop.f32.mrb[0].mxu0
    %449 = vdwg.mxu0
    %v450 = vadd.f32 %v364, %v445
    %v451 = vld [vmem:[%s287] sm:$0x3]
    %v452 = vld [vmem:[%s3 + $0xa0] sm:$0xf]
    %v453 = vld [vmem:[%s3 + $0xa4] sm:$0xf]
    %v454 = vld [vmem:[%s3 + $0xa8] sm:$0xf]
    %v455 = vld [vmem:[%s3 + $0xac] sm:$0xf]
    %v456 = vld [vmem:[%s3 + $0xb0] sm:$0xf]
    %v457 = vld [vmem:[%s3 + $0xb4] sm:$0xf]
    %v458 = vld [vmem:[%s3 + $0xb8] sm:$0xf]
    %v459 = vld [vmem:[%s3 + $0xbc] sm:$0xf]
    %v462 = vunpack.c.l.s4 1983009808
    %v463 = vunpack.c.0.s8 %v462
    %v464 = vlaneseq
    %v465 = vshrl.u32 %v464, 7
    %v466 = vsub.s32 %v463, %v465
    %v467 = vrot.slane %v451, %v466
    %v469 = vshrl.u32 %v467, 16
    %v471 = vshll.u32 %v467, 16
    %v473 = vrot.slane %v471, 1
    %v474 = vor.u32 %v469, %v473
    %v483 = vunpack.c.l.b16 %v452
    %v484 = vunpack.c.l.b16 %v453
    %v485 = vunpack.c.l.b16 %v454
    %v486 = vunpack.c.l.b16 %v455
    %v487 = vunpack.c.l.b16 %v456
    %v488 = vunpack.c.l.b16 %v457
    %v489 = vunpack.c.l.b16 %v458
    %v490 = vunpack.c.l.b16 %v459
    %v491 = vpack.c.b16 %v484, %v483
    %v492 = vpack.c.b16 %v486, %v485
    %v493 = vpack.c.b16 %v488, %v487
    %v494 = vpack.c.b16 %v490, %v489
    %v500 = vsel %vm83, %v474, 0
    %502 = vmatprep.subr.bf16.mxu0 0
    %503 = vmatpush1.bf16.msra.mxu0 %v491
    %504 = vmatprep.subr.bf16.mxu0 0
    %505 = vmatpush1.bf16.msra.mxu0 %v492
    %506 = vmatprep.subr.bf16.mxu0 0
    %507 = vmatpush1.bf16.msra.mxu0 %v493
    %508 = vmatprep.subr.bf16.mxu0 0
    %509 = vmatpush1.bf16.msra.mxu0 %v494
    %510 = vmatprep.subr.bf16.mxu0 0
    %511 = vmatpush1.bf16.msra.mxu0 0
    %512 = vmatprep.subr.bf16.mxu0 0
    %513 = vmatpush1.bf16.msra.mxu0 0
    %514 = vmatprep.subr.bf16.mxu0 0
    %515 = vmatpush1.bf16.msra.mxu0 0
    %516 = vmatprep.subr.bf16.mxu0 0
    %517 = vmatpush1.bf16.msra.mxu0 0
    %518 = vmatprep.subr.bf16.mxu0 0
    %519 = vmatpush1.bf16.msra.mxu0 0
    %520 = vmatprep.subr.bf16.mxu0 0
    %521 = vmatpush1.bf16.msra.mxu0 0
    %522 = vmatprep.subr.bf16.mxu0 0
    %523 = vmatpush1.bf16.msra.mxu0 0
    %524 = vmatprep.subr.bf16.mxu0 0
    %525 = vmatpush1.bf16.msra.mxu0 0
    %526 = vmatprep.subr.bf16.mxu0 0
    %527 = vmatpush1.bf16.msra.mxu0 0
    %528 = vmatprep.subr.bf16.mxu0 0
    %529 = vmatpush1.bf16.msra.mxu0 0
    %530 = vmatprep.subr.bf16.mxu0 0
    %531 = vmatpush1.bf16.msra.mxu0 0
    %532 = vmatprep.subr.bf16.mxu0 0
    %533 = vmatpush1.bf16.msra.mxu0 0
    %534 = vmatprep.mubr.bf16.mxu0 0
    %535 = vmatmul.mubr.bf16.gmra.mrb[0].mxu0 %v500
    %v536 = vpop.f32.mrb[0].mxu0
    %v537 = vadd.f32 0.0, %v536
    %v538 = vpop.f32.mrb[0].mxu0
    %v539 = vpop.f32.mrb[0].mxu0
    %v540 = vpop.f32.mrb[0].mxu0
    %541 = vdwg.mxu0
    %v542 = vadd.f32 %v450, %v537
    %s543 = smul.addr %s25, 2
    %s544 = scalar_lea.vmem %s2, %s543
    %v545 = vld [vmem:[%s544] sm:$0x1]
    %v546 = vld [vmem:[%s3 + $0xc0] sm:$0xf]
    %v547 = vld [vmem:[%s3 + $0xc4] sm:$0xf]
    %v548 = vld [vmem:[%s3 + $0xc8] sm:$0xf]
    %v549 = vld [vmem:[%s3 + $0xcc] sm:$0xf]
    %v550 = vld [vmem:[%s3 + $0xd0] sm:$0xf]
    %v551 = vld [vmem:[%s3 + $0xd4] sm:$0xf]
    %v552 = vld [vmem:[%s3 + $0xd8] sm:$0xf]
    %v553 = vld [vmem:[%s3 + $0xdc] sm:$0xf]
    %v562 = vunpack.c.l.b16 %v546
    %v563 = vunpack.c.l.b16 %v547
    %v564 = vunpack.c.l.b16 %v548
    %v565 = vunpack.c.l.b16 %v549
    %v566 = vunpack.c.l.b16 %v550
    %v567 = vunpack.c.l.b16 %v551
    %v568 = vunpack.c.l.b16 %v552
    %v569 = vunpack.c.l.b16 %v553
    %v570 = vpack.c.b16 %v563, %v562
    %v571 = vpack.c.b16 %v565, %v564
    %v572 = vpack.c.b16 %v567, %v566
    %v573 = vpack.c.b16 %v569, %v568
    %v579 = vsel %vm83, %v545, 0
    %581 = vmatprep.subr.bf16.mxu0 0
    %582 = vmatpush1.bf16.msra.mxu0 %v570
    %583 = vmatprep.subr.bf16.mxu0 0
    %584 = vmatpush1.bf16.msra.mxu0 %v571
    %585 = vmatprep.subr.bf16.mxu0 0
    %586 = vmatpush1.bf16.msra.mxu0 %v572
    %587 = vmatprep.subr.bf16.mxu0 0
    %588 = vmatpush1.bf16.msra.mxu0 %v573
    %589 = vmatprep.subr.bf16.mxu0 0
    %590 = vmatpush1.bf16.msra.mxu0 0
    %591 = vmatprep.subr.bf16.mxu0 0
    %592 = vmatpush1.bf16.msra.mxu0 0
    %593 = vmatprep.subr.bf16.mxu0 0
    %594 = vmatpush1.bf16.msra.mxu0 0
    %595 = vmatprep.subr.bf16.mxu0 0
    %596 = vmatpush1.bf16.msra.mxu0 0
    %597 = vmatprep.subr.bf16.mxu0 0
    %598 = vmatpush1.bf16.msra.mxu0 0
    %599 = vmatprep.subr.bf16.mxu0 0
    %600 = vmatpush1.bf16.msra.mxu0 0
    %601 = vmatprep.subr.bf16.mxu0 0
    %602 = vmatpush1.bf16.msra.mxu0 0
    %603 = vmatprep.subr.bf16.mxu0 0
    %604 = vmatpush1.bf16.msra.mxu0 0
    %605 = vmatprep.subr.bf16.mxu0 0
    %606 = vmatpush1.bf16.msra.mxu0 0
    %607 = vmatprep.subr.bf16.mxu0 0
    %608 = vmatpush1.bf16.msra.mxu0 0
    %609 = vmatprep.subr.bf16.mxu0 0
    %610 = vmatpush1.bf16.msra.mxu0 0
    %611 = vmatprep.subr.bf16.mxu0 0
    %612 = vmatpush1.bf16.msra.mxu0 0
    %613 = vmatprep.mubr.bf16.mxu0 0
    %614 = vmatmul.mubr.bf16.gmra.mrb[0].mxu0 %v579
    %v615 = vpop.f32.mrb[0].mxu0
    %v616 = vadd.f32 0.0, %v615
    %v617 = vpop.f32.mrb[0].mxu0
    %v618 = vpop.f32.mrb[0].mxu0
    %v619 = vpop.f32.mrb[0].mxu0
    %620 = vdwg.mxu0
    %v621 = vadd.f32 %v542, %v616
    %v622 = vld [vmem:[%s3 + $0xe0] sm:$0xf]
    %v623 = vld [vmem:[%s3 + $0xe4] sm:$0xf]
    %v624 = vld [vmem:[%s3 + $0xe8] sm:$0xf]
    %v625 = vld [vmem:[%s3 + $0xec] sm:$0xf]
    %v626 = vld [vmem:[%s3 + $0xf0] sm:$0xf]
    %v627 = vld [vmem:[%s3 + $0xf4] sm:$0xf]
    %v628 = vld [vmem:[%s3 + $0xf8] sm:$0xf]
    %v629 = vld [vmem:[%s3 + $0xfc] sm:$0xf]
    %v632 = vunpack.c.l.s4 1983009808
    %v633 = vunpack.c.0.s8 %v632
    %v634 = vlaneseq
    %v635 = vshrl.u32 %v634, 7
    %v636 = vsub.s32 %v633, %v635
    %v637 = vrot.slane %v545, %v636
    %638 = vrot.lane.b32.xlu0 %v637, 64
    %v639 = vpop.permute.xlu0 %638
    %v648 = vunpack.c.l.b16 %v622
    %v649 = vunpack.c.l.b16 %v623
    %v650 = vunpack.c.l.b16 %v624
    %v651 = vunpack.c.l.b16 %v625
    %v652 = vunpack.c.l.b16 %v626
    %v653 = vunpack.c.l.b16 %v627
    %v654 = vunpack.c.l.b16 %v628
    %v655 = vunpack.c.l.b16 %v629
    %v656 = vpack.c.b16 %v649, %v648
    %v657 = vpack.c.b16 %v651, %v650
    %v658 = vpack.c.b16 %v653, %v652
    %v659 = vpack.c.b16 %v655, %v654
    %v665 = vsel %vm83, %v639, 0
    %667 = vmatprep.subr.bf16.mxu0 0
    %668 = vmatpush1.bf16.msra.mxu0 %v656
    %669 = vmatprep.subr.bf16.mxu0 0
    %670 = vmatpush1.bf16.msra.mxu0 %v657
    %671 = vmatprep.subr.bf16.mxu0 0
    %672 = vmatpush1.bf16.msra.mxu0 %v658
    %673 = vmatprep.subr.bf16.mxu0 0
    %674 = vmatpush1.bf16.msra.mxu0 %v659
    %675 = vmatprep.subr.bf16.mxu0 0
    %676 = vmatpush1.bf16.msra.mxu0 0
    %677 = vmatprep.subr.bf16.mxu0 0
    %678 = vmatpush1.bf16.msra.mxu0 0
    %679 = vmatprep.subr.bf16.mxu0 0
    %680 = vmatpush1.bf16.msra.mxu0 0
    %681 = vmatprep.subr.bf16.mxu0 0
    %682 = vmatpush1.bf16.msra.mxu0 0
    %683 = vmatprep.subr.bf16.mxu0 0
    %684 = vmatpush1.bf16.msra.mxu0 0
    %685 = vmatprep.subr.bf16.mxu0 0
    %686 = vmatpush1.bf16.msra.mxu0 0
    %687 = vmatprep.subr.bf16.mxu0 0
    %688 = vmatpush1.bf16.msra.mxu0 0
    %689 = vmatprep.subr.bf16.mxu0 0
    %690 = vmatpush1.bf16.msra.mxu0 0
    %691 = vmatprep.subr.bf16.mxu0 0
    %692 = vmatpush1.bf16.msra.mxu0 0
    %693 = vmatprep.subr.bf16.mxu0 0
    %694 = vmatpush1.bf16.msra.mxu0 0
    %695 = vmatprep.subr.bf16.mxu0 0
    %696 = vmatpush1.bf16.msra.mxu0 0
    %697 = vmatprep.subr.bf16.mxu0 0
    %698 = vmatpush1.bf16.msra.mxu0 0
    %699 = vmatprep.mubr.bf16.mxu0 0
    %700 = vmatmul.mubr.bf16.gmra.mrb[0].mxu0 %v665
    %v701 = vpop.f32.mrb[0].mxu0
    %v702 = vadd.f32 0.0, %v701
    %v703 = vpop.f32.mrb[0].mxu0
    %v704 = vpop.f32.mrb[0].mxu0
    %v705 = vpop.f32.mrb[0].mxu0
    %706 = vdwg.mxu0
    %v707 = vadd.f32 %v621, %v702
    %v708 = vld [vmem:[%s544] sm:$0x3]
    %v709 = vld [vmem:[%s3 + $0x100] sm:$0xf]
    %v710 = vld [vmem:[%s3 + $0x104] sm:$0xf]
    %v711 = vld [vmem:[%s3 + $0x108] sm:$0xf]
    %v712 = vld [vmem:[%s3 + $0x10c] sm:$0xf]
    %v713 = vld [vmem:[%s3 + $0x110] sm:$0xf]
    %v714 = vld [vmem:[%s3 + $0x114] sm:$0xf]
    %v715 = vld [vmem:[%s3 + $0x118] sm:$0xf]
    %v716 = vld [vmem:[%s3 + $0x11c] sm:$0xf]
    %v719 = vunpack.c.l.s4 1983009808
    %v720 = vunpack.c.0.s8 %v719
    %v721 = vlaneseq
    %v722 = vshrl.u32 %v721, 7
    %v723 = vsub.s32 %v720, %v722
    %v724 = vrot.slane %v708, %v723
    %v726 = vshrl.u32 %v724, 16
    %v728 = vshll.u32 %v724, 16
    %v730 = vrot.slane %v728, 1
    %v731 = vor.u32 %v726, %v730
    %v740 = vunpack.c.l.b16 %v709
    %v741 = vunpack.c.l.b16 %v710
    %v742 = vunpack.c.l.b16 %v711
    %v743 = vunpack.c.l.b16 %v712
    %v744 = vunpack.c.l.b16 %v713
    %v745 = vunpack.c.l.b16 %v714
    %v746 = vunpack.c.l.b16 %v715
    %v747 = vunpack.c.l.b16 %v716
    %v748 = vpack.c.b16 %v741, %v740
    %v749 = vpack.c.b16 %v743, %v742
    %v750 = vpack.c.b16 %v745, %v744
    %v751 = vpack.c.b16 %v747, %v746
    %v757 = vsel %vm83, %v731, 0
    %759 = vmatprep.subr.bf16.mxu0 0
    %760 = vmatpush1.bf16.msra.mxu0 %v748
    %761 = vmatprep.subr.bf16.mxu0 0
    %762 = vmatpush1.bf16.msra.mxu0 %v749
    %763 = vmatprep.subr.bf16.mxu0 0
    %764 = vmatpush1.bf16.msra.mxu0 %v750
    %765 = vmatprep.subr.bf16.mxu0 0
    %766 = vmatpush1.bf16.msra.mxu0 %v751
    %767 = vmatprep.subr.bf16.mxu0 0
    %768 = vmatpush1.bf16.msra.mxu0 0
    %769 = vmatprep.subr.bf16.mxu0 0
    %770 = vmatpush1.bf16.msra.mxu0 0
    %771 = vmatprep.subr.bf16.mxu0 0
    %772 = vmatpush1.bf16.msra.mxu0 0
    %773 = vmatprep.subr.bf16.mxu0 0
    %774 = vmatpush1.bf16.msra.mxu0 0
    %775 = vmatprep.subr.bf16.mxu0 0
    %776 = vmatpush1.bf16.msra.mxu0 0
    %777 = vmatprep.subr.bf16.mxu0 0
    %778 = vmatpush1.bf16.msra.mxu0 0
    %779 = vmatprep.subr.bf16.mxu0 0
    %780 = vmatpush1.bf16.msra.mxu0 0
    %781 = vmatprep.subr.bf16.mxu0 0
    %782 = vmatpush1.bf16.msra.mxu0 0
    %783 = vmatprep.subr.bf16.mxu0 0
    %784 = vmatpush1.bf16.msra.mxu0 0
    %785 = vmatprep.subr.bf16.mxu0 0
    %786 = vmatpush1.bf16.msra.mxu0 0
    %787 = vmatprep.subr.bf16.mxu0 0
    %788 = vmatpush1.bf16.msra.mxu0 0
    %789 = vmatprep.subr.bf16.mxu0 0
    %790 = vmatpush1.bf16.msra.mxu0 0
    %791 = vmatprep.mubr.bf16.mxu0 0
    %792 = vmatmul.mubr.bf16.gmra.mrb[0].mxu0 %v757
    %v793 = vpop.f32.mrb[0].mxu0
    %v794 = vadd.f32 0.0, %v793
    %v795 = vpop.f32.mrb[0].mxu0
    %v796 = vpop.f32.mrb[0].mxu0
    %v797 = vpop.f32.mrb[0].mxu0
    %798 = vdwg.mxu0
    %v799 = vadd.f32 %v707, %v794
    %v800 = vld [vmem:[%s4] sm:$0x1]
    %v802 = vlaneseq
    %v803 = vshrl.u32 %v802, 7
    %v804 = vsub.s32 0, %v803
    %v805 = vrot.slane %v800, %v804
    %v807 = vadd.f32 %v799, %v805
    %vm808 = vcmp.ge.f32.partialorder %v807, 0.0
    %v809 = vld [vmem:[%s5] sm:$0x1]
    %v811 = vlaneseq
    %v812 = vshrl.u32 %v811, 7
    %v813 = vsub.s32 0, %v812
    %v814 = vrot.slane %v809, %v813
    %v816 = vmul.f32 %v814, %v807
    %v817 = vsel %vm808, %v807, %v816
    %v818 = vpack.c.bf16 %v817, %v817
    %s819 = scalar_lea.vmem %s6, %s25
    %820 = vst [vmem:[%s819] sm:$0x1] %v818
  $region30: #{_forward_impl.14} parent=0 // loop_footer
    %s29 = sadd.s32 1, %s25
  $region31: #{_forward_impl.14} parent=0 // loop_footer_branch
    %24 = sbr.rel target = $region27
  $region32: #{_forward_impl.14} parent=0 // loop_exit
    _
  // Predicated region
  $region33: #{_forward_impl.14} parent=0 // pred_check
    _
  $region34: #{_forward_impl.14} parent=0 // pred_check_branch
    %822 = sbr.rel (0) target = $region36
  $region35: #{_forward_impl.14} parent=0 // pred_region
    _
  $region36: #{_forward_impl.14} parent=0 // pred_fallthru
    _
  // Predicated region
  $region37: #{_forward_impl.14} parent=0 // pred_check
    _
  $region38: #{_forward_impl.14} parent=0 // pred_check_branch
    %824 = sbr.rel (0) target = $region40
  $region39: #{_forward_impl.14} parent=0 // pred_region
    _
  $region40: #{_forward_impl.14} parent=0 // pred_fallthru
    _

// kernel: _forward_impl.15
$region0: #{_forward_impl.15}
  #allocation0 [shape = 'u32[]', space=smem, size = 0x4, offset = 0x4, fixed_abs, tag = 'smem constant byte address 0x4 - core index']
  #allocation1 [shape = 'u32[144,128]{1,0:T(1,128)}', space=vmem, size = 0x12000, scoped, tag = 'internal scratch']
  %s0 = inlined_call_operand.vmem [shape: bf16[4,4,128], index: 0, kind: input, shape index: {}]
  %s1 = inlined_call_operand.vmem [shape: bf16[4,4,128], index: 1, kind: input, shape index: {}]
  %s2 = inlined_call_operand.vmem [shape: bf16[4,4,128], index: 2, kind: input, shape index: {}]
  %s3 = inlined_call_operand.vmem [shape: bf16[1152,128], index: 3, kind: input, shape index: {}]
  %s4 = inlined_call_operand.vmem [shape: f32[1,128], index: 4, kind: input, shape index: {}]
  %s5 = inlined_call_operand.vmem [shape: f32[1,128], index: 5, kind: input, shape index: {}]
  %s6 = inlined_call_operand.vmem [shape: bf16[4,2,128], index: 6, kind: output, shape index: {}]
  %s7 = sld [smem:[#allocation0]]
  $region41: #{_forward_impl.15} parent=0
    _
  %s9 = ssub.s32 1, %s7
  %s10 = scalar_select 0, %s9, %s7
  // Predicated region
  $region2: #{_forward_impl.15} parent=0 // pred_check
    _
  $region3: #{_forward_impl.15} parent=0 // pred_check_branch
    %12 = sbr.rel (0) target = $region5
  $region4: #{_forward_impl.15} parent=0 // pred_region
    _
  $region5: #{_forward_impl.15} parent=0 // pred_fallthru
    _
  // Predicated region
  $region6: #{_forward_impl.15} parent=0 // pred_check
    _
  $region7: #{_forward_impl.15} parent=0 // pred_check_branch
    %14 = sbr.rel (0) target = $region9
  $region8: #{_forward_impl.15} parent=0 // pred_region
    _
  $region9: #{_forward_impl.15} parent=0 // pred_fallthru
    _
  // Predicated region
  $region10: #{_forward_impl.15} parent=0 // pred_check
    _
  $region11: #{_forward_impl.15} parent=0 // pred_check_branch
    %16 = sbr.rel (0) target = $region13
  $region12: #{_forward_impl.15} parent=0 // pred_region
    _
  $region13: #{_forward_impl.15} parent=0 // pred_fallthru
    _
  // Predicated region
  $region14: #{_forward_impl.15} parent=0 // pred_check
    _
  $region15: #{_forward_impl.15} parent=0 // pred_check_branch
    %18 = sbr.rel (0) target = $region17
  $region16: #{_forward_impl.15} parent=0 // pred_region
    _
  $region17: #{_forward_impl.15} parent=0 // pred_fallthru
    _
  // Predicated region
  $region18: #{_forward_impl.15} parent=0 // pred_check
    _
  $region19: #{_forward_impl.15} parent=0 // pred_check_branch
    %20 = sbr.rel (0) target = $region21
  $region20: #{_forward_impl.15} parent=0 // pred_region
    _
  $region21: #{_forward_impl.15} parent=0 // pred_fallthru
    _
  // Predicated region
  $region22: #{_forward_impl.15} parent=0 // pred_check
    _
  $region23: #{_forward_impl.15} parent=0 // pred_check_branch
    %22 = sbr.rel (0) target = $region25
  $region24: #{_forward_impl.15} parent=0 // pred_region
    _
  $region25: #{_forward_impl.15} parent=0 // pred_fallthru
    _
  loop: start=0, step=1, limit=4
  $region26: #{_forward_impl.15} parent=0 // loop_pre_header
    _
  $region27: #{_forward_impl.15} parent=0 // loop_header
    %s25 = sphi 0, %s29
    %p26 = scmp.ge.s32.totalorder %s25, 4
  $region28: #{_forward_impl.15} parent=0 // loop_header_branch
    %28 = sbr.rel (%p26) target = $region32
  $region29: #{_forward_impl.15} parent=0 // loop_body
    %s30 = smul.addr %s25, 2
    %s31 = scalar_lea.vmem %s0, %s30
    %v32 = vld [vmem:[%s31] sm:$0x1]
    %v33 = vld [vmem:[%s3] sm:$0xf]
    %v34 = vld [vmem:[%s3 + $0x4] sm:$0xf]
    %v35 = vld [vmem:[%s3 + $0x8] sm:$0xf]
    %v36 = vld [vmem:[%s3 + $0xc] sm:$0xf]
    %v37 = vld [vmem:[%s3 + $0x10] sm:$0xf]
    %v38 = vld [vmem:[%s3 + $0x14] sm:$0xf]
    %v39 = vld [vmem:[%s3 + $0x18] sm:$0xf]
    %v40 = vld [vmem:[%s3 + $0x1c] sm:$0xf]
    %v41 = vld [vmem:[%s3 + $0x20] sm:$0xf]
    %v42 = vld [vmem:[%s3 + $0x24] sm:$0xf]
    %v43 = vld [vmem:[%s3 + $0x28] sm:$0xf]
    %v44 = vld [vmem:[%s3 + $0x2c] sm:$0xf]
    %v45 = vld [vmem:[%s3 + $0x30] sm:$0xf]
    %v46 = vld [vmem:[%s3 + $0x34] sm:$0xf]
    %v47 = vld [vmem:[%s3 + $0x38] sm:$0xf]
    %v48 = vld [vmem:[%s3 + $0x3c] sm:$0xf]
    %v49 = vld [vmem:[%s31] sm:$0x3]
    %v50 = vld [vmem:[%s3 + $0x40] sm:$0xf]
    %v51 = vld [vmem:[%s3 + $0x44] sm:$0xf]
    %v52 = vld [vmem:[%s3 + $0x48] sm:$0xf]
    %v53 = vld [vmem:[%s3 + $0x4c] sm:$0xf]
    %v54 = vld [vmem:[%s3 + $0x50] sm:$0xf]
    %v55 = vld [vmem:[%s3 + $0x54] sm:$0xf]
    %v56 = vld [vmem:[%s3 + $0x58] sm:$0xf]
    %v57 = vld [vmem:[%s3 + $0x5c] sm:$0xf]
    %v58 = vld [vmem:[%s3 + $0x60] sm:$0xf]
    %v59 = vld [vmem:[%s3 + $0x64] sm:$0xf]
    %v60 = vld [vmem:[%s3 + $0x68] sm:$0xf]
    %v61 = vld [vmem:[%s3 + $0x6c] sm:$0xf]
    %v62 = vld [vmem:[%s3 + $0x70] sm:$0xf]
    %v63 = vld [vmem:[%s3 + $0x74] sm:$0xf]
    %v64 = vld [vmem:[%s3 + $0x78] sm:$0xf]
    %v65 = vld [vmem:[%s3 + $0x7c] sm:$0xf]
    %v68 = vunpack.c.l.s4 1983009808
    %v69 = vunpack.c.0.s8 %v68
    %v70 = vlaneseq
    %v71 = vshrl.u32 %v70, 7
    %v72 = vsub.s32 %v69, %v71
    %v73 = vrot.slane %v49, %v72
    %v75 = vshrl.u32 %v73, 16
    %v77 = vshll.u32 %v73, 16
    %v79 = vrot.slane %v77, 1
    %v80 = vor.u32 %v75, %v79
    %v98 = vunpack.c.l.b16 %v50
    %v99 = vunpack.c.l.b16 %v51
    %v100 = vunpack.c.l.b16 %v52
    %v101 = vunpack.c.l.b16 %v53
    %v102 = vunpack.c.l.b16 %v54
    %v103 = vunpack.c.l.b16 %v55
    %v104 = vunpack.c.l.b16 %v56
    %v105 = vunpack.c.l.b16 %v57
    %v106 = vunpack.c.l.b16 %v58
    %v107 = vunpack.c.l.b16 %v59
    %v108 = vunpack.c.l.b16 %v60
    %v109 = vunpack.c.l.b16 %v61
    %v110 = vunpack.c.l.b16 %v62
    %v111 = vunpack.c.l.b16 %v63
    %v112 = vunpack.c.l.b16 %v64
    %v113 = vunpack.c.l.b16 %v65
    %v114 = vpack.c.b16 %v99, %v98
    %v115 = vpack.c.b16 %v101, %v100
    %v116 = vpack.c.b16 %v103, %v102
    %v117 = vpack.c.b16 %v105, %v104
    %v118 = vpack.c.b16 %v107, %v106
    %v119 = vpack.c.b16 %v109, %v108
    %v120 = vpack.c.b16 %v111, %v110
    %v121 = vpack.c.b16 %v113, %v112
    %130 = vmatprep.subr.bf16.mxu0 0
    %131 = vmatpush1.bf16.msra.mxu0 %v114
    %132 = vmatprep.subr.bf16.mxu0 0
    %133 = vmatpush1.bf16.msra.mxu0 %v115
    %134 = vmatprep.subr.bf16.mxu0 0
    %135 = vmatpush1.bf16.msra.mxu0 %v116
    %136 = vmatprep.subr.bf16.mxu0 0
    %137 = vmatpush1.bf16.msra.mxu0 %v117
    %138 = vmatprep.subr.bf16.mxu0 0
    %139 = vmatpush1.bf16.msra.mxu0 %v118
    %140 = vmatprep.subr.bf16.mxu0 0
    %141 = vmatpush1.bf16.msra.mxu0 %v119
    %142 = vmatprep.subr.bf16.mxu0 0
    %143 = vmatpush1.bf16.msra.mxu0 %v120
    %144 = vmatprep.subr.bf16.mxu0 0
    %145 = vmatpush1.bf16.msra.mxu0 %v121
    %146 = vmatprep.subr.bf16.mxu0 0
    %147 = vmatpush1.bf16.msra.mxu0 0
    %148 = vmatprep.subr.bf16.mxu0 0
    %149 = vmatpush1.bf16.msra.mxu0 0
    %150 = vmatprep.subr.bf16.mxu0 0
    %151 = vmatpush1.bf16.msra.mxu0 0
    %152 = vmatprep.subr.bf16.mxu0 0
    %153 = vmatpush1.bf16.msra.mxu0 0
    %154 = vmatprep.subr.bf16.mxu0 0
    %155 = vmatpush1.bf16.msra.mxu0 0
    %156 = vmatprep.subr.bf16.mxu0 0
    %157 = vmatpush1.bf16.msra.mxu0 0
    %158 = vmatprep.subr.bf16.mxu0 0
    %159 = vmatpush1.bf16.msra.mxu0 0
    %160 = vmatprep.subr.bf16.mxu0 0
    %161 = vmatpush1.bf16.msra.mxu0 0
    %162 = vmatprep.mubr.bf16.mxu0 0
    %163 = vmatmul.mubr.bf16.gmra.mrb[0].mxu0 %v80
    %v164 = vpop.f32.mrb[0].mxu0
    %v165 = vadd.f32 0.0, %v164
    %v166 = vpop.f32.mrb[0].mxu0
    %v167 = vpop.f32.mrb[0].mxu0
    %v168 = vpop.f32.mrb[0].mxu0
    %169 = vdwg.mxu0
    %v186 = vunpack.c.l.b16 %v33
    %v187 = vunpack.c.l.b16 %v34
    %v188 = vunpack.c.l.b16 %v35
    %v189 = vunpack.c.l.b16 %v36
    %v190 = vunpack.c.l.b16 %v37
    %v191 = vunpack.c.l.b16 %v38
    %v192 = vunpack.c.l.b16 %v39
    %v193 = vunpack.c.l.b16 %v40
    %v194 = vunpack.c.l.b16 %v41
    %v195 = vunpack.c.l.b16 %v42
    %v196 = vunpack.c.l.b16 %v43
    %v197 = vunpack.c.l.b16 %v44
    %v198 = vunpack.c.l.b16 %v45
    %v199 = vunpack.c.l.b16 %v46
    %v200 = vunpack.c.l.b16 %v47
    %v201 = vunpack.c.l.b16 %v48
    %v202 = vpack.c.b16 %v187, %v186
    %v203 = vpack.c.b16 %v189, %v188
    %v204 = vpack.c.b16 %v191, %v190
    %v205 = vpack.c.b16 %v193, %v192
    %v206 = vpack.c.b16 %v195, %v194
    %v207 = vpack.c.b16 %v197, %v196
    %v208 = vpack.c.b16 %v199, %v198
    %v209 = vpack.c.b16 %v201, %v200
    %218 = vmatprep.subr.bf16.mxu0 0
    %219 = vmatpush1.bf16.msra.mxu0 %v202
    %220 = vmatprep.subr.bf16.mxu0 0
    %221 = vmatpush1.bf16.msra.mxu0 %v203
    %222 = vmatprep.subr.bf16.mxu0 0
    %223 = vmatpush1.bf16.msra.mxu0 %v204
    %224 = vmatprep.subr.bf16.mxu0 0
    %225 = vmatpush1.bf16.msra.mxu0 %v205
    %226 = vmatprep.subr.bf16.mxu0 0
    %227 = vmatpush1.bf16.msra.mxu0 %v206
    %228 = vmatprep.subr.bf16.mxu0 0
    %229 = vmatpush1.bf16.msra.mxu0 %v207
    %230 = vmatprep.subr.bf16.mxu0 0
    %231 = vmatpush1.bf16.msra.mxu0 %v208
    %232 = vmatprep.subr.bf16.mxu0 0
    %233 = vmatpush1.bf16.msra.mxu0 %v209
    %234 = vmatprep.subr.bf16.mxu0 0
    %235 = vmatpush1.bf16.msra.mxu0 0
    %236 = vmatprep.subr.bf16.mxu0 0
    %237 = vmatpush1.bf16.msra.mxu0 0
    %238 = vmatprep.subr.bf16.mxu0 0
    %239 = vmatpush1.bf16.msra.mxu0 0
    %240 = vmatprep.subr.bf16.mxu0 0
    %241 = vmatpush1.bf16.msra.mxu0 0
    %242 = vmatprep.subr.bf16.mxu0 0
    %243 = vmatpush1.bf16.msra.mxu0 0
    %244 = vmatprep.subr.bf16.mxu0 0
    %245 = vmatpush1.bf16.msra.mxu0 0
    %246 = vmatprep.subr.bf16.mxu0 0
    %247 = vmatpush1.bf16.msra.mxu0 0
    %248 = vmatprep.subr.bf16.mxu0 0
    %249 = vmatpush1.bf16.msra.mxu0 0
    %250 = vmatprep.mubr.bf16.mxu0 0
    %251 = vmatmul.mubr.bf16.gmra.mrb[0].mxu0 %v32
    %v252 = vpop.f32.mrb[0].mxu0
    %v253 = vadd.f32 %v165, %v252
    %v254 = vpop.f32.mrb[0].mxu0
    %v255 = vpop.f32.mrb[0].mxu0
    %v256 = vpop.f32.mrb[0].mxu0
    %257 = vdwg.mxu0
    %v258 = vld [vmem:[%s31] sm:$0x2]
    %v259 = vld [vmem:[%s3 + $0x80] sm:$0xf]
    %v260 = vld [vmem:[%s3 + $0x84] sm:$0xf]
    %v261 = vld [vmem:[%s3 + $0x88] sm:$0xf]
    %v262 = vld [vmem:[%s3 + $0x8c] sm:$0xf]
    %v263 = vld [vmem:[%s3 + $0x90] sm:$0xf]
    %v264 = vld [vmem:[%s3 + $0x94] sm:$0xf]
    %v265 = vld [vmem:[%s3 + $0x98] sm:$0xf]
    %v266 = vld [vmem:[%s3 + $0x9c] sm:$0xf]
    %v267 = vld [vmem:[%s3 + $0xa0] sm:$0xf]
    %v268 = vld [vmem:[%s3 + $0xa4] sm:$0xf]
    %v269 = vld [vmem:[%s3 + $0xa8] sm:$0xf]
    %v270 = vld [vmem:[%s3 + $0xac] sm:$0xf]
    %v271 = vld [vmem:[%s3 + $0xb0] sm:$0xf]
    %v272 = vld [vmem:[%s3 + $0xb4] sm:$0xf]
    %v273 = vld [vmem:[%s3 + $0xb8] sm:$0xf]
    %v274 = vld [vmem:[%s3 + $0xbc] sm:$0xf]
    %v277 = vunpack.c.l.s4 1983009808
    %v278 = vunpack.c.0.s8 %v277
    %v279 = vlaneseq
    %v280 = vshrl.u32 %v279, 7
    %v281 = vsub.s32 %v278, %v280
    %v282 = vrot.slane %v258, %v281
    %v283 = vrot.slane %v282, 1
    %v301 = vunpack.c.l.b16 %v259
    %v302 = vunpack.c.l.b16 %v260
    %v303 = vunpack.c.l.b16 %v261
    %v304 = vunpack.c.l.b16 %v262
    %v305 = vunpack.c.l.b16 %v263
    %v306 = vunpack.c.l.b16 %v264
    %v307 = vunpack.c.l.b16 %v265
    %v308 = vunpack.c.l.b16 %v266
    %v309 = vunpack.c.l.b16 %v267
    %v310 = vunpack.c.l.b16 %v268
    %v311 = vunpack.c.l.b16 %v269
    %v312 = vunpack.c.l.b16 %v270
    %v313 = vunpack.c.l.b16 %v271
    %v314 = vunpack.c.l.b16 %v272
    %v315 = vunpack.c.l.b16 %v273
    %v316 = vunpack.c.l.b16 %v274
    %v317 = vpack.c.b16 %v302, %v301
    %v318 = vpack.c.b16 %v304, %v303
    %v319 = vpack.c.b16 %v306, %v305
    %v320 = vpack.c.b16 %v308, %v307
    %v321 = vpack.c.b16 %v310, %v309
    %v322 = vpack.c.b16 %v312, %v311
    %v323 = vpack.c.b16 %v314, %v313
    %v324 = vpack.c.b16 %v316, %v315
    %333 = vmatprep.subr.bf16.mxu0 0
    %334 = vmatpush1.bf16.msra.mxu0 %v317
    %335 = vmatprep.subr.bf16.mxu0 0
    %336 = vmatpush1.bf16.msra.mxu0 %v318
    %337 = vmatprep.subr.bf16.mxu0 0
    %338 = vmatpush1.bf16.msra.mxu0 %v319
    %339 = vmatprep.subr.bf16.mxu0 0
    %340 = vmatpush1.bf16.msra.mxu0 %v320
    %341 = vmatprep.subr.bf16.mxu0 0
    %342 = vmatpush1.bf16.msra.mxu0 %v321
    %343 = vmatprep.subr.bf16.mxu0 0
    %344 = vmatpush1.bf16.msra.mxu0 %v322
    %345 = vmatprep.subr.bf16.mxu0 0
    %346 = vmatpush1.bf16.msra.mxu0 %v323
    %347 = vmatprep.subr.bf16.mxu0 0
    %348 = vmatpush1.bf16.msra.mxu0 %v324
    %349 = vmatprep.subr.bf16.mxu0 0
    %350 = vmatpush1.bf16.msra.mxu0 0
    %351 = vmatprep.subr.bf16.mxu0 0
    %352 = vmatpush1.bf16.msra.mxu0 0
    %353 = vmatprep.subr.bf16.mxu0 0
    %354 = vmatpush1.bf16.msra.mxu0 0
    %355 = vmatprep.subr.bf16.mxu0 0
    %356 = vmatpush1.bf16.msra.mxu0 0
    %357 = vmatprep.subr.bf16.mxu0 0
    %358 = vmatpush1.bf16.msra.mxu0 0
    %359 = vmatprep.subr.bf16.mxu0 0
    %360 = vmatpush1.bf16.msra.mxu0 0
    %361 = vmatprep.subr.bf16.mxu0 0
    %362 = vmatpush1.bf16.msra.mxu0 0
    %363 = vmatprep.subr.bf16.mxu0 0
    %364 = vmatpush1.bf16.msra.mxu0 0
    %365 = vmatprep.mubr.bf16.mxu0 0
    %366 = vmatmul.mubr.bf16.gmra.mrb[0].mxu0 %v283
    %v367 = vpop.f32.mrb[0].mxu0
    %v368 = vadd.f32 0.0, %v367
    %v369 = vpop.f32.mrb[0].mxu0
    %v370 = vpop.f32.mrb[0].mxu0
    %v371 = vpop.f32.mrb[0].mxu0
    %372 = vdwg.mxu0
    %v373 = vadd.f32 %v253, %v368
    %s374 = smul.addr %s25, 2
    %s375 = scalar_lea.vmem %s1, %s374
    %v376 = vld [vmem:[%s375] sm:$0x1]
    %v377 = vld [vmem:[%s3 + $0xc0] sm:$0xf]
    %v378 = vld [vmem:[%s3 + $0xc4] sm:$0xf]
    %v379 = vld [vmem:[%s3 + $0xc8] sm:$0xf]
    %v380 = vld [vmem:[%s3 + $0xcc] sm:$0xf]
    %v381 = vld [vmem:[%s3 + $0xd0] sm:$0xf]
    %v382 = vld [vmem:[%s3 + $0xd4] sm:$0xf]
    %v383 = vld [vmem:[%s3 + $0xd8] sm:$0xf]
    %v384 = vld [vmem:[%s3 + $0xdc] sm:$0xf]
    %v385 = vld [vmem:[%s3 + $0xe0] sm:$0xf]
    %v386 = vld [vmem:[%s3 + $0xe4] sm:$0xf]
    %v387 = vld [vmem:[%s3 + $0xe8] sm:$0xf]
    %v388 = vld [vmem:[%s3 + $0xec] sm:$0xf]
    %v389 = vld [vmem:[%s3 + $0xf0] sm:$0xf]
    %v390 = vld [vmem:[%s3 + $0xf4] sm:$0xf]
    %v391 = vld [vmem:[%s3 + $0xf8] sm:$0xf]
    %v392 = vld [vmem:[%s3 + $0xfc] sm:$0xf]
    %v409 = vunpack.c.l.b16 %v377
    %v410 = vunpack.c.l.b16 %v378
    %v411 = vunpack.c.l.b16 %v379
    %v412 = vunpack.c.l.b16 %v380
    %v413 = vunpack.c.l.b16 %v381
    %v414 = vunpack.c.l.b16 %v382
    %v415 = vunpack.c.l.b16 %v383
    %v416 = vunpack.c.l.b16 %v384
    %v417 = vunpack.c.l.b16 %v385
    %v418 = vunpack.c.l.b16 %v386
    %v419 = vunpack.c.l.b16 %v387
    %v420 = vunpack.c.l.b16 %v388
    %v421 = vunpack.c.l.b16 %v389
    %v422 = vunpack.c.l.b16 %v390
    %v423 = vunpack.c.l.b16 %v391
    %v424 = vunpack.c.l.b16 %v392
    %v425 = vpack.c.b16 %v410, %v409
    %v426 = vpack.c.b16 %v412, %v411
    %v427 = vpack.c.b16 %v414, %v413
    %v428 = vpack.c.b16 %v416, %v415
    %v429 = vpack.c.b16 %v418, %v417
    %v430 = vpack.c.b16 %v420, %v419
    %v431 = vpack.c.b16 %v422, %v421
    %v432 = vpack.c.b16 %v424, %v423
    %441 = vmatprep.subr.bf16.mxu0 0
    %442 = vmatpush1.bf16.msra.mxu0 %v425
    %443 = vmatprep.subr.bf16.mxu0 0
    %444 = vmatpush1.bf16.msra.mxu0 %v426
    %445 = vmatprep.subr.bf16.mxu0 0
    %446 = vmatpush1.bf16.msra.mxu0 %v427
    %447 = vmatprep.subr.bf16.mxu0 0
    %448 = vmatpush1.bf16.msra.mxu0 %v428
    %449 = vmatprep.subr.bf16.mxu0 0
    %450 = vmatpush1.bf16.msra.mxu0 %v429
    %451 = vmatprep.subr.bf16.mxu0 0
    %452 = vmatpush1.bf16.msra.mxu0 %v430
    %453 = vmatprep.subr.bf16.mxu0 0
    %454 = vmatpush1.bf16.msra.mxu0 %v431
    %455 = vmatprep.subr.bf16.mxu0 0
    %456 = vmatpush1.bf16.msra.mxu0 %v432
    %457 = vmatprep.subr.bf16.mxu0 0
    %458 = vmatpush1.bf16.msra.mxu0 0
    %459 = vmatprep.subr.bf16.mxu0 0
    %460 = vmatpush1.bf16.msra.mxu0 0
    %461 = vmatprep.subr.bf16.mxu0 0
    %462 = vmatpush1.bf16.msra.mxu0 0
    %463 = vmatprep.subr.bf16.mxu0 0
    %464 = vmatpush1.bf16.msra.mxu0 0
    %465 = vmatprep.subr.bf16.mxu0 0
    %466 = vmatpush1.bf16.msra.mxu0 0
    %467 = vmatprep.subr.bf16.mxu0 0
    %468 = vmatpush1.bf16.msra.mxu0 0
    %469 = vmatprep.subr.bf16.mxu0 0
    %470 = vmatpush1.bf16.msra.mxu0 0
    %471 = vmatprep.subr.bf16.mxu0 0
    %472 = vmatpush1.bf16.msra.mxu0 0
    %473 = vmatprep.mubr.bf16.mxu0 0
    %474 = vmatmul.mubr.bf16.gmra.mrb[0].mxu0 %v376
    %v475 = vpop.f32.mrb[0].mxu0
    %v476 = vadd.f32 0.0, %v475
    %v477 = vpop.f32.mrb[0].mxu0
    %v478 = vpop.f32.mrb[0].mxu0
    %v479 = vpop.f32.mrb[0].mxu0
    %480 = vdwg.mxu0
    %v481 = vadd.f32 %v373, %v476
    %v482 = vld [vmem:[%s375] sm:$0x3]
    %v483 = vld [vmem:[%s3 + $0x100] sm:$0xf]
    %v484 = vld [vmem:[%s3 + $0x104] sm:$0xf]
    %v485 = vld [vmem:[%s3 + $0x108] sm:$0xf]
    %v486 = vld [vmem:[%s3 + $0x10c] sm:$0xf]
    %v487 = vld [vmem:[%s3 + $0x110] sm:$0xf]
    %v488 = vld [vmem:[%s3 + $0x114] sm:$0xf]
    %v489 = vld [vmem:[%s3 + $0x118] sm:$0xf]
    %v490 = vld [vmem:[%s3 + $0x11c] sm:$0xf]
    %v491 = vld [vmem:[%s3 + $0x120] sm:$0xf]
    %v492 = vld [vmem:[%s3 + $0x124] sm:$0xf]
    %v493 = vld [vmem:[%s3 + $0x128] sm:$0xf]
    %v494 = vld [vmem:[%s3 + $0x12c] sm:$0xf]
    %v495 = vld [vmem:[%s3 + $0x130] sm:$0xf]
    %v496 = vld [vmem:[%s3 + $0x134] sm:$0xf]
    %v497 = vld [vmem:[%s3 + $0x138] sm:$0xf]
    %v498 = vld [vmem:[%s3 + $0x13c] sm:$0xf]
    %v501 = vunpack.c.l.s4 1983009808
    %v502 = vunpack.c.0.s8 %v501
    %v503 = vlaneseq
    %v504 = vshrl.u32 %v503, 7
    %v505 = vsub.s32 %v502, %v504
    %v506 = vrot.slane %v482, %v505
    %v508 = vshrl.u32 %v506, 16
    %v510 = vshll.u32 %v506, 16
    %v512 = vrot.slane %v510, 1
    %v513 = vor.u32 %v508, %v512
    %v531 = vunpack.c.l.b16 %v483
    %v532 = vunpack.c.l.b16 %v484
    %v533 = vunpack.c.l.b16 %v485
    %v534 = vunpack.c.l.b16 %v486
    %v535 = vunpack.c.l.b16 %v487
    %v536 = vunpack.c.l.b16 %v488
    %v537 = vunpack.c.l.b16 %v489
    %v538 = vunpack.c.l.b16 %v490
    %v539 = vunpack.c.l.b16 %v491
    %v540 = vunpack.c.l.b16 %v492
    %v541 = vunpack.c.l.b16 %v493
    %v542 = vunpack.c.l.b16 %v494
    %v543 = vunpack.c.l.b16 %v495
    %v544 = vunpack.c.l.b16 %v496
    %v545 = vunpack.c.l.b16 %v497
    %v546 = vunpack.c.l.b16 %v498
    %v547 = vpack.c.b16 %v532, %v531
    %v548 = vpack.c.b16 %v534, %v533
    %v549 = vpack.c.b16 %v536, %v535
    %v550 = vpack.c.b16 %v538, %v537
    %v551 = vpack.c.b16 %v540, %v539
    %v552 = vpack.c.b16 %v542, %v541
    %v553 = vpack.c.b16 %v544, %v543
    %v554 = vpack.c.b16 %v546, %v545
    %563 = vmatprep.subr.bf16.mxu0 0
    %564 = vmatpush1.bf16.msra.mxu0 %v547
    %565 = vmatprep.subr.bf16.mxu0 0
    %566 = vmatpush1.bf16.msra.mxu0 %v548
    %567 = vmatprep.subr.bf16.mxu0 0
    %568 = vmatpush1.bf16.msra.mxu0 %v549
    %569 = vmatprep.subr.bf16.mxu0 0
    %570 = vmatpush1.bf16.msra.mxu0 %v550
    %571 = vmatprep.subr.bf16.mxu0 0
    %572 = vmatpush1.bf16.msra.mxu0 %v551
    %573 = vmatprep.subr.bf16.mxu0 0
    %574 = vmatpush1.bf16.msra.mxu0 %v552
    %575 = vmatprep.subr.bf16.mxu0 0
    %576 = vmatpush1.bf16.msra.mxu0 %v553
    %577 = vmatprep.subr.bf16.mxu0 0
    %578 = vmatpush1.bf16.msra.mxu0 %v554
    %579 = vmatprep.subr.bf16.mxu0 0
    %580 = vmatpush1.bf16.msra.mxu0 0
    %581 = vmatprep.subr.bf16.mxu0 0
    %582 = vmatpush1.bf16.msra.mxu0 0
    %583 = vmatprep.subr.bf16.mxu0 0
    %584 = vmatpush1.bf16.msra.mxu0 0
    %585 = vmatprep.subr.bf16.mxu0 0
    %586 = vmatpush1.bf16.msra.mxu0 0
    %587 = vmatprep.subr.bf16.mxu0 0
    %588 = vmatpush1.bf16.msra.mxu0 0
    %589 = vmatprep.subr.bf16.mxu0 0
    %590 = vmatpush1.bf16.msra.mxu0 0
    %591 = vmatprep.subr.bf16.mxu0 0
    %592 = vmatpush1.bf16.msra.mxu0 0
    %593 = vmatprep.subr.bf16.mxu0 0
    %594 = vmatpush1.bf16.msra.mxu0 0
    %595 = vmatprep.mubr.bf16.mxu0 0
    %596 = vmatmul.mubr.bf16.gmra.mrb[0].mxu0 %v513
    %v597 = vpop.f32.mrb[0].mxu0
    %v598 = vadd.f32 0.0, %v597
    %v599 = vpop.f32.mrb[0].mxu0
    %v600 = vpop.f32.mrb[0].mxu0
    %v601 = vpop.f32.mrb[0].mxu0
    %602 = vdwg.mxu0
    %v603 = vadd.f32 %v481, %v598
    %v604 = vld [vmem:[%s375] sm:$0x2]
    %v605 = vld [vmem:[%s3 + $0x140] sm:$0xf]
    %v606 = vld [vmem:[%s3 + $0x144] sm:$0xf]
    %v607 = vld [vmem:[%s3 + $0x148] sm:$0xf]
    %v608 = vld [vmem:[%s3 + $0x14c] sm:$0xf]
    %v609 = vld [vmem:[%s3 + $0x150] sm:$0xf]
    %v610 = vld [vmem:[%s3 + $0x154] sm:$0xf]
    %v611 = vld [vmem:[%s3 + $0x158] sm:$0xf]
    %v612 = vld [vmem:[%s3 + $0x15c] sm:$0xf]
    %v613 = vld [vmem:[%s3 + $0x160] sm:$0xf]
    %v614 = vld [vmem:[%s3 + $0x164] sm:$0xf]
    %v615 = vld [vmem:[%s3 + $0x168] sm:$0xf]
    %v616 = vld [vmem:[%s3 + $0x16c] sm:$0xf]
    %v617 = vld [vmem:[%s3 + $0x170] sm:$0xf]
    %v618 = vld [vmem:[%s3 + $0x174] sm:$0xf]
    %v619 = vld [vmem:[%s3 + $0x178] sm:$0xf]
    %v620 = vld [vmem:[%s3 + $0x17c] sm:$0xf]
    %v623 = vunpack.c.l.s4 1983009808
    %v624 = vunpack.c.0.s8 %v623
    %v625 = vlaneseq
    %v626 = vshrl.u32 %v625, 7
    %v627 = vsub.s32 %v624, %v626
    %v628 = vrot.slane %v604, %v627
    %v629 = vrot.slane %v628, 1
    %v647 = vunpack.c.l.b16 %v605
    %v648 = vunpack.c.l.b16 %v606
    %v649 = vunpack.c.l.b16 %v607
    %v650 = vunpack.c.l.b16 %v608
    %v651 = vunpack.c.l.b16 %v609
    %v652 = vunpack.c.l.b16 %v610
    %v653 = vunpack.c.l.b16 %v611
    %v654 = vunpack.c.l.b16 %v612
    %v655 = vunpack.c.l.b16 %v613
    %v656 = vunpack.c.l.b16 %v614
    %v657 = vunpack.c.l.b16 %v615
    %v658 = vunpack.c.l.b16 %v616
    %v659 = vunpack.c.l.b16 %v617
    %v660 = vunpack.c.l.b16 %v618
    %v661 = vunpack.c.l.b16 %v619
    %v662 = vunpack.c.l.b16 %v620
    %v663 = vpack.c.b16 %v648, %v647
    %v664 = vpack.c.b16 %v650, %v649
    %v665 = vpack.c.b16 %v652, %v651
    %v666 = vpack.c.b16 %v654, %v653
    %v667 = vpack.c.b16 %v656, %v655
    %v668 = vpack.c.b16 %v658, %v657
    %v669 = vpack.c.b16 %v660, %v659
    %v670 = vpack.c.b16 %v662, %v661
    %679 = vmatprep.subr.bf16.mxu0 0
    %680 = vmatpush1.bf16.msra.mxu0 %v663
    %681 = vmatprep.subr.bf16.mxu0 0
    %682 = vmatpush1.bf16.msra.mxu0 %v664
    %683 = vmatprep.subr.bf16.mxu0 0
    %684 = vmatpush1.bf16.msra.mxu0 %v665
    %685 = vmatprep.subr.bf16.mxu0 0
    %686 = vmatpush1.bf16.msra.mxu0 %v666
    %687 = vmatprep.subr.bf16.mxu0 0
    %688 = vmatpush1.bf16.msra.mxu0 %v667
    %689 = vmatprep.subr.bf16.mxu0 0
    %690 = vmatpush1.bf16.msra.mxu0 %v668
    %691 = vmatprep.subr.bf16.mxu0 0
    %692 = vmatpush1.bf16.msra.mxu0 %v669
    %693 = vmatprep.subr.bf16.mxu0 0
    %694 = vmatpush1.bf16.msra.mxu0 %v670
    %695 = vmatprep.subr.bf16.mxu0 0
    %696 = vmatpush1.bf16.msra.mxu0 0
    %697 = vmatprep.subr.bf16.mxu0 0
    %698 = vmatpush1.bf16.msra.mxu0 0
    %699 = vmatprep.subr.bf16.mxu0 0
    %700 = vmatpush1.bf16.msra.mxu0 0
    %701 = vmatprep.subr.bf16.mxu0 0
    %702 = vmatpush1.bf16.msra.mxu0 0
    %703 = vmatprep.subr.bf16.mxu0 0
    %704 = vmatpush1.bf16.msra.mxu0 0
    %705 = vmatprep.subr.bf16.mxu0 0
    %706 = vmatpush1.bf16.msra.mxu0 0
    %707 = vmatprep.subr.bf16.mxu0 0
    %708 = vmatpush1.bf16.msra.mxu0 0
    %709 = vmatprep.subr.bf16.mxu0 0
    %710 = vmatpush1.bf16.msra.mxu0 0
    %711 = vmatprep.mubr.bf16.mxu0 0
    %712 = vmatmul.mubr.bf16.gmra.mrb[0].mxu0 %v629
    %v713 = vpop.f32.mrb[0].mxu0
    %v714 = vadd.f32 0.0, %v713
    %v715 = vpop.f32.mrb[0].mxu0
    %v716 = vpop.f32.mrb[0].mxu0
    %v717 = vpop.f32.mrb[0].mxu0
    %718 = vdwg.mxu0
    %v719 = vadd.f32 %v603, %v714
    %s720 = smul.addr %s25, 2
    %s721 = scalar_lea.vmem %s2, %s720
    %v722 = vld [vmem:[%s721] sm:$0x1]
    %v723 = vld [vmem:[%s3 + $0x180] sm:$0xf]
    %v724 = vld [vmem:[%s3 + $0x184] sm:$0xf]
    %v725 = vld [vmem:[%s3 + $0x188] sm:$0xf]
    %v726 = vld [vmem:[%s3 + $0x18c] sm:$0xf]
    %v727 = vld [vmem:[%s3 + $0x190] sm:$0xf]
    %v728 = vld [vmem:[%s3 + $0x194] sm:$0xf]
    %v729 = vld [vmem:[%s3 + $0x198] sm:$0xf]
    %v730 = vld [vmem:[%s3 + $0x19c] sm:$0xf]
    %v731 = vld [vmem:[%s3 + $0x1a0] sm:$0xf]
    %v732 = vld [vmem:[%s3 + $0x1a4] sm:$0xf]
    %v733 = vld [vmem:[%s3 + $0x1a8] sm:$0xf]
    %v734 = vld [vmem:[%s3 + $0x1ac] sm:$0xf]
    %v735 = vld [vmem:[%s3 + $0x1b0] sm:$0xf]
    %v736 = vld [vmem:[%s3 + $0x1b4] sm:$0xf]
    %v737 = vld [vmem:[%s3 + $0x1b8] sm:$0xf]
    %v738 = vld [vmem:[%s3 + $0x1bc] sm:$0xf]
    %v755 = vunpack.c.l.b16 %v723
    %v756 = vunpack.c.l.b16 %v724
    %v757 = vunpack.c.l.b16 %v725
    %v758 = vunpack.c.l.b16 %v726
    %v759 = vunpack.c.l.b16 %v727
    %v760 = vunpack.c.l.b16 %v728
    %v761 = vunpack.c.l.b16 %v729
    %v762 = vunpack.c.l.b16 %v730
    %v763 = vunpack.c.l.b16 %v731
    %v764 = vunpack.c.l.b16 %v732
    %v765 = vunpack.c.l.b16 %v733
    %v766 = vunpack.c.l.b16 %v734
    %v767 = vunpack.c.l.b16 %v735
    %v768 = vunpack.c.l.b16 %v736
    %v769 = vunpack.c.l.b16 %v737
    %v770 = vunpack.c.l.b16 %v738
    %v771 = vpack.c.b16 %v756, %v755
    %v772 = vpack.c.b16 %v758, %v757
    %v773 = vpack.c.b16 %v760, %v759
    %v774 = vpack.c.b16 %v762, %v761
    %v775 = vpack.c.b16 %v764, %v763
    %v776 = vpack.c.b16 %v766, %v765
    %v777 = vpack.c.b16 %v768, %v767
    %v778 = vpack.c.b16 %v770, %v769
    %787 = vmatprep.subr.bf16.mxu0 0
    %788 = vmatpush1.bf16.msra.mxu0 %v771
    %789 = vmatprep.subr.bf16.mxu0 0
    %790 = vmatpush1.bf16.msra.mxu0 %v772
    %791 = vmatprep.subr.bf16.mxu0 0
    %792 = vmatpush1.bf16.msra.mxu0 %v773
    %793 = vmatprep.subr.bf16.mxu0 0
    %794 = vmatpush1.bf16.msra.mxu0 %v774
    %795 = vmatprep.subr.bf16.mxu0 0
    %796 = vmatpush1.bf16.msra.mxu0 %v775
    %797 = vmatprep.subr.bf16.mxu0 0
    %798 = vmatpush1.bf16.msra.mxu0 %v776
    %799 = vmatprep.subr.bf16.mxu0 0
    %800 = vmatpush1.bf16.msra.mxu0 %v777
    %801 = vmatprep.subr.bf16.mxu0 0
    %802 = vmatpush1.bf16.msra.mxu0 %v778
    %803 = vmatprep.subr.bf16.mxu0 0
    %804 = vmatpush1.bf16.msra.mxu0 0
    %805 = vmatprep.subr.bf16.mxu0 0
    %806 = vmatpush1.bf16.msra.mxu0 0
    %807 = vmatprep.subr.bf16.mxu0 0
    %808 = vmatpush1.bf16.msra.mxu0 0
    %809 = vmatprep.subr.bf16.mxu0 0
    %810 = vmatpush1.bf16.msra.mxu0 0
    %811 = vmatprep.subr.bf16.mxu0 0
    %812 = vmatpush1.bf16.msra.mxu0 0
    %813 = vmatprep.subr.bf16.mxu0 0
    %814 = vmatpush1.bf16.msra.mxu0 0
    %815 = vmatprep.subr.bf16.mxu0 0
    %816 = vmatpush1.bf16.msra.mxu0 0
    %817 = vmatprep.subr.bf16.mxu0 0
    %818 = vmatpush1.bf16.msra.mxu0 0
    %819 = vmatprep.mubr.bf16.mxu0 0
    %820 = vmatmul.mubr.bf16.gmra.mrb[0].mxu0 %v722
    %v821 = vpop.f32.mrb[0].mxu0
    %v822 = vadd.f32 0.0, %v821
    %v823 = vpop.f32.mrb[0].mxu0
    %v824 = vpop.f32.mrb[0].mxu0
    %v825 = vpop.f32.mrb[0].mxu0
    %826 = vdwg.mxu0
    %v827 = vadd.f32 %v719, %v822
    %v828 = vld [vmem:[%s721] sm:$0x3]
    %v829 = vld [vmem:[%s3 + $0x1c0] sm:$0xf]
    %v830 = vld [vmem:[%s3 + $0x1c4] sm:$0xf]
    %v831 = vld [vmem:[%s3 + $0x1c8] sm:$0xf]
    %v832 = vld [vmem:[%s3 + $0x1cc] sm:$0xf]
    %v833 = vld [vmem:[%s3 + $0x1d0] sm:$0xf]
    %v834 = vld [vmem:[%s3 + $0x1d4] sm:$0xf]
    %v835 = vld [vmem:[%s3 + $0x1d8] sm:$0xf]
    %v836 = vld [vmem:[%s3 + $0x1dc] sm:$0xf]
    %v837 = vld [vmem:[%s3 + $0x1e0] sm:$0xf]
    %v838 = vld [vmem:[%s3 + $0x1e4] sm:$0xf]
    %v839 = vld [vmem:[%s3 + $0x1e8] sm:$0xf]
    %v840 = vld [vmem:[%s3 + $0x1ec] sm:$0xf]
    %v841 = vld [vmem:[%s3 + $0x1f0] sm:$0xf]
    %v842 = vld [vmem:[%s3 + $0x1f4] sm:$0xf]
    %v843 = vld [vmem:[%s3 + $0x1f8] sm:$0xf]
    %v844 = vld [vmem:[%s3 + $0x1fc] sm:$0xf]
    %v847 = vunpack.c.l.s4 1983009808
    %v848 = vunpack.c.0.s8 %v847
    %v849 = vlaneseq
    %v850 = vshrl.u32 %v849, 7
    %v851 = vsub.s32 %v848, %v850
    %v852 = vrot.slane %v828, %v851
    %v854 = vshrl.u32 %v852, 16
    %v856 = vshll.u32 %v852, 16
    %v858 = vrot.slane %v856, 1
    %v859 = vor.u32 %v854, %v858
    %v877 = vunpack.c.l.b16 %v829
    %v878 = vunpack.c.l.b16 %v830
    %v879 = vunpack.c.l.b16 %v831
    %v880 = vunpack.c.l.b16 %v832
    %v881 = vunpack.c.l.b16 %v833
    %v882 = vunpack.c.l.b16 %v834
    %v883 = vunpack.c.l.b16 %v835
    %v884 = vunpack.c.l.b16 %v836
    %v885 = vunpack.c.l.b16 %v837
    %v886 = vunpack.c.l.b16 %v838
    %v887 = vunpack.c.l.b16 %v839
    %v888 = vunpack.c.l.b16 %v840
    %v889 = vunpack.c.l.b16 %v841
    %v890 = vunpack.c.l.b16 %v842
    %v891 = vunpack.c.l.b16 %v843
    %v892 = vunpack.c.l.b16 %v844
    %v893 = vpack.c.b16 %v878, %v877
    %v894 = vpack.c.b16 %v880, %v879
    %v895 = vpack.c.b16 %v882, %v881
    %v896 = vpack.c.b16 %v884, %v883
    %v897 = vpack.c.b16 %v886, %v885
    %v898 = vpack.c.b16 %v888, %v887
    %v899 = vpack.c.b16 %v890, %v889
    %v900 = vpack.c.b16 %v892, %v891
    %909 = vmatprep.subr.bf16.mxu0 0
    %910 = vmatpush1.bf16.msra.mxu0 %v893
    %911 = vmatprep.subr.bf16.mxu0 0
    %912 = vmatpush1.bf16.msra.mxu0 %v894
    %913 = vmatprep.subr.bf16.mxu0 0
    %914 = vmatpush1.bf16.msra.mxu0 %v895
    %915 = vmatprep.subr.bf16.mxu0 0
    %916 = vmatpush1.bf16.msra.mxu0 %v896
    %917 = vmatprep.subr.bf16.mxu0 0
    %918 = vmatpush1.bf16.msra.mxu0 %v897
    %919 = vmatprep.subr.bf16.mxu0 0
    %920 = vmatpush1.bf16.msra.mxu0 %v898
    %921 = vmatprep.subr.bf16.mxu0 0
    %922 = vmatpush1.bf16.msra.mxu0 %v899
    %923 = vmatprep.subr.bf16.mxu0 0
    %924 = vmatpush1.bf16.msra.mxu0 %v900
    %925 = vmatprep.subr.bf16.mxu0 0
    %926 = vmatpush1.bf16.msra.mxu0 0
    %927 = vmatprep.subr.bf16.mxu0 0
    %928 = vmatpush1.bf16.msra.mxu0 0
    %929 = vmatprep.subr.bf16.mxu0 0
    %930 = vmatpush1.bf16.msra.mxu0 0
    %931 = vmatprep.subr.bf16.mxu0 0
    %932 = vmatpush1.bf16.msra.mxu0 0
    %933 = vmatprep.subr.bf16.mxu0 0
    %934 = vmatpush1.bf16.msra.mxu0 0
    %935 = vmatprep.subr.bf16.mxu0 0
    %936 = vmatpush1.bf16.msra.mxu0 0
    %937 = vmatprep.subr.bf16.mxu0 0
    %938 = vmatpush1.bf16.msra.mxu0 0
    %939 = vmatprep.subr.bf16.mxu0 0
    %940 = vmatpush1.bf16.msra.mxu0 0
    %941 = vmatprep.mubr.bf16.mxu0 0
    %942 = vmatmul.mubr.bf16.gmra.mrb[0].mxu0 %v859
    %v943 = vpop.f32.mrb[0].mxu0
    %v944 = vadd.f32 0.0, %v943
    %v945 = vpop.f32.mrb[0].mxu0
    %v946 = vpop.f32.mrb[0].mxu0
    %v947 = vpop.f32.mrb[0].mxu0
    %948 = vdwg.mxu0
    %v949 = vadd.f32 %v827, %v944
    %v950 = vld [vmem:[%s721] sm:$0x2]
    %v951 = vld [vmem:[%s3 + $0x200] sm:$0xf]
    %v952 = vld [vmem:[%s3 + $0x204] sm:$0xf]
    %v953 = vld [vmem:[%s3 + $0x208] sm:$0xf]
    %v954 = vld [vmem:[%s3 + $0x20c] sm:$0xf]
    %v955 = vld [vmem:[%s3 + $0x210] sm:$0xf]
    %v956 = vld [vmem:[%s3 + $0x214] sm:$0xf]
    %v957 = vld [vmem:[%s3 + $0x218] sm:$0xf]
    %v958 = vld [vmem:[%s3 + $0x21c] sm:$0xf]
    %v959 = vld [vmem:[%s3 + $0x220] sm:$0xf]
    %v960 = vld [vmem:[%s3 + $0x224] sm:$0xf]
    %v961 = vld [vmem:[%s3 + $0x228] sm:$0xf]
    %v962 = vld [vmem:[%s3 + $0x22c] sm:$0xf]
    %v963 = vld [vmem:[%s3 + $0x230] sm:$0xf]
    %v964 = vld [vmem:[%s3 + $0x234] sm:$0xf]
    %v965 = vld [vmem:[%s3 + $0x238] sm:$0xf]
    %v966 = vld [vmem:[%s3 + $0x23c] sm:$0xf]
    %v969 = vunpack.c.l.s4 1983009808
    %v970 = vunpack.c.0.s8 %v969
    %v971 = vlaneseq
    %v972 = vshrl.u32 %v971, 7
    %v973 = vsub.s32 %v970, %v972
    %v974 = vrot.slane %v950, %v973
    %v975 = vrot.slane %v974, 1
    %v993 = vunpack.c.l.b16 %v951
    %v994 = vunpack.c.l.b16 %v952
    %v995 = vunpack.c.l.b16 %v953
    %v996 = vunpack.c.l.b16 %v954
    %v997 = vunpack.c.l.b16 %v955
    %v998 = vunpack.c.l.b16 %v956
    %v999 = vunpack.c.l.b16 %v957
    %v1000 = vunpack.c.l.b16 %v958
    %v1001 = vunpack.c.l.b16 %v959
    %v1002 = vunpack.c.l.b16 %v960
    %v1003 = vunpack.c.l.b16 %v961
    %v1004 = vunpack.c.l.b16 %v962
    %v1005 = vunpack.c.l.b16 %v963
    %v1006 = vunpack.c.l.b16 %v964
    %v1007 = vunpack.c.l.b16 %v965
    %v1008 = vunpack.c.l.b16 %v966
    %v1009 = vpack.c.b16 %v994, %v993
    %v1010 = vpack.c.b16 %v996, %v995
    %v1011 = vpack.c.b16 %v998, %v997
    %v1012 = vpack.c.b16 %v1000, %v999
    %v1013 = vpack.c.b16 %v1002, %v1001
    %v1014 = vpack.c.b16 %v1004, %v1003
    %v1015 = vpack.c.b16 %v1006, %v1005
    %v1016 = vpack.c.b16 %v1008, %v1007
    %1025 = vmatprep.subr.bf16.mxu0 0
    %1026 = vmatpush1.bf16.msra.mxu0 %v1009
    %1027 = vmatprep.subr.bf16.mxu0 0
    %1028 = vmatpush1.bf16.msra.mxu0 %v1010
    %1029 = vmatprep.subr.bf16.mxu0 0
    %1030 = vmatpush1.bf16.msra.mxu0 %v1011
    %1031 = vmatprep.subr.bf16.mxu0 0
    %1032 = vmatpush1.bf16.msra.mxu0 %v1012
    %1033 = vmatprep.subr.bf16.mxu0 0
    %1034 = vmatpush1.bf16.msra.mxu0 %v1013
    %1035 = vmatprep.subr.bf16.mxu0 0
    %1036 = vmatpush1.bf16.msra.mxu0 %v1014
    %1037 = vmatprep.subr.bf16.mxu0 0
    %1038 = vmatpush1.bf16.msra.mxu0 %v1015
    %1039 = vmatprep.subr.bf16.mxu0 0
    %1040 = vmatpush1.bf16.msra.mxu0 %v1016
    %1041 = vmatprep.subr.bf16.mxu0 0
    %1042 = vmatpush1.bf16.msra.mxu0 0
    %1043 = vmatprep.subr.bf16.mxu0 0
    %1044 = vmatpush1.bf16.msra.mxu0 0
    %1045 = vmatprep.subr.bf16.mxu0 0
    %1046 = vmatpush1.bf16.msra.mxu0 0
    %1047 = vmatprep.subr.bf16.mxu0 0
    %1048 = vmatpush1.bf16.msra.mxu0 0
    %1049 = vmatprep.subr.bf16.mxu0 0
    %1050 = vmatpush1.bf16.msra.mxu0 0
    %1051 = vmatprep.subr.bf16.mxu0 0
    %1052 = vmatpush1.bf16.msra.mxu0 0
    %1053 = vmatprep.subr.bf16.mxu0 0
    %1054 = vmatpush1.bf16.msra.mxu0 0
    %1055 = vmatprep.subr.bf16.mxu0 0
    %1056 = vmatpush1.bf16.msra.mxu0 0
    %1057 = vmatprep.mubr.bf16.mxu0 0
    %1058 = vmatmul.mubr.bf16.gmra.mrb[0].mxu0 %v975
    %v1059 = vpop.f32.mrb[0].mxu0
    %v1060 = vadd.f32 0.0, %v1059
    %v1061 = vpop.f32.mrb[0].mxu0
    %v1062 = vpop.f32.mrb[0].mxu0
    %v1063 = vpop.f32.mrb[0].mxu0
    %1064 = vdwg.mxu0
    %v1065 = vadd.f32 %v949, %v1060
    %v1066 = vld [vmem:[%s4] sm:$0x1]
    %v1068 = vlaneseq
    %v1069 = vshrl.u32 %v1068, 7
    %v1070 = vsub.s32 0, %v1069
    %v1071 = vrot.slane %v1066, %v1070
    %v1073 = vadd.f32 %v1065, %v1071
    %vm1074 = vcmp.ge.f32.partialorder %v1073, 0.0
    %v1075 = vld [vmem:[%s5] sm:$0x1]
    %v1077 = vlaneseq
    %v1078 = vshrl.u32 %v1077, 7
    %v1079 = vsub.s32 0, %v1078
    %v1080 = vrot.slane %v1075, %v1079
    %v1082 = vmul.f32 %v1080, %v1073
    %v1083 = vsel %vm1074, %v1073, %v1082
    %v1084 = vpack.c.bf16 %v1083, %v1083
    %s1085 = scalar_lea.vmem %s6, %s25
    %1086 = vst [vmem:[%s1085] sm:$0x1] %v1084
  $region30: #{_forward_impl.15} parent=0 // loop_footer
    %s29 = sadd.s32 1, %s25
  $region31: #{_forward_impl.15} parent=0 // loop_footer_branch
    %24 = sbr.rel target = $region27
  $region32: #{_forward_impl.15} parent=0 // loop_exit
    _
  // Predicated region
  $region33: #{_forward_impl.15} parent=0 // pred_check
    _
  $region34: #{_forward_impl.15} parent=0 // pred_check_branch
    %1088 = sbr.rel (0) target = $region36
  $region35: #{_forward_impl.15} parent=0 // pred_region
    _
  $region36: #{_forward_impl.15} parent=0 // pred_fallthru
    _
  // Predicated region
  $region37: #{_forward_impl.15} parent=0 // pred_check
    _
  $region38: #{_forward_impl.15} parent=0 // pred_check_branch
    %1090 = sbr.rel (0) target = $region40
  $region39: #{_forward_impl.15} parent=0 // pred_region
    _
  $region40: #{_forward_impl.15} parent=0 // pred_fallthru
    _

</llo_original>
